<compile_context>
chip_gen: v7x
topology: tpu7x:2x2x1
jax: 0.10.0
libtpu: 0.0.40
codegen_flags: <defaults>
</compile_context>

<pallas_src>
import functools

import jax
import jax.numpy as jnp
from jax.experimental import pallas as pl
from jax.experimental.pallas import tpu as pltpu


# ----------------------------------------------------------------------------
# Fused ViT kernel
# ----------------------------------------------------------------------------
def _vit_kernel(
    patches_ref, pw_ref, pb_ref, pos_ref,
    wq_ref, bq_ref, wk_ref, bk_ref, wv_ref, bv_ref,
    wo_ref, bo_ref, g1_ref, be1_ref,
    w1_ref, b1_ref, w2_ref, b2_ref, g2_ref, be2_ref,
    lng_ref, lnb_ref, fcw_ref, fcb_ref,
    out_ref,
    seq_ref,
    *, num_heads, head_dim, seq_len, seq_pad, batch_tile,
):
    layer = pl.program_id(1)
    num_layers = pl.num_programs(1)

    def layer_norm(y, g, b):
        mu = jnp.mean(y, axis=-1, keepdims=True)
        var = jnp.mean(jnp.square(y - mu), axis=-1, keepdims=True)
        return (y - mu) * jax.lax.rsqrt(var + 1e-5) * g + b

    # ---- layer 0: build the padded token sequence for every batch row ------
    @pl.when(layer == 0)
    def _build_sequence():
        embed_dim = pw_ref.shape[1]
        pad = jnp.zeros((seq_pad - seq_len, embed_dim), jnp.float32)
        for b in range(batch_tile):
            emb = (
                jnp.dot(patches_ref[b], pw_ref[...],
                        preferred_element_type=jnp.float32)
                + pb_ref[...]
            )
            # NOTE: the reference model CONCATENATES the positional embedding
            # along the sequence axis (it does not add it) -> S = 2*P + 1.
            seq_ref[pl.ds(b * seq_pad, seq_pad), :] = jnp.concatenate(
                [emb, pos_ref[...], pad], axis=0)

    x = seq_ref[...]                                   # (batch_tile*S_pad, E)
    embed_dim = x.shape[1]

    # Additive bias masking padded key positions out of every softmax.
    col = jax.lax.broadcasted_iota(jnp.int32, (1, seq_pad), 1)
    key_bias = jnp.where(col < seq_len, 0.0, -1e30)    # (1, S_pad)

    # ---- multi-head self-attention ------------------------------------------
    # Per-head projections run on the WHOLE (batch_tile*S_pad, E) slab: one
    # full-width MXU matmul per head/tensor.  wq/wk/wv were expanded on the
    # host to per-head (E, head_dim) matrices (head selection folded into the
    # weight) and 1/sqrt(head_dim) was folded into wq/bq, so every matmul is a
    # plain 2-D dot with no lane-misaligned activation slicing.  Padded rows
    # stay finite and are masked out as keys, so real rows are exact.
    wo = wo_ref[0]                                     # (E, E)
    q_heads = [jnp.dot(x, wq_ref[0, h], preferred_element_type=jnp.float32)
               + bq_ref[0] for h in range(num_heads)]
    k_heads = [jnp.dot(x, wk_ref[0, h], preferred_element_type=jnp.float32)
               + bk_ref[0] for h in range(num_heads)]
    v_heads = [jnp.dot(x, wv_ref[0, h], preferred_element_type=jnp.float32)
               + bv_ref[0] for h in range(num_heads)]

    attn_blocks = []
    for b in range(batch_tile):
        r0 = b * seq_pad                               # static, multiple of 8
        acc = jnp.zeros((seq_pad, embed_dim), jnp.float32)
        for h in range(num_heads):
            q = q_heads[h][r0:r0 + seq_pad]
            k = k_heads[h][r0:r0 + seq_pad]
            v = v_heads[h][r0:r0 + seq_pad]
            s = jnp.dot(q, k.T, preferred_element_type=jnp.float32) + key_bias
            s = s - jnp.max(s, axis=-1, keepdims=True)
            p = jnp.exp(s)
            p = p * pl.reciprocal(jnp.sum(p, axis=-1, keepdims=True),
                                  approx=True)
            o_h = jnp.dot(p, v, preferred_element_type=jnp.float32)
            lo = h * head_dim
            acc = acc + jnp.dot(o_h, wo[lo:lo + head_dim, :],
                                preferred_element_type=jnp.float32)
        attn_blocks.append(acc)
    attn = jnp.concatenate(attn_blocks, axis=0) + bo_ref[0]

    # residual + LN1 on the whole slab  (dropout: identity in eval)
    x1 = layer_norm(x + attn, g1_ref[0], be1_ref[0])

    # MLP: Linear -> ReLU -> Linear, whole slab
    hidden = jnp.maximum(
        jnp.dot(x1, w1_ref[0], preferred_element_type=jnp.float32) + b1_ref[0],
        0.0)
    mlp = jnp.dot(hidden, w2_ref[0], preferred_element_type=jnp.float32) + b2_ref[0]

    # residual + LN2
    x2 = layer_norm(x1 + mlp, g2_ref[0], be2_ref[0])
    seq_ref[...] = x2

    # ---- last layer: final LayerNorm + classifier on the class-token rows --
    @pl.when(layer == num_layers - 1)
    def _classifier_head():
        ct = jnp.concatenate(
            [x2[b * seq_pad:b * seq_pad + 1, :] for b in range(batch_tile)],
            axis=0)                                    # (batch_tile, E)
        ct = layer_norm(ct, lng_ref[...], lnb_ref[...])
        out_ref[...] = (
            jnp.dot(ct, fcw_ref[...], preferred_element_type=jnp.float32)
            + fcb_ref[...]
        )


# ----------------------------------------------------------------------------
# pallas_call wrapper
# ----------------------------------------------------------------------------
def _layer_spec(shape):
    """BlockSpec selecting the current layer's slab of a layer-stacked array."""
    trailing = (0,) * (len(shape) - 1)
    return pl.BlockSpec((1,) + tuple(shape[1:]), lambda nb, l: (l,) + trailing)


def _shared_spec(shape):
    """BlockSpec for an array shared by every grid step (whole array)."""
    zeros = (0,) * len(shape)
    return pl.BlockSpec(tuple(shape), lambda nb, l: zeros)


def extract_patches(x_nchw, patch_size):
    B, C, H, W = x_nchw.shape
    p = patch_size
    h, w = H // p, W // p
    # 'b c (h p1) (w p2) -> b (h w) (p1 p2 c)'
    return (
        x_nchw.reshape(B, C, h, p, w, p)
        .transpose(0, 2, 4, 3, 5, 1)
        .reshape(B, h * w, p * p * C)
    )


def vit_forward(x_nchw, kp, cfg):
    B = x_nchw.shape[0]
    E, H, d = cfg["embed_dim"], cfg["num_heads"], cfg["head_dim"]
    L, C = cfg["num_layers"], cfg["num_classes"]

    patches = extract_patches(x_nchw, cfg["patch_size"])    # (B, P, patch_dim)
    _, P, patch_dim = patches.shape
    seq_len = 2 * P + 1                                     # emb (P) + pos (P+1)
    seq_pad = ((seq_len + 7) // 8) * 8                      # sublane-aligned
    c_pad = kp["fc_w_t"].shape[1]                           # lane-dense logits

    # Batch tiling: a whole tile shares one weight DMA per layer and one
    # sequence scratch.  Keep the output block sublane-legal: either the tile
    # covers the whole (padded) batch or it is a multiple of 8.
    batch_tile = B if B <= 8 else 8
    nb = (B + batch_tile - 1) // batch_tile
    b_pad = nb * batch_tile
    if b_pad != B:
        patches = jnp.pad(patches, ((0, b_pad - B), (0, 0), (0, 0)))

    kern = functools.partial(
        _vit_kernel, num_heads=H, head_dim=d,
        seq_len=seq_len, seq_pad=seq_pad, batch_tile=batch_tile)

    in_specs = [
        pl.BlockSpec((batch_tile, P, patch_dim), lambda nb_, l: (nb_, 0, 0)),
        _shared_spec(kp["pw_t"].shape),
        _shared_spec(kp["pb"].shape),
        _shared_spec(kp["pos"].shape),
        _layer_spec(kp["wq"].shape), _layer_spec(kp["bq"].shape),
        _layer_spec(kp["wk"].shape), _layer_spec(kp["bk"].shape),
        _layer_spec(kp["wv"].shape), _layer_spec(kp["bv"].shape),
        _layer_spec(kp["wo_t"].shape), _layer_spec(kp["bo"].shape),
        _layer_spec(kp["g1"].shape), _layer_spec(kp["be1"].shape),
        _layer_spec(kp["w1_t"].shape), _layer_spec(kp["b1"].shape),
        _layer_spec(kp["w2_t"].shape), _layer_spec(kp["b2"].shape),
        _layer_spec(kp["g2"].shape), _layer_spec(kp["be2"].shape),
        _shared_spec(kp["ln_g"].shape), _shared_spec(kp["ln_b"].shape),
        _shared_spec(kp["fc_w_t"].shape), _shared_spec(kp["fc_b"].shape),
    ]

    out_padded = pl.pallas_call(
        kern,
        out_shape=jax.ShapeDtypeStruct((b_pad, c_pad), jnp.float32),
        grid_spec=pltpu.PrefetchScalarGridSpec(
            num_scalar_prefetch=0,
            grid=(nb, L),
            in_specs=in_specs,
            out_specs=pl.BlockSpec((batch_tile, c_pad), lambda nb_, l: (nb_, 0)),
            scratch_shapes=[pltpu.VMEM((batch_tile * seq_pad, E), jnp.float32)],
        ),
        compiler_params=pltpu.CompilerParams(
            dimension_semantics=("parallel", "arbitrary"),
            # TODO(synk): at ViT-Base scale set vmem_limit_bytes and tile the
            # MLP F dimension with an extra "arbitrary" grid axis (64 MiB VMEM
            # on v7x); unnecessary at this configuration (<2 MiB resident).
        ),
    )(
        patches, kp["pw_t"], kp["pb"], kp["pos"],
        kp["wq"], kp["bq"], kp["wk"], kp["bk"], kp["wv"], kp["bv"],
        kp["wo_t"], kp["bo"], kp["g1"], kp["be1"],
        kp["w1_t"], kp["b1"], kp["w2_t"], kp["b2"], kp["g2"], kp["be2"],
        kp["ln_g"], kp["ln_b"], kp["fc_w_t"], kp["fc_b"],
    )
    return out_padded[:B, :C]


# ----------------------------------------------------------------------------
# Parameters (deterministic, PyTorch Linear convention: W is (out, in))
# ----------------------------------------------------------------------------
def init_linear(key, out_dim, in_dim, scale=0.05):
    kw, kb = jax.random.split(key)
    w = jax.random.normal(kw, (out_dim, in_dim), jnp.float32) * scale
    b = jax.random.normal(kb, (out_dim,), jnp.float32) * scale
    return w, b


def init_params(key, cfg):
    E, F = cfg["embed_dim"], cfg["mlp_dim"]
    d = cfg["head_dim"]
    num_patches = (cfg["image_size"] // cfg["patch_size"]) ** 2
    patch_dim = 3 * cfg["patch_size"] ** 2
    ks = jax.random.split(key, 4 + cfg["num_layers"])
    patch_w, patch_b = init_linear(ks[0], E, patch_dim)
    pos = jax.random.normal(ks[1], (1, num_patches + 1, E), jnp.float32) * 0.02
    fc_w, fc_b = init_linear(ks[2], cfg["num_classes"], E)
    layers = []
    for li in range(cfg["num_layers"]):
        lk = jax.random.split(ks[4 + li], 6)
        wq, bq = init_linear(lk[0], d, d)
        wk, bk = init_linear(lk[1], d, d)
        wv, bv = init_linear(lk[2], d, d)
        wo, bo = init_linear(lk[3], E, E)
        w1, b1 = init_linear(lk[4], F, E)
        w2, b2 = init_linear(lk[5], E, F)
        layers.append(dict(
            wq=wq, bq=bq, wk=wk, bk=bk, wv=wv, bv=bv, wo=wo, bo=bo,
            g1=jnp.ones((E,), jnp.float32), be1=jnp.zeros((E,), jnp.float32),
            w1=w1, b1=b1, w2=w2, b2=b2,
            g2=jnp.ones((E,), jnp.float32), be2=jnp.zeros((E,), jnp.float32),
        ))
    return dict(
        patch_w=patch_w, patch_b=patch_b, pos_emb=pos, layers=layers,
        ln_g=jnp.ones((E,), jnp.float32), ln_b=jnp.zeros((E,), jnp.float32),
        fc_w=fc_w, fc_b=fc_b,
    )


def prepare_kernel_params(raw, cfg):
    E, H, d = cfg["embed_dim"], cfg["num_heads"], cfg["head_dim"]
    F, C = cfg["mlp_dim"], cfg["num_classes"]
    c_pad = ((C + 127) // 128) * 128
    scale = float(d) ** -0.5

    def expand_heads(w):
        # per-head shared (d, d) torch weight -> (H, E, d): head selection is
        # folded into the weight so q_h = x @ expand[h] (plain full-width dot).
        blocks = []
        for h in range(H):
            m = jnp.zeros((E, d), jnp.float32)
            m = m.at[h * d:(h + 1) * d, :].set(w.T)
            blocks.append(m)
        return jnp.stack(blocks, axis=0)

    def stack(fn):
        return jnp.stack([fn(lp) for lp in raw["layers"]], axis=0)

    return dict(
        pw_t=raw["patch_w"].T,
        pb=raw["patch_b"].reshape(1, E),
        pos=raw["pos_emb"][0],                                     # (P+1, E)
        wq=stack(lambda lp: expand_heads(lp["wq"]) * scale),       # (L, H, E, d)
        bq=stack(lambda lp: (lp["bq"] * scale).reshape(1, d)),     # (L, 1, d)
        wk=stack(lambda lp: expand_heads(lp["wk"])),
        bk=stack(lambda lp: lp["bk"].reshape(1, d)),
        wv=stack(lambda lp: expand_heads(lp["wv"])),
        bv=stack(lambda lp: lp["bv"].reshape(1, d)),
        wo_t=stack(lambda lp: lp["wo"].T),                         # (L, E, E)
        bo=stack(lambda lp: lp["bo"].reshape(1, E)),
        g1=stack(lambda lp: lp["g1"].reshape(1, E)),
        be1=stack(lambda lp: lp["be1"].reshape(1, E)),
        w1_t=stack(lambda lp: lp["w1"].T),                         # (L, E, F)
        b1=stack(lambda lp: lp["b1"].reshape(1, F)),
        w2_t=stack(lambda lp: lp["w2"].T),                         # (L, F, E)
        b2=stack(lambda lp: lp["b2"].reshape(1, E)),
        g2=stack(lambda lp: lp["g2"].reshape(1, E)),
        be2=stack(lambda lp: lp["be2"].reshape(1, E)),
        ln_g=raw["ln_g"].reshape(1, E),
        ln_b=raw["ln_b"].reshape(1, E),
        fc_w_t=jnp.zeros((E, c_pad), jnp.float32).at[:, :C].set(raw["fc_w"].T),
        fc_b=jnp.zeros((1, c_pad), jnp.float32).at[:, :C].set(
            raw["fc_b"].reshape(1, C)),
    )


# ----------------------------------------------------------------------------
# Pure-JAX reference (mirrors the PyTorch module) for validation
# ----------------------------------------------------------------------------
def ref_ln(x, g, b):
    mu = jnp.mean(x, axis=-1, keepdims=True)
    var = jnp.mean(jnp.square(x - mu), axis=-1, keepdims=True)
    return (x - mu) / jnp.sqrt(var + 1e-5) * g + b


def ref_mha(x, lp, num_heads, head_dim):
    B, S, E = x.shape

    def split(t):
        return t.reshape(B, S, num_heads, head_dim).transpose(0, 2, 1, 3)

    q = split(x) @ lp["wq"].T + lp["bq"]
    k = split(x) @ lp["wk"].T + lp["bk"]
    v = split(x) @ lp["wv"].T + lp["bv"]
    scores = (q @ jnp.swapaxes(k, -2, -1)) / jnp.sqrt(jnp.float32(head_dim))
    attn = jax.nn.softmax(scores, axis=-1)
    out = (attn @ v).transpose(0, 2, 1, 3).reshape(B, S, E)
    return out @ lp["wo"].T + lp["bo"]


def ref_block(x, lp, num_heads, head_dim):
    a = ref_mha(x, lp, num_heads, head_dim)
    x = ref_ln(x + a, lp["g1"], lp["be1"])
    m = jnp.maximum(x @ lp["w1"].T + lp["b1"], 0.0) @ lp["w2"].T + lp["b2"]
    return ref_ln(x + m, lp["g2"], lp["be2"])


def vit_reference(x_nchw, raw, cfg):
    B = x_nchw.shape[0]
    patches = extract_patches(x_nchw, cfg["patch_size"])
    x = patches @ raw["patch_w"].T + raw["patch_b"]
    pos = jnp.broadcast_to(raw["pos_emb"], (B,) + raw["pos_emb"].shape[1:])
    x = jnp.concatenate([x, pos], axis=1)
    for lp in raw["layers"]:
        x = ref_block(x, lp, cfg["num_heads"], cfg["head_dim"])
    x = ref_ln(x, raw["ln_g"], raw["ln_b"])
    return x[:, 0] @ raw["fc_w"].T + raw["fc_b"]


# ----------------------------------------------------------------------------
if __name__ == "__main__":
    cfg = dict(
        image_size=16, patch_size=4, num_classes=10,
        embed_dim=128, num_heads=4, num_layers=2, mlp_dim=256,
    )
    cfg["head_dim"] = cfg["embed_dim"] // cfg["num_heads"]

    key = jax.random.PRNGKey(0)
    key, kx = jax.random.split(key)
    x = jax.random.normal(
        kx, (2, 3, cfg["image_size"], cfg["image_size"]), jnp.float32
    )

    raw = init_params(key, cfg)
    kparams = prepare_kernel_params(raw, cfg)

    out = jax.block_until_ready(vit_forward(x, kparams, cfg))
    ref = jax.block_until_ready(vit_reference(x, raw, cfg))

    assert out.shape == (2, cfg["num_classes"]), out.shape
    max_diff = float(jnp.max(jnp.abs(out - ref)))
    # tolerance accounts for MXU default-precision matmuls and the EUP
    # approximate reciprocal used for the softmax normalization.
    assert max_diff < 5e-3, f"mismatch vs reference: {max_diff}"
    print("KERNEL_OK")
</pallas_src>

<mosaic_0001>
module attributes {stable_mosaic.version = 11 : i64} {
  func.func @_vit_kernel(%arg0: i32, %arg1: i32, %arg2: memref<2x16x48xf32, #tpu.memory_space<vmem>>, %arg3: memref<48x128xf32, #tpu.memory_space<vmem>>, %arg4: memref<1x128xf32, #tpu.memory_space<vmem>>, %arg5: memref<17x128xf32, #tpu.memory_space<vmem>>, %arg6: memref<1x4x128x32xf32, #tpu.memory_space<vmem>>, %arg7: memref<1x1x32xf32, #tpu.memory_space<vmem>>, %arg8: memref<1x4x128x32xf32, #tpu.memory_space<vmem>>, %arg9: memref<1x1x32xf32, #tpu.memory_space<vmem>>, %arg10: memref<1x4x128x32xf32, #tpu.memory_space<vmem>>, %arg11: memref<1x1x32xf32, #tpu.memory_space<vmem>>, %arg12: memref<1x128x128xf32, #tpu.memory_space<vmem>>, %arg13: memref<1x1x128xf32, #tpu.memory_space<vmem>>, %arg14: memref<1x1x128xf32, #tpu.memory_space<vmem>>, %arg15: memref<1x1x128xf32, #tpu.memory_space<vmem>>, %arg16: memref<1x128x256xf32, #tpu.memory_space<vmem>>, %arg17: memref<1x1x256xf32, #tpu.memory_space<vmem>>, %arg18: memref<1x256x128xf32, #tpu.memory_space<vmem>>, %arg19: memref<1x1x128xf32, #tpu.memory_space<vmem>>, %arg20: memref<1x1x128xf32, #tpu.memory_space<vmem>>, %arg21: memref<1x1x128xf32, #tpu.memory_space<vmem>>, %arg22: memref<1x128xf32, #tpu.memory_space<vmem>>, %arg23: memref<1x128xf32, #tpu.memory_space<vmem>>, %arg24: memref<128x128xf32, #tpu.memory_space<vmem>>, %arg25: memref<1x128xf32, #tpu.memory_space<vmem>>, %arg26: memref<2x128xf32, #tpu.memory_space<vmem>>, %arg27: memref<80x128xf32, #tpu.memory_space<vmem>>) attributes {dimension_semantics = [#tpu.dimension_semantics<parallel>, #tpu.dimension_semantics<arbitrary>], iteration_bounds = array<i64: 1, 2>, scalar_prefetch = 0 : i64, scratch_operands = 1 : i64, tpu.core_type = #tpu.core_type<tc>, window_params = [{transform_indices = @transform_0, window_bounds = array<i64: 2, 16, 48>}, {pipeline_mode = #tpu.pipeline_mode<synchronous>, transform_indices = @transform_1, window_bounds = array<i64: 48, 128>}, {pipeline_mode = #tpu.pipeline_mode<synchronous>, transform_indices = @transform_2, window_bounds = array<i64: 1, 128>}, {pipeline_mode = #tpu.pipeline_mode<synchronous>, transform_indices = @transform_3, window_bounds = array<i64: 17, 128>}, {transform_indices = @transform_4, window_bounds = array<i64: 1, 4, 128, 32>}, {transform_indices = @transform_5, window_bounds = array<i64: 1, 1, 32>}, {transform_indices = @transform_6, window_bounds = array<i64: 1, 4, 128, 32>}, {transform_indices = @transform_7, window_bounds = array<i64: 1, 1, 32>}, {transform_indices = @transform_8, window_bounds = array<i64: 1, 4, 128, 32>}, {transform_indices = @transform_9, window_bounds = array<i64: 1, 1, 32>}, {transform_indices = @transform_10, window_bounds = array<i64: 1, 128, 128>}, {transform_indices = @transform_11, window_bounds = array<i64: 1, 1, 128>}, {transform_indices = @transform_12, window_bounds = array<i64: 1, 1, 128>}, {transform_indices = @transform_13, window_bounds = array<i64: 1, 1, 128>}, {transform_indices = @transform_14, window_bounds = array<i64: 1, 128, 256>}, {transform_indices = @transform_15, window_bounds = array<i64: 1, 1, 256>}, {transform_indices = @transform_16, window_bounds = array<i64: 1, 256, 128>}, {transform_indices = @transform_17, window_bounds = array<i64: 1, 1, 128>}, {transform_indices = @transform_18, window_bounds = array<i64: 1, 1, 128>}, {transform_indices = @transform_19, window_bounds = array<i64: 1, 1, 128>}, {pipeline_mode = #tpu.pipeline_mode<synchronous>, transform_indices = @transform_20, window_bounds = array<i64: 1, 128>}, {pipeline_mode = #tpu.pipeline_mode<synchronous>, transform_indices = @transform_21, window_bounds = array<i64: 1, 128>}, {pipeline_mode = #tpu.pipeline_mode<synchronous>, transform_indices = @transform_22, window_bounds = array<i64: 128, 128>}, {pipeline_mode = #tpu.pipeline_mode<synchronous>, transform_indices = @transform_23, window_bounds = array<i64: 1, 128>}, {transform_indices = @transform_24, window_bounds = array<i64: 2, 128>}]} {
    %c0_i32 = arith.constant 0 : i32
    %0 = arith.cmpi eq, %arg1, %c0_i32 : i32
    %1 = arith.extui %0 : i1 to i32
    %c0_i32_0 = arith.constant 0 : i32
    %2 = arith.cmpi ne, %1, %c0_i32_0 : i32
    scf.if %2 {
      %cst_184 = arith.constant 0.000000e+00 : f32
      %345 = vector.broadcast %cst_184 : f32 to vector<7x128xf32>
      %c0_185 = arith.constant 0 : index
      %c0_186 = arith.constant 0 : index
      %c0_187 = arith.constant 0 : index
      %346 = vector.load %arg2[%c0_185, %c0_186, %c0_187] : memref<2x16x48xf32, #tpu.memory_space<vmem>>, vector<1x16x48xf32>
      %347 = vector.shape_cast %346 : vector<1x16x48xf32> to vector<16x48xf32>
      %c0_188 = arith.constant 0 : index
      %c0_189 = arith.constant 0 : index
      %348 = vector.load %arg3[%c0_188, %c0_189] : memref<48x128xf32, #tpu.memory_space<vmem>>, vector<48x128xf32>
      %cst_190 = arith.constant dense<0.000000e+00> : vector<16x128xf32>
      %349 = tpu.matmul %347, %348, %cst_190 {dimension_numbers = #tpu.dot_dimension_numbers<[1], [0], [0], [1], [0, 0, 1, 1], [], []>} : vector<16x48xf32>, vector<48x128xf32>, vector<16x128xf32> -> vector<16x128xf32>
      %c0_191 = arith.constant 0 : index
      %c0_192 = arith.constant 0 : index
      %350 = vector.load %arg4[%c0_191, %c0_192] : memref<1x128xf32, #tpu.memory_space<vmem>>, vector<1x128xf32>
      %351 = vector.broadcast %350 : vector<1x128xf32> to vector<16x128xf32>
      %352 = arith.addf %349, %351 : vector<16x128xf32>
      %c0_193 = arith.constant 0 : index
      %c0_194 = arith.constant 0 : index
      %353 = vector.load %arg5[%c0_193, %c0_194] : memref<17x128xf32, #tpu.memory_space<vmem>>, vector<17x128xf32>
      %354 = tpu.concatenate %352, %353, %345 in 0 : vector<16x128xf32>, vector<17x128xf32>, vector<7x128xf32> -> vector<40x128xf32>
      %c0_195 = arith.constant 0 : index
      %c0_196 = arith.constant 0 : index
      %355 = vector.load %arg27[%c0_195, %c0_196] : memref<80x128xf32, #tpu.memory_space<vmem>>, vector<40x128xf32>
      tpu.vector_store %arg27[%c0_195, %c0_196], %354 {strides = array<i32>} : memref<80x128xf32, #tpu.memory_space<vmem>>, vector<40x128xf32>,
      %c1_197 = arith.constant 1 : index
      %c0_198 = arith.constant 0 : index
      %c0_199 = arith.constant 0 : index
      %356 = vector.load %arg2[%c1_197, %c0_198, %c0_199] : memref<2x16x48xf32, #tpu.memory_space<vmem>>, vector<1x16x48xf32>
      %357 = vector.shape_cast %356 : vector<1x16x48xf32> to vector<16x48xf32>
      %c0_200 = arith.constant 0 : index
      %c0_201 = arith.constant 0 : index
      %358 = vector.load %arg3[%c0_200, %c0_201] : memref<48x128xf32, #tpu.memory_space<vmem>>, vector<48x128xf32>
      %cst_202 = arith.constant dense<0.000000e+00> : vector<16x128xf32>
      %359 = tpu.matmul %357, %358, %cst_202 {dimension_numbers = #tpu.dot_dimension_numbers<[1], [0], [0], [1], [0, 0, 1, 1], [], []>} : vector<16x48xf32>, vector<48x128xf32>, vector<16x128xf32> -> vector<16x128xf32>
      %c0_203 = arith.constant 0 : index
      %c0_204 = arith.constant 0 : index
      %360 = vector.load %arg4[%c0_203, %c0_204] : memref<1x128xf32, #tpu.memory_space<vmem>>, vector<1x128xf32>
      %361 = vector.broadcast %360 : vector<1x128xf32> to vector<16x128xf32>
      %362 = arith.addf %359, %361 : vector<16x128xf32>
      %c0_205 = arith.constant 0 : index
      %c0_206 = arith.constant 0 : index
      %363 = vector.load %arg5[%c0_205, %c0_206] : memref<17x128xf32, #tpu.memory_space<vmem>>, vector<17x128xf32>
      %364 = tpu.concatenate %362, %363, %345 in 0 : vector<16x128xf32>, vector<17x128xf32>, vector<7x128xf32> -> vector<40x128xf32>
      %c40 = arith.constant 40 : index
      %c0_207 = arith.constant 0 : index
      %365 = vector.load %arg27[%c40, %c0_207] : memref<80x128xf32, #tpu.memory_space<vmem>>, vector<40x128xf32>
      tpu.vector_store %arg27[%c40, %c0_207], %364 {strides = array<i32>} : memref<80x128xf32, #tpu.memory_space<vmem>>, vector<40x128xf32>,
    } else {
    }
    %c0 = arith.constant 0 : index
    %c0_1 = arith.constant 0 : index
    %3 = vector.load %arg27[%c0, %c0_1] : memref<80x128xf32, #tpu.memory_space<vmem>>, vector<80x128xf32>
    %4 = tpu.iota {dimensions = array<i32: 1>} : vector<1x40xi32>
    %c33_i32 = arith.constant 33 : i32
    %5 = vector.broadcast %c33_i32 : i32 to vector<1x40xi32>
    %6 = arith.cmpi slt, %4, %5 : vector<1x40xi32>
    %cst = arith.constant 0.000000e+00 : f32
    %cst_2 = arith.constant -1.000000e+30 : f32
    %7 = vector.broadcast %cst : f32 to vector<1x40xf32>
    %8 = vector.broadcast %cst_2 : f32 to vector<1x40xf32>
    %9 = arith.select %6, %7, %8 : vector<1x40xi1>, vector<1x40xf32>
    %c0_3 = arith.constant 0 : index
    %c0_4 = arith.constant 0 : index
    %c0_5 = arith.constant 0 : index
    %10 = vector.load %arg12[%c0_3, %c0_4, %c0_5] : memref<1x128x128xf32, #tpu.memory_space<vmem>>, vector<1x128x128xf32>
    %11 = vector.shape_cast %10 : vector<1x128x128xf32> to vector<128x128xf32>
    %c0_6 = arith.constant 0 : index
    %c0_7 = arith.constant 0 : index
    %c0_8 = arith.constant 0 : index
    %c0_9 = arith.constant 0 : index
    %12 = vector.load %arg6[%c0_6, %c0_7, %c0_8, %c0_9] : memref<1x4x128x32xf32, #tpu.memory_space<vmem>>, vector<1x1x128x32xf32>
    %13 = vector.shape_cast %12 : vector<1x1x128x32xf32> to vector<128x32xf32>
    %cst_10 = arith.constant dense<0.000000e+00> : vector<80x32xf32>
    %14 = tpu.matmul %3, %13, %cst_10 {dimension_numbers = #tpu.dot_dimension_numbers<[1], [0], [0], [1], [0, 0, 1, 1], [], []>} : vector<80x128xf32>, vector<128x32xf32>, vector<80x32xf32> -> vector<80x32xf32>
    %c0_11 = arith.constant 0 : index
    %c0_12 = arith.constant 0 : index
    %c0_13 = arith.constant 0 : index
    %15 = vector.load %arg7[%c0_11, %c0_12, %c0_13] : memref<1x1x32xf32, #tpu.memory_space<vmem>>, vector<1x1x32xf32>
    %16 = vector.shape_cast %15 : vector<1x1x32xf32> to vector<1x32xf32>
    %17 = vector.broadcast %16 : vector<1x32xf32> to vector<80x32xf32>
    %18 = arith.addf %14, %17 : vector<80x32xf32>
    %c0_14 = arith.constant 0 : index
    %c1 = arith.constant 1 : index
    %c0_15 = arith.constant 0 : index
    %c0_16 = arith.constant 0 : index
    %19 = vector.load %arg6[%c0_14, %c1, %c0_15, %c0_16] : memref<1x4x128x32xf32, #tpu.memory_space<vmem>>, vector<1x1x128x32xf32>
    %20 = vector.shape_cast %19 : vector<1x1x128x32xf32> to vector<128x32xf32>
    %cst_17 = arith.constant dense<0.000000e+00> : vector<80x32xf32>
    %21 = tpu.matmul %3, %20, %cst_17 {dimension_numbers = #tpu.dot_dimension_numbers<[1], [0], [0], [1], [0, 0, 1, 1], [], []>} : vector<80x128xf32>, vector<128x32xf32>, vector<80x32xf32> -> vector<80x32xf32>
    %c0_18 = arith.constant 0 : index
    %c0_19 = arith.constant 0 : index
    %c0_20 = arith.constant 0 : index
    %22 = vector.load %arg7[%c0_18, %c0_19, %c0_20] : memref<1x1x32xf32, #tpu.memory_space<vmem>>, vector<1x1x32xf32>
    %23 = vector.shape_cast %22 : vector<1x1x32xf32> to vector<1x32xf32>
    %24 = vector.broadcast %23 : vector<1x32xf32> to vector<80x32xf32>
    %25 = arith.addf %21, %24 : vector<80x32xf32>
    %c0_21 = arith.constant 0 : index
    %c2 = arith.constant 2 : index
    %c0_22 = arith.constant 0 : index
    %c0_23 = arith.constant 0 : index
    %26 = vector.load %arg6[%c0_21, %c2, %c0_22, %c0_23] : memref<1x4x128x32xf32, #tpu.memory_space<vmem>>, vector<1x1x128x32xf32>
    %27 = vector.shape_cast %26 : vector<1x1x128x32xf32> to vector<128x32xf32>
    %cst_24 = arith.constant dense<0.000000e+00> : vector<80x32xf32>
    %28 = tpu.matmul %3, %27, %cst_24 {dimension_numbers = #tpu.dot_dimension_numbers<[1], [0], [0], [1], [0, 0, 1, 1], [], []>} : vector<80x128xf32>, vector<128x32xf32>, vector<80x32xf32> -> vector<80x32xf32>
    %c0_25 = arith.constant 0 : index
    %c0_26 = arith.constant 0 : index
    %c0_27 = arith.constant 0 : index
    %29 = vector.load %arg7[%c0_25, %c0_26, %c0_27] : memref<1x1x32xf32, #tpu.memory_space<vmem>>, vector<1x1x32xf32>
    %30 = vector.shape_cast %29 : vector<1x1x32xf32> to vector<1x32xf32>
    %31 = vector.broadcast %30 : vector<1x32xf32> to vector<80x32xf32>
    %32 = arith.addf %28, %31 : vector<80x32xf32>
    %c0_28 = arith.constant 0 : index
    %c3 = arith.constant 3 : index
    %c0_29 = arith.constant 0 : index
    %c0_30 = arith.constant 0 : index
    %33 = vector.load %arg6[%c0_28, %c3, %c0_29, %c0_30] : memref<1x4x128x32xf32, #tpu.memory_space<vmem>>, vector<1x1x128x32xf32>
    %34 = vector.shape_cast %33 : vector<1x1x128x32xf32> to vector<128x32xf32>
    %cst_31 = arith.constant dense<0.000000e+00> : vector<80x32xf32>
    %35 = tpu.matmul %3, %34, %cst_31 {dimension_numbers = #tpu.dot_dimension_numbers<[1], [0], [0], [1], [0, 0, 1, 1], [], []>} : vector<80x128xf32>, vector<128x32xf32>, vector<80x32xf32> -> vector<80x32xf32>
    %c0_32 = arith.constant 0 : index
    %c0_33 = arith.constant 0 : index
    %c0_34 = arith.constant 0 : index
    %36 = vector.load %arg7[%c0_32, %c0_33, %c0_34] : memref<1x1x32xf32, #tpu.memory_space<vmem>>, vector<1x1x32xf32>
    %37 = vector.shape_cast %36 : vector<1x1x32xf32> to vector<1x32xf32>
    %38 = vector.broadcast %37 : vector<1x32xf32> to vector<80x32xf32>
    %39 = arith.addf %35, %38 : vector<80x32xf32>
    %c0_35 = arith.constant 0 : index
    %c0_36 = arith.constant 0 : index
    %c0_37 = arith.constant 0 : index
    %c0_38 = arith.constant 0 : index
    %40 = vector.load %arg8[%c0_35, %c0_36, %c0_37, %c0_38] : memref<1x4x128x32xf32, #tpu.memory_space<vmem>>, vector<1x1x128x32xf32>
    %41 = vector.shape_cast %40 : vector<1x1x128x32xf32> to vector<128x32xf32>
    %cst_39 = arith.constant dense<0.000000e+00> : vector<80x32xf32>
    %42 = tpu.matmul %3, %41, %cst_39 {dimension_numbers = #tpu.dot_dimension_numbers<[1], [0], [0], [1], [0, 0, 1, 1], [], []>} : vector<80x128xf32>, vector<128x32xf32>, vector<80x32xf32> -> vector<80x32xf32>
    %c0_40 = arith.constant 0 : index
    %c0_41 = arith.constant 0 : index
    %c0_42 = arith.constant 0 : index
    %43 = vector.load %arg9[%c0_40, %c0_41, %c0_42] : memref<1x1x32xf32, #tpu.memory_space<vmem>>, vector<1x1x32xf32>
    %44 = vector.shape_cast %43 : vector<1x1x32xf32> to vector<1x32xf32>
    %45 = vector.broadcast %44 : vector<1x32xf32> to vector<80x32xf32>
    %46 = arith.addf %42, %45 : vector<80x32xf32>
    %c0_43 = arith.constant 0 : index
    %c1_44 = arith.constant 1 : index
    %c0_45 = arith.constant 0 : index
    %c0_46 = arith.constant 0 : index
    %47 = vector.load %arg8[%c0_43, %c1_44, %c0_45, %c0_46] : memref<1x4x128x32xf32, #tpu.memory_space<vmem>>, vector<1x1x128x32xf32>
    %48 = vector.shape_cast %47 : vector<1x1x128x32xf32> to vector<128x32xf32>
    %cst_47 = arith.constant dense<0.000000e+00> : vector<80x32xf32>
    %49 = tpu.matmul %3, %48, %cst_47 {dimension_numbers = #tpu.dot_dimension_numbers<[1], [0], [0], [1], [0, 0, 1, 1], [], []>} : vector<80x128xf32>, vector<128x32xf32>, vector<80x32xf32> -> vector<80x32xf32>
    %c0_48 = arith.constant 0 : index
    %c0_49 = arith.constant 0 : index
    %c0_50 = arith.constant 0 : index
    %50 = vector.load %arg9[%c0_48, %c0_49, %c0_50] : memref<1x1x32xf32, #tpu.memory_space<vmem>>, vector<1x1x32xf32>
    %51 = vector.shape_cast %50 : vector<1x1x32xf32> to vector<1x32xf32>
    %52 = vector.broadcast %51 : vector<1x32xf32> to vector<80x32xf32>
    %53 = arith.addf %49, %52 : vector<80x32xf32>
    %c0_51 = arith.constant 0 : index
    %c2_52 = arith.constant 2 : index
    %c0_53 = arith.constant 0 : index
    %c0_54 = arith.constant 0 : index
    %54 = vector.load %arg8[%c0_51, %c2_52, %c0_53, %c0_54] : memref<1x4x128x32xf32, #tpu.memory_space<vmem>>, vector<1x1x128x32xf32>
    %55 = vector.shape_cast %54 : vector<1x1x128x32xf32> to vector<128x32xf32>
    %cst_55 = arith.constant dense<0.000000e+00> : vector<80x32xf32>
    %56 = tpu.matmul %3, %55, %cst_55 {dimension_numbers = #tpu.dot_dimension_numbers<[1], [0], [0], [1], [0, 0, 1, 1], [], []>} : vector<80x128xf32>, vector<128x32xf32>, vector<80x32xf32> -> vector<80x32xf32>
    %c0_56 = arith.constant 0 : index
    %c0_57 = arith.constant 0 : index
    %c0_58 = arith.constant 0 : index
    %57 = vector.load %arg9[%c0_56, %c0_57, %c0_58] : memref<1x1x32xf32, #tpu.memory_space<vmem>>, vector<1x1x32xf32>
    %58 = vector.shape_cast %57 : vector<1x1x32xf32> to vector<1x32xf32>
    %59 = vector.broadcast %58 : vector<1x32xf32> to vector<80x32xf32>
    %60 = arith.addf %56, %59 : vector<80x32xf32>
    %c0_59 = arith.constant 0 : index
    %c3_60 = arith.constant 3 : index
    %c0_61 = arith.constant 0 : index
    %c0_62 = arith.constant 0 : index
    %61 = vector.load %arg8[%c0_59, %c3_60, %c0_61, %c0_62] : memref<1x4x128x32xf32, #tpu.memory_space<vmem>>, vector<1x1x128x32xf32>
    %62 = vector.shape_cast %61 : vector<1x1x128x32xf32> to vector<128x32xf32>
    %cst_63 = arith.constant dense<0.000000e+00> : vector<80x32xf32>
    %63 = tpu.matmul %3, %62, %cst_63 {dimension_numbers = #tpu.dot_dimension_numbers<[1], [0], [0], [1], [0, 0, 1, 1], [], []>} : vector<80x128xf32>, vector<128x32xf32>, vector<80x32xf32> -> vector<80x32xf32>
    %c0_64 = arith.constant 0 : index
    %c0_65 = arith.constant 0 : index
    %c0_66 = arith.constant 0 : index
    %64 = vector.load %arg9[%c0_64, %c0_65, %c0_66] : memref<1x1x32xf32, #tpu.memory_space<vmem>>, vector<1x1x32xf32>
    %65 = vector.shape_cast %64 : vector<1x1x32xf32> to vector<1x32xf32>
    %66 = vector.broadcast %65 : vector<1x32xf32> to vector<80x32xf32>
    %67 = arith.addf %63, %66 : vector<80x32xf32>
    %c0_67 = arith.constant 0 : index
    %c0_68 = arith.constant 0 : index
    %c0_69 = arith.constant 0 : index
    %c0_70 = arith.constant 0 : index
    %68 = vector.load %arg10[%c0_67, %c0_68, %c0_69, %c0_70] : memref<1x4x128x32xf32, #tpu.memory_space<vmem>>, vector<1x1x128x32xf32>
    %69 = vector.shape_cast %68 : vector<1x1x128x32xf32> to vector<128x32xf32>
    %cst_71 = arith.constant dense<0.000000e+00> : vector<80x32xf32>
    %70 = tpu.matmul %3, %69, %cst_71 {dimension_numbers = #tpu.dot_dimension_numbers<[1], [0], [0], [1], [0, 0, 1, 1], [], []>} : vector<80x128xf32>, vector<128x32xf32>, vector<80x32xf32> -> vector<80x32xf32>
    %c0_72 = arith.constant 0 : index
    %c0_73 = arith.constant 0 : index
    %c0_74 = arith.constant 0 : index
    %71 = vector.load %arg11[%c0_72, %c0_73, %c0_74] : memref<1x1x32xf32, #tpu.memory_space<vmem>>, vector<1x1x32xf32>
    %72 = vector.shape_cast %71 : vector<1x1x32xf32> to vector<1x32xf32>
    %73 = vector.broadcast %72 : vector<1x32xf32> to vector<80x32xf32>
    %74 = arith.addf %70, %73 : vector<80x32xf32>
    %c0_75 = arith.constant 0 : index
    %c1_76 = arith.constant 1 : index
    %c0_77 = arith.constant 0 : index
    %c0_78 = arith.constant 0 : index
    %75 = vector.load %arg10[%c0_75, %c1_76, %c0_77, %c0_78] : memref<1x4x128x32xf32, #tpu.memory_space<vmem>>, vector<1x1x128x32xf32>
    %76 = vector.shape_cast %75 : vector<1x1x128x32xf32> to vector<128x32xf32>
    %cst_79 = arith.constant dense<0.000000e+00> : vector<80x32xf32>
    %77 = tpu.matmul %3, %76, %cst_79 {dimension_numbers = #tpu.dot_dimension_numbers<[1], [0], [0], [1], [0, 0, 1, 1], [], []>} : vector<80x128xf32>, vector<128x32xf32>, vector<80x32xf32> -> vector<80x32xf32>
    %c0_80 = arith.constant 0 : index
    %c0_81 = arith.constant 0 : index
    %c0_82 = arith.constant 0 : index
    %78 = vector.load %arg11[%c0_80, %c0_81, %c0_82] : memref<1x1x32xf32, #tpu.memory_space<vmem>>, vector<1x1x32xf32>
    %79 = vector.shape_cast %78 : vector<1x1x32xf32> to vector<1x32xf32>
    %80 = vector.broadcast %79 : vector<1x32xf32> to vector<80x32xf32>
    %81 = arith.addf %77, %80 : vector<80x32xf32>
    %c0_83 = arith.constant 0 : index
    %c2_84 = arith.constant 2 : index
    %c0_85 = arith.constant 0 : index
    %c0_86 = arith.constant 0 : index
    %82 = vector.load %arg10[%c0_83, %c2_84, %c0_85, %c0_86] : memref<1x4x128x32xf32, #tpu.memory_space<vmem>>, vector<1x1x128x32xf32>
    %83 = vector.shape_cast %82 : vector<1x1x128x32xf32> to vector<128x32xf32>
    %cst_87 = arith.constant dense<0.000000e+00> : vector<80x32xf32>
    %84 = tpu.matmul %3, %83, %cst_87 {dimension_numbers = #tpu.dot_dimension_numbers<[1], [0], [0], [1], [0, 0, 1, 1], [], []>} : vector<80x128xf32>, vector<128x32xf32>, vector<80x32xf32> -> vector<80x32xf32>
    %c0_88 = arith.constant 0 : index
    %c0_89 = arith.constant 0 : index
    %c0_90 = arith.constant 0 : index
    %85 = vector.load %arg11[%c0_88, %c0_89, %c0_90] : memref<1x1x32xf32, #tpu.memory_space<vmem>>, vector<1x1x32xf32>
    %86 = vector.shape_cast %85 : vector<1x1x32xf32> to vector<1x32xf32>
    %87 = vector.broadcast %86 : vector<1x32xf32> to vector<80x32xf32>
    %88 = arith.addf %84, %87 : vector<80x32xf32>
    %c0_91 = arith.constant 0 : index
    %c3_92 = arith.constant 3 : index
    %c0_93 = arith.constant 0 : index
    %c0_94 = arith.constant 0 : index
    %89 = vector.load %arg10[%c0_91, %c3_92, %c0_93, %c0_94] : memref<1x4x128x32xf32, #tpu.memory_space<vmem>>, vector<1x1x128x32xf32>
    %90 = vector.shape_cast %89 : vector<1x1x128x32xf32> to vector<128x32xf32>
    %cst_95 = arith.constant dense<0.000000e+00> : vector<80x32xf32>
    %91 = tpu.matmul %3, %90, %cst_95 {dimension_numbers = #tpu.dot_dimension_numbers<[1], [0], [0], [1], [0, 0, 1, 1], [], []>} : vector<80x128xf32>, vector<128x32xf32>, vector<80x32xf32> -> vector<80x32xf32>
    %c0_96 = arith.constant 0 : index
    %c0_97 = arith.constant 0 : index
    %c0_98 = arith.constant 0 : index
    %92 = vector.load %arg11[%c0_96, %c0_97, %c0_98] : memref<1x1x32xf32, #tpu.memory_space<vmem>>, vector<1x1x32xf32>
    %93 = vector.shape_cast %92 : vector<1x1x32xf32> to vector<1x32xf32>
    %94 = vector.broadcast %93 : vector<1x32xf32> to vector<80x32xf32>
    %95 = arith.addf %91, %94 : vector<80x32xf32>
    %cst_99 = arith.constant 0.000000e+00 : f32
    %96 = vector.broadcast %cst_99 : f32 to vector<40x128xf32>
    %97 = vector.extract_strided_slice %18 {offsets = [0, 0], sizes = [40, 32], strides = [1, 1]} : vector<80x32xf32> to vector<40x32xf32>
    %98 = vector.extract_strided_slice %46 {offsets = [0, 0], sizes = [40, 32], strides = [1, 1]} : vector<80x32xf32> to vector<40x32xf32>
    %99 = vector.extract_strided_slice %74 {offsets = [0, 0], sizes = [40, 32], strides = [1, 1]} : vector<80x32xf32> to vector<40x32xf32>
    %100 = tpu.transpose %98, [1, 0] : vector<40x32xf32> -> vector<32x40xf32>
    %cst_100 = arith.constant dense<0.000000e+00> : vector<40x40xf32>
    %101 = tpu.matmul %97, %100, %cst_100 {dimension_numbers = #tpu.dot_dimension_numbers<[1], [0], [0], [1], [0, 0, 1, 1], [], []>} : vector<40x32xf32>, vector<32x40xf32>, vector<40x40xf32> -> vector<40x40xf32>
    %102 = vector.broadcast %9 : vector<1x40xf32> to vector<40x40xf32>
    %103 = arith.addf %101, %102 : vector<40x40xf32>
    %cst_101 = arith.constant dense<0xFF800000> : vector<40xf32>
    %104 = vector.multi_reduction <maximumf>, %103, %cst_101 [1] : vector<40x40xf32> to vector<40xf32>
    %105 = vector.shape_cast %104 : vector<40xf32> to vector<40x1xf32>
    %106 = vector.broadcast %105 : vector<40x1xf32> to vector<40x40xf32>
    %107 = arith.subf %103, %106 : vector<40x40xf32>
    %108 = math.exp %107 : vector<40x40xf32>
    %cst_102 = arith.constant dense<0.000000e+00> : vector<40xf32>
    %109 = vector.multi_reduction <add>, %108, %cst_102 [1] : vector<40x40xf32> to vector<40xf32>
    %110 = vector.shape_cast %109 : vector<40xf32> to vector<40x1xf32>
    %111 = tpu.reciprocal %110 {approx = true} : vector<40x1xf32> -> vector<40x1xf32>
    %112 = vector.broadcast %111 : vector<40x1xf32> to vector<40x40xf32>
    %113 = arith.mulf %108, %112 : vector<40x40xf32>
    %cst_103 = arith.constant dense<0.000000e+00> : vector<40x32xf32>
    %114 = tpu.matmul %113, %99, %cst_103 {dimension_numbers = #tpu.dot_dimension_numbers<[1], [0], [0], [1], [0, 0, 1, 1], [], []>} : vector<40x40xf32>, vector<40x32xf32>, vector<40x32xf32> -> vector<40x32xf32>
    %115 = vector.extract_strided_slice %11 {offsets = [0, 0], sizes = [32, 128], strides = [1, 1]} : vector<128x128xf32> to vector<32x128xf32>
    %cst_104 = arith.constant dense<0.000000e+00> : vector<40x128xf32>
    %116 = tpu.matmul %114, %115, %cst_104 {dimension_numbers = #tpu.dot_dimension_numbers<[1], [0], [0], [1], [0, 0, 1, 1], [], []>} : vector<40x32xf32>, vector<32x128xf32>, vector<40x128xf32> -> vector<40x128xf32>
    %117 = arith.addf %96, %116 : vector<40x128xf32>
    %118 = vector.extract_strided_slice %25 {offsets = [0, 0], sizes = [40, 32], strides = [1, 1]} : vector<80x32xf32> to vector<40x32xf32>
    %119 = vector.extract_strided_slice %53 {offsets = [0, 0], sizes = [40, 32], strides = [1, 1]} : vector<80x32xf32> to vector<40x32xf32>
    %120 = vector.extract_strided_slice %81 {offsets = [0, 0], sizes = [40, 32], strides = [1, 1]} : vector<80x32xf32> to vector<40x32xf32>
    %121 = tpu.transpose %119, [1, 0] : vector<40x32xf32> -> vector<32x40xf32>
    %cst_105 = arith.constant dense<0.000000e+00> : vector<40x40xf32>
    %122 = tpu.matmul %118, %121, %cst_105 {dimension_numbers = #tpu.dot_dimension_numbers<[1], [0], [0], [1], [0, 0, 1, 1], [], []>} : vector<40x32xf32>, vector<32x40xf32>, vector<40x40xf32> -> vector<40x40xf32>
    %123 = vector.broadcast %9 : vector<1x40xf32> to vector<40x40xf32>
    %124 = arith.addf %122, %123 : vector<40x40xf32>
    %cst_106 = arith.constant dense<0xFF800000> : vector<40xf32>
    %125 = vector.multi_reduction <maximumf>, %124, %cst_106 [1] : vector<40x40xf32> to vector<40xf32>
    %126 = vector.shape_cast %125 : vector<40xf32> to vector<40x1xf32>
    %127 = vector.broadcast %126 : vector<40x1xf32> to vector<40x40xf32>
    %128 = arith.subf %124, %127 : vector<40x40xf32>
    %129 = math.exp %128 : vector<40x40xf32>
    %cst_107 = arith.constant dense<0.000000e+00> : vector<40xf32>
    %130 = vector.multi_reduction <add>, %129, %cst_107 [1] : vector<40x40xf32> to vector<40xf32>
    %131 = vector.shape_cast %130 : vector<40xf32> to vector<40x1xf32>
    %132 = tpu.reciprocal %131 {approx = true} : vector<40x1xf32> -> vector<40x1xf32>
    %133 = vector.broadcast %132 : vector<40x1xf32> to vector<40x40xf32>
    %134 = arith.mulf %129, %133 : vector<40x40xf32>
    %cst_108 = arith.constant dense<0.000000e+00> : vector<40x32xf32>
    %135 = tpu.matmul %134, %120, %cst_108 {dimension_numbers = #tpu.dot_dimension_numbers<[1], [0], [0], [1], [0, 0, 1, 1], [], []>} : vector<40x40xf32>, vector<40x32xf32>, vector<40x32xf32> -> vector<40x32xf32>
    %136 = vector.extract_strided_slice %11 {offsets = [32, 0], sizes = [32, 128], strides = [1, 1]} : vector<128x128xf32> to vector<32x128xf32>
    %cst_109 = arith.constant dense<0.000000e+00> : vector<40x128xf32>
    %137 = tpu.matmul %135, %136, %cst_109 {dimension_numbers = #tpu.dot_dimension_numbers<[1], [0], [0], [1], [0, 0, 1, 1], [], []>} : vector<40x32xf32>, vector<32x128xf32>, vector<40x128xf32> -> vector<40x128xf32>
    %138 = arith.addf %117, %137 : vector<40x128xf32>
    %139 = vector.extract_strided_slice %32 {offsets = [0, 0], sizes = [40, 32], strides = [1, 1]} : vector<80x32xf32> to vector<40x32xf32>
    %140 = vector.extract_strided_slice %60 {offsets = [0, 0], sizes = [40, 32], strides = [1, 1]} : vector<80x32xf32> to vector<40x32xf32>
    %141 = vector.extract_strided_slice %88 {offsets = [0, 0], sizes = [40, 32], strides = [1, 1]} : vector<80x32xf32> to vector<40x32xf32>
    %142 = tpu.transpose %140, [1, 0] : vector<40x32xf32> -> vector<32x40xf32>
    %cst_110 = arith.constant dense<0.000000e+00> : vector<40x40xf32>
    %143 = tpu.matmul %139, %142, %cst_110 {dimension_numbers = #tpu.dot_dimension_numbers<[1], [0], [0], [1], [0, 0, 1, 1], [], []>} : vector<40x32xf32>, vector<32x40xf32>, vector<40x40xf32> -> vector<40x40xf32>
    %144 = vector.broadcast %9 : vector<1x40xf32> to vector<40x40xf32>
    %145 = arith.addf %143, %144 : vector<40x40xf32>
    %cst_111 = arith.constant dense<0xFF800000> : vector<40xf32>
    %146 = vector.multi_reduction <maximumf>, %145, %cst_111 [1] : vector<40x40xf32> to vector<40xf32>
    %147 = vector.shape_cast %146 : vector<40xf32> to vector<40x1xf32>
    %148 = vector.broadcast %147 : vector<40x1xf32> to vector<40x40xf32>
    %149 = arith.subf %145, %148 : vector<40x40xf32>
    %150 = math.exp %149 : vector<40x40xf32>
    %cst_112 = arith.constant dense<0.000000e+00> : vector<40xf32>
    %151 = vector.multi_reduction <add>, %150, %cst_112 [1] : vector<40x40xf32> to vector<40xf32>
    %152 = vector.shape_cast %151 : vector<40xf32> to vector<40x1xf32>
    %153 = tpu.reciprocal %152 {approx = true} : vector<40x1xf32> -> vector<40x1xf32>
    %154 = vector.broadcast %153 : vector<40x1xf32> to vector<40x40xf32>
    %155 = arith.mulf %150, %154 : vector<40x40xf32>
    %cst_113 = arith.constant dense<0.000000e+00> : vector<40x32xf32>
    %156 = tpu.matmul %155, %141, %cst_113 {dimension_numbers = #tpu.dot_dimension_numbers<[1], [0], [0], [1], [0, 0, 1, 1], [], []>} : vector<40x40xf32>, vector<40x32xf32>, vector<40x32xf32> -> vector<40x32xf32>
    %157 = vector.extract_strided_slice %11 {offsets = [64, 0], sizes = [32, 128], strides = [1, 1]} : vector<128x128xf32> to vector<32x128xf32>
    %cst_114 = arith.constant dense<0.000000e+00> : vector<40x128xf32>
    %158 = tpu.matmul %156, %157, %cst_114 {dimension_numbers = #tpu.dot_dimension_numbers<[1], [0], [0], [1], [0, 0, 1, 1], [], []>} : vector<40x32xf32>, vector<32x128xf32>, vector<40x128xf32> -> vector<40x128xf32>
    %159 = arith.addf %138, %158 : vector<40x128xf32>
    %160 = vector.extract_strided_slice %39 {offsets = [0, 0], sizes = [40, 32], strides = [1, 1]} : vector<80x32xf32> to vector<40x32xf32>
    %161 = vector.extract_strided_slice %67 {offsets = [0, 0], sizes = [40, 32], strides = [1, 1]} : vector<80x32xf32> to vector<40x32xf32>
    %162 = vector.extract_strided_slice %95 {offsets = [0, 0], sizes = [40, 32], strides = [1, 1]} : vector<80x32xf32> to vector<40x32xf32>
    %163 = tpu.transpose %161, [1, 0] : vector<40x32xf32> -> vector<32x40xf32>
    %cst_115 = arith.constant dense<0.000000e+00> : vector<40x40xf32>
    %164 = tpu.matmul %160, %163, %cst_115 {dimension_numbers = #tpu.dot_dimension_numbers<[1], [0], [0], [1], [0, 0, 1, 1], [], []>} : vector<40x32xf32>, vector<32x40xf32>, vector<40x40xf32> -> vector<40x40xf32>
    %165 = vector.broadcast %9 : vector<1x40xf32> to vector<40x40xf32>
    %166 = arith.addf %164, %165 : vector<40x40xf32>
    %cst_116 = arith.constant dense<0xFF800000> : vector<40xf32>
    %167 = vector.multi_reduction <maximumf>, %166, %cst_116 [1] : vector<40x40xf32> to vector<40xf32>
    %168 = vector.shape_cast %167 : vector<40xf32> to vector<40x1xf32>
    %169 = vector.broadcast %168 : vector<40x1xf32> to vector<40x40xf32>
    %170 = arith.subf %166, %169 : vector<40x40xf32>
    %171 = math.exp %170 : vector<40x40xf32>
    %cst_117 = arith.constant dense<0.000000e+00> : vector<40xf32>
    %172 = vector.multi_reduction <add>, %171, %cst_117 [1] : vector<40x40xf32> to vector<40xf32>
    %173 = vector.shape_cast %172 : vector<40xf32> to vector<40x1xf32>
    %174 = tpu.reciprocal %173 {approx = true} : vector<40x1xf32> -> vector<40x1xf32>
    %175 = vector.broadcast %174 : vector<40x1xf32> to vector<40x40xf32>
    %176 = arith.mulf %171, %175 : vector<40x40xf32>
    %cst_118 = arith.constant dense<0.000000e+00> : vector<40x32xf32>
    %177 = tpu.matmul %176, %162, %cst_118 {dimension_numbers = #tpu.dot_dimension_numbers<[1], [0], [0], [1], [0, 0, 1, 1], [], []>} : vector<40x40xf32>, vector<40x32xf32>, vector<40x32xf32> -> vector<40x32xf32>
    %178 = vector.extract_strided_slice %11 {offsets = [96, 0], sizes = [32, 128], strides = [1, 1]} : vector<128x128xf32> to vector<32x128xf32>
    %cst_119 = arith.constant dense<0.000000e+00> : vector<40x128xf32>
    %179 = tpu.matmul %177, %178, %cst_119 {dimension_numbers = #tpu.dot_dimension_numbers<[1], [0], [0], [1], [0, 0, 1, 1], [], []>} : vector<40x32xf32>, vector<32x128xf32>, vector<40x128xf32> -> vector<40x128xf32>
    %180 = arith.addf %159, %179 : vector<40x128xf32>
    %cst_120 = arith.constant 0.000000e+00 : f32
    %181 = vector.broadcast %cst_120 : f32 to vector<40x128xf32>
    %182 = vector.extract_strided_slice %18 {offsets = [40, 0], sizes = [40, 32], strides = [1, 1]} : vector<80x32xf32> to vector<40x32xf32>
    %183 = vector.extract_strided_slice %46 {offsets = [40, 0], sizes = [40, 32], strides = [1, 1]} : vector<80x32xf32> to vector<40x32xf32>
    %184 = vector.extract_strided_slice %74 {offsets = [40, 0], sizes = [40, 32], strides = [1, 1]} : vector<80x32xf32> to vector<40x32xf32>
    %185 = tpu.transpose %183, [1, 0] : vector<40x32xf32> -> vector<32x40xf32>
    %cst_121 = arith.constant dense<0.000000e+00> : vector<40x40xf32>
    %186 = tpu.matmul %182, %185, %cst_121 {dimension_numbers = #tpu.dot_dimension_numbers<[1], [0], [0], [1], [0, 0, 1, 1], [], []>} : vector<40x32xf32>, vector<32x40xf32>, vector<40x40xf32> -> vector<40x40xf32>
    %187 = vector.broadcast %9 : vector<1x40xf32> to vector<40x40xf32>
    %188 = arith.addf %186, %187 : vector<40x40xf32>
    %cst_122 = arith.constant dense<0xFF800000> : vector<40xf32>
    %189 = vector.multi_reduction <maximumf>, %188, %cst_122 [1] : vector<40x40xf32> to vector<40xf32>
    %190 = vector.shape_cast %189 : vector<40xf32> to vector<40x1xf32>
    %191 = vector.broadcast %190 : vector<40x1xf32> to vector<40x40xf32>
    %192 = arith.subf %188, %191 : vector<40x40xf32>
    %193 = math.exp %192 : vector<40x40xf32>
    %cst_123 = arith.constant dense<0.000000e+00> : vector<40xf32>
    %194 = vector.multi_reduction <add>, %193, %cst_123 [1] : vector<40x40xf32> to vector<40xf32>
    %195 = vector.shape_cast %194 : vector<40xf32> to vector<40x1xf32>
    %196 = tpu.reciprocal %195 {approx = true} : vector<40x1xf32> -> vector<40x1xf32>
    %197 = vector.broadcast %196 : vector<40x1xf32> to vector<40x40xf32>
    %198 = arith.mulf %193, %197 : vector<40x40xf32>
    %cst_124 = arith.constant dense<0.000000e+00> : vector<40x32xf32>
    %199 = tpu.matmul %198, %184, %cst_124 {dimension_numbers = #tpu.dot_dimension_numbers<[1], [0], [0], [1], [0, 0, 1, 1], [], []>} : vector<40x40xf32>, vector<40x32xf32>, vector<40x32xf32> -> vector<40x32xf32>
    %200 = vector.extract_strided_slice %11 {offsets = [0, 0], sizes = [32, 128], strides = [1, 1]} : vector<128x128xf32> to vector<32x128xf32>
    %cst_125 = arith.constant dense<0.000000e+00> : vector<40x128xf32>
    %201 = tpu.matmul %199, %200, %cst_125 {dimension_numbers = #tpu.dot_dimension_numbers<[1], [0], [0], [1], [0, 0, 1, 1], [], []>} : vector<40x32xf32>, vector<32x128xf32>, vector<40x128xf32> -> vector<40x128xf32>
    %202 = arith.addf %181, %201 : vector<40x128xf32>
    %203 = vector.extract_strided_slice %25 {offsets = [40, 0], sizes = [40, 32], strides = [1, 1]} : vector<80x32xf32> to vector<40x32xf32>
    %204 = vector.extract_strided_slice %53 {offsets = [40, 0], sizes = [40, 32], strides = [1, 1]} : vector<80x32xf32> to vector<40x32xf32>
    %205 = vector.extract_strided_slice %81 {offsets = [40, 0], sizes = [40, 32], strides = [1, 1]} : vector<80x32xf32> to vector<40x32xf32>
    %206 = tpu.transpose %204, [1, 0] : vector<40x32xf32> -> vector<32x40xf32>
    %cst_126 = arith.constant dense<0.000000e+00> : vector<40x40xf32>
    %207 = tpu.matmul %203, %206, %cst_126 {dimension_numbers = #tpu.dot_dimension_numbers<[1], [0], [0], [1], [0, 0, 1, 1], [], []>} : vector<40x32xf32>, vector<32x40xf32>, vector<40x40xf32> -> vector<40x40xf32>
    %208 = vector.broadcast %9 : vector<1x40xf32> to vector<40x40xf32>
    %209 = arith.addf %207, %208 : vector<40x40xf32>
    %cst_127 = arith.constant dense<0xFF800000> : vector<40xf32>
    %210 = vector.multi_reduction <maximumf>, %209, %cst_127 [1] : vector<40x40xf32> to vector<40xf32>
    %211 = vector.shape_cast %210 : vector<40xf32> to vector<40x1xf32>
    %212 = vector.broadcast %211 : vector<40x1xf32> to vector<40x40xf32>
    %213 = arith.subf %209, %212 : vector<40x40xf32>
    %214 = math.exp %213 : vector<40x40xf32>
    %cst_128 = arith.constant dense<0.000000e+00> : vector<40xf32>
    %215 = vector.multi_reduction <add>, %214, %cst_128 [1] : vector<40x40xf32> to vector<40xf32>
    %216 = vector.shape_cast %215 : vector<40xf32> to vector<40x1xf32>
    %217 = tpu.reciprocal %216 {approx = true} : vector<40x1xf32> -> vector<40x1xf32>
    %218 = vector.broadcast %217 : vector<40x1xf32> to vector<40x40xf32>
    %219 = arith.mulf %214, %218 : vector<40x40xf32>
    %cst_129 = arith.constant dense<0.000000e+00> : vector<40x32xf32>
    %220 = tpu.matmul %219, %205, %cst_129 {dimension_numbers = #tpu.dot_dimension_numbers<[1], [0], [0], [1], [0, 0, 1, 1], [], []>} : vector<40x40xf32>, vector<40x32xf32>, vector<40x32xf32> -> vector<40x32xf32>
    %221 = vector.extract_strided_slice %11 {offsets = [32, 0], sizes = [32, 128], strides = [1, 1]} : vector<128x128xf32> to vector<32x128xf32>
    %cst_130 = arith.constant dense<0.000000e+00> : vector<40x128xf32>
    %222 = tpu.matmul %220, %221, %cst_130 {dimension_numbers = #tpu.dot_dimension_numbers<[1], [0], [0], [1], [0, 0, 1, 1], [], []>} : vector<40x32xf32>, vector<32x128xf32>, vector<40x128xf32> -> vector<40x128xf32>
    %223 = arith.addf %202, %222 : vector<40x128xf32>
    %224 = vector.extract_strided_slice %32 {offsets = [40, 0], sizes = [40, 32], strides = [1, 1]} : vector<80x32xf32> to vector<40x32xf32>
    %225 = vector.extract_strided_slice %60 {offsets = [40, 0], sizes = [40, 32], strides = [1, 1]} : vector<80x32xf32> to vector<40x32xf32>
    %226 = vector.extract_strided_slice %88 {offsets = [40, 0], sizes = [40, 32], strides = [1, 1]} : vector<80x32xf32> to vector<40x32xf32>
    %227 = tpu.transpose %225, [1, 0] : vector<40x32xf32> -> vector<32x40xf32>
    %cst_131 = arith.constant dense<0.000000e+00> : vector<40x40xf32>
    %228 = tpu.matmul %224, %227, %cst_131 {dimension_numbers = #tpu.dot_dimension_numbers<[1], [0], [0], [1], [0, 0, 1, 1], [], []>} : vector<40x32xf32>, vector<32x40xf32>, vector<40x40xf32> -> vector<40x40xf32>
    %229 = vector.broadcast %9 : vector<1x40xf32> to vector<40x40xf32>
    %230 = arith.addf %228, %229 : vector<40x40xf32>
    %cst_132 = arith.constant dense<0xFF800000> : vector<40xf32>
    %231 = vector.multi_reduction <maximumf>, %230, %cst_132 [1] : vector<40x40xf32> to vector<40xf32>
    %232 = vector.shape_cast %231 : vector<40xf32> to vector<40x1xf32>
    %233 = vector.broadcast %232 : vector<40x1xf32> to vector<40x40xf32>
    %234 = arith.subf %230, %233 : vector<40x40xf32>
    %235 = math.exp %234 : vector<40x40xf32>
    %cst_133 = arith.constant dense<0.000000e+00> : vector<40xf32>
    %236 = vector.multi_reduction <add>, %235, %cst_133 [1] : vector<40x40xf32> to vector<40xf32>
    %237 = vector.shape_cast %236 : vector<40xf32> to vector<40x1xf32>
    %238 = tpu.reciprocal %237 {approx = true} : vector<40x1xf32> -> vector<40x1xf32>
    %239 = vector.broadcast %238 : vector<40x1xf32> to vector<40x40xf32>
    %240 = arith.mulf %235, %239 : vector<40x40xf32>
    %cst_134 = arith.constant dense<0.000000e+00> : vector<40x32xf32>
    %241 = tpu.matmul %240, %226, %cst_134 {dimension_numbers = #tpu.dot_dimension_numbers<[1], [0], [0], [1], [0, 0, 1, 1], [], []>} : vector<40x40xf32>, vector<40x32xf32>, vector<40x32xf32> -> vector<40x32xf32>
    %242 = vector.extract_strided_slice %11 {offsets = [64, 0], sizes = [32, 128], strides = [1, 1]} : vector<128x128xf32> to vector<32x128xf32>
    %cst_135 = arith.constant dense<0.000000e+00> : vector<40x128xf32>
    %243 = tpu.matmul %241, %242, %cst_135 {dimension_numbers = #tpu.dot_dimension_numbers<[1], [0], [0], [1], [0, 0, 1, 1], [], []>} : vector<40x32xf32>, vector<32x128xf32>, vector<40x128xf32> -> vector<40x128xf32>
    %244 = arith.addf %223, %243 : vector<40x128xf32>
    %245 = vector.extract_strided_slice %39 {offsets = [40, 0], sizes = [40, 32], strides = [1, 1]} : vector<80x32xf32> to vector<40x32xf32>
    %246 = vector.extract_strided_slice %67 {offsets = [40, 0], sizes = [40, 32], strides = [1, 1]} : vector<80x32xf32> to vector<40x32xf32>
    %247 = vector.extract_strided_slice %95 {offsets = [40, 0], sizes = [40, 32], strides = [1, 1]} : vector<80x32xf32> to vector<40x32xf32>
    %248 = tpu.transpose %246, [1, 0] : vector<40x32xf32> -> vector<32x40xf32>
    %cst_136 = arith.constant dense<0.000000e+00> : vector<40x40xf32>
    %249 = tpu.matmul %245, %248, %cst_136 {dimension_numbers = #tpu.dot_dimension_numbers<[1], [0], [0], [1], [0, 0, 1, 1], [], []>} : vector<40x32xf32>, vector<32x40xf32>, vector<40x40xf32> -> vector<40x40xf32>
    %250 = vector.broadcast %9 : vector<1x40xf32> to vector<40x40xf32>
    %251 = arith.addf %249, %250 : vector<40x40xf32>
    %cst_137 = arith.constant dense<0xFF800000> : vector<40xf32>
    %252 = vector.multi_reduction <maximumf>, %251, %cst_137 [1] : vector<40x40xf32> to vector<40xf32>
    %253 = vector.shape_cast %252 : vector<40xf32> to vector<40x1xf32>
    %254 = vector.broadcast %253 : vector<40x1xf32> to vector<40x40xf32>
    %255 = arith.subf %251, %254 : vector<40x40xf32>
    %256 = math.exp %255 : vector<40x40xf32>
    %cst_138 = arith.constant dense<0.000000e+00> : vector<40xf32>
    %257 = vector.multi_reduction <add>, %256, %cst_138 [1] : vector<40x40xf32> to vector<40xf32>
    %258 = vector.shape_cast %257 : vector<40xf32> to vector<40x1xf32>
    %259 = tpu.reciprocal %258 {approx = true} : vector<40x1xf32> -> vector<40x1xf32>
    %260 = vector.broadcast %259 : vector<40x1xf32> to vector<40x40xf32>
    %261 = arith.mulf %256, %260 : vector<40x40xf32>
    %cst_139 = arith.constant dense<0.000000e+00> : vector<40x32xf32>
    %262 = tpu.matmul %261, %247, %cst_139 {dimension_numbers = #tpu.dot_dimension_numbers<[1], [0], [0], [1], [0, 0, 1, 1], [], []>} : vector<40x40xf32>, vector<40x32xf32>, vector<40x32xf32> -> vector<40x32xf32>
    %263 = vector.extract_strided_slice %11 {offsets = [96, 0], sizes = [32, 128], strides = [1, 1]} : vector<128x128xf32> to vector<32x128xf32>
    %cst_140 = arith.constant dense<0.000000e+00> : vector<40x128xf32>
    %264 = tpu.matmul %262, %263, %cst_140 {dimension_numbers = #tpu.dot_dimension_numbers<[1], [0], [0], [1], [0, 0, 1, 1], [], []>} : vector<40x32xf32>, vector<32x128xf32>, vector<40x128xf32> -> vector<40x128xf32>
    %265 = arith.addf %244, %264 : vector<40x128xf32>
    %266 = tpu.concatenate %180, %265 in 0 : vector<40x128xf32>, vector<40x128xf32> -> vector<80x128xf32>
    %c0_141 = arith.constant 0 : index
    %c0_142 = arith.constant 0 : index
    %c0_143 = arith.constant 0 : index
    %267 = vector.load %arg13[%c0_141, %c0_142, %c0_143] : memref<1x1x128xf32, #tpu.memory_space<vmem>>, vector<1x1x128xf32>
    %268 = vector.shape_cast %267 : vector<1x1x128xf32> to vector<1x128xf32>
    %269 = vector.broadcast %268 : vector<1x128xf32> to vector<80x128xf32>
    %270 = arith.addf %266, %269 : vector<80x128xf32>
    %271 = arith.addf %3, %270 : vector<80x128xf32>
    %c0_144 = arith.constant 0 : index
    %c0_145 = arith.constant 0 : index
    %c0_146 = arith.constant 0 : index
    %272 = vector.load %arg14[%c0_144, %c0_145, %c0_146] : memref<1x1x128xf32, #tpu.memory_space<vmem>>, vector<1x1x128xf32>
    %273 = vector.shape_cast %272 : vector<1x1x128xf32> to vector<1x128xf32>
    %c0_147 = arith.constant 0 : index
    %c0_148 = arith.constant 0 : index
    %c0_149 = arith.constant 0 : index
    %274 = vector.load %arg15[%c0_147, %c0_148, %c0_149] : memref<1x1x128xf32, #tpu.memory_space<vmem>>, vector<1x1x128xf32>
    %275 = vector.shape_cast %274 : vector<1x1x128xf32> to vector<1x128xf32>
    %cst_150 = arith.constant dense<0.000000e+00> : vector<80xf32>
    %276 = vector.multi_reduction <add>, %271, %cst_150 [1] : vector<80x128xf32> to vector<80xf32>
    %277 = vector.shape_cast %276 : vector<80xf32> to vector<80x1xf32>
    %cst_151 = arith.constant 1.280000e+02 : f32
    %278 = vector.broadcast %cst_151 : f32 to vector<80x1xf32>
    %279 = arith.divf %277, %278 : vector<80x1xf32>
    %280 = vector.broadcast %279 : vector<80x1xf32> to vector<80x128xf32>
    %281 = arith.subf %271, %280 : vector<80x128xf32>
    %282 = arith.mulf %281, %281 : vector<80x128xf32>
    %cst_152 = arith.constant dense<0.000000e+00> : vector<80xf32>
    %283 = vector.multi_reduction <add>, %282, %cst_152 [1] : vector<80x128xf32> to vector<80xf32>
    %284 = vector.shape_cast %283 : vector<80xf32> to vector<80x1xf32>
    %cst_153 = arith.constant 1.280000e+02 : f32
    %285 = vector.broadcast %cst_153 : f32 to vector<80x1xf32>
    %286 = arith.divf %284, %285 : vector<80x1xf32>
    %287 = vector.broadcast %279 : vector<80x1xf32> to vector<80x128xf32>
    %288 = arith.subf %271, %287 : vector<80x128xf32>
    %cst_154 = arith.constant 9.99999974E-6 : f32
    %289 = vector.broadcast %cst_154 : f32 to vector<80x1xf32>
    %290 = arith.addf %286, %289 : vector<80x1xf32>
    %291 = math.rsqrt %290 : vector<80x1xf32>
    %292 = vector.broadcast %291 : vector<80x1xf32> to vector<80x128xf32>
    %293 = arith.mulf %288, %292 : vector<80x128xf32>
    %294 = vector.broadcast %273 : vector<1x128xf32> to vector<80x128xf32>
    %295 = arith.mulf %293, %294 : vector<80x128xf32>
    %296 = vector.broadcast %275 : vector<1x128xf32> to vector<80x128xf32>
    %297 = arith.addf %295, %296 : vector<80x128xf32>
    %c0_155 = arith.constant 0 : index
    %c0_156 = arith.constant 0 : index
    %c0_157 = arith.constant 0 : index
    %298 = vector.load %arg16[%c0_155, %c0_156, %c0_157] : memref<1x128x256xf32, #tpu.memory_space<vmem>>, vector<1x128x256xf32>
    %299 = vector.shape_cast %298 : vector<1x128x256xf32> to vector<128x256xf32>
    %cst_158 = arith.constant dense<0.000000e+00> : vector<80x256xf32>
    %300 = tpu.matmul %297, %299, %cst_158 {dimension_numbers = #tpu.dot_dimension_numbers<[1], [0], [0], [1], [0, 0, 1, 1], [], []>} : vector<80x128xf32>, vector<128x256xf32>, vector<80x256xf32> -> vector<80x256xf32>
    %c0_159 = arith.constant 0 : index
    %c0_160 = arith.constant 0 : index
    %c0_161 = arith.constant 0 : index
    %301 = vector.load %arg17[%c0_159, %c0_160, %c0_161] : memref<1x1x256xf32, #tpu.memory_space<vmem>>, vector<1x1x256xf32>
    %302 = vector.shape_cast %301 : vector<1x1x256xf32> to vector<1x256xf32>
    %303 = vector.broadcast %302 : vector<1x256xf32> to vector<80x256xf32>
    %304 = arith.addf %300, %303 : vector<80x256xf32>
    %cst_162 = arith.constant 0.000000e+00 : f32
    %305 = vector.broadcast %cst_162 : f32 to vector<80x256xf32>
    %306 = arith.maximumf %304, %305 : vector<80x256xf32>
    %c0_163 = arith.constant 0 : index
    %c0_164 = arith.constant 0 : index
    %c0_165 = arith.constant 0 : index
    %307 = vector.load %arg18[%c0_163, %c0_164, %c0_165] : memref<1x256x128xf32, #tpu.memory_space<vmem>>, vector<1x256x128xf32>
    %308 = vector.shape_cast %307 : vector<1x256x128xf32> to vector<256x128xf32>
    %cst_166 = arith.constant dense<0.000000e+00> : vector<80x128xf32>
    %309 = tpu.matmul %306, %308, %cst_166 {dimension_numbers = #tpu.dot_dimension_numbers<[1], [0], [0], [1], [0, 0, 1, 1], [], []>} : vector<80x256xf32>, vector<256x128xf32>, vector<80x128xf32> -> vector<80x128xf32>
    %c0_167 = arith.constant 0 : index
    %c0_168 = arith.constant 0 : index
    %c0_169 = arith.constant 0 : index
    %310 = vector.load %arg19[%c0_167, %c0_168, %c0_169] : memref<1x1x128xf32, #tpu.memory_space<vmem>>, vector<1x1x128xf32>
    %311 = vector.shape_cast %310 : vector<1x1x128xf32> to vector<1x128xf32>
    %312 = vector.broadcast %311 : vector<1x128xf32> to vector<80x128xf32>
    %313 = arith.addf %309, %312 : vector<80x128xf32>
    %314 = arith.addf %297, %313 : vector<80x128xf32>
    %c0_170 = arith.constant 0 : index
    %c0_171 = arith.constant 0 : index
    %c0_172 = arith.constant 0 : index
    %315 = vector.load %arg20[%c0_170, %c0_171, %c0_172] : memref<1x1x128xf32, #tpu.memory_space<vmem>>, vector<1x1x128xf32>
    %316 = vector.shape_cast %315 : vector<1x1x128xf32> to vector<1x128xf32>
    %c0_173 = arith.constant 0 : index
    %c0_174 = arith.constant 0 : index
    %c0_175 = arith.constant 0 : index
    %317 = vector.load %arg21[%c0_173, %c0_174, %c0_175] : memref<1x1x128xf32, #tpu.memory_space<vmem>>, vector<1x1x128xf32>
    %318 = vector.shape_cast %317 : vector<1x1x128xf32> to vector<1x128xf32>
    %cst_176 = arith.constant dense<0.000000e+00> : vector<80xf32>
    %319 = vector.multi_reduction <add>, %314, %cst_176 [1] : vector<80x128xf32> to vector<80xf32>
    %320 = vector.shape_cast %319 : vector<80xf32> to vector<80x1xf32>
    %cst_177 = arith.constant 1.280000e+02 : f32
    %321 = vector.broadcast %cst_177 : f32 to vector<80x1xf32>
    %322 = arith.divf %320, %321 : vector<80x1xf32>
    %323 = vector.broadcast %322 : vector<80x1xf32> to vector<80x128xf32>
    %324 = arith.subf %314, %323 : vector<80x128xf32>
    %325 = arith.mulf %324, %324 : vector<80x128xf32>
    %cst_178 = arith.constant dense<0.000000e+00> : vector<80xf32>
    %326 = vector.multi_reduction <add>, %325, %cst_178 [1] : vector<80x128xf32> to vector<80xf32>
    %327 = vector.shape_cast %326 : vector<80xf32> to vector<80x1xf32>
    %cst_179 = arith.constant 1.280000e+02 : f32
    %328 = vector.broadcast %cst_179 : f32 to vector<80x1xf32>
    %329 = arith.divf %327, %328 : vector<80x1xf32>
    %330 = vector.broadcast %322 : vector<80x1xf32> to vector<80x128xf32>
    %331 = arith.subf %314, %330 : vector<80x128xf32>
    %cst_180 = arith.constant 9.99999974E-6 : f32
    %332 = vector.broadcast %cst_180 : f32 to vector<80x1xf32>
    %333 = arith.addf %329, %332 : vector<80x1xf32>
    %334 = math.rsqrt %333 : vector<80x1xf32>
    %335 = vector.broadcast %334 : vector<80x1xf32> to vector<80x128xf32>
    %336 = arith.mulf %331, %335 : vector<80x128xf32>
    %337 = vector.broadcast %316 : vector<1x128xf32> to vector<80x128xf32>
    %338 = arith.mulf %336, %337 : vector<80x128xf32>
    %339 = vector.broadcast %318 : vector<1x128xf32> to vector<80x128xf32>
    %340 = arith.addf %338, %339 : vector<80x128xf32>
    %c0_181 = arith.constant 0 : index
    %c0_182 = arith.constant 0 : index
    %341 = vector.load %arg27[%c0_181, %c0_182] : memref<80x128xf32, #tpu.memory_space<vmem>>, vector<80x128xf32>
    tpu.vector_store %arg27[%c0_181, %c0_182], %340 {strides = array<i32>} : memref<80x128xf32, #tpu.memory_space<vmem>>, vector<80x128xf32>,
    %c1_i32 = arith.constant 1 : i32
    %342 = arith.cmpi eq, %arg1, %c1_i32 : i32
    %343 = arith.extui %342 : i1 to i32
    %c0_i32_183 = arith.constant 0 : i32
    %344 = arith.cmpi ne, %343, %c0_i32_183 : i32
    scf.if %344 {
      %345 = vector.extract_strided_slice %340 {offsets = [0, 0], sizes = [1, 128], strides = [1, 1]} : vector<80x128xf32> to vector<1x128xf32>
      %346 = vector.extract_strided_slice %340 {offsets = [40, 0], sizes = [1, 128], strides = [1, 1]} : vector<80x128xf32> to vector<1x128xf32>
      %347 = tpu.concatenate %345, %346 in 0 : vector<1x128xf32>, vector<1x128xf32> -> vector<2x128xf32>
      %c0_184 = arith.constant 0 : index
      %c0_185 = arith.constant 0 : index
      %348 = vector.load %arg22[%c0_184, %c0_185] : memref<1x128xf32, #tpu.memory_space<vmem>>, vector<1x128xf32>
      %c0_186 = arith.constant 0 : index
      %c0_187 = arith.constant 0 : index
      %349 = vector.load %arg23[%c0_186, %c0_187] : memref<1x128xf32, #tpu.memory_space<vmem>>, vector<1x128xf32>
      %cst_188 = arith.constant dense<0.000000e+00> : vector<2xf32>
      %350 = vector.multi_reduction <add>, %347, %cst_188 [1] : vector<2x128xf32> to vector<2xf32>
      %351 = vector.shape_cast %350 : vector<2xf32> to vector<2x1xf32>
      %cst_189 = arith.constant 1.280000e+02 : f32
      %352 = vector.broadcast %cst_189 : f32 to vector<2x1xf32>
      %353 = arith.divf %351, %352 : vector<2x1xf32>
      %354 = vector.broadcast %353 : vector<2x1xf32> to vector<2x128xf32>
      %355 = arith.subf %347, %354 : vector<2x128xf32>
      %356 = arith.mulf %355, %355 : vector<2x128xf32>
      %cst_190 = arith.constant dense<0.000000e+00> : vector<2xf32>
      %357 = vector.multi_reduction <add>, %356, %cst_190 [1] : vector<2x128xf32> to vector<2xf32>
      %358 = vector.shape_cast %357 : vector<2xf32> to vector<2x1xf32>
      %cst_191 = arith.constant 1.280000e+02 : f32
      %359 = vector.broadcast %cst_191 : f32 to vector<2x1xf32>
      %360 = arith.divf %358, %359 : vector<2x1xf32>
      %361 = vector.broadcast %353 : vector<2x1xf32> to vector<2x128xf32>
      %362 = arith.subf %347, %361 : vector<2x128xf32>
      %cst_192 = arith.constant 9.99999974E-6 : f32
      %363 = vector.broadcast %cst_192 : f32 to vector<2x1xf32>
      %364 = arith.addf %360, %363 : vector<2x1xf32>
      %365 = math.rsqrt %364 : vector<2x1xf32>
      %366 = vector.broadcast %365 : vector<2x1xf32> to vector<2x128xf32>
      %367 = arith.mulf %362, %366 : vector<2x128xf32>
      %368 = vector.broadcast %348 : vector<1x128xf32> to vector<2x128xf32>
      %369 = arith.mulf %367, %368 : vector<2x128xf32>
      %370 = vector.broadcast %349 : vector<1x128xf32> to vector<2x128xf32>
      %371 = arith.addf %369, %370 : vector<2x128xf32>
      %c0_193 = arith.constant 0 : index
      %c0_194 = arith.constant 0 : index
      %372 = vector.load %arg24[%c0_193, %c0_194] : memref<128x128xf32, #tpu.memory_space<vmem>>, vector<128x128xf32>
      %cst_195 = arith.constant dense<0.000000e+00> : vector<2x128xf32>
      %373 = tpu.matmul %371, %372, %cst_195 {dimension_numbers = #tpu.dot_dimension_numbers<[1], [0], [0], [1], [0, 0, 1, 1], [], []>} : vector<2x128xf32>, vector<128x128xf32>, vector<2x128xf32> -> vector<2x128xf32>
      %c0_196 = arith.constant 0 : index
      %c0_197 = arith.constant 0 : index
      %374 = vector.load %arg25[%c0_196, %c0_197] : memref<1x128xf32, #tpu.memory_space<vmem>>, vector<1x128xf32>
      %375 = vector.broadcast %374 : vector<1x128xf32> to vector<2x128xf32>
      %376 = arith.addf %373, %375 : vector<2x128xf32>
      %c0_198 = arith.constant 0 : index
      %c0_199 = arith.constant 0 : index
      %377 = vector.load %arg26[%c0_198, %c0_199] : memref<2x128xf32, #tpu.memory_space<vmem>>, vector<2x128xf32>
      tpu.vector_store %arg26[%c0_198, %c0_199], %376 {strides = array<i32>} : memref<2x128xf32, #tpu.memory_space<vmem>>, vector<2x128xf32>,
    } else {
    }
    return
  }
  func.func @transform_0(%arg0: i32, %arg1: i32) -> (i32, i32, i32) {
    %c0_i32 = arith.constant 0 : i32
    %c0_i32_0 = arith.constant 0 : i32
    %c0_i32_1 = arith.constant 0 : i32
    return %arg0, %c0_i32, %c0_i32_0 : i32, i32, i32
  }
  func.func @transform_1(%arg0: i32, %arg1: i32) -> (i32, i32) {
    %c0_i32 = arith.constant 0 : i32
    %c0_i32_0 = arith.constant 0 : i32
    %c0_i32_1 = arith.constant 0 : i32
    return %c0_i32, %c0_i32_0 : i32, i32
  }
  func.func @transform_2(%arg0: i32, %arg1: i32) -> (i32, i32) {
    %c0_i32 = arith.constant 0 : i32
    %c0_i32_0 = arith.constant 0 : i32
    %c0_i32_1 = arith.constant 0 : i32
    return %c0_i32, %c0_i32_0 : i32, i32
  }
  func.func @transform_3(%arg0: i32, %arg1: i32) -> (i32, i32) {
    %c0_i32 = arith.constant 0 : i32
    %c0_i32_0 = arith.constant 0 : i32
    %c0_i32_1 = arith.constant 0 : i32
    return %c0_i32, %c0_i32_0 : i32, i32
  }
  func.func @transform_4(%arg0: i32, %arg1: i32) -> (i32, i32, i32, i32) {
    %c0_i32 = arith.constant 0 : i32
    %c0_i32_0 = arith.constant 0 : i32
    %c0_i32_1 = arith.constant 0 : i32
    %c0_i32_2 = arith.constant 0 : i32
    return %arg1, %c0_i32, %c0_i32_0, %c0_i32_1 : i32, i32, i32, i32
  }
  func.func @transform_5(%arg0: i32, %arg1: i32) -> (i32, i32, i32) {
    %c0_i32 = arith.constant 0 : i32
    %c0_i32_0 = arith.constant 0 : i32
    %c0_i32_1 = arith.constant 0 : i32
    return %arg1, %c0_i32, %c0_i32_0 : i32, i32, i32
  }
  func.func @transform_6(%arg0: i32, %arg1: i32) -> (i32, i32, i32, i32) {
    %c0_i32 = arith.constant 0 : i32
    %c0_i32_0 = arith.constant 0 : i32
    %c0_i32_1 = arith.constant 0 : i32
    %c0_i32_2 = arith.constant 0 : i32
    return %arg1, %c0_i32, %c0_i32_0, %c0_i32_1 : i32, i32, i32, i32
  }
  func.func @transform_7(%arg0: i32, %arg1: i32) -> (i32, i32, i32) {
    %c0_i32 = arith.constant 0 : i32
    %c0_i32_0 = arith.constant 0 : i32
    %c0_i32_1 = arith.constant 0 : i32
    return %arg1, %c0_i32, %c0_i32_0 : i32, i32, i32
  }
  func.func @transform_8(%arg0: i32, %arg1: i32) -> (i32, i32, i32, i32) {
    %c0_i32 = arith.constant 0 : i32
    %c0_i32_0 = arith.constant 0 : i32
    %c0_i32_1 = arith.constant 0 : i32
    %c0_i32_2 = arith.constant 0 : i32
    return %arg1, %c0_i32, %c0_i32_0, %c0_i32_1 : i32, i32, i32, i32
  }
  func.func @transform_9(%arg0: i32, %arg1: i32) -> (i32, i32, i32) {
    %c0_i32 = arith.constant 0 : i32
    %c0_i32_0 = arith.constant 0 : i32
    %c0_i32_1 = arith.constant 0 : i32
    return %arg1, %c0_i32, %c0_i32_0 : i32, i32, i32
  }
  func.func @transform_10(%arg0: i32, %arg1: i32) -> (i32, i32, i32) {
    %c0_i32 = arith.constant 0 : i32
    %c0_i32_0 = arith.constant 0 : i32
    %c0_i32_1 = arith.constant 0 : i32
    return %arg1, %c0_i32, %c0_i32_0 : i32, i32, i32
  }
  func.func @transform_11(%arg0: i32, %arg1: i32) -> (i32, i32, i32) {
    %c0_i32 = arith.constant 0 : i32
    %c0_i32_0 = arith.constant 0 : i32
    %c0_i32_1 = arith.constant 0 : i32
    return %arg1, %c0_i32, %c0_i32_0 : i32, i32, i32
  }
  func.func @transform_12(%arg0: i32, %arg1: i32) -> (i32, i32, i32) {
    %c0_i32 = arith.constant 0 : i32
    %c0_i32_0 = arith.constant 0 : i32
    %c0_i32_1 = arith.constant 0 : i32
    return %arg1, %c0_i32, %c0_i32_0 : i32, i32, i32
  }
  func.func @transform_13(%arg0: i32, %arg1: i32) -> (i32, i32, i32) {
    %c0_i32 = arith.constant 0 : i32
    %c0_i32_0 = arith.constant 0 : i32
    %c0_i32_1 = arith.constant 0 : i32
    return %arg1, %c0_i32, %c0_i32_0 : i32, i32, i32
  }
  func.func @transform_14(%arg0: i32, %arg1: i32) -> (i32, i32, i32) {
    %c0_i32 = arith.constant 0 : i32
    %c0_i32_0 = arith.constant 0 : i32
    %c0_i32_1 = arith.constant 0 : i32
    return %arg1, %c0_i32, %c0_i32_0 : i32, i32, i32
  }
  func.func @transform_15(%arg0: i32, %arg1: i32) -> (i32, i32, i32) {
    %c0_i32 = arith.constant 0 : i32
    %c0_i32_0 = arith.constant 0 : i32
    %c0_i32_1 = arith.constant 0 : i32
    return %arg1, %c0_i32, %c0_i32_0 : i32, i32, i32
  }
  func.func @transform_16(%arg0: i32, %arg1: i32) -> (i32, i32, i32) {
    %c0_i32 = arith.constant 0 : i32
    %c0_i32_0 = arith.constant 0 : i32
    %c0_i32_1 = arith.constant 0 : i32
    return %arg1, %c0_i32, %c0_i32_0 : i32, i32, i32
  }
  func.func @transform_17(%arg0: i32, %arg1: i32) -> (i32, i32, i32) {
    %c0_i32 = arith.constant 0 : i32
    %c0_i32_0 = arith.constant 0 : i32
    %c0_i32_1 = arith.constant 0 : i32
    return %arg1, %c0_i32, %c0_i32_0 : i32, i32, i32
  }
  func.func @transform_18(%arg0: i32, %arg1: i32) -> (i32, i32, i32) {
    %c0_i32 = arith.constant 0 : i32
    %c0_i32_0 = arith.constant 0 : i32
    %c0_i32_1 = arith.constant 0 : i32
    return %arg1, %c0_i32, %c0_i32_0 : i32, i32, i32
  }
  func.func @transform_19(%arg0: i32, %arg1: i32) -> (i32, i32, i32) {
    %c0_i32 = arith.constant 0 : i32
    %c0_i32_0 = arith.constant 0 : i32
    %c0_i32_1 = arith.constant 0 : i32
    return %arg1, %c0_i32, %c0_i32_0 : i32, i32, i32
  }
  func.func @transform_20(%arg0: i32, %arg1: i32) -> (i32, i32) {
    %c0_i32 = arith.constant 0 : i32
    %c0_i32_0 = arith.constant 0 : i32
    %c0_i32_1 = arith.constant 0 : i32
    return %c0_i32, %c0_i32_0 : i32, i32
  }
  func.func @transform_21(%arg0: i32, %arg1: i32) -> (i32, i32) {
    %c0_i32 = arith.constant 0 : i32
    %c0_i32_0 = arith.constant 0 : i32
    %c0_i32_1 = arith.constant 0 : i32
    return %c0_i32, %c0_i32_0 : i32, i32
  }
  func.func @transform_22(%arg0: i32, %arg1: i32) -> (i32, i32) {
    %c0_i32 = arith.constant 0 : i32
    %c0_i32_0 = arith.constant 0 : i32
    %c0_i32_1 = arith.constant 0 : i32
    return %c0_i32, %c0_i32_0 : i32, i32
  }
  func.func @transform_23(%arg0: i32, %arg1: i32) -> (i32, i32) {
    %c0_i32 = arith.constant 0 : i32
    %c0_i32_0 = arith.constant 0 : i32
    %c0_i32_1 = arith.constant 0 : i32
    return %c0_i32, %c0_i32_0 : i32, i32
  }
  func.func @transform_24(%arg0: i32, %arg1: i32) -> (i32, i32) {
    %c0_i32 = arith.constant 0 : i32
    %c0_i32_0 = arith.constant 0 : i32
    return %arg0, %c0_i32 : i32, i32
  }
}

</mosaic_0001>

<llo_original>
// kernel: tpu_custom_call.1
$region0: #{tpu_custom_call.1}
  #allocation0 [shape = 'u32[]', space=smem, size = 0x4, offset = 0x4, fixed_abs, tag = 'smem constant byte address 0x4 - core index']
  #allocation1 [shape = 'u32[144,128]{1,0:T(1,128)}', space=vmem, size = 0x12000, scoped, tag = 'internal scratch']
  #allocation2 [shape = 'f32[80,128]{1,0:T(8,128)}', space=vmem, size = 0xa000, scoped, tag = 'scratch operand']
  %s0 = inlined_call_operand.vmem [shape: f32[2,16,48], index: 0, kind: input, shape index: {}]
  %s1 = inlined_call_operand.vmem [shape: f32[48,128], index: 1, kind: input, shape index: {}]
  %s2 = inlined_call_operand.vmem [shape: f32[1,128], index: 2, kind: input, shape index: {}]
  %s3 = inlined_call_operand.vmem [shape: f32[17,128], index: 3, kind: input, shape index: {}]
  %s4 = inlined_call_operand.vmem [shape: f32[2,4,128,32], index: 4, kind: input, shape index: {}]
  %s5 = inlined_call_operand.vmem [shape: f32[2,1,32], index: 5, kind: input, shape index: {}]
  %s6 = inlined_call_operand.vmem [shape: f32[2,4,128,32], index: 6, kind: input, shape index: {}]
  %s7 = inlined_call_operand.vmem [shape: f32[2,1,32], index: 7, kind: input, shape index: {}]
  %s8 = inlined_call_operand.vmem [shape: f32[2,4,128,32], index: 8, kind: input, shape index: {}]
  %s9 = inlined_call_operand.vmem [shape: f32[2,1,32], index: 9, kind: input, shape index: {}]
  %s10 = inlined_call_operand.vmem [shape: f32[2,128,128], index: 10, kind: input, shape index: {}]
  %s11 = inlined_call_operand.vmem [shape: f32[2,1,128], index: 11, kind: input, shape index: {}]
  %s12 = inlined_call_operand.vmem [shape: f32[2,1,128], index: 12, kind: input, shape index: {}]
  %s13 = inlined_call_operand.vmem [shape: f32[2,1,128], index: 13, kind: input, shape index: {}]
  %s14 = inlined_call_operand.vmem [shape: f32[2,128,256], index: 14, kind: input, shape index: {}]
  %s15 = inlined_call_operand.vmem [shape: f32[2,1,256], index: 15, kind: input, shape index: {}]
  %s16 = inlined_call_operand.vmem [shape: f32[2,256,128], index: 16, kind: input, shape index: {}]
  %s17 = inlined_call_operand.vmem [shape: f32[2,1,128], index: 17, kind: input, shape index: {}]
  %s18 = inlined_call_operand.vmem [shape: f32[2,1,128], index: 18, kind: input, shape index: {}]
  %s19 = inlined_call_operand.vmem [shape: f32[2,1,128], index: 19, kind: input, shape index: {}]
  %s20 = inlined_call_operand.vmem [shape: f32[1,128], index: 20, kind: input, shape index: {}]
  %s21 = inlined_call_operand.vmem [shape: f32[1,128], index: 21, kind: input, shape index: {}]
  %s22 = inlined_call_operand.vmem [shape: f32[128,128], index: 22, kind: input, shape index: {}]
  %s23 = inlined_call_operand.vmem [shape: f32[1,128], index: 23, kind: input, shape index: {}]
  %s24 = inlined_call_operand.hbm [shape: f32[2,128], index: 24, kind: output, shape index: {}]
  %s25 = sld [smem:[#allocation0]]
  $region137: #{tpu_custom_call.1} parent=0
    _
  %s27 = ssub.s32 1, %s25
  %s28 = scalar_select 0, %s27, %s25
  $region1: #{tpu_custom_call.1} parent=0
    #allocation3 [shape = 'u8[1024]{0}', space=vmem, size = 0x400, scoped, tag = 'output window, operand 0, single buffered']
    #allocation4 [shape = 's32[2]{0}', space=sflag, size = 0x8, scoped, tag = 'scoped memory for tpu_custom_call.1']
    %29 = vsyncpa [#allocation4], 0
    loop: start=0, step=1, limit=4
    $region2: #{tpu_custom_call.1} parent=1 // loop_pre_header
      _
    $region3: #{tpu_custom_call.1} parent=1 // loop_header
      %s31 = sphi 0, %s35
      %p32 = scmp.ge.s32.totalorder %s31, 4
      %s38 = sphi 0, %s50
      %s39 = sphi 0, %s46
      %s40 = sphi 0, %s38
      %s41 = sphi 0, %s39
      %s42 = sphi 0, %s40
      %s43 = sphi 0, %s41
      %s53 = sphi 0, %s55
      %s56 = sphi 0, %s53
      %s57 = sphi 0, %s56
      %s73 = sphi 0, %s57
      %s77 = sphi 0, %s77
      %s79 = sphi 0, %s77
      %s80 = sphi 0, %s79
      %s94 = sphi 0, %s80
      %s98 = sphi 0, %s98
      %s100 = sphi 0, %s98
      %s101 = sphi 0, %s100
      %s115 = sphi 0, %s101
      %s119 = sphi 0, %s119
      %s121 = sphi 0, %s119
      %s122 = sphi 0, %s121
      %s136 = sphi 0, %s122
      %s142 = sphi 0, %s144
      %s145 = sphi 0, %s142
      %s146 = sphi 0, %s145
      %s162 = sphi 0, %s146
      %s168 = sphi 0, %s170
      %s171 = sphi 0, %s168
      %s172 = sphi 0, %s171
      %s188 = sphi 0, %s172
      %s194 = sphi 0, %s196
      %s197 = sphi 0, %s194
      %s198 = sphi 0, %s197
      %s214 = sphi 0, %s198
      %s220 = sphi 0, %s222
      %s223 = sphi 0, %s220
      %s224 = sphi 0, %s223
      %s240 = sphi 0, %s224
      %s246 = sphi 0, %s248
      %s249 = sphi 0, %s246
      %s250 = sphi 0, %s249
      %s266 = sphi 0, %s250
      %s272 = sphi 0, %s274
      %s275 = sphi 0, %s272
      %s276 = sphi 0, %s275
      %s292 = sphi 0, %s276
      %s298 = sphi 0, %s300
      %s301 = sphi 0, %s298
      %s302 = sphi 0, %s301
      %s318 = sphi 0, %s302
      %s324 = sphi 0, %s326
      %s327 = sphi 0, %s324
      %s328 = sphi 0, %s327
      %s344 = sphi 0, %s328
      %s350 = sphi 0, %s352
      %s353 = sphi 0, %s350
      %s354 = sphi 0, %s353
      %s370 = sphi 0, %s354
      %s376 = sphi 0, %s378
      %s379 = sphi 0, %s376
      %s380 = sphi 0, %s379
      %s396 = sphi 0, %s380
      %s402 = sphi 0, %s404
      %s405 = sphi 0, %s402
      %s406 = sphi 0, %s405
      %s422 = sphi 0, %s406
      %s428 = sphi 0, %s430
      %s431 = sphi 0, %s428
      %s432 = sphi 0, %s431
      %s448 = sphi 0, %s432
      %s454 = sphi 0, %s456
      %s457 = sphi 0, %s454
      %s458 = sphi 0, %s457
      %s474 = sphi 0, %s458
      %s480 = sphi 0, %s482
      %s483 = sphi 0, %s480
      %s484 = sphi 0, %s483
      %s500 = sphi 0, %s484
      %s506 = sphi 0, %s508
      %s509 = sphi 0, %s506
      %s510 = sphi 0, %s509
      %s526 = sphi 0, %s510
      %s532 = sphi 0, %s534
      %s535 = sphi 0, %s532
      %s536 = sphi 0, %s535
      %s552 = sphi 0, %s536
      %s556 = sphi 0, %s556
      %s558 = sphi 0, %s556
      %s559 = sphi 0, %s558
      %s573 = sphi 0, %s559
      %s577 = sphi 0, %s577
      %s579 = sphi 0, %s577
      %s580 = sphi 0, %s579
      %s594 = sphi 0, %s580
      %s598 = sphi 0, %s598
      %s600 = sphi 0, %s598
      %s601 = sphi 0, %s600
      %s615 = sphi 0, %s601
      %s619 = sphi 0, %s619
      %s621 = sphi 0, %s619
      %s622 = sphi 0, %s621
      %s636 = sphi 0, %s622
      %s642 = sphi 0, %s644
      %s645 = sphi 0, %s642
      %s646 = sphi 0, %s645
      %s662 = sphi 0, %s646
    $region4: #{tpu_custom_call.1} parent=1 // loop_header_branch
      %34 = sbr.rel (%p32) target = $region8
    $region5: #{tpu_custom_call.1} parent=1 // loop_body
      %s36 = ssub.s32 %s31, 1
      %s37 = ssub.s32 %s31, 2
      %s44 = sadd.s32 1, %s39
      %p45 = scmp.ge.s32.totalorder %s44, 2
      %s46 = scalar_select %p45, 0, %s44
      %s47 = sadd.s32 1, %s38
      %s48 = scalar_select %p45, %s47, %s38
      %p49 = scmp.ge.s32.totalorder %s48, 1
      %s50 = scalar_select %p49, 0, %s48
      %s51 = ssub.s32 %s38, %s50
      %p52 = scmp.eq.s32.totalorder %s51, 0
      %s54 = sadd.s32 %s53, 1
      %s55 = scalar_select %p52, %s53, %s54
      %p58 = pneg %p52
      %p59 = scmp.eq.s32.totalorder %s31, 1
      %p60 = por %p58, %p59
      %p61 = scmp.ne.s32.totalorder %s53, %s56
      %p62 = scmp.eq.s32.totalorder %s31, 0
      %p63 = por %p61, %p62
      %p64 = scmp.ne.s32.totalorder %s53, %s56
      %p65 = scmp.eq.s32.totalorder %s36, 1
      %p66 = por %p64, %p65
      %p67 = scmp.ne.s32.totalorder %s56, %s57
      %p68 = scmp.eq.s32.totalorder %s36, 0
      %p69 = por %p67, %p68
      %p70 = scmp.ne.s32.totalorder %s56, %s57
      %p71 = scmp.eq.s32.totalorder %s37, 1
      %p72 = por %p70, %p71
      %p74 = scmp.ne.s32.totalorder %s57, %s73
      %p75 = scmp.eq.s32.totalorder %s37, 0
      %p76 = por %p74, %p75
      %s78 = sadd.s32 %s77, 1
      %p81 = scmp.eq.s32.totalorder %s31, 1
      %p82 = scmp.ne.s32.totalorder %s77, %s79
      %p83 = scmp.eq.s32.totalorder %s31, 0
      %p84 = por %p82, %p83
      %p85 = scmp.ne.s32.totalorder %s77, %s79
      %p86 = scmp.eq.s32.totalorder %s36, 1
      %p87 = por %p85, %p86
      %p88 = scmp.ne.s32.totalorder %s79, %s80
      %p89 = scmp.eq.s32.totalorder %s36, 0
      %p90 = por %p88, %p89
      %p91 = scmp.ne.s32.totalorder %s79, %s80
      %p92 = scmp.eq.s32.totalorder %s37, 1
      %p93 = por %p91, %p92
      %p95 = scmp.ne.s32.totalorder %s80, %s94
      %p96 = scmp.eq.s32.totalorder %s37, 0
      %p97 = por %p95, %p96
      %s99 = sadd.s32 %s98, 1
      %p102 = scmp.eq.s32.totalorder %s31, 1
      %p103 = scmp.ne.s32.totalorder %s98, %s100
      %p104 = scmp.eq.s32.totalorder %s31, 0
      %p105 = por %p103, %p104
      %p106 = scmp.ne.s32.totalorder %s98, %s100
      %p107 = scmp.eq.s32.totalorder %s36, 1
      %p108 = por %p106, %p107
      %p109 = scmp.ne.s32.totalorder %s100, %s101
      %p110 = scmp.eq.s32.totalorder %s36, 0
      %p111 = por %p109, %p110
      %p112 = scmp.ne.s32.totalorder %s100, %s101
      %p113 = scmp.eq.s32.totalorder %s37, 1
      %p114 = por %p112, %p113
      %p116 = scmp.ne.s32.totalorder %s101, %s115
      %p117 = scmp.eq.s32.totalorder %s37, 0
      %p118 = por %p116, %p117
      %s120 = sadd.s32 %s119, 1
      %p123 = scmp.eq.s32.totalorder %s31, 1
      %p124 = scmp.ne.s32.totalorder %s119, %s121
      %p125 = scmp.eq.s32.totalorder %s31, 0
      %p126 = por %p124, %p125
      %p127 = scmp.ne.s32.totalorder %s119, %s121
      %p128 = scmp.eq.s32.totalorder %s36, 1
      %p129 = por %p127, %p128
      %p130 = scmp.ne.s32.totalorder %s121, %s122
      %p131 = scmp.eq.s32.totalorder %s36, 0
      %p132 = por %p130, %p131
      %p133 = scmp.ne.s32.totalorder %s121, %s122
      %p134 = scmp.eq.s32.totalorder %s37, 1
      %p135 = por %p133, %p134
      %p137 = scmp.ne.s32.totalorder %s122, %s136
      %p138 = scmp.eq.s32.totalorder %s37, 0
      %p139 = por %p137, %p138
      %s140 = ssub.s32 %s39, %s46
      %p141 = scmp.eq.s32.totalorder %s140, 0
      %s143 = sadd.s32 %s142, 1
      %s144 = scalar_select %p141, %s142, %s143
      %p147 = pneg %p141
      %p148 = scmp.eq.s32.totalorder %s31, 1
      %p149 = por %p147, %p148
      %p150 = scmp.ne.s32.totalorder %s142, %s145
      %p151 = scmp.eq.s32.totalorder %s31, 0
      %p152 = por %p150, %p151
      %p153 = scmp.ne.s32.totalorder %s142, %s145
      %p154 = scmp.eq.s32.totalorder %s36, 1
      %p155 = por %p153, %p154
      %p156 = scmp.ne.s32.totalorder %s145, %s146
      %p157 = scmp.eq.s32.totalorder %s36, 0
      %p158 = por %p156, %p157
      %p159 = scmp.ne.s32.totalorder %s145, %s146
      %p160 = scmp.eq.s32.totalorder %s37, 1
      %p161 = por %p159, %p160
      %p163 = scmp.ne.s32.totalorder %s146, %s162
      %p164 = scmp.eq.s32.totalorder %s37, 0
      %p165 = por %p163, %p164
      %s166 = ssub.s32 %s39, %s46
      %p167 = scmp.eq.s32.totalorder %s166, 0
      %s169 = sadd.s32 %s168, 1
      %s170 = scalar_select %p167, %s168, %s169
      %p173 = pneg %p167
      %p174 = scmp.eq.s32.totalorder %s31, 1
      %p175 = por %p173, %p174
      %p176 = scmp.ne.s32.totalorder %s168, %s171
      %p177 = scmp.eq.s32.totalorder %s31, 0
      %p178 = por %p176, %p177
      %p179 = scmp.ne.s32.totalorder %s168, %s171
      %p180 = scmp.eq.s32.totalorder %s36, 1
      %p181 = por %p179, %p180
      %p182 = scmp.ne.s32.totalorder %s171, %s172
      %p183 = scmp.eq.s32.totalorder %s36, 0
      %p184 = por %p182, %p183
      %p185 = scmp.ne.s32.totalorder %s171, %s172
      %p186 = scmp.eq.s32.totalorder %s37, 1
      %p187 = por %p185, %p186
      %p189 = scmp.ne.s32.totalorder %s172, %s188
      %p190 = scmp.eq.s32.totalorder %s37, 0
      %p191 = por %p189, %p190
      %s192 = ssub.s32 %s39, %s46
      %p193 = scmp.eq.s32.totalorder %s192, 0
      %s195 = sadd.s32 %s194, 1
      %s196 = scalar_select %p193, %s194, %s195
      %p199 = pneg %p193
      %p200 = scmp.eq.s32.totalorder %s31, 1
      %p201 = por %p199, %p200
      %p202 = scmp.ne.s32.totalorder %s194, %s197
      %p203 = scmp.eq.s32.totalorder %s31, 0
      %p204 = por %p202, %p203
      %p205 = scmp.ne.s32.totalorder %s194, %s197
      %p206 = scmp.eq.s32.totalorder %s36, 1
      %p207 = por %p205, %p206
      %p208 = scmp.ne.s32.totalorder %s197, %s198
      %p209 = scmp.eq.s32.totalorder %s36, 0
      %p210 = por %p208, %p209
      %p211 = scmp.ne.s32.totalorder %s197, %s198
      %p212 = scmp.eq.s32.totalorder %s37, 1
      %p213 = por %p211, %p212
      %p215 = scmp.ne.s32.totalorder %s198, %s214
      %p216 = scmp.eq.s32.totalorder %s37, 0
      %p217 = por %p215, %p216
      %s218 = ssub.s32 %s39, %s46
      %p219 = scmp.eq.s32.totalorder %s218, 0
      %s221 = sadd.s32 %s220, 1
      %s222 = scalar_select %p219, %s220, %s221
      %p225 = pneg %p219
      %p226 = scmp.eq.s32.totalorder %s31, 1
      %p227 = por %p225, %p226
      %p228 = scmp.ne.s32.totalorder %s220, %s223
      %p229 = scmp.eq.s32.totalorder %s31, 0
      %p230 = por %p228, %p229
      %p231 = scmp.ne.s32.totalorder %s220, %s223
      %p232 = scmp.eq.s32.totalorder %s36, 1
      %p233 = por %p231, %p232
      %p234 = scmp.ne.s32.totalorder %s223, %s224
      %p235 = scmp.eq.s32.totalorder %s36, 0
      %p236 = por %p234, %p235
      %p237 = scmp.ne.s32.totalorder %s223, %s224
      %p238 = scmp.eq.s32.totalorder %s37, 1
      %p239 = por %p237, %p238
      %p241 = scmp.ne.s32.totalorder %s224, %s240
      %p242 = scmp.eq.s32.totalorder %s37, 0
      %p243 = por %p241, %p242
      %s244 = ssub.s32 %s39, %s46
      %p245 = scmp.eq.s32.totalorder %s244, 0
      %s247 = sadd.s32 %s246, 1
      %s248 = scalar_select %p245, %s246, %s247
      %p251 = pneg %p245
      %p252 = scmp.eq.s32.totalorder %s31, 1
      %p253 = por %p251, %p252
      %p254 = scmp.ne.s32.totalorder %s246, %s249
      %p255 = scmp.eq.s32.totalorder %s31, 0
      %p256 = por %p254, %p255
      %p257 = scmp.ne.s32.totalorder %s246, %s249
      %p258 = scmp.eq.s32.totalorder %s36, 1
      %p259 = por %p257, %p258
      %p260 = scmp.ne.s32.totalorder %s249, %s250
      %p261 = scmp.eq.s32.totalorder %s36, 0
      %p262 = por %p260, %p261
      %p263 = scmp.ne.s32.totalorder %s249, %s250
      %p264 = scmp.eq.s32.totalorder %s37, 1
      %p265 = por %p263, %p264
      %p267 = scmp.ne.s32.totalorder %s250, %s266
      %p268 = scmp.eq.s32.totalorder %s37, 0
      %p269 = por %p267, %p268
      %s270 = ssub.s32 %s39, %s46
      %p271 = scmp.eq.s32.totalorder %s270, 0
      %s273 = sadd.s32 %s272, 1
      %s274 = scalar_select %p271, %s272, %s273
      %p277 = pneg %p271
      %p278 = scmp.eq.s32.totalorder %s31, 1
      %p279 = por %p277, %p278
      %p280 = scmp.ne.s32.totalorder %s272, %s275
      %p281 = scmp.eq.s32.totalorder %s31, 0
      %p282 = por %p280, %p281
      %p283 = scmp.ne.s32.totalorder %s272, %s275
      %p284 = scmp.eq.s32.totalorder %s36, 1
      %p285 = por %p283, %p284
      %p286 = scmp.ne.s32.totalorder %s275, %s276
      %p287 = scmp.eq.s32.totalorder %s36, 0
      %p288 = por %p286, %p287
      %p289 = scmp.ne.s32.totalorder %s275, %s276
      %p290 = scmp.eq.s32.totalorder %s37, 1
      %p291 = por %p289, %p290
      %p293 = scmp.ne.s32.totalorder %s276, %s292
      %p294 = scmp.eq.s32.totalorder %s37, 0
      %p295 = por %p293, %p294
      %s296 = ssub.s32 %s39, %s46
      %p297 = scmp.eq.s32.totalorder %s296, 0
      %s299 = sadd.s32 %s298, 1
      %s300 = scalar_select %p297, %s298, %s299
      %p303 = pneg %p297
      %p304 = scmp.eq.s32.totalorder %s31, 1
      %p305 = por %p303, %p304
      %p306 = scmp.ne.s32.totalorder %s298, %s301
      %p307 = scmp.eq.s32.totalorder %s31, 0
      %p308 = por %p306, %p307
      %p309 = scmp.ne.s32.totalorder %s298, %s301
      %p310 = scmp.eq.s32.totalorder %s36, 1
      %p311 = por %p309, %p310
      %p312 = scmp.ne.s32.totalorder %s301, %s302
      %p313 = scmp.eq.s32.totalorder %s36, 0
      %p314 = por %p312, %p313
      %p315 = scmp.ne.s32.totalorder %s301, %s302
      %p316 = scmp.eq.s32.totalorder %s37, 1
      %p317 = por %p315, %p316
      %p319 = scmp.ne.s32.totalorder %s302, %s318
      %p320 = scmp.eq.s32.totalorder %s37, 0
      %p321 = por %p319, %p320
      %s322 = ssub.s32 %s39, %s46
      %p323 = scmp.eq.s32.totalorder %s322, 0
      %s325 = sadd.s32 %s324, 1
      %s326 = scalar_select %p323, %s324, %s325
      %p329 = pneg %p323
      %p330 = scmp.eq.s32.totalorder %s31, 1
      %p331 = por %p329, %p330
      %p332 = scmp.ne.s32.totalorder %s324, %s327
      %p333 = scmp.eq.s32.totalorder %s31, 0
      %p334 = por %p332, %p333
      %p335 = scmp.ne.s32.totalorder %s324, %s327
      %p336 = scmp.eq.s32.totalorder %s36, 1
      %p337 = por %p335, %p336
      %p338 = scmp.ne.s32.totalorder %s327, %s328
      %p339 = scmp.eq.s32.totalorder %s36, 0
      %p340 = por %p338, %p339
      %p341 = scmp.ne.s32.totalorder %s327, %s328
      %p342 = scmp.eq.s32.totalorder %s37, 1
      %p343 = por %p341, %p342
      %p345 = scmp.ne.s32.totalorder %s328, %s344
      %p346 = scmp.eq.s32.totalorder %s37, 0
      %p347 = por %p345, %p346
      %s348 = ssub.s32 %s39, %s46
      %p349 = scmp.eq.s32.totalorder %s348, 0
      %s351 = sadd.s32 %s350, 1
      %s352 = scalar_select %p349, %s350, %s351
      %p355 = pneg %p349
      %p356 = scmp.eq.s32.totalorder %s31, 1
      %p357 = por %p355, %p356
      %p358 = scmp.ne.s32.totalorder %s350, %s353
      %p359 = scmp.eq.s32.totalorder %s31, 0
      %p360 = por %p358, %p359
      %p361 = scmp.ne.s32.totalorder %s350, %s353
      %p362 = scmp.eq.s32.totalorder %s36, 1
      %p363 = por %p361, %p362
      %p364 = scmp.ne.s32.totalorder %s353, %s354
      %p365 = scmp.eq.s32.totalorder %s36, 0
      %p366 = por %p364, %p365
      %p367 = scmp.ne.s32.totalorder %s353, %s354
      %p368 = scmp.eq.s32.totalorder %s37, 1
      %p369 = por %p367, %p368
      %p371 = scmp.ne.s32.totalorder %s354, %s370
      %p372 = scmp.eq.s32.totalorder %s37, 0
      %p373 = por %p371, %p372
      %s374 = ssub.s32 %s39, %s46
      %p375 = scmp.eq.s32.totalorder %s374, 0
      %s377 = sadd.s32 %s376, 1
      %s378 = scalar_select %p375, %s376, %s377
      %p381 = pneg %p375
      %p382 = scmp.eq.s32.totalorder %s31, 1
      %p383 = por %p381, %p382
      %p384 = scmp.ne.s32.totalorder %s376, %s379
      %p385 = scmp.eq.s32.totalorder %s31, 0
      %p386 = por %p384, %p385
      %p387 = scmp.ne.s32.totalorder %s376, %s379
      %p388 = scmp.eq.s32.totalorder %s36, 1
      %p389 = por %p387, %p388
      %p390 = scmp.ne.s32.totalorder %s379, %s380
      %p391 = scmp.eq.s32.totalorder %s36, 0
      %p392 = por %p390, %p391
      %p393 = scmp.ne.s32.totalorder %s379, %s380
      %p394 = scmp.eq.s32.totalorder %s37, 1
      %p395 = por %p393, %p394
      %p397 = scmp.ne.s32.totalorder %s380, %s396
      %p398 = scmp.eq.s32.totalorder %s37, 0
      %p399 = por %p397, %p398
      %s400 = ssub.s32 %s39, %s46
      %p401 = scmp.eq.s32.totalorder %s400, 0
      %s403 = sadd.s32 %s402, 1
      %s404 = scalar_select %p401, %s402, %s403
      %p407 = pneg %p401
      %p408 = scmp.eq.s32.totalorder %s31, 1
      %p409 = por %p407, %p408
      %p410 = scmp.ne.s32.totalorder %s402, %s405
      %p411 = scmp.eq.s32.totalorder %s31, 0
      %p412 = por %p410, %p411
      %p413 = scmp.ne.s32.totalorder %s402, %s405
      %p414 = scmp.eq.s32.totalorder %s36, 1
      %p415 = por %p413, %p414
      %p416 = scmp.ne.s32.totalorder %s405, %s406
      %p417 = scmp.eq.s32.totalorder %s36, 0
      %p418 = por %p416, %p417
      %p419 = scmp.ne.s32.totalorder %s405, %s406
      %p420 = scmp.eq.s32.totalorder %s37, 1
      %p421 = por %p419, %p420
      %p423 = scmp.ne.s32.totalorder %s406, %s422
      %p424 = scmp.eq.s32.totalorder %s37, 0
      %p425 = por %p423, %p424
      %s426 = ssub.s32 %s39, %s46
      %p427 = scmp.eq.s32.totalorder %s426, 0
      %s429 = sadd.s32 %s428, 1
      %s430 = scalar_select %p427, %s428, %s429
      %p433 = pneg %p427
      %p434 = scmp.eq.s32.totalorder %s31, 1
      %p435 = por %p433, %p434
      %p436 = scmp.ne.s32.totalorder %s428, %s431
      %p437 = scmp.eq.s32.totalorder %s31, 0
      %p438 = por %p436, %p437
      %p439 = scmp.ne.s32.totalorder %s428, %s431
      %p440 = scmp.eq.s32.totalorder %s36, 1
      %p441 = por %p439, %p440
      %p442 = scmp.ne.s32.totalorder %s431, %s432
      %p443 = scmp.eq.s32.totalorder %s36, 0
      %p444 = por %p442, %p443
      %p445 = scmp.ne.s32.totalorder %s431, %s432
      %p446 = scmp.eq.s32.totalorder %s37, 1
      %p447 = por %p445, %p446
      %p449 = scmp.ne.s32.totalorder %s432, %s448
      %p450 = scmp.eq.s32.totalorder %s37, 0
      %p451 = por %p449, %p450
      %s452 = ssub.s32 %s39, %s46
      %p453 = scmp.eq.s32.totalorder %s452, 0
      %s455 = sadd.s32 %s454, 1
      %s456 = scalar_select %p453, %s454, %s455
      %p459 = pneg %p453
      %p460 = scmp.eq.s32.totalorder %s31, 1
      %p461 = por %p459, %p460
      %p462 = scmp.ne.s32.totalorder %s454, %s457
      %p463 = scmp.eq.s32.totalorder %s31, 0
      %p464 = por %p462, %p463
      %p465 = scmp.ne.s32.totalorder %s454, %s457
      %p466 = scmp.eq.s32.totalorder %s36, 1
      %p467 = por %p465, %p466
      %p468 = scmp.ne.s32.totalorder %s457, %s458
      %p469 = scmp.eq.s32.totalorder %s36, 0
      %p470 = por %p468, %p469
      %p471 = scmp.ne.s32.totalorder %s457, %s458
      %p472 = scmp.eq.s32.totalorder %s37, 1
      %p473 = por %p471, %p472
      %p475 = scmp.ne.s32.totalorder %s458, %s474
      %p476 = scmp.eq.s32.totalorder %s37, 0
      %p477 = por %p475, %p476
      %s478 = ssub.s32 %s39, %s46
      %p479 = scmp.eq.s32.totalorder %s478, 0
      %s481 = sadd.s32 %s480, 1
      %s482 = scalar_select %p479, %s480, %s481
      %p485 = pneg %p479
      %p486 = scmp.eq.s32.totalorder %s31, 1
      %p487 = por %p485, %p486
      %p488 = scmp.ne.s32.totalorder %s480, %s483
      %p489 = scmp.eq.s32.totalorder %s31, 0
      %p490 = por %p488, %p489
      %p491 = scmp.ne.s32.totalorder %s480, %s483
      %p492 = scmp.eq.s32.totalorder %s36, 1
      %p493 = por %p491, %p492
      %p494 = scmp.ne.s32.totalorder %s483, %s484
      %p495 = scmp.eq.s32.totalorder %s36, 0
      %p496 = por %p494, %p495
      %p497 = scmp.ne.s32.totalorder %s483, %s484
      %p498 = scmp.eq.s32.totalorder %s37, 1
      %p499 = por %p497, %p498
      %p501 = scmp.ne.s32.totalorder %s484, %s500
      %p502 = scmp.eq.s32.totalorder %s37, 0
      %p503 = por %p501, %p502
      %s504 = ssub.s32 %s39, %s46
      %p505 = scmp.eq.s32.totalorder %s504, 0
      %s507 = sadd.s32 %s506, 1
      %s508 = scalar_select %p505, %s506, %s507
      %p511 = pneg %p505
      %p512 = scmp.eq.s32.totalorder %s31, 1
      %p513 = por %p511, %p512
      %p514 = scmp.ne.s32.totalorder %s506, %s509
      %p515 = scmp.eq.s32.totalorder %s31, 0
      %p516 = por %p514, %p515
      %p517 = scmp.ne.s32.totalorder %s506, %s509
      %p518 = scmp.eq.s32.totalorder %s36, 1
      %p519 = por %p517, %p518
      %p520 = scmp.ne.s32.totalorder %s509, %s510
      %p521 = scmp.eq.s32.totalorder %s36, 0
      %p522 = por %p520, %p521
      %p523 = scmp.ne.s32.totalorder %s509, %s510
      %p524 = scmp.eq.s32.totalorder %s37, 1
      %p525 = por %p523, %p524
      %p527 = scmp.ne.s32.totalorder %s510, %s526
      %p528 = scmp.eq.s32.totalorder %s37, 0
      %p529 = por %p527, %p528
      %s530 = ssub.s32 %s39, %s46
      %p531 = scmp.eq.s32.totalorder %s530, 0
      %s533 = sadd.s32 %s532, 1
      %s534 = scalar_select %p531, %s532, %s533
      %p537 = pneg %p531
      %p538 = scmp.eq.s32.totalorder %s31, 1
      %p539 = por %p537, %p538
      %p540 = scmp.ne.s32.totalorder %s532, %s535
      %p541 = scmp.eq.s32.totalorder %s31, 0
      %p542 = por %p540, %p541
      %p543 = scmp.ne.s32.totalorder %s532, %s535
      %p544 = scmp.eq.s32.totalorder %s36, 1
      %p545 = por %p543, %p544
      %p546 = scmp.ne.s32.totalorder %s535, %s536
      %p547 = scmp.eq.s32.totalorder %s36, 0
      %p548 = por %p546, %p547
      %p549 = scmp.ne.s32.totalorder %s535, %s536
      %p550 = scmp.eq.s32.totalorder %s37, 1
      %p551 = por %p549, %p550
      %p553 = scmp.ne.s32.totalorder %s536, %s552
      %p554 = scmp.eq.s32.totalorder %s37, 0
      %p555 = por %p553, %p554
      %s557 = sadd.s32 %s556, 1
      %p560 = scmp.eq.s32.totalorder %s31, 1
      %p561 = scmp.ne.s32.totalorder %s556, %s558
      %p562 = scmp.eq.s32.totalorder %s31, 0
      %p563 = por %p561, %p562
      %p564 = scmp.ne.s32.totalorder %s556, %s558
      %p565 = scmp.eq.s32.totalorder %s36, 1
      %p566 = por %p564, %p565
      %p567 = scmp.ne.s32.totalorder %s558, %s559
      %p568 = scmp.eq.s32.totalorder %s36, 0
      %p569 = por %p567, %p568
      %p570 = scmp.ne.s32.totalorder %s558, %s559
      %p571 = scmp.eq.s32.totalorder %s37, 1
      %p572 = por %p570, %p571
      %p574 = scmp.ne.s32.totalorder %s559, %s573
      %p575 = scmp.eq.s32.totalorder %s37, 0
      %p576 = por %p574, %p575
      %s578 = sadd.s32 %s577, 1
      %p581 = scmp.eq.s32.totalorder %s31, 1
      %p582 = scmp.ne.s32.totalorder %s577, %s579
      %p583 = scmp.eq.s32.totalorder %s31, 0
      %p584 = por %p582, %p583
      %p585 = scmp.ne.s32.totalorder %s577, %s579
      %p586 = scmp.eq.s32.totalorder %s36, 1
      %p587 = por %p585, %p586
      %p588 = scmp.ne.s32.totalorder %s579, %s580
      %p589 = scmp.eq.s32.totalorder %s36, 0
      %p590 = por %p588, %p589
      %p591 = scmp.ne.s32.totalorder %s579, %s580
      %p592 = scmp.eq.s32.totalorder %s37, 1
      %p593 = por %p591, %p592
      %p595 = scmp.ne.s32.totalorder %s580, %s594
      %p596 = scmp.eq.s32.totalorder %s37, 0
      %p597 = por %p595, %p596
      %s599 = sadd.s32 %s598, 1
      %p602 = scmp.eq.s32.totalorder %s31, 1
      %p603 = scmp.ne.s32.totalorder %s598, %s600
      %p604 = scmp.eq.s32.totalorder %s31, 0
      %p605 = por %p603, %p604
      %p606 = scmp.ne.s32.totalorder %s598, %s600
      %p607 = scmp.eq.s32.totalorder %s36, 1
      %p608 = por %p606, %p607
      %p609 = scmp.ne.s32.totalorder %s600, %s601
      %p610 = scmp.eq.s32.totalorder %s36, 0
      %p611 = por %p609, %p610
      %p612 = scmp.ne.s32.totalorder %s600, %s601
      %p613 = scmp.eq.s32.totalorder %s37, 1
      %p614 = por %p612, %p613
      %p616 = scmp.ne.s32.totalorder %s601, %s615
      %p617 = scmp.eq.s32.totalorder %s37, 0
      %p618 = por %p616, %p617
      %s620 = sadd.s32 %s619, 1
      %p623 = scmp.eq.s32.totalorder %s31, 1
      %p624 = scmp.ne.s32.totalorder %s619, %s621
      %p625 = scmp.eq.s32.totalorder %s31, 0
      %p626 = por %p624, %p625
      %p627 = scmp.ne.s32.totalorder %s619, %s621
      %p628 = scmp.eq.s32.totalorder %s36, 1
      %p629 = por %p627, %p628
      %p630 = scmp.ne.s32.totalorder %s621, %s622
      %p631 = scmp.eq.s32.totalorder %s36, 0
      %p632 = por %p630, %p631
      %p633 = scmp.ne.s32.totalorder %s621, %s622
      %p634 = scmp.eq.s32.totalorder %s37, 1
      %p635 = por %p633, %p634
      %p637 = scmp.ne.s32.totalorder %s622, %s636
      %p638 = scmp.eq.s32.totalorder %s37, 0
      %p639 = por %p637, %p638
      %s640 = ssub.s32 %s38, %s50
      %p641 = scmp.eq.s32.totalorder %s640, 0
      %s643 = sadd.s32 %s642, 1
      %s644 = scalar_select %p641, %s642, %s643
      %p647 = pneg %p641
      %p648 = scmp.eq.s32.totalorder %s31, 1
      %p649 = por %p647, %p648
      %p650 = scmp.ne.s32.totalorder %s642, %s645
      %p651 = scmp.eq.s32.totalorder %s31, 0
      %p652 = por %p650, %p651
      %p653 = scmp.ne.s32.totalorder %s642, %s645
      %p654 = scmp.eq.s32.totalorder %s36, 1
      %p655 = por %p653, %p654
      %p656 = scmp.ne.s32.totalorder %s645, %s646
      %p657 = scmp.eq.s32.totalorder %s36, 0
      %p658 = por %p656, %p657
      %p659 = scmp.ne.s32.totalorder %s645, %s646
      %p660 = scmp.eq.s32.totalorder %s37, 1
      %p661 = por %p659, %p660
      %p663 = scmp.ne.s32.totalorder %s646, %s662
      %p664 = scmp.eq.s32.totalorder %s37, 0
      %p665 = por %p663, %p664
      %p666 = scmp.le.s32.totalorder 1, %s31
      %p667 = scmp.lt.s32.totalorder %s31, 3
      %p668 = pnand %p666, %p667
      %p669 = pneg %p668
      // Predicated region
      $region9: #{tpu_custom_call.1} parent=5 // pred_check
        _
      $region10: #{tpu_custom_call.1} parent=5 // pred_check_branch
        %671 = sbr.rel (%p668) target = $region12
      $region11: #{tpu_custom_call.1} parent=5 // pred_region
        %s672 = ssub.s32 %s31, 1
        // Predicated region
        $region13: #{tpu_custom_call.1} parent=11 // pred_check
          %p673 = pneg %p69
        $region14: #{tpu_custom_call.1} parent=11 // pred_check_branch
          %675 = sbr.rel (%p673) target = $region16
        $region15: #{tpu_custom_call.1} parent=11 // pred_region
          %s676 = smul.u32 2, %s40
          %p677 = scmp.lt.s32.totalorder %s676, 1
          %s678 = scalar_select %p677, %s676, 1
          %s679 = smul.addr %s678, 2
          %s680 = smul.addr %s679, 8
          %s681 = scalar_lea.vmem %s0, %s680
          %s682 = smul.u32 2, %s40
        $region16: #{tpu_custom_call.1} parent=11 // pred_fallthru
          _
        // Predicated region
        $region17: #{tpu_custom_call.1} parent=11 // pred_check
          %p683 = pneg %p90
        $region18: #{tpu_custom_call.1} parent=11 // pred_check_branch
          %685 = sbr.rel (%p683) target = $region20
        $region19: #{tpu_custom_call.1} parent=11 // pred_region
          _
        $region20: #{tpu_custom_call.1} parent=11 // pred_fallthru
          _
        // Predicated region
        $region21: #{tpu_custom_call.1} parent=11 // pred_check
          %p686 = pneg %p111
        $region22: #{tpu_custom_call.1} parent=11 // pred_check_branch
          %688 = sbr.rel (%p686) target = $region24
        $region23: #{tpu_custom_call.1} parent=11 // pred_region
          _
        $region24: #{tpu_custom_call.1} parent=11 // pred_fallthru
          _
        // Predicated region
        $region25: #{tpu_custom_call.1} parent=11 // pred_check
          %p689 = pneg %p132
        $region26: #{tpu_custom_call.1} parent=11 // pred_check_branch
          %691 = sbr.rel (%p689) target = $region28
        $region27: #{tpu_custom_call.1} parent=11 // pred_region
          _
        $region28: #{tpu_custom_call.1} parent=11 // pred_fallthru
          _
        // Predicated region
        $region29: #{tpu_custom_call.1} parent=11 // pred_check
          %p692 = pneg %p569
        $region30: #{tpu_custom_call.1} parent=11 // pred_check_branch
          %694 = sbr.rel (%p692) target = $region32
        $region31: #{tpu_custom_call.1} parent=11 // pred_region
          _
        $region32: #{tpu_custom_call.1} parent=11 // pred_fallthru
          _
        // Predicated region
        $region33: #{tpu_custom_call.1} parent=11 // pred_check
          %p695 = pneg %p590
        $region34: #{tpu_custom_call.1} parent=11 // pred_check_branch
          %697 = sbr.rel (%p695) target = $region36
        $region35: #{tpu_custom_call.1} parent=11 // pred_region
          _
        $region36: #{tpu_custom_call.1} parent=11 // pred_fallthru
          _
        // Predicated region
        $region37: #{tpu_custom_call.1} parent=11 // pred_check
          %p698 = pneg %p611
        $region38: #{tpu_custom_call.1} parent=11 // pred_check_branch
          %700 = sbr.rel (%p698) target = $region40
        $region39: #{tpu_custom_call.1} parent=11 // pred_region
          _
        $region40: #{tpu_custom_call.1} parent=11 // pred_fallthru
          _
        // Predicated region
        $region41: #{tpu_custom_call.1} parent=11 // pred_check
          %p701 = pneg %p632
        $region42: #{tpu_custom_call.1} parent=11 // pred_check_branch
          %703 = sbr.rel (%p701) target = $region44
        $region43: #{tpu_custom_call.1} parent=11 // pred_region
          _
        $region44: #{tpu_custom_call.1} parent=11 // pred_fallthru
          _
      $region12: #{tpu_custom_call.1} parent=5 // pred_fallthru
        _
      %p704 = scmp.lt.s32.totalorder %s31, 2
      // Predicated region
      $region45: #{tpu_custom_call.1} parent=5 // pred_check
        %p705 = pneg %p704
      $region46: #{tpu_custom_call.1} parent=5 // pred_check_branch
        %707 = sbr.rel (%p705) target = $region48
      $region47: #{tpu_custom_call.1} parent=5 // pred_region
        // Predicated region
        $region49: #{tpu_custom_call.1} parent=47 // pred_check
          %p708 = pneg %p152
        $region50: #{tpu_custom_call.1} parent=47 // pred_check_branch
          %710 = sbr.rel (%p708) target = $region52
        $region51: #{tpu_custom_call.1} parent=47 // pred_region
          %p711 = scmp.lt.s32.totalorder %s39, 1
          %s712 = scalar_select %p711, %s39, 1
          %s713 = smul.addr %s712, 64
          %s714 = smul.addr %s713, 8
          %s715 = scalar_lea.vmem %s4, %s714
        $region52: #{tpu_custom_call.1} parent=47 // pred_fallthru
          _
        // Predicated region
        $region53: #{tpu_custom_call.1} parent=47 // pred_check
          %p716 = pneg %p178
        $region54: #{tpu_custom_call.1} parent=47 // pred_check_branch
          %718 = sbr.rel (%p716) target = $region56
        $region55: #{tpu_custom_call.1} parent=47 // pred_region
          %p719 = scmp.lt.s32.totalorder %s39, 1
          %s720 = scalar_select %p719, %s39, 1
          %s721 = scalar_lea.vmem %s5, %s720
        $region56: #{tpu_custom_call.1} parent=47 // pred_fallthru
          _
        // Predicated region
        $region57: #{tpu_custom_call.1} parent=47 // pred_check
          %p722 = pneg %p204
        $region58: #{tpu_custom_call.1} parent=47 // pred_check_branch
          %724 = sbr.rel (%p722) target = $region60
        $region59: #{tpu_custom_call.1} parent=47 // pred_region
          %p725 = scmp.lt.s32.totalorder %s39, 1
          %s726 = scalar_select %p725, %s39, 1
          %s727 = smul.addr %s726, 64
          %s728 = smul.addr %s727, 8
          %s729 = scalar_lea.vmem %s6, %s728
        $region60: #{tpu_custom_call.1} parent=47 // pred_fallthru
          _
        // Predicated region
        $region61: #{tpu_custom_call.1} parent=47 // pred_check
          %p730 = pneg %p230
        $region62: #{tpu_custom_call.1} parent=47 // pred_check_branch
          %732 = sbr.rel (%p730) target = $region64
        $region63: #{tpu_custom_call.1} parent=47 // pred_region
          %p733 = scmp.lt.s32.totalorder %s39, 1
          %s734 = scalar_select %p733, %s39, 1
          %s735 = scalar_lea.vmem %s7, %s734
        $region64: #{tpu_custom_call.1} parent=47 // pred_fallthru
          _
        // Predicated region
        $region65: #{tpu_custom_call.1} parent=47 // pred_check
          %p736 = pneg %p256
        $region66: #{tpu_custom_call.1} parent=47 // pred_check_branch
          %738 = sbr.rel (%p736) target = $region68
        $region67: #{tpu_custom_call.1} parent=47 // pred_region
          %p739 = scmp.lt.s32.totalorder %s39, 1
          %s740 = scalar_select %p739, %s39, 1
          %s741 = smul.addr %s740, 64
          %s742 = smul.addr %s741, 8
          %s743 = scalar_lea.vmem %s8, %s742
        $region68: #{tpu_custom_call.1} parent=47 // pred_fallthru
          _
        // Predicated region
        $region69: #{tpu_custom_call.1} parent=47 // pred_check
          %p744 = pneg %p282
        $region70: #{tpu_custom_call.1} parent=47 // pred_check_branch
          %746 = sbr.rel (%p744) target = $region72
        $region71: #{tpu_custom_call.1} parent=47 // pred_region
          %p747 = scmp.lt.s32.totalorder %s39, 1
          %s748 = scalar_select %p747, %s39, 1
          %s749 = scalar_lea.vmem %s9, %s748
        $region72: #{tpu_custom_call.1} parent=47 // pred_fallthru
          _
        // Predicated region
        $region73: #{tpu_custom_call.1} parent=47 // pred_check
          %p750 = pneg %p308
        $region74: #{tpu_custom_call.1} parent=47 // pred_check_branch
          %752 = sbr.rel (%p750) target = $region76
        $region75: #{tpu_custom_call.1} parent=47 // pred_region
          %p753 = scmp.lt.s32.totalorder %s39, 1
          %s754 = scalar_select %p753, %s39, 1
          %s755 = smul.addr %s754, 16
          %s756 = smul.addr %s755, 8
          %s757 = scalar_lea.vmem %s10, %s756
        $region76: #{tpu_custom_call.1} parent=47 // pred_fallthru
          _
        // Predicated region
        $region77: #{tpu_custom_call.1} parent=47 // pred_check
          %p758 = pneg %p334
        $region78: #{tpu_custom_call.1} parent=47 // pred_check_branch
          %760 = sbr.rel (%p758) target = $region80
        $region79: #{tpu_custom_call.1} parent=47 // pred_region
          %p761 = scmp.lt.s32.totalorder %s39, 1
          %s762 = scalar_select %p761, %s39, 1
          %s763 = scalar_lea.vmem %s11, %s762
        $region80: #{tpu_custom_call.1} parent=47 // pred_fallthru
          _
        // Predicated region
        $region81: #{tpu_custom_call.1} parent=47 // pred_check
          %p764 = pneg %p360
        $region82: #{tpu_custom_call.1} parent=47 // pred_check_branch
          %766 = sbr.rel (%p764) target = $region84
        $region83: #{tpu_custom_call.1} parent=47 // pred_region
          %p767 = scmp.lt.s32.totalorder %s39, 1
          %s768 = scalar_select %p767, %s39, 1
          %s769 = scalar_lea.vmem %s12, %s768
        $region84: #{tpu_custom_call.1} parent=47 // pred_fallthru
          _
        // Predicated region
        $region85: #{tpu_custom_call.1} parent=47 // pred_check
          %p770 = pneg %p386
        $region86: #{tpu_custom_call.1} parent=47 // pred_check_branch
          %772 = sbr.rel (%p770) target = $region88
        $region87: #{tpu_custom_call.1} parent=47 // pred_region
          %p773 = scmp.lt.s32.totalorder %s39, 1
          %s774 = scalar_select %p773, %s39, 1
          %s775 = scalar_lea.vmem %s13, %s774
        $region88: #{tpu_custom_call.1} parent=47 // pred_fallthru
          _
        // Predicated region
        $region89: #{tpu_custom_call.1} parent=47 // pred_check
          %p776 = pneg %p412
        $region90: #{tpu_custom_call.1} parent=47 // pred_check_branch
          %778 = sbr.rel (%p776) target = $region92
        $region91: #{tpu_custom_call.1} parent=47 // pred_region
          %p779 = scmp.lt.s32.totalorder %s39, 1
          %s780 = scalar_select %p779, %s39, 1
          %s781 = smul.addr %s780, 32
          %s782 = smul.addr %s781, 8
          %s783 = scalar_lea.vmem %s14, %s782
        $region92: #{tpu_custom_call.1} parent=47 // pred_fallthru
          _
        // Predicated region
        $region93: #{tpu_custom_call.1} parent=47 // pred_check
          %p784 = pneg %p438
        $region94: #{tpu_custom_call.1} parent=47 // pred_check_branch
          %786 = sbr.rel (%p784) target = $region96
        $region95: #{tpu_custom_call.1} parent=47 // pred_region
          %p787 = scmp.lt.s32.totalorder %s39, 1
          %s788 = scalar_select %p787, %s39, 1
          %s789 = smul.addr %s788, 2
          %s790 = scalar_lea.vmem %s15, %s789
        $region96: #{tpu_custom_call.1} parent=47 // pred_fallthru
          _
        // Predicated region
        $region97: #{tpu_custom_call.1} parent=47 // pred_check
          %p791 = pneg %p464
        $region98: #{tpu_custom_call.1} parent=47 // pred_check_branch
          %793 = sbr.rel (%p791) target = $region100
        $region99: #{tpu_custom_call.1} parent=47 // pred_region
          %p794 = scmp.lt.s32.totalorder %s39, 1
          %s795 = scalar_select %p794, %s39, 1
          %s796 = smul.addr %s795, 32
          %s797 = smul.addr %s796, 8
          %s798 = scalar_lea.vmem %s16, %s797
        $region100: #{tpu_custom_call.1} parent=47 // pred_fallthru
          _
        // Predicated region
        $region101: #{tpu_custom_call.1} parent=47 // pred_check
          %p799 = pneg %p490
        $region102: #{tpu_custom_call.1} parent=47 // pred_check_branch
          %801 = sbr.rel (%p799) target = $region104
        $region103: #{tpu_custom_call.1} parent=47 // pred_region
          %p802 = scmp.lt.s32.totalorder %s39, 1
          %s803 = scalar_select %p802, %s39, 1
          %s804 = scalar_lea.vmem %s17, %s803
        $region104: #{tpu_custom_call.1} parent=47 // pred_fallthru
          _
        // Predicated region
        $region105: #{tpu_custom_call.1} parent=47 // pred_check
          %p805 = pneg %p516
        $region106: #{tpu_custom_call.1} parent=47 // pred_check_branch
          %807 = sbr.rel (%p805) target = $region108
        $region107: #{tpu_custom_call.1} parent=47 // pred_region
          %p808 = scmp.lt.s32.totalorder %s39, 1
          %s809 = scalar_select %p808, %s39, 1
          %s810 = scalar_lea.vmem %s18, %s809
        $region108: #{tpu_custom_call.1} parent=47 // pred_fallthru
          _
        // Predicated region
        $region109: #{tpu_custom_call.1} parent=47 // pred_check
          %p811 = pneg %p542
        $region110: #{tpu_custom_call.1} parent=47 // pred_check_branch
          %813 = sbr.rel (%p811) target = $region112
        $region111: #{tpu_custom_call.1} parent=47 // pred_region
          %p814 = scmp.lt.s32.totalorder %s39, 1
          %s815 = scalar_select %p814, %s39, 1
          %s816 = scalar_lea.vmem %s19, %s815
        $region112: #{tpu_custom_call.1} parent=47 // pred_fallthru
          _
      $region48: #{tpu_custom_call.1} parent=5 // pred_fallthru
        _
      %p817 = scmp.le.s32.totalorder 1, %s31
      %p818 = scmp.lt.s32.totalorder %s31, 3
      %p819 = pnand %p817, %p818
      %p820 = pneg %p819
      // Predicated region
      $region113: #{tpu_custom_call.1} parent=5 // pred_check
        _
      $region114: #{tpu_custom_call.1} parent=5 // pred_check_branch
        %822 = sbr.rel (%p819) target = $region116
      $region115: #{tpu_custom_call.1} parent=5 // pred_region
        %s823 = ssub.s32 %s31, 1
        %s824 = smul.u32 2, %s40
        %p825 = scmp.lt.s32.totalorder %s824, 1
        %s826 = scalar_select %p825, %s824, 1
        %s827 = smul.addr %s826, 2
        %s828 = smul.addr %s827, 8
        %s829 = scalar_lea.vmem %s0, %s828
        %p830 = pneg %p69
        %p831 = pneg %p66
        %p832 = pneg %p90
        %p833 = pneg %p87
        %p834 = pneg %p111
        %p835 = pneg %p108
        %p836 = pneg %p132
        %p837 = pneg %p129
        %p838 = scmp.lt.s32.totalorder %s41, 1
        %s839 = scalar_select %p838, %s41, 1
        %s840 = smul.addr %s839, 64
        %s841 = smul.addr %s840, 8
        %s842 = scalar_lea.vmem %s4, %s841
        %p843 = pneg %p158
        %p844 = pneg %p155
        %p845 = scmp.lt.s32.totalorder %s41, 1
        %s846 = scalar_select %p845, %s41, 1
        %s847 = scalar_lea.vmem %s5, %s846
        %p848 = pneg %p184
        %p849 = pneg %p181
        %p850 = scmp.lt.s32.totalorder %s41, 1
        %s851 = scalar_select %p850, %s41, 1
        %s852 = smul.addr %s851, 64
        %s853 = smul.addr %s852, 8
        %s854 = scalar_lea.vmem %s6, %s853
        %p855 = pneg %p210
        %p856 = pneg %p207
        %p857 = scmp.lt.s32.totalorder %s41, 1
        %s858 = scalar_select %p857, %s41, 1
        %s859 = scalar_lea.vmem %s7, %s858
        %p860 = pneg %p236
        %p861 = pneg %p233
        %p862 = scmp.lt.s32.totalorder %s41, 1
        %s863 = scalar_select %p862, %s41, 1
        %s864 = smul.addr %s863, 64
        %s865 = smul.addr %s864, 8
        %s866 = scalar_lea.vmem %s8, %s865
        %p867 = pneg %p262
        %p868 = pneg %p259
        %p869 = scmp.lt.s32.totalorder %s41, 1
        %s870 = scalar_select %p869, %s41, 1
        %s871 = scalar_lea.vmem %s9, %s870
        %p872 = pneg %p288
        %p873 = pneg %p285
        %p874 = scmp.lt.s32.totalorder %s41, 1
        %s875 = scalar_select %p874, %s41, 1
        %s876 = smul.addr %s875, 16
        %s877 = smul.addr %s876, 8
        %s878 = scalar_lea.vmem %s10, %s877
        %p879 = pneg %p314
        %p880 = pneg %p311
        %p881 = scmp.lt.s32.totalorder %s41, 1
        %s882 = scalar_select %p881, %s41, 1
        %s883 = scalar_lea.vmem %s11, %s882
        %p884 = pneg %p340
        %p885 = pneg %p337
        %p886 = scmp.lt.s32.totalorder %s41, 1
        %s887 = scalar_select %p886, %s41, 1
        %s888 = scalar_lea.vmem %s12, %s887
        %p889 = pneg %p366
        %p890 = pneg %p363
        %p891 = scmp.lt.s32.totalorder %s41, 1
        %s892 = scalar_select %p891, %s41, 1
        %s893 = scalar_lea.vmem %s13, %s892
        %p894 = pneg %p392
        %p895 = pneg %p389
        %p896 = scmp.lt.s32.totalorder %s41, 1
        %s897 = scalar_select %p896, %s41, 1
        %s898 = smul.addr %s897, 32
        %s899 = smul.addr %s898, 8
        %s900 = scalar_lea.vmem %s14, %s899
        %p901 = pneg %p418
        %p902 = pneg %p415
        %p903 = scmp.lt.s32.totalorder %s41, 1
        %s904 = scalar_select %p903, %s41, 1
        %s905 = smul.addr %s904, 2
        %s906 = scalar_lea.vmem %s15, %s905
        %p907 = pneg %p444
        %p908 = pneg %p441
        %p909 = scmp.lt.s32.totalorder %s41, 1
        %s910 = scalar_select %p909, %s41, 1
        %s911 = smul.addr %s910, 32
        %s912 = smul.addr %s911, 8
        %s913 = scalar_lea.vmem %s16, %s912
        %p914 = pneg %p470
        %p915 = pneg %p467
        %p916 = scmp.lt.s32.totalorder %s41, 1
        %s917 = scalar_select %p916, %s41, 1
        %s918 = scalar_lea.vmem %s17, %s917
        %p919 = pneg %p496
        %p920 = pneg %p493
        %p921 = scmp.lt.s32.totalorder %s41, 1
        %s922 = scalar_select %p921, %s41, 1
        %s923 = scalar_lea.vmem %s18, %s922
        %p924 = pneg %p522
        %p925 = pneg %p519
        %p926 = scmp.lt.s32.totalorder %s41, 1
        %s927 = scalar_select %p926, %s41, 1
        %s928 = scalar_lea.vmem %s19, %s927
        %p929 = pneg %p548
        %p930 = pneg %p545
        %p931 = pneg %p569
        %p932 = pneg %p566
        %p933 = pneg %p590
        %p934 = pneg %p587
        %p935 = pneg %p611
        %p936 = pneg %p608
        %p937 = pneg %p632
        %p938 = pneg %p629
        %p939 = pneg %p658
        %p940 = pneg %p655
        %s941 = smul.u32 2, %s40
        %p942 = scmp.lt.s32.totalorder %s941, 1
        %s943 = scalar_select %p942, %s941, 1
        %s944 = smul.addr %s943, 2
        %s945 = smul.addr %s944, 8
        %s946 = scalar_lea.vmem %s0, %s945
        %s947 = smul.u32 2, %s40
        %p948 = scmp.lt.s32.totalorder %s41, 1
        %s949 = scalar_select %p948, %s41, 1
        %s950 = smul.addr %s949, 64
        %s951 = smul.addr %s950, 8
        %s952 = scalar_lea.vmem %s4, %s951
        %p953 = scmp.lt.s32.totalorder %s41, 1
        %s954 = scalar_select %p953, %s41, 1
        %s955 = scalar_lea.vmem %s5, %s954
        %p956 = scmp.lt.s32.totalorder %s41, 1
        %s957 = scalar_select %p956, %s41, 1
        %s958 = smul.addr %s957, 64
        %s959 = smul.addr %s958, 8
        %s960 = scalar_lea.vmem %s6, %s959
        %p961 = scmp.lt.s32.totalorder %s41, 1
        %s962 = scalar_select %p961, %s41, 1
        %s963 = scalar_lea.vmem %s7, %s962
        %p964 = scmp.lt.s32.totalorder %s41, 1
        %s965 = scalar_select %p964, %s41, 1
        %s966 = smul.addr %s965, 64
        %s967 = smul.addr %s966, 8
        %s968 = scalar_lea.vmem %s8, %s967
        %p969 = scmp.lt.s32.totalorder %s41, 1
        %s970 = scalar_select %p969, %s41, 1
        %s971 = scalar_lea.vmem %s9, %s970
        %p972 = scmp.lt.s32.totalorder %s41, 1
        %s973 = scalar_select %p972, %s41, 1
        %s974 = smul.addr %s973, 16
        %s975 = smul.addr %s974, 8
        %s976 = scalar_lea.vmem %s10, %s975
        %p977 = scmp.lt.s32.totalorder %s41, 1
        %s978 = scalar_select %p977, %s41, 1
        %s979 = scalar_lea.vmem %s11, %s978
        %p980 = scmp.lt.s32.totalorder %s41, 1
        %s981 = scalar_select %p980, %s41, 1
        %s982 = scalar_lea.vmem %s12, %s981
        %p983 = scmp.lt.s32.totalorder %s41, 1
        %s984 = scalar_select %p983, %s41, 1
        %s985 = scalar_lea.vmem %s13, %s984
        %p986 = scmp.lt.s32.totalorder %s41, 1
        %s987 = scalar_select %p986, %s41, 1
        %s988 = smul.addr %s987, 32
        %s989 = smul.addr %s988, 8
        %s990 = scalar_lea.vmem %s14, %s989
        %p991 = scmp.lt.s32.totalorder %s41, 1
        %s992 = scalar_select %p991, %s41, 1
        %s993 = smul.addr %s992, 2
        %s994 = scalar_lea.vmem %s15, %s993
        %p995 = scmp.lt.s32.totalorder %s41, 1
        %s996 = scalar_select %p995, %s41, 1
        %s997 = smul.addr %s996, 32
        %s998 = smul.addr %s997, 8
        %s999 = scalar_lea.vmem %s16, %s998
        %p1000 = scmp.lt.s32.totalorder %s41, 1
        %s1001 = scalar_select %p1000, %s41, 1
        %s1002 = scalar_lea.vmem %s17, %s1001
        %p1003 = scmp.lt.s32.totalorder %s41, 1
        %s1004 = scalar_select %p1003, %s41, 1
        %s1005 = scalar_lea.vmem %s18, %s1004
        %p1006 = scmp.lt.s32.totalorder %s41, 1
        %s1007 = scalar_select %p1006, %s41, 1
        %s1008 = scalar_lea.vmem %s19, %s1007
        %p1009 = scmp.eq.s32.totalorder %s41, 0
        // Predicated region
        $region117: #{tpu_custom_call.1} parent=115 // pred_check
          %p1010 = pneg %p1009
        $region118: #{tpu_custom_call.1} parent=115 // pred_check_branch
          %1012 = sbr.rel (%p1010) target = $region120
        $region119: #{tpu_custom_call.1} parent=115 // pred_region
          %v1013 = vld [vmem:[%s946] sm:$0xff]
          %v1014 = vld [vmem:[%s946 + $0x8] sm:$0xff]
          %v1015 = vld [vmem:[%s1] sm:$0xff]
          %v1016 = vld [vmem:[%s1 + $0x8] sm:$0xff]
          %v1017 = vld [vmem:[%s1 + $0x10] sm:$0xff]
          %v1018 = vld [vmem:[%s1 + $0x18] sm:$0xff]
          %v1019 = vld [vmem:[%s1 + $0x20] sm:$0xff]
          %v1020 = vld [vmem:[%s1 + $0x28] sm:$0xff]
          %v1021 = vld [vmem:[%s2] sm:$0x1]
          %v1023 = vlaneseq
          %v1024 = vshrl.u32 %v1023, 7
          %v1025 = vsub.s32 0, %v1024
          %v1026 = vrot.slane %v1021, %v1025
          %vm1028 = vcmask 392192
          %v1030 = vsel %vm1028, %v1013, 0
          %v1033 = vsel %vm1028, %v1014, 0
          %1035 = vmatprep.subr.mxu0 0.0
          %1036 = vmatpush1.msra.mxu0 %v1015
          %1037 = vmatprep.subr.mxu0 0.0
          %1038 = vmatpush1.msra.mxu0 %v1016
          %1039 = vmatprep.subr.mxu0 0.0
          %1040 = vmatpush1.msra.mxu0 %v1017
          %1041 = vmatprep.subr.mxu0 0.0
          %1042 = vmatpush1.msra.mxu0 %v1018
          %1043 = vmatprep.subr.mxu0 0.0
          %1044 = vmatpush1.msra.mxu0 %v1019
          %1045 = vmatprep.subr.mxu0 0.0
          %1046 = vmatpush1.msra.mxu0 %v1020
          %1047 = vmatprep.subr.mxu0 0.0
          %1048 = vmatpush1.msra.mxu0 0.0
          %1049 = vmatprep.subr.mxu0 0.0
          %1050 = vmatpush1.msra.mxu0 0.0
          %1051 = vmatprep.subr.mxu0 0.0
          %1052 = vmatpush1.msra.mxu0 0.0
          %1053 = vmatprep.subr.mxu0 0.0
          %1054 = vmatpush1.msra.mxu0 0.0
          %1055 = vmatprep.subr.mxu0 0.0
          %1056 = vmatpush1.msra.mxu0 0.0
          %1057 = vmatprep.subr.mxu0 0.0
          %1058 = vmatpush1.msra.mxu0 0.0
          %1059 = vmatprep.subr.mxu0 0.0
          %1060 = vmatpush1.msra.mxu0 0.0
          %1061 = vmatprep.subr.mxu0 0.0
          %1062 = vmatpush1.msra.mxu0 0.0
          %1063 = vmatprep.subr.mxu0 0.0
          %1064 = vmatpush1.msra.mxu0 0.0
          %1065 = vmatprep.subr.mxu0 0.0
          %1066 = vmatpush1.msra.mxu0 0.0
          %1067 = vmatprep.subr.mxu0 0.0
          %1068 = vmatpush1.msra.mxu0 0.0
          %1069 = vmatprep.subr.mxu0 0.0
          %1070 = vmatpush1.msra.mxu0 0.0
          %1071 = vmatprep.subr.mxu0 0.0
          %1072 = vmatpush1.msra.mxu0 0.0
          %1073 = vmatprep.subr.mxu0 0.0
          %1074 = vmatpush1.msra.mxu0 0.0
          %1075 = vmatprep.subr.mxu0 0.0
          %1076 = vmatpush1.msra.mxu0 0.0
          %1077 = vmatprep.subr.mxu0 0.0
          %1078 = vmatpush1.msra.mxu0 0.0
          %1079 = vmatprep.subr.mxu0 0.0
          %1080 = vmatpush1.msra.mxu0 0.0
          %1081 = vmatprep.subr.mxu0 0.0
          %1082 = vmatpush1.msra.mxu0 0.0
          %1083 = vmatprep.subr.mxu0 0.0
          %1084 = vmatpush1.msra.mxu0 0.0
          %1085 = vmatprep.subr.mxu0 0.0
          %1086 = vmatpush1.msra.mxu0 0.0
          %1087 = vmatprep.subr.mxu0 0.0
          %1088 = vmatpush1.msra.mxu0 0.0
          %1089 = vmatprep.subr.mxu0 0.0
          %1090 = vmatpush1.msra.mxu0 0.0
          %1091 = vmatprep.subr.mxu0 0.0
          %1092 = vmatpush1.msra.mxu0 0.0
          %1093 = vmatprep.subr.mxu0 0.0
          %1094 = vmatpush1.msra.mxu0 0.0
          %1095 = vmatprep.subr.mxu0 0.0
          %1096 = vmatpush1.msra.mxu0 0.0
          %1097 = vmatprep.subr.mxu0 0.0
          %1098 = vmatpush1.msra.mxu0 0.0
          %1099 = vmatprep.mubr.f32.mxu0 0.0
          %1100 = vmatmul.mubr.f32.gmra.mrb[0].mxu0 %v1030
          %v1101 = vpop.f32.mrb[0].mxu0
          %v1102 = vadd.f32 %v1026, %v1101
          %v1103 = vpop.f32.mrb[0].mxu0
          %1104 = vmatprep.mubr.f32.mxu0 0.0
          %1105 = vmatmul.mubr.f32.gmra.mrb[0].mxu0 %v1033
          %v1106 = vpop.f32.mrb[0].mxu0
          %v1107 = vadd.f32 %v1026, %v1106
          %v1108 = vpop.f32.mrb[0].mxu0
          %1109 = vdwg.mxu0
          %v1110 = vld [vmem:[%s3] sm:$0xff]
          %v1111 = vld [vmem:[%s3 + $0x8] sm:$0xff]
          %v1112 = vld [vmem:[%s3 + $0x10] sm:$0x1]
          %vm1113 = vcmask 1040384
          %v1114 = vsel %vm1113, %v1112, 0.0
          %1115 = vst [vmem:[#allocation2] sm:$0xff] %v1102
          %1116 = vst [vmem:[#allocation2 + $0x8] sm:$0xff] %v1107
          %1117 = vst [vmem:[#allocation2 + $0x10] sm:$0xff] %v1110
          %1118 = vst [vmem:[#allocation2 + $0x18] sm:$0xff] %v1111
          %1119 = vst [vmem:[#allocation2 + $0x20] sm:$0xff] %v1114
          %s1120 = scalar_lea.vmem %s946, 16
          %v1121 = vld [vmem:[%s1120] sm:$0xff]
          %v1122 = vld [vmem:[%s1120 + $0x8] sm:$0xff]
          %v1123 = vld [vmem:[%s1] sm:$0xff]
          %v1124 = vld [vmem:[%s1 + $0x8] sm:$0xff]
          %v1125 = vld [vmem:[%s1 + $0x10] sm:$0xff]
          %v1126 = vld [vmem:[%s1 + $0x18] sm:$0xff]
          %v1127 = vld [vmem:[%s1 + $0x20] sm:$0xff]
          %v1128 = vld [vmem:[%s1 + $0x28] sm:$0xff]
          %v1129 = vld [vmem:[%s2] sm:$0x1]
          %v1131 = vlaneseq
          %v1132 = vshrl.u32 %v1131, 7
          %v1133 = vsub.s32 0, %v1132
          %v1134 = vrot.slane %v1129, %v1133
          %v1137 = vsel %vm1028, %v1121, 0
          %v1140 = vsel %vm1028, %v1122, 0
          %1142 = vmatprep.subr.mxu0 0.0
          %1143 = vmatpush1.msra.mxu0 %v1123
          %1144 = vmatprep.subr.mxu0 0.0
          %1145 = vmatpush1.msra.mxu0 %v1124
          %1146 = vmatprep.subr.mxu0 0.0
          %1147 = vmatpush1.msra.mxu0 %v1125
          %1148 = vmatprep.subr.mxu0 0.0
          %1149 = vmatpush1.msra.mxu0 %v1126
          %1150 = vmatprep.subr.mxu0 0.0
          %1151 = vmatpush1.msra.mxu0 %v1127
          %1152 = vmatprep.subr.mxu0 0.0
          %1153 = vmatpush1.msra.mxu0 %v1128
          %1154 = vmatprep.subr.mxu0 0.0
          %1155 = vmatpush1.msra.mxu0 0.0
          %1156 = vmatprep.subr.mxu0 0.0
          %1157 = vmatpush1.msra.mxu0 0.0
          %1158 = vmatprep.subr.mxu0 0.0
          %1159 = vmatpush1.msra.mxu0 0.0
          %1160 = vmatprep.subr.mxu0 0.0
          %1161 = vmatpush1.msra.mxu0 0.0
          %1162 = vmatprep.subr.mxu0 0.0
          %1163 = vmatpush1.msra.mxu0 0.0
          %1164 = vmatprep.subr.mxu0 0.0
          %1165 = vmatpush1.msra.mxu0 0.0
          %1166 = vmatprep.subr.mxu0 0.0
          %1167 = vmatpush1.msra.mxu0 0.0
          %1168 = vmatprep.subr.mxu0 0.0
          %1169 = vmatpush1.msra.mxu0 0.0
          %1170 = vmatprep.subr.mxu0 0.0
          %1171 = vmatpush1.msra.mxu0 0.0
          %1172 = vmatprep.subr.mxu0 0.0
          %1173 = vmatpush1.msra.mxu0 0.0
          %1174 = vmatprep.subr.mxu0 0.0
          %1175 = vmatpush1.msra.mxu0 0.0
          %1176 = vmatprep.subr.mxu0 0.0
          %1177 = vmatpush1.msra.mxu0 0.0
          %1178 = vmatprep.subr.mxu0 0.0
          %1179 = vmatpush1.msra.mxu0 0.0
          %1180 = vmatprep.subr.mxu0 0.0
          %1181 = vmatpush1.msra.mxu0 0.0
          %1182 = vmatprep.subr.mxu0 0.0
          %1183 = vmatpush1.msra.mxu0 0.0
          %1184 = vmatprep.subr.mxu0 0.0
          %1185 = vmatpush1.msra.mxu0 0.0
          %1186 = vmatprep.subr.mxu0 0.0
          %1187 = vmatpush1.msra.mxu0 0.0
          %1188 = vmatprep.subr.mxu0 0.0
          %1189 = vmatpush1.msra.mxu0 0.0
          %1190 = vmatprep.subr.mxu0 0.0
          %1191 = vmatpush1.msra.mxu0 0.0
          %1192 = vmatprep.subr.mxu0 0.0
          %1193 = vmatpush1.msra.mxu0 0.0
          %1194 = vmatprep.subr.mxu0 0.0
          %1195 = vmatpush1.msra.mxu0 0.0
          %1196 = vmatprep.subr.mxu0 0.0
          %1197 = vmatpush1.msra.mxu0 0.0
          %1198 = vmatprep.subr.mxu0 0.0
          %1199 = vmatpush1.msra.mxu0 0.0
          %1200 = vmatprep.subr.mxu0 0.0
          %1201 = vmatpush1.msra.mxu0 0.0
          %1202 = vmatprep.subr.mxu0 0.0
          %1203 = vmatpush1.msra.mxu0 0.0
          %1204 = vmatprep.subr.mxu0 0.0
          %1205 = vmatpush1.msra.mxu0 0.0
          %1206 = vmatprep.mubr.f32.mxu0 0.0
          %1207 = vmatmul.mubr.f32.gmra.mrb[0].mxu0 %v1137
          %v1208 = vpop.f32.mrb[0].mxu0
          %v1209 = vadd.f32 %v1134, %v1208
          %v1210 = vpop.f32.mrb[0].mxu0
          %1211 = vmatprep.mubr.f32.mxu0 0.0
          %1212 = vmatmul.mubr.f32.gmra.mrb[0].mxu0 %v1140
          %v1213 = vpop.f32.mrb[0].mxu0
          %v1214 = vadd.f32 %v1134, %v1213
          %v1215 = vpop.f32.mrb[0].mxu0
          %1216 = vdwg.mxu0
          %v1217 = vld [vmem:[%s3] sm:$0xff]
          %v1218 = vld [vmem:[%s3 + $0x8] sm:$0xff]
          %v1219 = vld [vmem:[%s3 + $0x10] sm:$0x1]
          %v1220 = vsel %vm1113, %v1219, 0.0
          %1221 = vst [vmem:[#allocation2 + $0x28] sm:$0xff] %v1209
          %1222 = vst [vmem:[#allocation2 + $0x30] sm:$0xff] %v1214
          %1223 = vst [vmem:[#allocation2 + $0x38] sm:$0xff] %v1217
          %1224 = vst [vmem:[#allocation2 + $0x40] sm:$0xff] %v1218
          %1225 = vst [vmem:[#allocation2 + $0x48] sm:$0xff] %v1220
        $region120: #{tpu_custom_call.1} parent=115 // pred_fallthru
          _
        %v1226 = vld [vmem:[#allocation2] sm:$0xff]
        %v1227 = vld [vmem:[#allocation2 + $0x8] sm:$0xff]
        %v1228 = vld [vmem:[#allocation2 + $0x10] sm:$0xff]
        %v1229 = vld [vmem:[#allocation2 + $0x18] sm:$0xff]
        %v1230 = vld [vmem:[#allocation2 + $0x20] sm:$0xff]
        %v1231 = vld [vmem:[#allocation2 + $0x28] sm:$0xff]
        %v1232 = vld [vmem:[#allocation2 + $0x30] sm:$0xff]
        %v1233 = vld [vmem:[#allocation2 + $0x38] sm:$0xff]
        %v1234 = vld [vmem:[#allocation2 + $0x40] sm:$0xff]
        %v1235 = vld [vmem:[#allocation2 + $0x48] sm:$0xff]
        %v1236 = vlaneseq
        %v1237 = vand.u32 %v1236, 127
        %vm1238 = vcmp.lt.s32.totalorder %v1237, 33
        %v1239 = vsel %vm1238, 0.0, -1e+30
        %v1240 = vld [vmem:[%s976] sm:$0xff]
        %v1241 = vld [vmem:[%s976 + $0x8] sm:$0xff]
        %v1242 = vld [vmem:[%s976 + $0x10] sm:$0xff]
        %v1243 = vld [vmem:[%s976 + $0x18] sm:$0xff]
        %v1244 = vld [vmem:[%s976 + $0x20] sm:$0xff]
        %v1245 = vld [vmem:[%s976 + $0x28] sm:$0xff]
        %v1246 = vld [vmem:[%s976 + $0x30] sm:$0xff]
        %v1247 = vld [vmem:[%s976 + $0x38] sm:$0xff]
        %v1248 = vld [vmem:[%s976 + $0x40] sm:$0xff]
        %v1249 = vld [vmem:[%s976 + $0x48] sm:$0xff]
        %v1250 = vld [vmem:[%s976 + $0x50] sm:$0xff]
        %v1251 = vld [vmem:[%s976 + $0x58] sm:$0xff]
        %v1252 = vld [vmem:[%s976 + $0x60] sm:$0xff]
        %v1253 = vld [vmem:[%s976 + $0x68] sm:$0xff]
        %v1254 = vld [vmem:[%s976 + $0x70] sm:$0xff]
        %v1255 = vld [vmem:[%s976 + $0x78] sm:$0xff]
        %v1256 = vld [vmem:[%s952] sm:$0xff]
        %v1257 = vld [vmem:[%s952 + $0x8] sm:$0xff]
        %v1258 = vld [vmem:[%s952 + $0x10] sm:$0xff]
        %v1259 = vld [vmem:[%s952 + $0x18] sm:$0xff]
        %v1260 = vld [vmem:[%s952 + $0x20] sm:$0xff]
        %v1261 = vld [vmem:[%s952 + $0x28] sm:$0xff]
        %v1262 = vld [vmem:[%s952 + $0x30] sm:$0xff]
        %v1263 = vld [vmem:[%s952 + $0x38] sm:$0xff]
        %v1264 = vld [vmem:[%s952 + $0x40] sm:$0xff]
        %v1265 = vld [vmem:[%s952 + $0x48] sm:$0xff]
        %v1266 = vld [vmem:[%s952 + $0x50] sm:$0xff]
        %v1267 = vld [vmem:[%s952 + $0x58] sm:$0xff]
        %v1268 = vld [vmem:[%s952 + $0x60] sm:$0xff]
        %v1269 = vld [vmem:[%s952 + $0x68] sm:$0xff]
        %v1270 = vld [vmem:[%s952 + $0x70] sm:$0xff]
        %v1271 = vld [vmem:[%s952 + $0x78] sm:$0xff]
        %v1272 = vld [vmem:[%s955] sm:$0x1]
        %v1274 = vlaneseq
        %v1275 = vshrl.u32 %v1274, 7
        %v1276 = vsub.s32 0, %v1275
        %v1277 = vrot.slane %v1272, %v1276
        %1279 = vmatprep.subr.mxu0 0.0
        %1280 = vmatpush1.msra.mxu0 %v1256
        %1281 = vmatprep.subr.mxu0 0.0
        %1282 = vmatpush1.msra.mxu0 %v1257
        %1283 = vmatprep.subr.mxu0 0.0
        %1284 = vmatpush1.msra.mxu0 %v1258
        %1285 = vmatprep.subr.mxu0 0.0
        %1286 = vmatpush1.msra.mxu0 %v1259
        %1287 = vmatprep.subr.mxu0 0.0
        %1288 = vmatpush1.msra.mxu0 %v1260
        %1289 = vmatprep.subr.mxu0 0.0
        %1290 = vmatpush1.msra.mxu0 %v1261
        %1291 = vmatprep.subr.mxu0 0.0
        %1292 = vmatpush1.msra.mxu0 %v1262
        %1293 = vmatprep.subr.mxu0 0.0
        %1294 = vmatpush1.msra.mxu0 %v1263
        %1295 = vmatprep.subr.mxu0 0.0
        %1296 = vmatpush1.msra.mxu0 %v1264
        %1297 = vmatprep.subr.mxu0 0.0
        %1298 = vmatpush1.msra.mxu0 %v1265
        %1299 = vmatprep.subr.mxu0 0.0
        %1300 = vmatpush1.msra.mxu0 %v1266
        %1301 = vmatprep.subr.mxu0 0.0
        %1302 = vmatpush1.msra.mxu0 %v1267
        %1303 = vmatprep.subr.mxu0 0.0
        %1304 = vmatpush1.msra.mxu0 %v1268
        %1305 = vmatprep.subr.mxu0 0.0
        %1306 = vmatpush1.msra.mxu0 %v1269
        %1307 = vmatprep.subr.mxu0 0.0
        %1308 = vmatpush1.msra.mxu0 %v1270
        %1309 = vmatprep.subr.mxu0 0.0
        %1310 = vmatpush1.msra.mxu0 %v1271
        %1311 = vmatprep.subr.mxu0 0.0
        %1312 = vmatpush1.msra.mxu0 0.0
        %1313 = vmatprep.subr.mxu0 0.0
        %1314 = vmatpush1.msra.mxu0 0.0
        %1315 = vmatprep.subr.mxu0 0.0
        %1316 = vmatpush1.msra.mxu0 0.0
        %1317 = vmatprep.subr.mxu0 0.0
        %1318 = vmatpush1.msra.mxu0 0.0
        %1319 = vmatprep.subr.mxu0 0.0
        %1320 = vmatpush1.msra.mxu0 0.0
        %1321 = vmatprep.subr.mxu0 0.0
        %1322 = vmatpush1.msra.mxu0 0.0
        %1323 = vmatprep.subr.mxu0 0.0
        %1324 = vmatpush1.msra.mxu0 0.0
        %1325 = vmatprep.subr.mxu0 0.0
        %1326 = vmatpush1.msra.mxu0 0.0
        %1327 = vmatprep.subr.mxu0 0.0
        %1328 = vmatpush1.msra.mxu0 0.0
        %1329 = vmatprep.subr.mxu0 0.0
        %1330 = vmatpush1.msra.mxu0 0.0
        %1331 = vmatprep.subr.mxu0 0.0
        %1332 = vmatpush1.msra.mxu0 0.0
        %1333 = vmatprep.subr.mxu0 0.0
        %1334 = vmatpush1.msra.mxu0 0.0
        %1335 = vmatprep.subr.mxu0 0.0
        %1336 = vmatpush1.msra.mxu0 0.0
        %1337 = vmatprep.subr.mxu0 0.0
        %1338 = vmatpush1.msra.mxu0 0.0
        %1339 = vmatprep.subr.mxu0 0.0
        %1340 = vmatpush1.msra.mxu0 0.0
        %1341 = vmatprep.subr.mxu0 0.0
        %1342 = vmatpush1.msra.mxu0 0.0
        %1343 = vmatprep.mubr.f32.mxu0 0.0
        %1344 = vmatmul.mubr.f32.gmra.mrb[0].mxu0 %v1226
        %v1345 = vpop.f32.mrb[0].mxu0
        %v1346 = vadd.f32 %v1277, %v1345
        %v1347 = vpop.f32.mrb[0].mxu0
        %1348 = vmatprep.mubr.f32.mxu0 0.0
        %1349 = vmatmul.mubr.f32.gmra.mrb[0].mxu0 %v1227
        %v1350 = vpop.f32.mrb[0].mxu0
        %v1351 = vadd.f32 %v1277, %v1350
        %v1352 = vpop.f32.mrb[0].mxu0
        %1353 = vmatprep.mubr.f32.mxu0 0.0
        %1354 = vmatmul.mubr.f32.gmra.mrb[0].mxu0 %v1228
        %v1355 = vpop.f32.mrb[0].mxu0
        %v1356 = vadd.f32 %v1277, %v1355
        %v1357 = vpop.f32.mrb[0].mxu0
        %1358 = vmatprep.mubr.f32.mxu0 0.0
        %1359 = vmatmul.mubr.f32.gmra.mrb[0].mxu0 %v1229
        %v1360 = vpop.f32.mrb[0].mxu0
        %v1361 = vadd.f32 %v1277, %v1360
        %v1362 = vpop.f32.mrb[0].mxu0
        %1363 = vmatprep.mubr.f32.mxu0 0.0
        %1364 = vmatmul.mubr.f32.gmra.mrb[0].mxu0 %v1230
        %v1365 = vpop.f32.mrb[0].mxu0
        %v1366 = vadd.f32 %v1277, %v1365
        %v1367 = vpop.f32.mrb[0].mxu0
        %1368 = vmatprep.mubr.f32.mxu0 0.0
        %1369 = vmatmul.mubr.f32.gmra.mrb[0].mxu0 %v1231
        %v1370 = vpop.f32.mrb[0].mxu0
        %v1371 = vadd.f32 %v1277, %v1370
        %v1372 = vpop.f32.mrb[0].mxu0
        %1373 = vmatprep.mubr.f32.mxu0 0.0
        %1374 = vmatmul.mubr.f32.gmra.mrb[0].mxu0 %v1232
        %v1375 = vpop.f32.mrb[0].mxu0
        %v1376 = vadd.f32 %v1277, %v1375
        %v1377 = vpop.f32.mrb[0].mxu0
        %1378 = vmatprep.mubr.f32.mxu0 0.0
        %1379 = vmatmul.mubr.f32.gmra.mrb[0].mxu0 %v1233
        %v1380 = vpop.f32.mrb[0].mxu0
        %v1381 = vadd.f32 %v1277, %v1380
        %v1382 = vpop.f32.mrb[0].mxu0
        %1383 = vmatprep.mubr.f32.mxu0 0.0
        %1384 = vmatmul.mubr.f32.gmra.mrb[0].mxu0 %v1234
        %v1385 = vpop.f32.mrb[0].mxu0
        %v1386 = vadd.f32 %v1277, %v1385
        %v1387 = vpop.f32.mrb[0].mxu0
        %1388 = vmatprep.mubr.f32.mxu0 0.0
        %1389 = vmatmul.mubr.f32.gmra.mrb[0].mxu0 %v1235
        %v1390 = vpop.f32.mrb[0].mxu0
        %v1391 = vadd.f32 %v1277, %v1390
        %v1392 = vpop.f32.mrb[0].mxu0
        %1393 = vdwg.mxu0
        %s1394 = scalar_lea.vmem %s952, 128
        %v1395 = vld [vmem:[%s1394] sm:$0xff]
        %v1396 = vld [vmem:[%s1394 + $0x8] sm:$0xff]
        %v1397 = vld [vmem:[%s1394 + $0x10] sm:$0xff]
        %v1398 = vld [vmem:[%s1394 + $0x18] sm:$0xff]
        %v1399 = vld [vmem:[%s1394 + $0x20] sm:$0xff]
        %v1400 = vld [vmem:[%s1394 + $0x28] sm:$0xff]
        %v1401 = vld [vmem:[%s1394 + $0x30] sm:$0xff]
        %v1402 = vld [vmem:[%s1394 + $0x38] sm:$0xff]
        %v1403 = vld [vmem:[%s1394 + $0x40] sm:$0xff]
        %v1404 = vld [vmem:[%s1394 + $0x48] sm:$0xff]
        %v1405 = vld [vmem:[%s1394 + $0x50] sm:$0xff]
        %v1406 = vld [vmem:[%s1394 + $0x58] sm:$0xff]
        %v1407 = vld [vmem:[%s1394 + $0x60] sm:$0xff]
        %v1408 = vld [vmem:[%s1394 + $0x68] sm:$0xff]
        %v1409 = vld [vmem:[%s1394 + $0x70] sm:$0xff]
        %v1410 = vld [vmem:[%s1394 + $0x78] sm:$0xff]
        %1411 = vmatprep.subr.mxu0 0.0
        %1412 = vmatpush1.msra.mxu0 %v1395
        %1413 = vmatprep.subr.mxu0 0.0
        %1414 = vmatpush1.msra.mxu0 %v1396
        %1415 = vmatprep.subr.mxu0 0.0
        %1416 = vmatpush1.msra.mxu0 %v1397
        %1417 = vmatprep.subr.mxu0 0.0
        %1418 = vmatpush1.msra.mxu0 %v1398
        %1419 = vmatprep.subr.mxu0 0.0
        %1420 = vmatpush1.msra.mxu0 %v1399
        %1421 = vmatprep.subr.mxu0 0.0
        %1422 = vmatpush1.msra.mxu0 %v1400
        %1423 = vmatprep.subr.mxu0 0.0
        %1424 = vmatpush1.msra.mxu0 %v1401
        %1425 = vmatprep.subr.mxu0 0.0
        %1426 = vmatpush1.msra.mxu0 %v1402
        %1427 = vmatprep.subr.mxu0 0.0
        %1428 = vmatpush1.msra.mxu0 %v1403
        %1429 = vmatprep.subr.mxu0 0.0
        %1430 = vmatpush1.msra.mxu0 %v1404
        %1431 = vmatprep.subr.mxu0 0.0
        %1432 = vmatpush1.msra.mxu0 %v1405
        %1433 = vmatprep.subr.mxu0 0.0
        %1434 = vmatpush1.msra.mxu0 %v1406
        %1435 = vmatprep.subr.mxu0 0.0
        %1436 = vmatpush1.msra.mxu0 %v1407
        %1437 = vmatprep.subr.mxu0 0.0
        %1438 = vmatpush1.msra.mxu0 %v1408
        %1439 = vmatprep.subr.mxu0 0.0
        %1440 = vmatpush1.msra.mxu0 %v1409
        %1441 = vmatprep.subr.mxu0 0.0
        %1442 = vmatpush1.msra.mxu0 %v1410
        %1443 = vmatprep.subr.mxu0 0.0
        %1444 = vmatpush1.msra.mxu0 0.0
        %1445 = vmatprep.subr.mxu0 0.0
        %1446 = vmatpush1.msra.mxu0 0.0
        %1447 = vmatprep.subr.mxu0 0.0
        %1448 = vmatpush1.msra.mxu0 0.0
        %1449 = vmatprep.subr.mxu0 0.0
        %1450 = vmatpush1.msra.mxu0 0.0
        %1451 = vmatprep.subr.mxu0 0.0
        %1452 = vmatpush1.msra.mxu0 0.0
        %1453 = vmatprep.subr.mxu0 0.0
        %1454 = vmatpush1.msra.mxu0 0.0
        %1455 = vmatprep.subr.mxu0 0.0
        %1456 = vmatpush1.msra.mxu0 0.0
        %1457 = vmatprep.subr.mxu0 0.0
        %1458 = vmatpush1.msra.mxu0 0.0
        %1459 = vmatprep.subr.mxu0 0.0
        %1460 = vmatpush1.msra.mxu0 0.0
        %1461 = vmatprep.subr.mxu0 0.0
        %1462 = vmatpush1.msra.mxu0 0.0
        %1463 = vmatprep.subr.mxu0 0.0
        %1464 = vmatpush1.msra.mxu0 0.0
        %1465 = vmatprep.subr.mxu0 0.0
        %1466 = vmatpush1.msra.mxu0 0.0
        %1467 = vmatprep.subr.mxu0 0.0
        %1468 = vmatpush1.msra.mxu0 0.0
        %1469 = vmatprep.subr.mxu0 0.0
        %1470 = vmatpush1.msra.mxu0 0.0
        %1471 = vmatprep.subr.mxu0 0.0
        %1472 = vmatpush1.msra.mxu0 0.0
        %1473 = vmatprep.subr.mxu0 0.0
        %1474 = vmatpush1.msra.mxu0 0.0
        %1475 = vmatprep.mubr.f32.mxu0 0.0
        %1476 = vmatmul.mubr.f32.gmra.mrb[0].mxu0 %v1226
        %v1477 = vpop.f32.mrb[0].mxu0
        %v1478 = vadd.f32 %v1277, %v1477
        %v1479 = vpop.f32.mrb[0].mxu0
        %1480 = vmatprep.mubr.f32.mxu0 0.0
        %1481 = vmatmul.mubr.f32.gmra.mrb[0].mxu0 %v1227
        %v1482 = vpop.f32.mrb[0].mxu0
        %v1483 = vadd.f32 %v1277, %v1482
        %v1484 = vpop.f32.mrb[0].mxu0
        %1485 = vmatprep.mubr.f32.mxu0 0.0
        %1486 = vmatmul.mubr.f32.gmra.mrb[0].mxu0 %v1228
        %v1487 = vpop.f32.mrb[0].mxu0
        %v1488 = vadd.f32 %v1277, %v1487
        %v1489 = vpop.f32.mrb[0].mxu0
        %1490 = vmatprep.mubr.f32.mxu0 0.0
        %1491 = vmatmul.mubr.f32.gmra.mrb[0].mxu0 %v1229
        %v1492 = vpop.f32.mrb[0].mxu0
        %v1493 = vadd.f32 %v1277, %v1492
        %v1494 = vpop.f32.mrb[0].mxu0
        %1495 = vmatprep.mubr.f32.mxu0 0.0
        %1496 = vmatmul.mubr.f32.gmra.mrb[0].mxu0 %v1230
        %v1497 = vpop.f32.mrb[0].mxu0
        %v1498 = vadd.f32 %v1277, %v1497
        %v1499 = vpop.f32.mrb[0].mxu0
        %1500 = vmatprep.mubr.f32.mxu0 0.0
        %1501 = vmatmul.mubr.f32.gmra.mrb[0].mxu0 %v1231
        %v1502 = vpop.f32.mrb[0].mxu0
        %v1503 = vadd.f32 %v1277, %v1502
        %v1504 = vpop.f32.mrb[0].mxu0
        %1505 = vmatprep.mubr.f32.mxu0 0.0
        %1506 = vmatmul.mubr.f32.gmra.mrb[0].mxu0 %v1232
        %v1507 = vpop.f32.mrb[0].mxu0
        %v1508 = vadd.f32 %v1277, %v1507
        %v1509 = vpop.f32.mrb[0].mxu0
        %1510 = vmatprep.mubr.f32.mxu0 0.0
        %1511 = vmatmul.mubr.f32.gmra.mrb[0].mxu0 %v1233
        %v1512 = vpop.f32.mrb[0].mxu0
        %v1513 = vadd.f32 %v1277, %v1512
        %v1514 = vpop.f32.mrb[0].mxu0
        %1515 = vmatprep.mubr.f32.mxu0 0.0
        %1516 = vmatmul.mubr.f32.gmra.mrb[0].mxu0 %v1234
        %v1517 = vpop.f32.mrb[0].mxu0
        %v1518 = vadd.f32 %v1277, %v1517
        %v1519 = vpop.f32.mrb[0].mxu0
        %1520 = vmatprep.mubr.f32.mxu0 0.0
        %1521 = vmatmul.mubr.f32.gmra.mrb[0].mxu0 %v1235
        %v1522 = vpop.f32.mrb[0].mxu0
        %v1523 = vadd.f32 %v1277, %v1522
        %v1524 = vpop.f32.mrb[0].mxu0
        %1525 = vdwg.mxu0
        %s1526 = scalar_lea.vmem %s952, 256
        %v1527 = vld [vmem:[%s1526] sm:$0xff]
        %v1528 = vld [vmem:[%s1526 + $0x8] sm:$0xff]
        %v1529 = vld [vmem:[%s1526 + $0x10] sm:$0xff]
        %v1530 = vld [vmem:[%s1526 + $0x18] sm:$0xff]
        %v1531 = vld [vmem:[%s1526 + $0x20] sm:$0xff]
        %v1532 = vld [vmem:[%s1526 + $0x28] sm:$0xff]
        %v1533 = vld [vmem:[%s1526 + $0x30] sm:$0xff]
        %v1534 = vld [vmem:[%s1526 + $0x38] sm:$0xff]
        %v1535 = vld [vmem:[%s1526 + $0x40] sm:$0xff]
        %v1536 = vld [vmem:[%s1526 + $0x48] sm:$0xff]
        %v1537 = vld [vmem:[%s1526 + $0x50] sm:$0xff]
        %v1538 = vld [vmem:[%s1526 + $0x58] sm:$0xff]
        %v1539 = vld [vmem:[%s1526 + $0x60] sm:$0xff]
        %v1540 = vld [vmem:[%s1526 + $0x68] sm:$0xff]
        %v1541 = vld [vmem:[%s1526 + $0x70] sm:$0xff]
        %v1542 = vld [vmem:[%s1526 + $0x78] sm:$0xff]
        %1543 = vmatprep.subr.mxu0 0.0
        %1544 = vmatpush1.msra.mxu0 %v1527
        %1545 = vmatprep.subr.mxu0 0.0
        %1546 = vmatpush1.msra.mxu0 %v1528
        %1547 = vmatprep.subr.mxu0 0.0
        %1548 = vmatpush1.msra.mxu0 %v1529
        %1549 = vmatprep.subr.mxu0 0.0
        %1550 = vmatpush1.msra.mxu0 %v1530
        %1551 = vmatprep.subr.mxu0 0.0
        %1552 = vmatpush1.msra.mxu0 %v1531
        %1553 = vmatprep.subr.mxu0 0.0
        %1554 = vmatpush1.msra.mxu0 %v1532
        %1555 = vmatprep.subr.mxu0 0.0
        %1556 = vmatpush1.msra.mxu0 %v1533
        %1557 = vmatprep.subr.mxu0 0.0
        %1558 = vmatpush1.msra.mxu0 %v1534
        %1559 = vmatprep.subr.mxu0 0.0
        %1560 = vmatpush1.msra.mxu0 %v1535
        %1561 = vmatprep.subr.mxu0 0.0
        %1562 = vmatpush1.msra.mxu0 %v1536
        %1563 = vmatprep.subr.mxu0 0.0
        %1564 = vmatpush1.msra.mxu0 %v1537
        %1565 = vmatprep.subr.mxu0 0.0
        %1566 = vmatpush1.msra.mxu0 %v1538
        %1567 = vmatprep.subr.mxu0 0.0
        %1568 = vmatpush1.msra.mxu0 %v1539
        %1569 = vmatprep.subr.mxu0 0.0
        %1570 = vmatpush1.msra.mxu0 %v1540
        %1571 = vmatprep.subr.mxu0 0.0
        %1572 = vmatpush1.msra.mxu0 %v1541
        %1573 = vmatprep.subr.mxu0 0.0
        %1574 = vmatpush1.msra.mxu0 %v1542
        %1575 = vmatprep.subr.mxu0 0.0
        %1576 = vmatpush1.msra.mxu0 0.0
        %1577 = vmatprep.subr.mxu0 0.0
        %1578 = vmatpush1.msra.mxu0 0.0
        %1579 = vmatprep.subr.mxu0 0.0
        %1580 = vmatpush1.msra.mxu0 0.0
        %1581 = vmatprep.subr.mxu0 0.0
        %1582 = vmatpush1.msra.mxu0 0.0
        %1583 = vmatprep.subr.mxu0 0.0
        %1584 = vmatpush1.msra.mxu0 0.0
        %1585 = vmatprep.subr.mxu0 0.0
        %1586 = vmatpush1.msra.mxu0 0.0
        %1587 = vmatprep.subr.mxu0 0.0
        %1588 = vmatpush1.msra.mxu0 0.0
        %1589 = vmatprep.subr.mxu0 0.0
        %1590 = vmatpush1.msra.mxu0 0.0
        %1591 = vmatprep.subr.mxu0 0.0
        %1592 = vmatpush1.msra.mxu0 0.0
        %1593 = vmatprep.subr.mxu0 0.0
        %1594 = vmatpush1.msra.mxu0 0.0
        %1595 = vmatprep.subr.mxu0 0.0
        %1596 = vmatpush1.msra.mxu0 0.0
        %1597 = vmatprep.subr.mxu0 0.0
        %1598 = vmatpush1.msra.mxu0 0.0
        %1599 = vmatprep.subr.mxu0 0.0
        %1600 = vmatpush1.msra.mxu0 0.0
        %1601 = vmatprep.subr.mxu0 0.0
        %1602 = vmatpush1.msra.mxu0 0.0
        %1603 = vmatprep.subr.mxu0 0.0
        %1604 = vmatpush1.msra.mxu0 0.0
        %1605 = vmatprep.subr.mxu0 0.0
        %1606 = vmatpush1.msra.mxu0 0.0
        %1607 = vmatprep.mubr.f32.mxu0 0.0
        %1608 = vmatmul.mubr.f32.gmra.mrb[0].mxu0 %v1226
        %v1609 = vpop.f32.mrb[0].mxu0
        %v1610 = vadd.f32 %v1277, %v1609
        %v1611 = vpop.f32.mrb[0].mxu0
        %1612 = vmatprep.mubr.f32.mxu0 0.0
        %1613 = vmatmul.mubr.f32.gmra.mrb[0].mxu0 %v1227
        %v1614 = vpop.f32.mrb[0].mxu0
        %v1615 = vadd.f32 %v1277, %v1614
        %v1616 = vpop.f32.mrb[0].mxu0
        %1617 = vmatprep.mubr.f32.mxu0 0.0
        %1618 = vmatmul.mubr.f32.gmra.mrb[0].mxu0 %v1228
        %v1619 = vpop.f32.mrb[0].mxu0
        %v1620 = vadd.f32 %v1277, %v1619
        %v1621 = vpop.f32.mrb[0].mxu0
        %1622 = vmatprep.mubr.f32.mxu0 0.0
        %1623 = vmatmul.mubr.f32.gmra.mrb[0].mxu0 %v1229
        %v1624 = vpop.f32.mrb[0].mxu0
        %v1625 = vadd.f32 %v1277, %v1624
        %v1626 = vpop.f32.mrb[0].mxu0
        %1627 = vmatprep.mubr.f32.mxu0 0.0
        %1628 = vmatmul.mubr.f32.gmra.mrb[0].mxu0 %v1230
        %v1629 = vpop.f32.mrb[0].mxu0
        %v1630 = vadd.f32 %v1277, %v1629
        %v1631 = vpop.f32.mrb[0].mxu0
        %1632 = vmatprep.mubr.f32.mxu0 0.0
        %1633 = vmatmul.mubr.f32.gmra.mrb[0].mxu0 %v1231
        %v1634 = vpop.f32.mrb[0].mxu0
        %v1635 = vadd.f32 %v1277, %v1634
        %v1636 = vpop.f32.mrb[0].mxu0
        %1637 = vmatprep.mubr.f32.mxu0 0.0
        %1638 = vmatmul.mubr.f32.gmra.mrb[0].mxu0 %v1232
        %v1639 = vpop.f32.mrb[0].mxu0
        %v1640 = vadd.f32 %v1277, %v1639
        %v1641 = vpop.f32.mrb[0].mxu0
        %1642 = vmatprep.mubr.f32.mxu0 0.0
        %1643 = vmatmul.mubr.f32.gmra.mrb[0].mxu0 %v1233
        %v1644 = vpop.f32.mrb[0].mxu0
        %v1645 = vadd.f32 %v1277, %v1644
        %v1646 = vpop.f32.mrb[0].mxu0
        %1647 = vmatprep.mubr.f32.mxu0 0.0
        %1648 = vmatmul.mubr.f32.gmra.mrb[0].mxu0 %v1234
        %v1649 = vpop.f32.mrb[0].mxu0
        %v1650 = vadd.f32 %v1277, %v1649
        %v1651 = vpop.f32.mrb[0].mxu0
        %1652 = vmatprep.mubr.f32.mxu0 0.0
        %1653 = vmatmul.mubr.f32.gmra.mrb[0].mxu0 %v1235
        %v1654 = vpop.f32.mrb[0].mxu0
        %v1655 = vadd.f32 %v1277, %v1654
        %v1656 = vpop.f32.mrb[0].mxu0
        %1657 = vdwg.mxu0
        %s1658 = scalar_lea.vmem %s952, 384
        %v1659 = vld [vmem:[%s1658] sm:$0xff]
        %v1660 = vld [vmem:[%s1658 + $0x8] sm:$0xff]
        %v1661 = vld [vmem:[%s1658 + $0x10] sm:$0xff]
        %v1662 = vld [vmem:[%s1658 + $0x18] sm:$0xff]
        %v1663 = vld [vmem:[%s1658 + $0x20] sm:$0xff]
        %v1664 = vld [vmem:[%s1658 + $0x28] sm:$0xff]
        %v1665 = vld [vmem:[%s1658 + $0x30] sm:$0xff]
        %v1666 = vld [vmem:[%s1658 + $0x38] sm:$0xff]
        %v1667 = vld [vmem:[%s1658 + $0x40] sm:$0xff]
        %v1668 = vld [vmem:[%s1658 + $0x48] sm:$0xff]
        %v1669 = vld [vmem:[%s1658 + $0x50] sm:$0xff]
        %v1670 = vld [vmem:[%s1658 + $0x58] sm:$0xff]
        %v1671 = vld [vmem:[%s1658 + $0x60] sm:$0xff]
        %v1672 = vld [vmem:[%s1658 + $0x68] sm:$0xff]
        %v1673 = vld [vmem:[%s1658 + $0x70] sm:$0xff]
        %v1674 = vld [vmem:[%s1658 + $0x78] sm:$0xff]
        %1675 = vmatprep.subr.mxu0 0.0
        %1676 = vmatpush1.msra.mxu0 %v1659
        %1677 = vmatprep.subr.mxu0 0.0
        %1678 = vmatpush1.msra.mxu0 %v1660
        %1679 = vmatprep.subr.mxu0 0.0
        %1680 = vmatpush1.msra.mxu0 %v1661
        %1681 = vmatprep.subr.mxu0 0.0
        %1682 = vmatpush1.msra.mxu0 %v1662
        %1683 = vmatprep.subr.mxu0 0.0
        %1684 = vmatpush1.msra.mxu0 %v1663
        %1685 = vmatprep.subr.mxu0 0.0
        %1686 = vmatpush1.msra.mxu0 %v1664
        %1687 = vmatprep.subr.mxu0 0.0
        %1688 = vmatpush1.msra.mxu0 %v1665
        %1689 = vmatprep.subr.mxu0 0.0
        %1690 = vmatpush1.msra.mxu0 %v1666
        %1691 = vmatprep.subr.mxu0 0.0
        %1692 = vmatpush1.msra.mxu0 %v1667
        %1693 = vmatprep.subr.mxu0 0.0
        %1694 = vmatpush1.msra.mxu0 %v1668
        %1695 = vmatprep.subr.mxu0 0.0
        %1696 = vmatpush1.msra.mxu0 %v1669
        %1697 = vmatprep.subr.mxu0 0.0
        %1698 = vmatpush1.msra.mxu0 %v1670
        %1699 = vmatprep.subr.mxu0 0.0
        %1700 = vmatpush1.msra.mxu0 %v1671
        %1701 = vmatprep.subr.mxu0 0.0
        %1702 = vmatpush1.msra.mxu0 %v1672
        %1703 = vmatprep.subr.mxu0 0.0
        %1704 = vmatpush1.msra.mxu0 %v1673
        %1705 = vmatprep.subr.mxu0 0.0
        %1706 = vmatpush1.msra.mxu0 %v1674
        %1707 = vmatprep.subr.mxu0 0.0
        %1708 = vmatpush1.msra.mxu0 0.0
        %1709 = vmatprep.subr.mxu0 0.0
        %1710 = vmatpush1.msra.mxu0 0.0
        %1711 = vmatprep.subr.mxu0 0.0
        %1712 = vmatpush1.msra.mxu0 0.0
        %1713 = vmatprep.subr.mxu0 0.0
        %1714 = vmatpush1.msra.mxu0 0.0
        %1715 = vmatprep.subr.mxu0 0.0
        %1716 = vmatpush1.msra.mxu0 0.0
        %1717 = vmatprep.subr.mxu0 0.0
        %1718 = vmatpush1.msra.mxu0 0.0
        %1719 = vmatprep.subr.mxu0 0.0
        %1720 = vmatpush1.msra.mxu0 0.0
        %1721 = vmatprep.subr.mxu0 0.0
        %1722 = vmatpush1.msra.mxu0 0.0
        %1723 = vmatprep.subr.mxu0 0.0
        %1724 = vmatpush1.msra.mxu0 0.0
        %1725 = vmatprep.subr.mxu0 0.0
        %1726 = vmatpush1.msra.mxu0 0.0
        %1727 = vmatprep.subr.mxu0 0.0
        %1728 = vmatpush1.msra.mxu0 0.0
        %1729 = vmatprep.subr.mxu0 0.0
        %1730 = vmatpush1.msra.mxu0 0.0
        %1731 = vmatprep.subr.mxu0 0.0
        %1732 = vmatpush1.msra.mxu0 0.0
        %1733 = vmatprep.subr.mxu0 0.0
        %1734 = vmatpush1.msra.mxu0 0.0
        %1735 = vmatprep.subr.mxu0 0.0
        %1736 = vmatpush1.msra.mxu0 0.0
        %1737 = vmatprep.subr.mxu0 0.0
        %1738 = vmatpush1.msra.mxu0 0.0
        %1739 = vmatprep.mubr.f32.mxu0 0.0
        %1740 = vmatmul.mubr.f32.gmra.mrb[0].mxu0 %v1226
        %v1741 = vpop.f32.mrb[0].mxu0
        %v1742 = vadd.f32 %v1277, %v1741
        %v1743 = vpop.f32.mrb[0].mxu0
        %1744 = vmatprep.mubr.f32.mxu0 0.0
        %1745 = vmatmul.mubr.f32.gmra.mrb[0].mxu0 %v1227
        %v1746 = vpop.f32.mrb[0].mxu0
        %v1747 = vadd.f32 %v1277, %v1746
        %v1748 = vpop.f32.mrb[0].mxu0
        %1749 = vmatprep.mubr.f32.mxu0 0.0
        %1750 = vmatmul.mubr.f32.gmra.mrb[0].mxu0 %v1228
        %v1751 = vpop.f32.mrb[0].mxu0
        %v1752 = vadd.f32 %v1277, %v1751
        %v1753 = vpop.f32.mrb[0].mxu0
        %1754 = vmatprep.mubr.f32.mxu0 0.0
        %1755 = vmatmul.mubr.f32.gmra.mrb[0].mxu0 %v1229
        %v1756 = vpop.f32.mrb[0].mxu0
        %v1757 = vadd.f32 %v1277, %v1756
        %v1758 = vpop.f32.mrb[0].mxu0
        %1759 = vmatprep.mubr.f32.mxu0 0.0
        %1760 = vmatmul.mubr.f32.gmra.mrb[0].mxu0 %v1230
        %v1761 = vpop.f32.mrb[0].mxu0
        %v1762 = vadd.f32 %v1277, %v1761
        %v1763 = vpop.f32.mrb[0].mxu0
        %1764 = vmatprep.mubr.f32.mxu0 0.0
        %1765 = vmatmul.mubr.f32.gmra.mrb[0].mxu0 %v1231
        %v1766 = vpop.f32.mrb[0].mxu0
        %v1767 = vadd.f32 %v1277, %v1766
        %v1768 = vpop.f32.mrb[0].mxu0
        %1769 = vmatprep.mubr.f32.mxu0 0.0
        %1770 = vmatmul.mubr.f32.gmra.mrb[0].mxu0 %v1232
        %v1771 = vpop.f32.mrb[0].mxu0
        %v1772 = vadd.f32 %v1277, %v1771
        %v1773 = vpop.f32.mrb[0].mxu0
        %1774 = vmatprep.mubr.f32.mxu0 0.0
        %1775 = vmatmul.mubr.f32.gmra.mrb[0].mxu0 %v1233
        %v1776 = vpop.f32.mrb[0].mxu0
        %v1777 = vadd.f32 %v1277, %v1776
        %v1778 = vpop.f32.mrb[0].mxu0
        %1779 = vmatprep.mubr.f32.mxu0 0.0
        %1780 = vmatmul.mubr.f32.gmra.mrb[0].mxu0 %v1234
        %v1781 = vpop.f32.mrb[0].mxu0
        %v1782 = vadd.f32 %v1277, %v1781
        %v1783 = vpop.f32.mrb[0].mxu0
        %1784 = vmatprep.mubr.f32.mxu0 0.0
        %1785 = vmatmul.mubr.f32.gmra.mrb[0].mxu0 %v1235
        %v1786 = vpop.f32.mrb[0].mxu0
        %v1787 = vadd.f32 %v1277, %v1786
        %v1788 = vpop.f32.mrb[0].mxu0
        %1789 = vdwg.mxu0
        %v1790 = vld [vmem:[%s960] sm:$0xff]
        %v1791 = vld [vmem:[%s960 + $0x8] sm:$0xff]
        %v1792 = vld [vmem:[%s960 + $0x10] sm:$0xff]
        %v1793 = vld [vmem:[%s960 + $0x18] sm:$0xff]
        %v1794 = vld [vmem:[%s960 + $0x20] sm:$0xff]
        %v1795 = vld [vmem:[%s960 + $0x28] sm:$0xff]
        %v1796 = vld [vmem:[%s960 + $0x30] sm:$0xff]
        %v1797 = vld [vmem:[%s960 + $0x38] sm:$0xff]
        %v1798 = vld [vmem:[%s960 + $0x40] sm:$0xff]
        %v1799 = vld [vmem:[%s960 + $0x48] sm:$0xff]
        %v1800 = vld [vmem:[%s960 + $0x50] sm:$0xff]
        %v1801 = vld [vmem:[%s960 + $0x58] sm:$0xff]
        %v1802 = vld [vmem:[%s960 + $0x60] sm:$0xff]
        %v1803 = vld [vmem:[%s960 + $0x68] sm:$0xff]
        %v1804 = vld [vmem:[%s960 + $0x70] sm:$0xff]
        %v1805 = vld [vmem:[%s960 + $0x78] sm:$0xff]
        %v1806 = vld [vmem:[%s963] sm:$0x1]
        %v1808 = vlaneseq
        %v1809 = vshrl.u32 %v1808, 7
        %v1810 = vsub.s32 0, %v1809
        %v1811 = vrot.slane %v1806, %v1810
        %1813 = vmatprep.subr.mxu0 0.0
        %1814 = vmatpush1.msra.mxu0 %v1790
        %1815 = vmatprep.subr.mxu0 0.0
        %1816 = vmatpush1.msra.mxu0 %v1791
        %1817 = vmatprep.subr.mxu0 0.0
        %1818 = vmatpush1.msra.mxu0 %v1792
        %1819 = vmatprep.subr.mxu0 0.0
        %1820 = vmatpush1.msra.mxu0 %v1793
        %1821 = vmatprep.subr.mxu0 0.0
        %1822 = vmatpush1.msra.mxu0 %v1794
        %1823 = vmatprep.subr.mxu0 0.0
        %1824 = vmatpush1.msra.mxu0 %v1795
        %1825 = vmatprep.subr.mxu0 0.0
        %1826 = vmatpush1.msra.mxu0 %v1796
        %1827 = vmatprep.subr.mxu0 0.0
        %1828 = vmatpush1.msra.mxu0 %v1797
        %1829 = vmatprep.subr.mxu0 0.0
        %1830 = vmatpush1.msra.mxu0 %v1798
        %1831 = vmatprep.subr.mxu0 0.0
        %1832 = vmatpush1.msra.mxu0 %v1799
        %1833 = vmatprep.subr.mxu0 0.0
        %1834 = vmatpush1.msra.mxu0 %v1800
        %1835 = vmatprep.subr.mxu0 0.0
        %1836 = vmatpush1.msra.mxu0 %v1801
        %1837 = vmatprep.subr.mxu0 0.0
        %1838 = vmatpush1.msra.mxu0 %v1802
        %1839 = vmatprep.subr.mxu0 0.0
        %1840 = vmatpush1.msra.mxu0 %v1803
        %1841 = vmatprep.subr.mxu0 0.0
        %1842 = vmatpush1.msra.mxu0 %v1804
        %1843 = vmatprep.subr.mxu0 0.0
        %1844 = vmatpush1.msra.mxu0 %v1805
        %1845 = vmatprep.subr.mxu0 0.0
        %1846 = vmatpush1.msra.mxu0 0.0
        %1847 = vmatprep.subr.mxu0 0.0
        %1848 = vmatpush1.msra.mxu0 0.0
        %1849 = vmatprep.subr.mxu0 0.0
        %1850 = vmatpush1.msra.mxu0 0.0
        %1851 = vmatprep.subr.mxu0 0.0
        %1852 = vmatpush1.msra.mxu0 0.0
        %1853 = vmatprep.subr.mxu0 0.0
        %1854 = vmatpush1.msra.mxu0 0.0
        %1855 = vmatprep.subr.mxu0 0.0
        %1856 = vmatpush1.msra.mxu0 0.0
        %1857 = vmatprep.subr.mxu0 0.0
        %1858 = vmatpush1.msra.mxu0 0.0
        %1859 = vmatprep.subr.mxu0 0.0
        %1860 = vmatpush1.msra.mxu0 0.0
        %1861 = vmatprep.subr.mxu0 0.0
        %1862 = vmatpush1.msra.mxu0 0.0
        %1863 = vmatprep.subr.mxu0 0.0
        %1864 = vmatpush1.msra.mxu0 0.0
        %1865 = vmatprep.subr.mxu0 0.0
        %1866 = vmatpush1.msra.mxu0 0.0
        %1867 = vmatprep.subr.mxu0 0.0
        %1868 = vmatpush1.msra.mxu0 0.0
        %1869 = vmatprep.subr.mxu0 0.0
        %1870 = vmatpush1.msra.mxu0 0.0
        %1871 = vmatprep.subr.mxu0 0.0
        %1872 = vmatpush1.msra.mxu0 0.0
        %1873 = vmatprep.subr.mxu0 0.0
        %1874 = vmatpush1.msra.mxu0 0.0
        %1875 = vmatprep.subr.mxu0 0.0
        %1876 = vmatpush1.msra.mxu0 0.0
        %1877 = vmatprep.mubr.f32.mxu0 0.0
        %1878 = vmatmul.mubr.f32.gmra.mrb[0].mxu0 %v1226
        %v1879 = vpop.f32.mrb[0].mxu0
        %v1880 = vadd.f32 %v1811, %v1879
        %v1881 = vpop.f32.mrb[0].mxu0
        %1882 = vmatprep.mubr.f32.mxu0 0.0
        %1883 = vmatmul.mubr.f32.gmra.mrb[0].mxu0 %v1227
        %v1884 = vpop.f32.mrb[0].mxu0
        %v1885 = vadd.f32 %v1811, %v1884
        %v1886 = vpop.f32.mrb[0].mxu0
        %1887 = vmatprep.mubr.f32.mxu0 0.0
        %1888 = vmatmul.mubr.f32.gmra.mrb[0].mxu0 %v1228
        %v1889 = vpop.f32.mrb[0].mxu0
        %v1890 = vadd.f32 %v1811, %v1889
        %v1891 = vpop.f32.mrb[0].mxu0
        %1892 = vmatprep.mubr.f32.mxu0 0.0
        %1893 = vmatmul.mubr.f32.gmra.mrb[0].mxu0 %v1229
        %v1894 = vpop.f32.mrb[0].mxu0
        %v1895 = vadd.f32 %v1811, %v1894
        %v1896 = vpop.f32.mrb[0].mxu0
        %1897 = vmatprep.mubr.f32.mxu0 0.0
        %1898 = vmatmul.mubr.f32.gmra.mrb[0].mxu0 %v1230
        %v1899 = vpop.f32.mrb[0].mxu0
        %v1900 = vadd.f32 %v1811, %v1899
        %v1901 = vpop.f32.mrb[0].mxu0
        %1902 = vmatprep.mubr.f32.mxu0 0.0
        %1903 = vmatmul.mubr.f32.gmra.mrb[0].mxu0 %v1231
        %v1904 = vpop.f32.mrb[0].mxu0
        %v1905 = vadd.f32 %v1811, %v1904
        %v1906 = vpop.f32.mrb[0].mxu0
        %1907 = vmatprep.mubr.f32.mxu0 0.0
        %1908 = vmatmul.mubr.f32.gmra.mrb[0].mxu0 %v1232
        %v1909 = vpop.f32.mrb[0].mxu0
        %v1910 = vadd.f32 %v1811, %v1909
        %v1911 = vpop.f32.mrb[0].mxu0
        %1912 = vmatprep.mubr.f32.mxu0 0.0
        %1913 = vmatmul.mubr.f32.gmra.mrb[0].mxu0 %v1233
        %v1914 = vpop.f32.mrb[0].mxu0
        %v1915 = vadd.f32 %v1811, %v1914
        %v1916 = vpop.f32.mrb[0].mxu0
        %1917 = vmatprep.mubr.f32.mxu0 0.0
        %1918 = vmatmul.mubr.f32.gmra.mrb[0].mxu0 %v1234
        %v1919 = vpop.f32.mrb[0].mxu0
        %v1920 = vadd.f32 %v1811, %v1919
        %v1921 = vpop.f32.mrb[0].mxu0
        %1922 = vmatprep.mubr.f32.mxu0 0.0
        %1923 = vmatmul.mubr.f32.gmra.mrb[0].mxu0 %v1235
        %v1924 = vpop.f32.mrb[0].mxu0
        %v1925 = vadd.f32 %v1811, %v1924
        %v1926 = vpop.f32.mrb[0].mxu0
        %1927 = vdwg.mxu0
        %s1928 = scalar_lea.vmem %s960, 128
        %v1929 = vld [vmem:[%s1928] sm:$0xff]
        %v1930 = vld [vmem:[%s1928 + $0x8] sm:$0xff]
        %v1931 = vld [vmem:[%s1928 + $0x10] sm:$0xff]
        %v1932 = vld [vmem:[%s1928 + $0x18] sm:$0xff]
        %v1933 = vld [vmem:[%s1928 + $0x20] sm:$0xff]
        %v1934 = vld [vmem:[%s1928 + $0x28] sm:$0xff]
        %v1935 = vld [vmem:[%s1928 + $0x30] sm:$0xff]
        %v1936 = vld [vmem:[%s1928 + $0x38] sm:$0xff]
        %v1937 = vld [vmem:[%s1928 + $0x40] sm:$0xff]
        %v1938 = vld [vmem:[%s1928 + $0x48] sm:$0xff]
        %v1939 = vld [vmem:[%s1928 + $0x50] sm:$0xff]
        %v1940 = vld [vmem:[%s1928 + $0x58] sm:$0xff]
        %v1941 = vld [vmem:[%s1928 + $0x60] sm:$0xff]
        %v1942 = vld [vmem:[%s1928 + $0x68] sm:$0xff]
        %v1943 = vld [vmem:[%s1928 + $0x70] sm:$0xff]
        %v1944 = vld [vmem:[%s1928 + $0x78] sm:$0xff]
        %1945 = vmatprep.subr.mxu0 0.0
        %1946 = vmatpush1.msra.mxu0 %v1929
        %1947 = vmatprep.subr.mxu0 0.0
        %1948 = vmatpush1.msra.mxu0 %v1930
        %1949 = vmatprep.subr.mxu0 0.0
        %1950 = vmatpush1.msra.mxu0 %v1931
        %1951 = vmatprep.subr.mxu0 0.0
        %1952 = vmatpush1.msra.mxu0 %v1932
        %1953 = vmatprep.subr.mxu0 0.0
        %1954 = vmatpush1.msra.mxu0 %v1933
        %1955 = vmatprep.subr.mxu0 0.0
        %1956 = vmatpush1.msra.mxu0 %v1934
        %1957 = vmatprep.subr.mxu0 0.0
        %1958 = vmatpush1.msra.mxu0 %v1935
        %1959 = vmatprep.subr.mxu0 0.0
        %1960 = vmatpush1.msra.mxu0 %v1936
        %1961 = vmatprep.subr.mxu0 0.0
        %1962 = vmatpush1.msra.mxu0 %v1937
        %1963 = vmatprep.subr.mxu0 0.0
        %1964 = vmatpush1.msra.mxu0 %v1938
        %1965 = vmatprep.subr.mxu0 0.0
        %1966 = vmatpush1.msra.mxu0 %v1939
        %1967 = vmatprep.subr.mxu0 0.0
        %1968 = vmatpush1.msra.mxu0 %v1940
        %1969 = vmatprep.subr.mxu0 0.0
        %1970 = vmatpush1.msra.mxu0 %v1941
        %1971 = vmatprep.subr.mxu0 0.0
        %1972 = vmatpush1.msra.mxu0 %v1942
        %1973 = vmatprep.subr.mxu0 0.0
        %1974 = vmatpush1.msra.mxu0 %v1943
        %1975 = vmatprep.subr.mxu0 0.0
        %1976 = vmatpush1.msra.mxu0 %v1944
        %1977 = vmatprep.subr.mxu0 0.0
        %1978 = vmatpush1.msra.mxu0 0.0
        %1979 = vmatprep.subr.mxu0 0.0
        %1980 = vmatpush1.msra.mxu0 0.0
        %1981 = vmatprep.subr.mxu0 0.0
        %1982 = vmatpush1.msra.mxu0 0.0
        %1983 = vmatprep.subr.mxu0 0.0
        %1984 = vmatpush1.msra.mxu0 0.0
        %1985 = vmatprep.subr.mxu0 0.0
        %1986 = vmatpush1.msra.mxu0 0.0
        %1987 = vmatprep.subr.mxu0 0.0
        %1988 = vmatpush1.msra.mxu0 0.0
        %1989 = vmatprep.subr.mxu0 0.0
        %1990 = vmatpush1.msra.mxu0 0.0
        %1991 = vmatprep.subr.mxu0 0.0
        %1992 = vmatpush1.msra.mxu0 0.0
        %1993 = vmatprep.subr.mxu0 0.0
        %1994 = vmatpush1.msra.mxu0 0.0
        %1995 = vmatprep.subr.mxu0 0.0
        %1996 = vmatpush1.msra.mxu0 0.0
        %1997 = vmatprep.subr.mxu0 0.0
        %1998 = vmatpush1.msra.mxu0 0.0
        %1999 = vmatprep.subr.mxu0 0.0
        %2000 = vmatpush1.msra.mxu0 0.0
        %2001 = vmatprep.subr.mxu0 0.0
        %2002 = vmatpush1.msra.mxu0 0.0
        %2003 = vmatprep.subr.mxu0 0.0
        %2004 = vmatpush1.msra.mxu0 0.0
        %2005 = vmatprep.subr.mxu0 0.0
        %2006 = vmatpush1.msra.mxu0 0.0
        %2007 = vmatprep.subr.mxu0 0.0
        %2008 = vmatpush1.msra.mxu0 0.0
        %2009 = vmatprep.mubr.f32.mxu0 0.0
        %2010 = vmatmul.mubr.f32.gmra.mrb[0].mxu0 %v1226
        %v2011 = vpop.f32.mrb[0].mxu0
        %v2012 = vadd.f32 %v1811, %v2011
        %v2013 = vpop.f32.mrb[0].mxu0
        %2014 = vmatprep.mubr.f32.mxu0 0.0
        %2015 = vmatmul.mubr.f32.gmra.mrb[0].mxu0 %v1227
        %v2016 = vpop.f32.mrb[0].mxu0
        %v2017 = vadd.f32 %v1811, %v2016
        %v2018 = vpop.f32.mrb[0].mxu0
        %2019 = vmatprep.mubr.f32.mxu0 0.0
        %2020 = vmatmul.mubr.f32.gmra.mrb[0].mxu0 %v1228
        %v2021 = vpop.f32.mrb[0].mxu0
        %v2022 = vadd.f32 %v1811, %v2021
        %v2023 = vpop.f32.mrb[0].mxu0
        %2024 = vmatprep.mubr.f32.mxu0 0.0
        %2025 = vmatmul.mubr.f32.gmra.mrb[0].mxu0 %v1229
        %v2026 = vpop.f32.mrb[0].mxu0
        %v2027 = vadd.f32 %v1811, %v2026
        %v2028 = vpop.f32.mrb[0].mxu0
        %2029 = vmatprep.mubr.f32.mxu0 0.0
        %2030 = vmatmul.mubr.f32.gmra.mrb[0].mxu0 %v1230
        %v2031 = vpop.f32.mrb[0].mxu0
        %v2032 = vadd.f32 %v1811, %v2031
        %v2033 = vpop.f32.mrb[0].mxu0
        %2034 = vmatprep.mubr.f32.mxu0 0.0
        %2035 = vmatmul.mubr.f32.gmra.mrb[0].mxu0 %v1231
        %v2036 = vpop.f32.mrb[0].mxu0
        %v2037 = vadd.f32 %v1811, %v2036
        %v2038 = vpop.f32.mrb[0].mxu0
        %2039 = vmatprep.mubr.f32.mxu0 0.0
        %2040 = vmatmul.mubr.f32.gmra.mrb[0].mxu0 %v1232
        %v2041 = vpop.f32.mrb[0].mxu0
        %v2042 = vadd.f32 %v1811, %v2041
        %v2043 = vpop.f32.mrb[0].mxu0
        %2044 = vmatprep.mubr.f32.mxu0 0.0
        %2045 = vmatmul.mubr.f32.gmra.mrb[0].mxu0 %v1233
        %v2046 = vpop.f32.mrb[0].mxu0
        %v2047 = vadd.f32 %v1811, %v2046
        %v2048 = vpop.f32.mrb[0].mxu0
        %2049 = vmatprep.mubr.f32.mxu0 0.0
        %2050 = vmatmul.mubr.f32.gmra.mrb[0].mxu0 %v1234
        %v2051 = vpop.f32.mrb[0].mxu0
        %v2052 = vadd.f32 %v1811, %v2051
        %v2053 = vpop.f32.mrb[0].mxu0
        %2054 = vmatprep.mubr.f32.mxu0 0.0
        %2055 = vmatmul.mubr.f32.gmra.mrb[0].mxu0 %v1235
        %v2056 = vpop.f32.mrb[0].mxu0
        %v2057 = vadd.f32 %v1811, %v2056
        %v2058 = vpop.f32.mrb[0].mxu0
        %2059 = vdwg.mxu0
        %s2060 = scalar_lea.vmem %s960, 256
        %v2061 = vld [vmem:[%s2060] sm:$0xff]
        %v2062 = vld [vmem:[%s2060 + $0x8] sm:$0xff]
        %v2063 = vld [vmem:[%s2060 + $0x10] sm:$0xff]
        %v2064 = vld [vmem:[%s2060 + $0x18] sm:$0xff]
        %v2065 = vld [vmem:[%s2060 + $0x20] sm:$0xff]
        %v2066 = vld [vmem:[%s2060 + $0x28] sm:$0xff]
        %v2067 = vld [vmem:[%s2060 + $0x30] sm:$0xff]
        %v2068 = vld [vmem:[%s2060 + $0x38] sm:$0xff]
        %v2069 = vld [vmem:[%s2060 + $0x40] sm:$0xff]
        %v2070 = vld [vmem:[%s2060 + $0x48] sm:$0xff]
        %v2071 = vld [vmem:[%s2060 + $0x50] sm:$0xff]
        %v2072 = vld [vmem:[%s2060 + $0x58] sm:$0xff]
        %v2073 = vld [vmem:[%s2060 + $0x60] sm:$0xff]
        %v2074 = vld [vmem:[%s2060 + $0x68] sm:$0xff]
        %v2075 = vld [vmem:[%s2060 + $0x70] sm:$0xff]
        %v2076 = vld [vmem:[%s2060 + $0x78] sm:$0xff]
        %2077 = vmatprep.subr.mxu0 0.0
        %2078 = vmatpush1.msra.mxu0 %v2061
        %2079 = vmatprep.subr.mxu0 0.0
        %2080 = vmatpush1.msra.mxu0 %v2062
        %2081 = vmatprep.subr.mxu0 0.0
        %2082 = vmatpush1.msra.mxu0 %v2063
        %2083 = vmatprep.subr.mxu0 0.0
        %2084 = vmatpush1.msra.mxu0 %v2064
        %2085 = vmatprep.subr.mxu0 0.0
        %2086 = vmatpush1.msra.mxu0 %v2065
        %2087 = vmatprep.subr.mxu0 0.0
        %2088 = vmatpush1.msra.mxu0 %v2066
        %2089 = vmatprep.subr.mxu0 0.0
        %2090 = vmatpush1.msra.mxu0 %v2067
        %2091 = vmatprep.subr.mxu0 0.0
        %2092 = vmatpush1.msra.mxu0 %v2068
        %2093 = vmatprep.subr.mxu0 0.0
        %2094 = vmatpush1.msra.mxu0 %v2069
        %2095 = vmatprep.subr.mxu0 0.0
        %2096 = vmatpush1.msra.mxu0 %v2070
        %2097 = vmatprep.subr.mxu0 0.0
        %2098 = vmatpush1.msra.mxu0 %v2071
        %2099 = vmatprep.subr.mxu0 0.0
        %2100 = vmatpush1.msra.mxu0 %v2072
        %2101 = vmatprep.subr.mxu0 0.0
        %2102 = vmatpush1.msra.mxu0 %v2073
        %2103 = vmatprep.subr.mxu0 0.0
        %2104 = vmatpush1.msra.mxu0 %v2074
        %2105 = vmatprep.subr.mxu0 0.0
        %2106 = vmatpush1.msra.mxu0 %v2075
        %2107 = vmatprep.subr.mxu0 0.0
        %2108 = vmatpush1.msra.mxu0 %v2076
        %2109 = vmatprep.subr.mxu0 0.0
        %2110 = vmatpush1.msra.mxu0 0.0
        %2111 = vmatprep.subr.mxu0 0.0
        %2112 = vmatpush1.msra.mxu0 0.0
        %2113 = vmatprep.subr.mxu0 0.0
        %2114 = vmatpush1.msra.mxu0 0.0
        %2115 = vmatprep.subr.mxu0 0.0
        %2116 = vmatpush1.msra.mxu0 0.0
        %2117 = vmatprep.subr.mxu0 0.0
        %2118 = vmatpush1.msra.mxu0 0.0
        %2119 = vmatprep.subr.mxu0 0.0
        %2120 = vmatpush1.msra.mxu0 0.0
        %2121 = vmatprep.subr.mxu0 0.0
        %2122 = vmatpush1.msra.mxu0 0.0
        %2123 = vmatprep.subr.mxu0 0.0
        %2124 = vmatpush1.msra.mxu0 0.0
        %2125 = vmatprep.subr.mxu0 0.0
        %2126 = vmatpush1.msra.mxu0 0.0
        %2127 = vmatprep.subr.mxu0 0.0
        %2128 = vmatpush1.msra.mxu0 0.0
        %2129 = vmatprep.subr.mxu0 0.0
        %2130 = vmatpush1.msra.mxu0 0.0
        %2131 = vmatprep.subr.mxu0 0.0
        %2132 = vmatpush1.msra.mxu0 0.0
        %2133 = vmatprep.subr.mxu0 0.0
        %2134 = vmatpush1.msra.mxu0 0.0
        %2135 = vmatprep.subr.mxu0 0.0
        %2136 = vmatpush1.msra.mxu0 0.0
        %2137 = vmatprep.subr.mxu0 0.0
        %2138 = vmatpush1.msra.mxu0 0.0
        %2139 = vmatprep.subr.mxu0 0.0
        %2140 = vmatpush1.msra.mxu0 0.0
        %2141 = vmatprep.mubr.f32.mxu0 0.0
        %2142 = vmatmul.mubr.f32.gmra.mrb[0].mxu0 %v1226
        %v2143 = vpop.f32.mrb[0].mxu0
        %v2144 = vadd.f32 %v1811, %v2143
        %v2145 = vpop.f32.mrb[0].mxu0
        %2146 = vmatprep.mubr.f32.mxu0 0.0
        %2147 = vmatmul.mubr.f32.gmra.mrb[0].mxu0 %v1227
        %v2148 = vpop.f32.mrb[0].mxu0
        %v2149 = vadd.f32 %v1811, %v2148
        %v2150 = vpop.f32.mrb[0].mxu0
        %2151 = vmatprep.mubr.f32.mxu0 0.0
        %2152 = vmatmul.mubr.f32.gmra.mrb[0].mxu0 %v1228
        %v2153 = vpop.f32.mrb[0].mxu0
        %v2154 = vadd.f32 %v1811, %v2153
        %v2155 = vpop.f32.mrb[0].mxu0
        %2156 = vmatprep.mubr.f32.mxu0 0.0
        %2157 = vmatmul.mubr.f32.gmra.mrb[0].mxu0 %v1229
        %v2158 = vpop.f32.mrb[0].mxu0
        %v2159 = vadd.f32 %v1811, %v2158
        %v2160 = vpop.f32.mrb[0].mxu0
        %2161 = vmatprep.mubr.f32.mxu0 0.0
        %2162 = vmatmul.mubr.f32.gmra.mrb[0].mxu0 %v1230
        %v2163 = vpop.f32.mrb[0].mxu0
        %v2164 = vadd.f32 %v1811, %v2163
        %v2165 = vpop.f32.mrb[0].mxu0
        %2166 = vmatprep.mubr.f32.mxu0 0.0
        %2167 = vmatmul.mubr.f32.gmra.mrb[0].mxu0 %v1231
        %v2168 = vpop.f32.mrb[0].mxu0
        %v2169 = vadd.f32 %v1811, %v2168
        %v2170 = vpop.f32.mrb[0].mxu0
        %2171 = vmatprep.mubr.f32.mxu0 0.0
        %2172 = vmatmul.mubr.f32.gmra.mrb[0].mxu0 %v1232
        %v2173 = vpop.f32.mrb[0].mxu0
        %v2174 = vadd.f32 %v1811, %v2173
        %v2175 = vpop.f32.mrb[0].mxu0
        %2176 = vmatprep.mubr.f32.mxu0 0.0
        %2177 = vmatmul.mubr.f32.gmra.mrb[0].mxu0 %v1233
        %v2178 = vpop.f32.mrb[0].mxu0
        %v2179 = vadd.f32 %v1811, %v2178
        %v2180 = vpop.f32.mrb[0].mxu0
        %2181 = vmatprep.mubr.f32.mxu0 0.0
        %2182 = vmatmul.mubr.f32.gmra.mrb[0].mxu0 %v1234
        %v2183 = vpop.f32.mrb[0].mxu0
        %v2184 = vadd.f32 %v1811, %v2183
        %v2185 = vpop.f32.mrb[0].mxu0
        %2186 = vmatprep.mubr.f32.mxu0 0.0
        %2187 = vmatmul.mubr.f32.gmra.mrb[0].mxu0 %v1235
        %v2188 = vpop.f32.mrb[0].mxu0
        %v2189 = vadd.f32 %v1811, %v2188
        %v2190 = vpop.f32.mrb[0].mxu0
        %2191 = vdwg.mxu0
        %s2192 = scalar_lea.vmem %s960, 384
        %v2193 = vld [vmem:[%s2192] sm:$0xff]
        %v2194 = vld [vmem:[%s2192 + $0x8] sm:$0xff]
        %v2195 = vld [vmem:[%s2192 + $0x10] sm:$0xff]
        %v2196 = vld [vmem:[%s2192 + $0x18] sm:$0xff]
        %v2197 = vld [vmem:[%s2192 + $0x20] sm:$0xff]
        %v2198 = vld [vmem:[%s2192 + $0x28] sm:$0xff]
        %v2199 = vld [vmem:[%s2192 + $0x30] sm:$0xff]
        %v2200 = vld [vmem:[%s2192 + $0x38] sm:$0xff]
        %v2201 = vld [vmem:[%s2192 + $0x40] sm:$0xff]
        %v2202 = vld [vmem:[%s2192 + $0x48] sm:$0xff]
        %v2203 = vld [vmem:[%s2192 + $0x50] sm:$0xff]
        %v2204 = vld [vmem:[%s2192 + $0x58] sm:$0xff]
        %v2205 = vld [vmem:[%s2192 + $0x60] sm:$0xff]
        %v2206 = vld [vmem:[%s2192 + $0x68] sm:$0xff]
        %v2207 = vld [vmem:[%s2192 + $0x70] sm:$0xff]
        %v2208 = vld [vmem:[%s2192 + $0x78] sm:$0xff]
        %2209 = vmatprep.subr.mxu0 0.0
        %2210 = vmatpush1.msra.mxu0 %v2193
        %2211 = vmatprep.subr.mxu0 0.0
        %2212 = vmatpush1.msra.mxu0 %v2194
        %2213 = vmatprep.subr.mxu0 0.0
        %2214 = vmatpush1.msra.mxu0 %v2195
        %2215 = vmatprep.subr.mxu0 0.0
        %2216 = vmatpush1.msra.mxu0 %v2196
        %2217 = vmatprep.subr.mxu0 0.0
        %2218 = vmatpush1.msra.mxu0 %v2197
        %2219 = vmatprep.subr.mxu0 0.0
        %2220 = vmatpush1.msra.mxu0 %v2198
        %2221 = vmatprep.subr.mxu0 0.0
        %2222 = vmatpush1.msra.mxu0 %v2199
        %2223 = vmatprep.subr.mxu0 0.0
        %2224 = vmatpush1.msra.mxu0 %v2200
        %2225 = vmatprep.subr.mxu0 0.0
        %2226 = vmatpush1.msra.mxu0 %v2201
        %2227 = vmatprep.subr.mxu0 0.0
        %2228 = vmatpush1.msra.mxu0 %v2202
        %2229 = vmatprep.subr.mxu0 0.0
        %2230 = vmatpush1.msra.mxu0 %v2203
        %2231 = vmatprep.subr.mxu0 0.0
        %2232 = vmatpush1.msra.mxu0 %v2204
        %2233 = vmatprep.subr.mxu0 0.0
        %2234 = vmatpush1.msra.mxu0 %v2205
        %2235 = vmatprep.subr.mxu0 0.0
        %2236 = vmatpush1.msra.mxu0 %v2206
        %2237 = vmatprep.subr.mxu0 0.0
        %2238 = vmatpush1.msra.mxu0 %v2207
        %2239 = vmatprep.subr.mxu0 0.0
        %2240 = vmatpush1.msra.mxu0 %v2208
        %2241 = vmatprep.subr.mxu0 0.0
        %2242 = vmatpush1.msra.mxu0 0.0
        %2243 = vmatprep.subr.mxu0 0.0
        %2244 = vmatpush1.msra.mxu0 0.0
        %2245 = vmatprep.subr.mxu0 0.0
        %2246 = vmatpush1.msra.mxu0 0.0
        %2247 = vmatprep.subr.mxu0 0.0
        %2248 = vmatpush1.msra.mxu0 0.0
        %2249 = vmatprep.subr.mxu0 0.0
        %2250 = vmatpush1.msra.mxu0 0.0
        %2251 = vmatprep.subr.mxu0 0.0
        %2252 = vmatpush1.msra.mxu0 0.0
        %2253 = vmatprep.subr.mxu0 0.0
        %2254 = vmatpush1.msra.mxu0 0.0
        %2255 = vmatprep.subr.mxu0 0.0
        %2256 = vmatpush1.msra.mxu0 0.0
        %2257 = vmatprep.subr.mxu0 0.0
        %2258 = vmatpush1.msra.mxu0 0.0
        %2259 = vmatprep.subr.mxu0 0.0
        %2260 = vmatpush1.msra.mxu0 0.0
        %2261 = vmatprep.subr.mxu0 0.0
        %2262 = vmatpush1.msra.mxu0 0.0
        %2263 = vmatprep.subr.mxu0 0.0
        %2264 = vmatpush1.msra.mxu0 0.0
        %2265 = vmatprep.subr.mxu0 0.0
        %2266 = vmatpush1.msra.mxu0 0.0
        %2267 = vmatprep.subr.mxu0 0.0
        %2268 = vmatpush1.msra.mxu0 0.0
        %2269 = vmatprep.subr.mxu0 0.0
        %2270 = vmatpush1.msra.mxu0 0.0
        %2271 = vmatprep.subr.mxu0 0.0
        %2272 = vmatpush1.msra.mxu0 0.0
        %2273 = vmatprep.mubr.f32.mxu0 0.0
        %2274 = vmatmul.mubr.f32.gmra.mrb[0].mxu0 %v1226
        %v2275 = vpop.f32.mrb[0].mxu0
        %v2276 = vadd.f32 %v1811, %v2275
        %v2277 = vpop.f32.mrb[0].mxu0
        %2278 = vmatprep.mubr.f32.mxu0 0.0
        %2279 = vmatmul.mubr.f32.gmra.mrb[0].mxu0 %v1227
        %v2280 = vpop.f32.mrb[0].mxu0
        %v2281 = vadd.f32 %v1811, %v2280
        %v2282 = vpop.f32.mrb[0].mxu0
        %2283 = vmatprep.mubr.f32.mxu0 0.0
        %2284 = vmatmul.mubr.f32.gmra.mrb[0].mxu0 %v1228
        %v2285 = vpop.f32.mrb[0].mxu0
        %v2286 = vadd.f32 %v1811, %v2285
        %v2287 = vpop.f32.mrb[0].mxu0
        %2288 = vmatprep.mubr.f32.mxu0 0.0
        %2289 = vmatmul.mubr.f32.gmra.mrb[0].mxu0 %v1229
        %v2290 = vpop.f32.mrb[0].mxu0
        %v2291 = vadd.f32 %v1811, %v2290
        %v2292 = vpop.f32.mrb[0].mxu0
        %2293 = vmatprep.mubr.f32.mxu0 0.0
        %2294 = vmatmul.mubr.f32.gmra.mrb[0].mxu0 %v1230
        %v2295 = vpop.f32.mrb[0].mxu0
        %v2296 = vadd.f32 %v1811, %v2295
        %v2297 = vpop.f32.mrb[0].mxu0
        %2298 = vmatprep.mubr.f32.mxu0 0.0
        %2299 = vmatmul.mubr.f32.gmra.mrb[0].mxu0 %v1231
        %v2300 = vpop.f32.mrb[0].mxu0
        %v2301 = vadd.f32 %v1811, %v2300
        %v2302 = vpop.f32.mrb[0].mxu0
        %2303 = vmatprep.mubr.f32.mxu0 0.0
        %2304 = vmatmul.mubr.f32.gmra.mrb[0].mxu0 %v1232
        %v2305 = vpop.f32.mrb[0].mxu0
        %v2306 = vadd.f32 %v1811, %v2305
        %v2307 = vpop.f32.mrb[0].mxu0
        %2308 = vmatprep.mubr.f32.mxu0 0.0
        %2309 = vmatmul.mubr.f32.gmra.mrb[0].mxu0 %v1233
        %v2310 = vpop.f32.mrb[0].mxu0
        %v2311 = vadd.f32 %v1811, %v2310
        %v2312 = vpop.f32.mrb[0].mxu0
        %2313 = vmatprep.mubr.f32.mxu0 0.0
        %2314 = vmatmul.mubr.f32.gmra.mrb[0].mxu0 %v1234
        %v2315 = vpop.f32.mrb[0].mxu0
        %v2316 = vadd.f32 %v1811, %v2315
        %v2317 = vpop.f32.mrb[0].mxu0
        %2318 = vmatprep.mubr.f32.mxu0 0.0
        %2319 = vmatmul.mubr.f32.gmra.mrb[0].mxu0 %v1235
        %v2320 = vpop.f32.mrb[0].mxu0
        %v2321 = vadd.f32 %v1811, %v2320
        %v2322 = vpop.f32.mrb[0].mxu0
        %2323 = vdwg.mxu0
        %v2324 = vld [vmem:[%s968] sm:$0xff]
        %v2325 = vld [vmem:[%s968 + $0x8] sm:$0xff]
        %v2326 = vld [vmem:[%s968 + $0x10] sm:$0xff]
        %v2327 = vld [vmem:[%s968 + $0x18] sm:$0xff]
        %v2328 = vld [vmem:[%s968 + $0x20] sm:$0xff]
        %v2329 = vld [vmem:[%s968 + $0x28] sm:$0xff]
        %v2330 = vld [vmem:[%s968 + $0x30] sm:$0xff]
        %v2331 = vld [vmem:[%s968 + $0x38] sm:$0xff]
        %v2332 = vld [vmem:[%s968 + $0x40] sm:$0xff]
        %v2333 = vld [vmem:[%s968 + $0x48] sm:$0xff]
        %v2334 = vld [vmem:[%s968 + $0x50] sm:$0xff]
        %v2335 = vld [vmem:[%s968 + $0x58] sm:$0xff]
        %v2336 = vld [vmem:[%s968 + $0x60] sm:$0xff]
        %v2337 = vld [vmem:[%s968 + $0x68] sm:$0xff]
        %v2338 = vld [vmem:[%s968 + $0x70] sm:$0xff]
        %v2339 = vld [vmem:[%s968 + $0x78] sm:$0xff]
        %v2340 = vld [vmem:[%s971] sm:$0x1]
        %v2342 = vlaneseq
        %v2343 = vshrl.u32 %v2342, 7
        %v2344 = vsub.s32 0, %v2343
        %v2345 = vrot.slane %v2340, %v2344
        %2347 = vmatprep.subr.mxu0 0.0
        %2348 = vmatpush1.msra.mxu0 %v2324
        %2349 = vmatprep.subr.mxu0 0.0
        %2350 = vmatpush1.msra.mxu0 %v2325
        %2351 = vmatprep.subr.mxu0 0.0
        %2352 = vmatpush1.msra.mxu0 %v2326
        %2353 = vmatprep.subr.mxu0 0.0
        %2354 = vmatpush1.msra.mxu0 %v2327
        %2355 = vmatprep.subr.mxu0 0.0
        %2356 = vmatpush1.msra.mxu0 %v2328
        %2357 = vmatprep.subr.mxu0 0.0
        %2358 = vmatpush1.msra.mxu0 %v2329
        %2359 = vmatprep.subr.mxu0 0.0
        %2360 = vmatpush1.msra.mxu0 %v2330
        %2361 = vmatprep.subr.mxu0 0.0
        %2362 = vmatpush1.msra.mxu0 %v2331
        %2363 = vmatprep.subr.mxu0 0.0
        %2364 = vmatpush1.msra.mxu0 %v2332
        %2365 = vmatprep.subr.mxu0 0.0
        %2366 = vmatpush1.msra.mxu0 %v2333
        %2367 = vmatprep.subr.mxu0 0.0
        %2368 = vmatpush1.msra.mxu0 %v2334
        %2369 = vmatprep.subr.mxu0 0.0
        %2370 = vmatpush1.msra.mxu0 %v2335
        %2371 = vmatprep.subr.mxu0 0.0
        %2372 = vmatpush1.msra.mxu0 %v2336
        %2373 = vmatprep.subr.mxu0 0.0
        %2374 = vmatpush1.msra.mxu0 %v2337
        %2375 = vmatprep.subr.mxu0 0.0
        %2376 = vmatpush1.msra.mxu0 %v2338
        %2377 = vmatprep.subr.mxu0 0.0
        %2378 = vmatpush1.msra.mxu0 %v2339
        %2379 = vmatprep.subr.mxu0 0.0
        %2380 = vmatpush1.msra.mxu0 0.0
        %2381 = vmatprep.subr.mxu0 0.0
        %2382 = vmatpush1.msra.mxu0 0.0
        %2383 = vmatprep.subr.mxu0 0.0
        %2384 = vmatpush1.msra.mxu0 0.0
        %2385 = vmatprep.subr.mxu0 0.0
        %2386 = vmatpush1.msra.mxu0 0.0
        %2387 = vmatprep.subr.mxu0 0.0
        %2388 = vmatpush1.msra.mxu0 0.0
        %2389 = vmatprep.subr.mxu0 0.0
        %2390 = vmatpush1.msra.mxu0 0.0
        %2391 = vmatprep.subr.mxu0 0.0
        %2392 = vmatpush1.msra.mxu0 0.0
        %2393 = vmatprep.subr.mxu0 0.0
        %2394 = vmatpush1.msra.mxu0 0.0
        %2395 = vmatprep.subr.mxu0 0.0
        %2396 = vmatpush1.msra.mxu0 0.0
        %2397 = vmatprep.subr.mxu0 0.0
        %2398 = vmatpush1.msra.mxu0 0.0
        %2399 = vmatprep.subr.mxu0 0.0
        %2400 = vmatpush1.msra.mxu0 0.0
        %2401 = vmatprep.subr.mxu0 0.0
        %2402 = vmatpush1.msra.mxu0 0.0
        %2403 = vmatprep.subr.mxu0 0.0
        %2404 = vmatpush1.msra.mxu0 0.0
        %2405 = vmatprep.subr.mxu0 0.0
        %2406 = vmatpush1.msra.mxu0 0.0
        %2407 = vmatprep.subr.mxu0 0.0
        %2408 = vmatpush1.msra.mxu0 0.0
        %2409 = vmatprep.subr.mxu0 0.0
        %2410 = vmatpush1.msra.mxu0 0.0
        %2411 = vmatprep.mubr.f32.mxu0 0.0
        %2412 = vmatmul.mubr.f32.gmra.mrb[0].mxu0 %v1226
        %v2413 = vpop.f32.mrb[0].mxu0
        %v2414 = vadd.f32 %v2345, %v2413
        %v2415 = vpop.f32.mrb[0].mxu0
        %2416 = vmatprep.mubr.f32.mxu0 0.0
        %2417 = vmatmul.mubr.f32.gmra.mrb[0].mxu0 %v1227
        %v2418 = vpop.f32.mrb[0].mxu0
        %v2419 = vadd.f32 %v2345, %v2418
        %v2420 = vpop.f32.mrb[0].mxu0
        %2421 = vmatprep.mubr.f32.mxu0 0.0
        %2422 = vmatmul.mubr.f32.gmra.mrb[0].mxu0 %v1228
        %v2423 = vpop.f32.mrb[0].mxu0
        %v2424 = vadd.f32 %v2345, %v2423
        %v2425 = vpop.f32.mrb[0].mxu0
        %2426 = vmatprep.mubr.f32.mxu0 0.0
        %2427 = vmatmul.mubr.f32.gmra.mrb[0].mxu0 %v1229
        %v2428 = vpop.f32.mrb[0].mxu0
        %v2429 = vadd.f32 %v2345, %v2428
        %v2430 = vpop.f32.mrb[0].mxu0
        %2431 = vmatprep.mubr.f32.mxu0 0.0
        %2432 = vmatmul.mubr.f32.gmra.mrb[0].mxu0 %v1230
        %v2433 = vpop.f32.mrb[0].mxu0
        %v2434 = vadd.f32 %v2345, %v2433
        %v2435 = vpop.f32.mrb[0].mxu0
        %2436 = vmatprep.mubr.f32.mxu0 0.0
        %2437 = vmatmul.mubr.f32.gmra.mrb[0].mxu0 %v1231
        %v2438 = vpop.f32.mrb[0].mxu0
        %v2439 = vadd.f32 %v2345, %v2438
        %v2440 = vpop.f32.mrb[0].mxu0
        %2441 = vmatprep.mubr.f32.mxu0 0.0
        %2442 = vmatmul.mubr.f32.gmra.mrb[0].mxu0 %v1232
        %v2443 = vpop.f32.mrb[0].mxu0
        %v2444 = vadd.f32 %v2345, %v2443
        %v2445 = vpop.f32.mrb[0].mxu0
        %2446 = vmatprep.mubr.f32.mxu0 0.0
        %2447 = vmatmul.mubr.f32.gmra.mrb[0].mxu0 %v1233
        %v2448 = vpop.f32.mrb[0].mxu0
        %v2449 = vadd.f32 %v2345, %v2448
        %v2450 = vpop.f32.mrb[0].mxu0
        %2451 = vmatprep.mubr.f32.mxu0 0.0
        %2452 = vmatmul.mubr.f32.gmra.mrb[0].mxu0 %v1234
        %v2453 = vpop.f32.mrb[0].mxu0
        %v2454 = vadd.f32 %v2345, %v2453
        %v2455 = vpop.f32.mrb[0].mxu0
        %2456 = vmatprep.mubr.f32.mxu0 0.0
        %2457 = vmatmul.mubr.f32.gmra.mrb[0].mxu0 %v1235
        %v2458 = vpop.f32.mrb[0].mxu0
        %v2459 = vadd.f32 %v2345, %v2458
        %v2460 = vpop.f32.mrb[0].mxu0
        %2461 = vdwg.mxu0
        %s2462 = scalar_lea.vmem %s968, 128
        %v2463 = vld [vmem:[%s2462] sm:$0xff]
        %v2464 = vld [vmem:[%s2462 + $0x8] sm:$0xff]
        %v2465 = vld [vmem:[%s2462 + $0x10] sm:$0xff]
        %v2466 = vld [vmem:[%s2462 + $0x18] sm:$0xff]
        %v2467 = vld [vmem:[%s2462 + $0x20] sm:$0xff]
        %v2468 = vld [vmem:[%s2462 + $0x28] sm:$0xff]
        %v2469 = vld [vmem:[%s2462 + $0x30] sm:$0xff]
        %v2470 = vld [vmem:[%s2462 + $0x38] sm:$0xff]
        %v2471 = vld [vmem:[%s2462 + $0x40] sm:$0xff]
        %v2472 = vld [vmem:[%s2462 + $0x48] sm:$0xff]
        %v2473 = vld [vmem:[%s2462 + $0x50] sm:$0xff]
        %v2474 = vld [vmem:[%s2462 + $0x58] sm:$0xff]
        %v2475 = vld [vmem:[%s2462 + $0x60] sm:$0xff]
        %v2476 = vld [vmem:[%s2462 + $0x68] sm:$0xff]
        %v2477 = vld [vmem:[%s2462 + $0x70] sm:$0xff]
        %v2478 = vld [vmem:[%s2462 + $0x78] sm:$0xff]
        %2479 = vmatprep.subr.mxu0 0.0
        %2480 = vmatpush1.msra.mxu0 %v2463
        %2481 = vmatprep.subr.mxu0 0.0
        %2482 = vmatpush1.msra.mxu0 %v2464
        %2483 = vmatprep.subr.mxu0 0.0
        %2484 = vmatpush1.msra.mxu0 %v2465
        %2485 = vmatprep.subr.mxu0 0.0
        %2486 = vmatpush1.msra.mxu0 %v2466
        %2487 = vmatprep.subr.mxu0 0.0
        %2488 = vmatpush1.msra.mxu0 %v2467
        %2489 = vmatprep.subr.mxu0 0.0
        %2490 = vmatpush1.msra.mxu0 %v2468
        %2491 = vmatprep.subr.mxu0 0.0
        %2492 = vmatpush1.msra.mxu0 %v2469
        %2493 = vmatprep.subr.mxu0 0.0
        %2494 = vmatpush1.msra.mxu0 %v2470
        %2495 = vmatprep.subr.mxu0 0.0
        %2496 = vmatpush1.msra.mxu0 %v2471
        %2497 = vmatprep.subr.mxu0 0.0
        %2498 = vmatpush1.msra.mxu0 %v2472
        %2499 = vmatprep.subr.mxu0 0.0
        %2500 = vmatpush1.msra.mxu0 %v2473
        %2501 = vmatprep.subr.mxu0 0.0
        %2502 = vmatpush1.msra.mxu0 %v2474
        %2503 = vmatprep.subr.mxu0 0.0
        %2504 = vmatpush1.msra.mxu0 %v2475
        %2505 = vmatprep.subr.mxu0 0.0
        %2506 = vmatpush1.msra.mxu0 %v2476
        %2507 = vmatprep.subr.mxu0 0.0
        %2508 = vmatpush1.msra.mxu0 %v2477
        %2509 = vmatprep.subr.mxu0 0.0
        %2510 = vmatpush1.msra.mxu0 %v2478
        %2511 = vmatprep.subr.mxu0 0.0
        %2512 = vmatpush1.msra.mxu0 0.0
        %2513 = vmatprep.subr.mxu0 0.0
        %2514 = vmatpush1.msra.mxu0 0.0
        %2515 = vmatprep.subr.mxu0 0.0
        %2516 = vmatpush1.msra.mxu0 0.0
        %2517 = vmatprep.subr.mxu0 0.0
        %2518 = vmatpush1.msra.mxu0 0.0
        %2519 = vmatprep.subr.mxu0 0.0
        %2520 = vmatpush1.msra.mxu0 0.0
        %2521 = vmatprep.subr.mxu0 0.0
        %2522 = vmatpush1.msra.mxu0 0.0
        %2523 = vmatprep.subr.mxu0 0.0
        %2524 = vmatpush1.msra.mxu0 0.0
        %2525 = vmatprep.subr.mxu0 0.0
        %2526 = vmatpush1.msra.mxu0 0.0
        %2527 = vmatprep.subr.mxu0 0.0
        %2528 = vmatpush1.msra.mxu0 0.0
        %2529 = vmatprep.subr.mxu0 0.0
        %2530 = vmatpush1.msra.mxu0 0.0
        %2531 = vmatprep.subr.mxu0 0.0
        %2532 = vmatpush1.msra.mxu0 0.0
        %2533 = vmatprep.subr.mxu0 0.0
        %2534 = vmatpush1.msra.mxu0 0.0
        %2535 = vmatprep.subr.mxu0 0.0
        %2536 = vmatpush1.msra.mxu0 0.0
        %2537 = vmatprep.subr.mxu0 0.0
        %2538 = vmatpush1.msra.mxu0 0.0
        %2539 = vmatprep.subr.mxu0 0.0
        %2540 = vmatpush1.msra.mxu0 0.0
        %2541 = vmatprep.subr.mxu0 0.0
        %2542 = vmatpush1.msra.mxu0 0.0
        %2543 = vmatprep.mubr.f32.mxu0 0.0
        %2544 = vmatmul.mubr.f32.gmra.mrb[0].mxu0 %v1226
        %v2545 = vpop.f32.mrb[0].mxu0
        %v2546 = vadd.f32 %v2345, %v2545
        %v2547 = vpop.f32.mrb[0].mxu0
        %2548 = vmatprep.mubr.f32.mxu0 0.0
        %2549 = vmatmul.mubr.f32.gmra.mrb[0].mxu0 %v1227
        %v2550 = vpop.f32.mrb[0].mxu0
        %v2551 = vadd.f32 %v2345, %v2550
        %v2552 = vpop.f32.mrb[0].mxu0
        %2553 = vmatprep.mubr.f32.mxu0 0.0
        %2554 = vmatmul.mubr.f32.gmra.mrb[0].mxu0 %v1228
        %v2555 = vpop.f32.mrb[0].mxu0
        %v2556 = vadd.f32 %v2345, %v2555
        %v2557 = vpop.f32.mrb[0].mxu0
        %2558 = vmatprep.mubr.f32.mxu0 0.0
        %2559 = vmatmul.mubr.f32.gmra.mrb[0].mxu0 %v1229
        %v2560 = vpop.f32.mrb[0].mxu0
        %v2561 = vadd.f32 %v2345, %v2560
        %v2562 = vpop.f32.mrb[0].mxu0
        %2563 = vmatprep.mubr.f32.mxu0 0.0
        %2564 = vmatmul.mubr.f32.gmra.mrb[0].mxu0 %v1230
        %v2565 = vpop.f32.mrb[0].mxu0
        %v2566 = vadd.f32 %v2345, %v2565
        %v2567 = vpop.f32.mrb[0].mxu0
        %2568 = vmatprep.mubr.f32.mxu0 0.0
        %2569 = vmatmul.mubr.f32.gmra.mrb[0].mxu0 %v1231
        %v2570 = vpop.f32.mrb[0].mxu0
        %v2571 = vadd.f32 %v2345, %v2570
        %v2572 = vpop.f32.mrb[0].mxu0
        %2573 = vmatprep.mubr.f32.mxu0 0.0
        %2574 = vmatmul.mubr.f32.gmra.mrb[0].mxu0 %v1232
        %v2575 = vpop.f32.mrb[0].mxu0
        %v2576 = vadd.f32 %v2345, %v2575
        %v2577 = vpop.f32.mrb[0].mxu0
        %2578 = vmatprep.mubr.f32.mxu0 0.0
        %2579 = vmatmul.mubr.f32.gmra.mrb[0].mxu0 %v1233
        %v2580 = vpop.f32.mrb[0].mxu0
        %v2581 = vadd.f32 %v2345, %v2580
        %v2582 = vpop.f32.mrb[0].mxu0
        %2583 = vmatprep.mubr.f32.mxu0 0.0
        %2584 = vmatmul.mubr.f32.gmra.mrb[0].mxu0 %v1234
        %v2585 = vpop.f32.mrb[0].mxu0
        %v2586 = vadd.f32 %v2345, %v2585
        %v2587 = vpop.f32.mrb[0].mxu0
        %2588 = vmatprep.mubr.f32.mxu0 0.0
        %2589 = vmatmul.mubr.f32.gmra.mrb[0].mxu0 %v1235
        %v2590 = vpop.f32.mrb[0].mxu0
        %v2591 = vadd.f32 %v2345, %v2590
        %v2592 = vpop.f32.mrb[0].mxu0
        %2593 = vdwg.mxu0
        %s2594 = scalar_lea.vmem %s968, 256
        %v2595 = vld [vmem:[%s2594] sm:$0xff]
        %v2596 = vld [vmem:[%s2594 + $0x8] sm:$0xff]
        %v2597 = vld [vmem:[%s2594 + $0x10] sm:$0xff]
        %v2598 = vld [vmem:[%s2594 + $0x18] sm:$0xff]
        %v2599 = vld [vmem:[%s2594 + $0x20] sm:$0xff]
        %v2600 = vld [vmem:[%s2594 + $0x28] sm:$0xff]
        %v2601 = vld [vmem:[%s2594 + $0x30] sm:$0xff]
        %v2602 = vld [vmem:[%s2594 + $0x38] sm:$0xff]
        %v2603 = vld [vmem:[%s2594 + $0x40] sm:$0xff]
        %v2604 = vld [vmem:[%s2594 + $0x48] sm:$0xff]
        %v2605 = vld [vmem:[%s2594 + $0x50] sm:$0xff]
        %v2606 = vld [vmem:[%s2594 + $0x58] sm:$0xff]
        %v2607 = vld [vmem:[%s2594 + $0x60] sm:$0xff]
        %v2608 = vld [vmem:[%s2594 + $0x68] sm:$0xff]
        %v2609 = vld [vmem:[%s2594 + $0x70] sm:$0xff]
        %v2610 = vld [vmem:[%s2594 + $0x78] sm:$0xff]
        %2611 = vmatprep.subr.mxu0 0.0
        %2612 = vmatpush1.msra.mxu0 %v2595
        %2613 = vmatprep.subr.mxu0 0.0
        %2614 = vmatpush1.msra.mxu0 %v2596
        %2615 = vmatprep.subr.mxu0 0.0
        %2616 = vmatpush1.msra.mxu0 %v2597
        %2617 = vmatprep.subr.mxu0 0.0
        %2618 = vmatpush1.msra.mxu0 %v2598
        %2619 = vmatprep.subr.mxu0 0.0
        %2620 = vmatpush1.msra.mxu0 %v2599
        %2621 = vmatprep.subr.mxu0 0.0
        %2622 = vmatpush1.msra.mxu0 %v2600
        %2623 = vmatprep.subr.mxu0 0.0
        %2624 = vmatpush1.msra.mxu0 %v2601
        %2625 = vmatprep.subr.mxu0 0.0
        %2626 = vmatpush1.msra.mxu0 %v2602
        %2627 = vmatprep.subr.mxu0 0.0
        %2628 = vmatpush1.msra.mxu0 %v2603
        %2629 = vmatprep.subr.mxu0 0.0
        %2630 = vmatpush1.msra.mxu0 %v2604
        %2631 = vmatprep.subr.mxu0 0.0
        %2632 = vmatpush1.msra.mxu0 %v2605
        %2633 = vmatprep.subr.mxu0 0.0
        %2634 = vmatpush1.msra.mxu0 %v2606
        %2635 = vmatprep.subr.mxu0 0.0
        %2636 = vmatpush1.msra.mxu0 %v2607
        %2637 = vmatprep.subr.mxu0 0.0
        %2638 = vmatpush1.msra.mxu0 %v2608
        %2639 = vmatprep.subr.mxu0 0.0
        %2640 = vmatpush1.msra.mxu0 %v2609
        %2641 = vmatprep.subr.mxu0 0.0
        %2642 = vmatpush1.msra.mxu0 %v2610
        %2643 = vmatprep.subr.mxu0 0.0
        %2644 = vmatpush1.msra.mxu0 0.0
        %2645 = vmatprep.subr.mxu0 0.0
        %2646 = vmatpush1.msra.mxu0 0.0
        %2647 = vmatprep.subr.mxu0 0.0
        %2648 = vmatpush1.msra.mxu0 0.0
        %2649 = vmatprep.subr.mxu0 0.0
        %2650 = vmatpush1.msra.mxu0 0.0
        %2651 = vmatprep.subr.mxu0 0.0
        %2652 = vmatpush1.msra.mxu0 0.0
        %2653 = vmatprep.subr.mxu0 0.0
        %2654 = vmatpush1.msra.mxu0 0.0
        %2655 = vmatprep.subr.mxu0 0.0
        %2656 = vmatpush1.msra.mxu0 0.0
        %2657 = vmatprep.subr.mxu0 0.0
        %2658 = vmatpush1.msra.mxu0 0.0
        %2659 = vmatprep.subr.mxu0 0.0
        %2660 = vmatpush1.msra.mxu0 0.0
        %2661 = vmatprep.subr.mxu0 0.0
        %2662 = vmatpush1.msra.mxu0 0.0
        %2663 = vmatprep.subr.mxu0 0.0
        %2664 = vmatpush1.msra.mxu0 0.0
        %2665 = vmatprep.subr.mxu0 0.0
        %2666 = vmatpush1.msra.mxu0 0.0
        %2667 = vmatprep.subr.mxu0 0.0
        %2668 = vmatpush1.msra.mxu0 0.0
        %2669 = vmatprep.subr.mxu0 0.0
        %2670 = vmatpush1.msra.mxu0 0.0
        %2671 = vmatprep.subr.mxu0 0.0
        %2672 = vmatpush1.msra.mxu0 0.0
        %2673 = vmatprep.subr.mxu0 0.0
        %2674 = vmatpush1.msra.mxu0 0.0
        %2675 = vmatprep.mubr.f32.mxu0 0.0
        %2676 = vmatmul.mubr.f32.gmra.mrb[0].mxu0 %v1226
        %v2677 = vpop.f32.mrb[0].mxu0
        %v2678 = vadd.f32 %v2345, %v2677
        %v2679 = vpop.f32.mrb[0].mxu0
        %2680 = vmatprep.mubr.f32.mxu0 0.0
        %2681 = vmatmul.mubr.f32.gmra.mrb[0].mxu0 %v1227
        %v2682 = vpop.f32.mrb[0].mxu0
        %v2683 = vadd.f32 %v2345, %v2682
        %v2684 = vpop.f32.mrb[0].mxu0
        %2685 = vmatprep.mubr.f32.mxu0 0.0
        %2686 = vmatmul.mubr.f32.gmra.mrb[0].mxu0 %v1228
        %v2687 = vpop.f32.mrb[0].mxu0
        %v2688 = vadd.f32 %v2345, %v2687
        %v2689 = vpop.f32.mrb[0].mxu0
        %2690 = vmatprep.mubr.f32.mxu0 0.0
        %2691 = vmatmul.mubr.f32.gmra.mrb[0].mxu0 %v1229
        %v2692 = vpop.f32.mrb[0].mxu0
        %v2693 = vadd.f32 %v2345, %v2692
        %v2694 = vpop.f32.mrb[0].mxu0
        %2695 = vmatprep.mubr.f32.mxu0 0.0
        %2696 = vmatmul.mubr.f32.gmra.mrb[0].mxu0 %v1230
        %v2697 = vpop.f32.mrb[0].mxu0
        %v2698 = vadd.f32 %v2345, %v2697
        %v2699 = vpop.f32.mrb[0].mxu0
        %2700 = vmatprep.mubr.f32.mxu0 0.0
        %2701 = vmatmul.mubr.f32.gmra.mrb[0].mxu0 %v1231
        %v2702 = vpop.f32.mrb[0].mxu0
        %v2703 = vadd.f32 %v2345, %v2702
        %v2704 = vpop.f32.mrb[0].mxu0
        %2705 = vmatprep.mubr.f32.mxu0 0.0
        %2706 = vmatmul.mubr.f32.gmra.mrb[0].mxu0 %v1232
        %v2707 = vpop.f32.mrb[0].mxu0
        %v2708 = vadd.f32 %v2345, %v2707
        %v2709 = vpop.f32.mrb[0].mxu0
        %2710 = vmatprep.mubr.f32.mxu0 0.0
        %2711 = vmatmul.mubr.f32.gmra.mrb[0].mxu0 %v1233
        %v2712 = vpop.f32.mrb[0].mxu0
        %v2713 = vadd.f32 %v2345, %v2712
        %v2714 = vpop.f32.mrb[0].mxu0
        %2715 = vmatprep.mubr.f32.mxu0 0.0
        %2716 = vmatmul.mubr.f32.gmra.mrb[0].mxu0 %v1234
        %v2717 = vpop.f32.mrb[0].mxu0
        %v2718 = vadd.f32 %v2345, %v2717
        %v2719 = vpop.f32.mrb[0].mxu0
        %2720 = vmatprep.mubr.f32.mxu0 0.0
        %2721 = vmatmul.mubr.f32.gmra.mrb[0].mxu0 %v1235
        %v2722 = vpop.f32.mrb[0].mxu0
        %v2723 = vadd.f32 %v2345, %v2722
        %v2724 = vpop.f32.mrb[0].mxu0
        %2725 = vdwg.mxu0
        %s2726 = scalar_lea.vmem %s968, 384
        %v2727 = vld [vmem:[%s2726] sm:$0xff]
        %v2728 = vld [vmem:[%s2726 + $0x8] sm:$0xff]
        %v2729 = vld [vmem:[%s2726 + $0x10] sm:$0xff]
        %v2730 = vld [vmem:[%s2726 + $0x18] sm:$0xff]
        %v2731 = vld [vmem:[%s2726 + $0x20] sm:$0xff]
        %v2732 = vld [vmem:[%s2726 + $0x28] sm:$0xff]
        %v2733 = vld [vmem:[%s2726 + $0x30] sm:$0xff]
        %v2734 = vld [vmem:[%s2726 + $0x38] sm:$0xff]
        %v2735 = vld [vmem:[%s2726 + $0x40] sm:$0xff]
        %v2736 = vld [vmem:[%s2726 + $0x48] sm:$0xff]
        %v2737 = vld [vmem:[%s2726 + $0x50] sm:$0xff]
        %v2738 = vld [vmem:[%s2726 + $0x58] sm:$0xff]
        %v2739 = vld [vmem:[%s2726 + $0x60] sm:$0xff]
        %v2740 = vld [vmem:[%s2726 + $0x68] sm:$0xff]
        %v2741 = vld [vmem:[%s2726 + $0x70] sm:$0xff]
        %v2742 = vld [vmem:[%s2726 + $0x78] sm:$0xff]
        %2743 = vmatprep.subr.mxu0 0.0
        %2744 = vmatpush1.msra.mxu0 %v2727
        %2745 = vmatprep.subr.mxu0 0.0
        %2746 = vmatpush1.msra.mxu0 %v2728
        %2747 = vmatprep.subr.mxu0 0.0
        %2748 = vmatpush1.msra.mxu0 %v2729
        %2749 = vmatprep.subr.mxu0 0.0
        %2750 = vmatpush1.msra.mxu0 %v2730
        %2751 = vmatprep.subr.mxu0 0.0
        %2752 = vmatpush1.msra.mxu0 %v2731
        %2753 = vmatprep.subr.mxu0 0.0
        %2754 = vmatpush1.msra.mxu0 %v2732
        %2755 = vmatprep.subr.mxu0 0.0
        %2756 = vmatpush1.msra.mxu0 %v2733
        %2757 = vmatprep.subr.mxu0 0.0
        %2758 = vmatpush1.msra.mxu0 %v2734
        %2759 = vmatprep.subr.mxu0 0.0
        %2760 = vmatpush1.msra.mxu0 %v2735
        %2761 = vmatprep.subr.mxu0 0.0
        %2762 = vmatpush1.msra.mxu0 %v2736
        %2763 = vmatprep.subr.mxu0 0.0
        %2764 = vmatpush1.msra.mxu0 %v2737
        %2765 = vmatprep.subr.mxu0 0.0
        %2766 = vmatpush1.msra.mxu0 %v2738
        %2767 = vmatprep.subr.mxu0 0.0
        %2768 = vmatpush1.msra.mxu0 %v2739
        %2769 = vmatprep.subr.mxu0 0.0
        %2770 = vmatpush1.msra.mxu0 %v2740
        %2771 = vmatprep.subr.mxu0 0.0
        %2772 = vmatpush1.msra.mxu0 %v2741
        %2773 = vmatprep.subr.mxu0 0.0
        %2774 = vmatpush1.msra.mxu0 %v2742
        %2775 = vmatprep.subr.mxu0 0.0
        %2776 = vmatpush1.msra.mxu0 0.0
        %2777 = vmatprep.subr.mxu0 0.0
        %2778 = vmatpush1.msra.mxu0 0.0
        %2779 = vmatprep.subr.mxu0 0.0
        %2780 = vmatpush1.msra.mxu0 0.0
        %2781 = vmatprep.subr.mxu0 0.0
        %2782 = vmatpush1.msra.mxu0 0.0
        %2783 = vmatprep.subr.mxu0 0.0
        %2784 = vmatpush1.msra.mxu0 0.0
        %2785 = vmatprep.subr.mxu0 0.0
        %2786 = vmatpush1.msra.mxu0 0.0
        %2787 = vmatprep.subr.mxu0 0.0
        %2788 = vmatpush1.msra.mxu0 0.0
        %2789 = vmatprep.subr.mxu0 0.0
        %2790 = vmatpush1.msra.mxu0 0.0
        %2791 = vmatprep.subr.mxu0 0.0
        %2792 = vmatpush1.msra.mxu0 0.0
        %2793 = vmatprep.subr.mxu0 0.0
        %2794 = vmatpush1.msra.mxu0 0.0
        %2795 = vmatprep.subr.mxu0 0.0
        %2796 = vmatpush1.msra.mxu0 0.0
        %2797 = vmatprep.subr.mxu0 0.0
        %2798 = vmatpush1.msra.mxu0 0.0
        %2799 = vmatprep.subr.mxu0 0.0
        %2800 = vmatpush1.msra.mxu0 0.0
        %2801 = vmatprep.subr.mxu0 0.0
        %2802 = vmatpush1.msra.mxu0 0.0
        %2803 = vmatprep.subr.mxu0 0.0
        %2804 = vmatpush1.msra.mxu0 0.0
        %2805 = vmatprep.subr.mxu0 0.0
        %2806 = vmatpush1.msra.mxu0 0.0
        %2807 = vmatprep.mubr.f32.mxu0 0.0
        %2808 = vmatmul.mubr.f32.gmra.mrb[0].mxu0 %v1226
        %v2809 = vpop.f32.mrb[0].mxu0
        %v2810 = vadd.f32 %v2345, %v2809
        %v2811 = vpop.f32.mrb[0].mxu0
        %2812 = vmatprep.mubr.f32.mxu0 0.0
        %2813 = vmatmul.mubr.f32.gmra.mrb[0].mxu0 %v1227
        %v2814 = vpop.f32.mrb[0].mxu0
        %v2815 = vadd.f32 %v2345, %v2814
        %v2816 = vpop.f32.mrb[0].mxu0
        %2817 = vmatprep.mubr.f32.mxu0 0.0
        %2818 = vmatmul.mubr.f32.gmra.mrb[0].mxu0 %v1228
        %v2819 = vpop.f32.mrb[0].mxu0
        %v2820 = vadd.f32 %v2345, %v2819
        %v2821 = vpop.f32.mrb[0].mxu0
        %2822 = vmatprep.mubr.f32.mxu0 0.0
        %2823 = vmatmul.mubr.f32.gmra.mrb[0].mxu0 %v1229
        %v2824 = vpop.f32.mrb[0].mxu0
        %v2825 = vadd.f32 %v2345, %v2824
        %v2826 = vpop.f32.mrb[0].mxu0
        %2827 = vmatprep.mubr.f32.mxu0 0.0
        %2828 = vmatmul.mubr.f32.gmra.mrb[0].mxu0 %v1230
        %v2829 = vpop.f32.mrb[0].mxu0
        %v2830 = vadd.f32 %v2345, %v2829
        %v2831 = vpop.f32.mrb[0].mxu0
        %2832 = vmatprep.mubr.f32.mxu0 0.0
        %2833 = vmatmul.mubr.f32.gmra.mrb[0].mxu0 %v1231
        %v2834 = vpop.f32.mrb[0].mxu0
        %v2835 = vadd.f32 %v2345, %v2834
        %v2836 = vpop.f32.mrb[0].mxu0
        %2837 = vmatprep.mubr.f32.mxu0 0.0
        %2838 = vmatmul.mubr.f32.gmra.mrb[0].mxu0 %v1232
        %v2839 = vpop.f32.mrb[0].mxu0
        %v2840 = vadd.f32 %v2345, %v2839
        %v2841 = vpop.f32.mrb[0].mxu0
        %2842 = vmatprep.mubr.f32.mxu0 0.0
        %2843 = vmatmul.mubr.f32.gmra.mrb[0].mxu0 %v1233
        %v2844 = vpop.f32.mrb[0].mxu0
        %v2845 = vadd.f32 %v2345, %v2844
        %v2846 = vpop.f32.mrb[0].mxu0
        %2847 = vmatprep.mubr.f32.mxu0 0.0
        %2848 = vmatmul.mubr.f32.gmra.mrb[0].mxu0 %v1234
        %v2849 = vpop.f32.mrb[0].mxu0
        %v2850 = vadd.f32 %v2345, %v2849
        %v2851 = vpop.f32.mrb[0].mxu0
        %2852 = vmatprep.mubr.f32.mxu0 0.0
        %2853 = vmatmul.mubr.f32.gmra.mrb[0].mxu0 %v1235
        %v2854 = vpop.f32.mrb[0].mxu0
        %v2855 = vadd.f32 %v2345, %v2854
        %v2856 = vpop.f32.mrb[0].mxu0
        %2857 = vdwg.mxu0
        %vm2858 = vcmask 261120
        %v2860 = vsel %vm2858, %v1346, 0
        %v2863 = vsel %vm2858, %v1351, 0
        %v2866 = vsel %vm2858, %v1356, 0
        %v2869 = vsel %vm2858, %v1361, 0
        %v2872 = vsel %vm2858, %v1366, 0
        %v2875 = vsel %vm2858, %v1880, 0
        %v2878 = vsel %vm2858, %v1885, 0
        %v2881 = vsel %vm2858, %v1890, 0
        %v2884 = vsel %vm2858, %v1895, 0
        %v2887 = vsel %vm2858, %v1900, 0
        %2889 = vmatprep.subr.mxu0 0.0
        %2890 = vmatpush1.xpose.msra.mxu0 %v2875
        %2891 = vmatprep.subr.mxu0 0.0
        %2892 = vmatpush1.xpose.msra.mxu0 %v2878
        %2893 = vmatprep.subr.mxu0 0.0
        %2894 = vmatpush1.xpose.msra.mxu0 %v2881
        %2895 = vmatprep.subr.mxu0 0.0
        %2896 = vmatpush1.xpose.msra.mxu0 %v2884
        %2897 = vmatprep.subr.mxu0 0.0
        %2898 = vmatpush1.xpose.msra.mxu0 %v2887
        %2899 = vmatprep.subr.mxu0 0.0
        %2900 = vmatpush1.xpose.msra.mxu0 0.0
        %2901 = vmatprep.subr.mxu0 0.0
        %2902 = vmatpush1.xpose.msra.mxu0 0.0
        %2903 = vmatprep.subr.mxu0 0.0
        %2904 = vmatpush1.xpose.msra.mxu0 0.0
        %2905 = vmatprep.subr.mxu0 0.0
        %2906 = vmatpush1.xpose.msra.mxu0 0.0
        %2907 = vmatprep.subr.mxu0 0.0
        %2908 = vmatpush1.xpose.msra.mxu0 0.0
        %2909 = vmatprep.subr.mxu0 0.0
        %2910 = vmatpush1.xpose.msra.mxu0 0.0
        %2911 = vmatprep.subr.mxu0 0.0
        %2912 = vmatpush1.xpose.msra.mxu0 0.0
        %2913 = vmatprep.subr.mxu0 0.0
        %2914 = vmatpush1.xpose.msra.mxu0 0.0
        %2915 = vmatprep.subr.mxu0 0.0
        %2916 = vmatpush1.xpose.msra.mxu0 0.0
        %2917 = vmatprep.subr.mxu0 0.0
        %2918 = vmatpush1.xpose.msra.mxu0 0.0
        %2919 = vmatprep.subr.mxu0 0.0
        %2920 = vmatpush1.xpose.msra.mxu0 0.0
        %2921 = vmatprep.subr.mxu0 0.0
        %2922 = vmatpush1.xpose.msra.mxu0 0.0
        %2923 = vmatprep.subr.mxu0 0.0
        %2924 = vmatpush1.xpose.msra.mxu0 0.0
        %2925 = vmatprep.subr.mxu0 0.0
        %2926 = vmatpush1.xpose.msra.mxu0 0.0
        %2927 = vmatprep.subr.mxu0 0.0
        %2928 = vmatpush1.xpose.msra.mxu0 0.0
        %2929 = vmatprep.subr.mxu0 0.0
        %2930 = vmatpush1.xpose.msra.mxu0 0.0
        %2931 = vmatprep.subr.mxu0 0.0
        %2932 = vmatpush1.xpose.msra.mxu0 0.0
        %2933 = vmatprep.subr.mxu0 0.0
        %2934 = vmatpush1.xpose.msra.mxu0 0.0
        %2935 = vmatprep.subr.mxu0 0.0
        %2936 = vmatpush1.xpose.msra.mxu0 0.0
        %2937 = vmatprep.subr.mxu0 0.0
        %2938 = vmatpush1.xpose.msra.mxu0 0.0
        %2939 = vmatprep.subr.mxu0 0.0
        %2940 = vmatpush1.xpose.msra.mxu0 0.0
        %2941 = vmatprep.subr.mxu0 0.0
        %2942 = vmatpush1.xpose.msra.mxu0 0.0
        %2943 = vmatprep.subr.mxu0 0.0
        %2944 = vmatpush1.xpose.msra.mxu0 0.0
        %2945 = vmatprep.subr.mxu0 0.0
        %2946 = vmatpush1.xpose.msra.mxu0 0.0
        %2947 = vmatprep.subr.mxu0 0.0
        %2948 = vmatpush1.xpose.msra.mxu0 0.0
        %2949 = vmatprep.subr.mxu0 0.0
        %2950 = vmatpush1.xpose.msra.mxu0 0.0
        %2951 = vmatprep.subr.mxu0 0.0
        %2952 = vmatpush1.xpose.msra.mxu0 0.0
        %2953 = vmatprep.mubr.f32.mxu0 0.0
        %2954 = vmatmul.mubr.f32.gmra.mrb[0].mxu0 %v2860
        %v2955 = vpop.f32.mrb[0].mxu0
        %v2956 = vadd.f32 %v1239, %v2955
        %v2957 = vpop.f32.mrb[0].mxu0
        %2958 = vmatprep.mubr.f32.mxu0 0.0
        %2959 = vmatmul.mubr.f32.gmra.mrb[0].mxu0 %v2863
        %v2960 = vpop.f32.mrb[0].mxu0
        %v2961 = vadd.f32 %v1239, %v2960
        %v2962 = vpop.f32.mrb[0].mxu0
        %2963 = vmatprep.mubr.f32.mxu0 0.0
        %2964 = vmatmul.mubr.f32.gmra.mrb[0].mxu0 %v2866
        %v2965 = vpop.f32.mrb[0].mxu0
        %v2966 = vadd.f32 %v1239, %v2965
        %v2967 = vpop.f32.mrb[0].mxu0
        %2968 = vmatprep.mubr.f32.mxu0 0.0
        %2969 = vmatmul.mubr.f32.gmra.mrb[0].mxu0 %v2869
        %v2970 = vpop.f32.mrb[0].mxu0
        %v2971 = vadd.f32 %v1239, %v2970
        %v2972 = vpop.f32.mrb[0].mxu0
        %2973 = vmatprep.mubr.f32.mxu0 0.0
        %2974 = vmatmul.mubr.f32.gmra.mrb[0].mxu0 %v2872
        %v2975 = vpop.f32.mrb[0].mxu0
        %v2976 = vadd.f32 %v1239, %v2975
        %v2977 = vpop.f32.mrb[0].mxu0
        %2978 = vdwg.mxu0
        %vm2979 = vcmask 326656
        %v2980 = vsel %vm2979, %v2956, -inf
        %2981 = vmax.xlane.f32.xlu0 %v2980
        %v2982 = vpop.xlane.xlu0 %2981
        %v2983 = vsel %vm2979, %v2961, -inf
        %2984 = vmax.xlane.f32.xlu0 %v2983
        %v2985 = vpop.xlane.xlu0 %2984
        %v2986 = vsel %vm2979, %v2966, -inf
        %2987 = vmax.xlane.f32.xlu0 %v2986
        %v2988 = vpop.xlane.xlu0 %2987
        %v2989 = vsel %vm2979, %v2971, -inf
        %2990 = vmax.xlane.f32.xlu0 %v2989
        %v2991 = vpop.xlane.xlu0 %2990
        %v2992 = vsel %vm2979, %v2976, -inf
        %2993 = vmax.xlane.f32.xlu0 %v2992
        %v2994 = vpop.xlane.xlu0 %2993
        %v2995 = vsub.f32 %v2956, %v2982
        %v2996 = vsub.f32 %v2961, %v2985
        %v2997 = vsub.f32 %v2966, %v2988
        %v2998 = vsub.f32 %v2971, %v2991
        %v2999 = vsub.f32 %v2976, %v2994
        %v3000 = vmul.f32 %v2995, 1.442695
        %v3001 = vpow.pop %v3000
        %v3002 = vmul.f32 %v2996, 1.442695
        %v3003 = vpow.pop %v3002
        %v3004 = vmul.f32 %v2997, 1.442695
        %v3005 = vpow.pop %v3004
        %v3006 = vmul.f32 %v2998, 1.442695
        %v3007 = vpow.pop %v3006
        %v3008 = vmul.f32 %v2999, 1.442695
        %v3009 = vpow.pop %v3008
        %v3010 = vsel %vm2979, %v3001, 0.0
        %3011 = vadd.xlane.f32.xlu0 %v3010
        %v3012 = vpop.xlane.xlu0 %3011
        %v3013 = vsel %vm2979, %v3003, 0.0
        %3014 = vadd.xlane.f32.xlu0 %v3013
        %v3015 = vpop.xlane.xlu0 %3014
        %v3016 = vsel %vm2979, %v3005, 0.0
        %3017 = vadd.xlane.f32.xlu0 %v3016
        %v3018 = vpop.xlane.xlu0 %3017
        %v3019 = vsel %vm2979, %v3007, 0.0
        %3020 = vadd.xlane.f32.xlu0 %v3019
        %v3021 = vpop.xlane.xlu0 %3020
        %v3022 = vsel %vm2979, %v3009, 0.0
        %3023 = vadd.xlane.f32.xlu0 %v3022
        %v3024 = vpop.xlane.xlu0 %3023
        %v3025 = vrcp.pop %v3012
        %v3026 = vrcp.pop %v3015
        %v3027 = vrcp.pop %v3018
        %v3028 = vrcp.pop %v3021
        %v3029 = vrcp.pop %v3024
        %v3030 = vmul.f32 %v3001, %v3025
        %v3031 = vmul.f32 %v3003, %v3026
        %v3032 = vmul.f32 %v3005, %v3027
        %v3033 = vmul.f32 %v3007, %v3028
        %v3034 = vmul.f32 %v3009, %v3029
        %v3036 = vsel %vm2979, %v3030, 0
        %v3039 = vsel %vm2979, %v3031, 0
        %v3042 = vsel %vm2979, %v3032, 0
        %v3045 = vsel %vm2979, %v3033, 0
        %v3048 = vsel %vm2979, %v3034, 0
        %3050 = vmatprep.subr.mxu0 0.0
        %3051 = vmatpush1.msra.mxu0 %v2414
        %3052 = vmatprep.subr.mxu0 0.0
        %3053 = vmatpush1.msra.mxu0 %v2419
        %3054 = vmatprep.subr.mxu0 0.0
        %3055 = vmatpush1.msra.mxu0 %v2424
        %3056 = vmatprep.subr.mxu0 0.0
        %3057 = vmatpush1.msra.mxu0 %v2429
        %3058 = vmatprep.subr.mxu0 0.0
        %3059 = vmatpush1.msra.mxu0 %v2434
        %3060 = vmatprep.subr.mxu0 0.0
        %3061 = vmatpush1.msra.mxu0 0.0
        %3062 = vmatprep.subr.mxu0 0.0
        %3063 = vmatpush1.msra.mxu0 0.0
        %3064 = vmatprep.subr.mxu0 0.0
        %3065 = vmatpush1.msra.mxu0 0.0
        %3066 = vmatprep.subr.mxu0 0.0
        %3067 = vmatpush1.msra.mxu0 0.0
        %3068 = vmatprep.subr.mxu0 0.0
        %3069 = vmatpush1.msra.mxu0 0.0
        %3070 = vmatprep.subr.mxu0 0.0
        %3071 = vmatpush1.msra.mxu0 0.0
        %3072 = vmatprep.subr.mxu0 0.0
        %3073 = vmatpush1.msra.mxu0 0.0
        %3074 = vmatprep.subr.mxu0 0.0
        %3075 = vmatpush1.msra.mxu0 0.0
        %3076 = vmatprep.subr.mxu0 0.0
        %3077 = vmatpush1.msra.mxu0 0.0
        %3078 = vmatprep.subr.mxu0 0.0
        %3079 = vmatpush1.msra.mxu0 0.0
        %3080 = vmatprep.subr.mxu0 0.0
        %3081 = vmatpush1.msra.mxu0 0.0
        %3082 = vmatprep.subr.mxu0 0.0
        %3083 = vmatpush1.msra.mxu0 0.0
        %3084 = vmatprep.subr.mxu0 0.0
        %3085 = vmatpush1.msra.mxu0 0.0
        %3086 = vmatprep.subr.mxu0 0.0
        %3087 = vmatpush1.msra.mxu0 0.0
        %3088 = vmatprep.subr.mxu0 0.0
        %3089 = vmatpush1.msra.mxu0 0.0
        %3090 = vmatprep.subr.mxu0 0.0
        %3091 = vmatpush1.msra.mxu0 0.0
        %3092 = vmatprep.subr.mxu0 0.0
        %3093 = vmatpush1.msra.mxu0 0.0
        %3094 = vmatprep.subr.mxu0 0.0
        %3095 = vmatpush1.msra.mxu0 0.0
        %3096 = vmatprep.subr.mxu0 0.0
        %3097 = vmatpush1.msra.mxu0 0.0
        %3098 = vmatprep.subr.mxu0 0.0
        %3099 = vmatpush1.msra.mxu0 0.0
        %3100 = vmatprep.subr.mxu0 0.0
        %3101 = vmatpush1.msra.mxu0 0.0
        %3102 = vmatprep.subr.mxu0 0.0
        %3103 = vmatpush1.msra.mxu0 0.0
        %3104 = vmatprep.subr.mxu0 0.0
        %3105 = vmatpush1.msra.mxu0 0.0
        %3106 = vmatprep.subr.mxu0 0.0
        %3107 = vmatpush1.msra.mxu0 0.0
        %3108 = vmatprep.subr.mxu0 0.0
        %3109 = vmatpush1.msra.mxu0 0.0
        %3110 = vmatprep.subr.mxu0 0.0
        %3111 = vmatpush1.msra.mxu0 0.0
        %3112 = vmatprep.subr.mxu0 0.0
        %3113 = vmatpush1.msra.mxu0 0.0
        %3114 = vmatprep.mubr.f32.mxu0 0.0
        %3115 = vmatmul.mubr.f32.gmra.mrb[0].mxu0 %v3036
        %v3116 = vpop.f32.mrb[0].mxu0
        %v3117 = vadd.f32 0.0, %v3116
        %v3118 = vpop.f32.mrb[0].mxu0
        %3119 = vmatprep.mubr.f32.mxu0 0.0
        %3120 = vmatmul.mubr.f32.gmra.mrb[0].mxu0 %v3039
        %v3121 = vpop.f32.mrb[0].mxu0
        %v3122 = vadd.f32 0.0, %v3121
        %v3123 = vpop.f32.mrb[0].mxu0
        %3124 = vmatprep.mubr.f32.mxu0 0.0
        %3125 = vmatmul.mubr.f32.gmra.mrb[0].mxu0 %v3042
        %v3126 = vpop.f32.mrb[0].mxu0
        %v3127 = vadd.f32 0.0, %v3126
        %v3128 = vpop.f32.mrb[0].mxu0
        %3129 = vmatprep.mubr.f32.mxu0 0.0
        %3130 = vmatmul.mubr.f32.gmra.mrb[0].mxu0 %v3045
        %v3131 = vpop.f32.mrb[0].mxu0
        %v3132 = vadd.f32 0.0, %v3131
        %v3133 = vpop.f32.mrb[0].mxu0
        %3134 = vmatprep.mubr.f32.mxu0 0.0
        %3135 = vmatmul.mubr.f32.gmra.mrb[0].mxu0 %v3048
        %v3136 = vpop.f32.mrb[0].mxu0
        %v3137 = vadd.f32 0.0, %v3136
        %v3138 = vpop.f32.mrb[0].mxu0
        %3139 = vdwg.mxu0
        %v3141 = vsel %vm2858, %v1478, 0
        %v3144 = vsel %vm2858, %v1483, 0
        %v3147 = vsel %vm2858, %v1488, 0
        %v3150 = vsel %vm2858, %v1493, 0
        %v3153 = vsel %vm2858, %v1498, 0
        %v3156 = vsel %vm2858, %v2012, 0
        %v3159 = vsel %vm2858, %v2017, 0
        %v3162 = vsel %vm2858, %v2022, 0
        %v3165 = vsel %vm2858, %v2027, 0
        %v3168 = vsel %vm2858, %v2032, 0
        %3170 = vmatprep.subr.mxu0 0.0
        %3171 = vmatpush1.xpose.msra.mxu0 %v3156
        %3172 = vmatprep.subr.mxu0 0.0
        %3173 = vmatpush1.xpose.msra.mxu0 %v3159
        %3174 = vmatprep.subr.mxu0 0.0
        %3175 = vmatpush1.xpose.msra.mxu0 %v3162
        %3176 = vmatprep.subr.mxu0 0.0
        %3177 = vmatpush1.xpose.msra.mxu0 %v3165
        %3178 = vmatprep.subr.mxu0 0.0
        %3179 = vmatpush1.xpose.msra.mxu0 %v3168
        %3180 = vmatprep.subr.mxu0 0.0
        %3181 = vmatpush1.xpose.msra.mxu0 0.0
        %3182 = vmatprep.subr.mxu0 0.0
        %3183 = vmatpush1.xpose.msra.mxu0 0.0
        %3184 = vmatprep.subr.mxu0 0.0
        %3185 = vmatpush1.xpose.msra.mxu0 0.0
        %3186 = vmatprep.subr.mxu0 0.0
        %3187 = vmatpush1.xpose.msra.mxu0 0.0
        %3188 = vmatprep.subr.mxu0 0.0
        %3189 = vmatpush1.xpose.msra.mxu0 0.0
        %3190 = vmatprep.subr.mxu0 0.0
        %3191 = vmatpush1.xpose.msra.mxu0 0.0
        %3192 = vmatprep.subr.mxu0 0.0
        %3193 = vmatpush1.xpose.msra.mxu0 0.0
        %3194 = vmatprep.subr.mxu0 0.0
        %3195 = vmatpush1.xpose.msra.mxu0 0.0
        %3196 = vmatprep.subr.mxu0 0.0
        %3197 = vmatpush1.xpose.msra.mxu0 0.0
        %3198 = vmatprep.subr.mxu0 0.0
        %3199 = vmatpush1.xpose.msra.mxu0 0.0
        %3200 = vmatprep.subr.mxu0 0.0
        %3201 = vmatpush1.xpose.msra.mxu0 0.0
        %3202 = vmatprep.subr.mxu0 0.0
        %3203 = vmatpush1.xpose.msra.mxu0 0.0
        %3204 = vmatprep.subr.mxu0 0.0
        %3205 = vmatpush1.xpose.msra.mxu0 0.0
        %3206 = vmatprep.subr.mxu0 0.0
        %3207 = vmatpush1.xpose.msra.mxu0 0.0
        %3208 = vmatprep.subr.mxu0 0.0
        %3209 = vmatpush1.xpose.msra.mxu0 0.0
        %3210 = vmatprep.subr.mxu0 0.0
        %3211 = vmatpush1.xpose.msra.mxu0 0.0
        %3212 = vmatprep.subr.mxu0 0.0
        %3213 = vmatpush1.xpose.msra.mxu0 0.0
        %3214 = vmatprep.subr.mxu0 0.0
        %3215 = vmatpush1.xpose.msra.mxu0 0.0
        %3216 = vmatprep.subr.mxu0 0.0
        %3217 = vmatpush1.xpose.msra.mxu0 0.0
        %3218 = vmatprep.subr.mxu0 0.0
        %3219 = vmatpush1.xpose.msra.mxu0 0.0
        %3220 = vmatprep.subr.mxu0 0.0
        %3221 = vmatpush1.xpose.msra.mxu0 0.0
        %3222 = vmatprep.subr.mxu0 0.0
        %3223 = vmatpush1.xpose.msra.mxu0 0.0
        %3224 = vmatprep.subr.mxu0 0.0
        %3225 = vmatpush1.xpose.msra.mxu0 0.0
        %3226 = vmatprep.subr.mxu0 0.0
        %3227 = vmatpush1.xpose.msra.mxu0 0.0
        %3228 = vmatprep.subr.mxu0 0.0
        %3229 = vmatpush1.xpose.msra.mxu0 0.0
        %3230 = vmatprep.subr.mxu0 0.0
        %3231 = vmatpush1.xpose.msra.mxu0 0.0
        %3232 = vmatprep.subr.mxu0 0.0
        %3233 = vmatpush1.xpose.msra.mxu0 0.0
        %3234 = vmatprep.mubr.f32.mxu0 0.0
        %3235 = vmatmul.mubr.f32.gmra.mrb[0].mxu0 %v3141
        %v3236 = vpop.f32.mrb[0].mxu0
        %v3237 = vadd.f32 %v1239, %v3236
        %v3238 = vpop.f32.mrb[0].mxu0
        %3239 = vmatprep.mubr.f32.mxu0 0.0
        %3240 = vmatmul.mubr.f32.gmra.mrb[0].mxu0 %v3144
        %v3241 = vpop.f32.mrb[0].mxu0
        %v3242 = vadd.f32 %v1239, %v3241
        %v3243 = vpop.f32.mrb[0].mxu0
        %3244 = vmatprep.mubr.f32.mxu0 0.0
        %3245 = vmatmul.mubr.f32.gmra.mrb[0].mxu0 %v3147
        %v3246 = vpop.f32.mrb[0].mxu0
        %v3247 = vadd.f32 %v1239, %v3246
        %v3248 = vpop.f32.mrb[0].mxu0
        %3249 = vmatprep.mubr.f32.mxu0 0.0
        %3250 = vmatmul.mubr.f32.gmra.mrb[0].mxu0 %v3150
        %v3251 = vpop.f32.mrb[0].mxu0
        %v3252 = vadd.f32 %v1239, %v3251
        %v3253 = vpop.f32.mrb[0].mxu0
        %3254 = vmatprep.mubr.f32.mxu0 0.0
        %3255 = vmatmul.mubr.f32.gmra.mrb[0].mxu0 %v3153
        %v3256 = vpop.f32.mrb[0].mxu0
        %v3257 = vadd.f32 %v1239, %v3256
        %v3258 = vpop.f32.mrb[0].mxu0
        %3259 = vdwg.mxu0
        %v3260 = vsel %vm2979, %v3237, -inf
        %3261 = vmax.xlane.f32.xlu0 %v3260
        %v3262 = vpop.xlane.xlu0 %3261
        %v3263 = vsel %vm2979, %v3242, -inf
        %3264 = vmax.xlane.f32.xlu0 %v3263
        %v3265 = vpop.xlane.xlu0 %3264
        %v3266 = vsel %vm2979, %v3247, -inf
        %3267 = vmax.xlane.f32.xlu0 %v3266
        %v3268 = vpop.xlane.xlu0 %3267
        %v3269 = vsel %vm2979, %v3252, -inf
        %3270 = vmax.xlane.f32.xlu0 %v3269
        %v3271 = vpop.xlane.xlu0 %3270
        %v3272 = vsel %vm2979, %v3257, -inf
        %3273 = vmax.xlane.f32.xlu0 %v3272
        %v3274 = vpop.xlane.xlu0 %3273
        %v3275 = vsub.f32 %v3237, %v3262
        %v3276 = vsub.f32 %v3242, %v3265
        %v3277 = vsub.f32 %v3247, %v3268
        %v3278 = vsub.f32 %v3252, %v3271
        %v3279 = vsub.f32 %v3257, %v3274
        %v3280 = vmul.f32 %v3275, 1.442695
        %v3281 = vpow.pop %v3280
        %v3282 = vmul.f32 %v3276, 1.442695
        %v3283 = vpow.pop %v3282
        %v3284 = vmul.f32 %v3277, 1.442695
        %v3285 = vpow.pop %v3284
        %v3286 = vmul.f32 %v3278, 1.442695
        %v3287 = vpow.pop %v3286
        %v3288 = vmul.f32 %v3279, 1.442695
        %v3289 = vpow.pop %v3288
        %v3290 = vsel %vm2979, %v3281, 0.0
        %3291 = vadd.xlane.f32.xlu0 %v3290
        %v3292 = vpop.xlane.xlu0 %3291
        %v3293 = vsel %vm2979, %v3283, 0.0
        %3294 = vadd.xlane.f32.xlu0 %v3293
        %v3295 = vpop.xlane.xlu0 %3294
        %v3296 = vsel %vm2979, %v3285, 0.0
        %3297 = vadd.xlane.f32.xlu0 %v3296
        %v3298 = vpop.xlane.xlu0 %3297
        %v3299 = vsel %vm2979, %v3287, 0.0
        %3300 = vadd.xlane.f32.xlu0 %v3299
        %v3301 = vpop.xlane.xlu0 %3300
        %v3302 = vsel %vm2979, %v3289, 0.0
        %3303 = vadd.xlane.f32.xlu0 %v3302
        %v3304 = vpop.xlane.xlu0 %3303
        %v3305 = vrcp.pop %v3292
        %v3306 = vrcp.pop %v3295
        %v3307 = vrcp.pop %v3298
        %v3308 = vrcp.pop %v3301
        %v3309 = vrcp.pop %v3304
        %v3310 = vmul.f32 %v3281, %v3305
        %v3311 = vmul.f32 %v3283, %v3306
        %v3312 = vmul.f32 %v3285, %v3307
        %v3313 = vmul.f32 %v3287, %v3308
        %v3314 = vmul.f32 %v3289, %v3309
        %v3316 = vsel %vm2979, %v3310, 0
        %v3319 = vsel %vm2979, %v3311, 0
        %v3322 = vsel %vm2979, %v3312, 0
        %v3325 = vsel %vm2979, %v3313, 0
        %v3328 = vsel %vm2979, %v3314, 0
        %3330 = vmatprep.subr.mxu0 0.0
        %3331 = vmatpush1.msra.mxu0 %v2546
        %3332 = vmatprep.subr.mxu0 0.0
        %3333 = vmatpush1.msra.mxu0 %v2551
        %3334 = vmatprep.subr.mxu0 0.0
        %3335 = vmatpush1.msra.mxu0 %v2556
        %3336 = vmatprep.subr.mxu0 0.0
        %3337 = vmatpush1.msra.mxu0 %v2561
        %3338 = vmatprep.subr.mxu0 0.0
        %3339 = vmatpush1.msra.mxu0 %v2566
        %3340 = vmatprep.subr.mxu0 0.0
        %3341 = vmatpush1.msra.mxu0 0.0
        %3342 = vmatprep.subr.mxu0 0.0
        %3343 = vmatpush1.msra.mxu0 0.0
        %3344 = vmatprep.subr.mxu0 0.0
        %3345 = vmatpush1.msra.mxu0 0.0
        %3346 = vmatprep.subr.mxu0 0.0
        %3347 = vmatpush1.msra.mxu0 0.0
        %3348 = vmatprep.subr.mxu0 0.0
        %3349 = vmatpush1.msra.mxu0 0.0
        %3350 = vmatprep.subr.mxu0 0.0
        %3351 = vmatpush1.msra.mxu0 0.0
        %3352 = vmatprep.subr.mxu0 0.0
        %3353 = vmatpush1.msra.mxu0 0.0
        %3354 = vmatprep.subr.mxu0 0.0
        %3355 = vmatpush1.msra.mxu0 0.0
        %3356 = vmatprep.subr.mxu0 0.0
        %3357 = vmatpush1.msra.mxu0 0.0
        %3358 = vmatprep.subr.mxu0 0.0
        %3359 = vmatpush1.msra.mxu0 0.0
        %3360 = vmatprep.subr.mxu0 0.0
        %3361 = vmatpush1.msra.mxu0 0.0
        %3362 = vmatprep.subr.mxu0 0.0
        %3363 = vmatpush1.msra.mxu0 0.0
        %3364 = vmatprep.subr.mxu0 0.0
        %3365 = vmatpush1.msra.mxu0 0.0
        %3366 = vmatprep.subr.mxu0 0.0
        %3367 = vmatpush1.msra.mxu0 0.0
        %3368 = vmatprep.subr.mxu0 0.0
        %3369 = vmatpush1.msra.mxu0 0.0
        %3370 = vmatprep.subr.mxu0 0.0
        %3371 = vmatpush1.msra.mxu0 0.0
        %3372 = vmatprep.subr.mxu0 0.0
        %3373 = vmatpush1.msra.mxu0 0.0
        %3374 = vmatprep.subr.mxu0 0.0
        %3375 = vmatpush1.msra.mxu0 0.0
        %3376 = vmatprep.subr.mxu0 0.0
        %3377 = vmatpush1.msra.mxu0 0.0
        %3378 = vmatprep.subr.mxu0 0.0
        %3379 = vmatpush1.msra.mxu0 0.0
        %3380 = vmatprep.subr.mxu0 0.0
        %3381 = vmatpush1.msra.mxu0 0.0
        %3382 = vmatprep.subr.mxu0 0.0
        %3383 = vmatpush1.msra.mxu0 0.0
        %3384 = vmatprep.subr.mxu0 0.0
        %3385 = vmatpush1.msra.mxu0 0.0
        %3386 = vmatprep.subr.mxu0 0.0
        %3387 = vmatpush1.msra.mxu0 0.0
        %3388 = vmatprep.subr.mxu0 0.0
        %3389 = vmatpush1.msra.mxu0 0.0
        %3390 = vmatprep.subr.mxu0 0.0
        %3391 = vmatpush1.msra.mxu0 0.0
        %3392 = vmatprep.subr.mxu0 0.0
        %3393 = vmatpush1.msra.mxu0 0.0
        %3394 = vmatprep.mubr.f32.mxu0 0.0
        %3395 = vmatmul.mubr.f32.gmra.mrb[0].mxu0 %v3316
        %v3396 = vpop.f32.mrb[0].mxu0
        %v3397 = vadd.f32 0.0, %v3396
        %v3398 = vpop.f32.mrb[0].mxu0
        %3399 = vmatprep.mubr.f32.mxu0 0.0
        %3400 = vmatmul.mubr.f32.gmra.mrb[0].mxu0 %v3319
        %v3401 = vpop.f32.mrb[0].mxu0
        %v3402 = vadd.f32 0.0, %v3401
        %v3403 = vpop.f32.mrb[0].mxu0
        %3404 = vmatprep.mubr.f32.mxu0 0.0
        %3405 = vmatmul.mubr.f32.gmra.mrb[0].mxu0 %v3322
        %v3406 = vpop.f32.mrb[0].mxu0
        %v3407 = vadd.f32 0.0, %v3406
        %v3408 = vpop.f32.mrb[0].mxu0
        %3409 = vmatprep.mubr.f32.mxu0 0.0
        %3410 = vmatmul.mubr.f32.gmra.mrb[0].mxu0 %v3325
        %v3411 = vpop.f32.mrb[0].mxu0
        %v3412 = vadd.f32 0.0, %v3411
        %v3413 = vpop.f32.mrb[0].mxu0
        %3414 = vmatprep.mubr.f32.mxu0 0.0
        %3415 = vmatmul.mubr.f32.gmra.mrb[0].mxu0 %v3328
        %v3416 = vpop.f32.mrb[0].mxu0
        %v3417 = vadd.f32 0.0, %v3416
        %v3418 = vpop.f32.mrb[0].mxu0
        %3419 = vdwg.mxu0
        %v3421 = vsel %vm2858, %v3397, 0
        %v3424 = vsel %vm2858, %v3402, 0
        %v3427 = vsel %vm2858, %v3407, 0
        %v3430 = vsel %vm2858, %v3412, 0
        %v3433 = vsel %vm2858, %v3417, 0
        %3435 = vmatprep.subr.mxu0 0.0
        %3436 = vmatpush1.msra.mxu0 %v1244
        %3437 = vmatprep.subr.mxu0 0.0
        %3438 = vmatpush1.msra.mxu0 %v1245
        %3439 = vmatprep.subr.mxu0 0.0
        %3440 = vmatpush1.msra.mxu0 %v1246
        %3441 = vmatprep.subr.mxu0 0.0
        %3442 = vmatpush1.msra.mxu0 %v1247
        %3443 = vmatprep.subr.mxu0 0.0
        %3444 = vmatpush1.msra.mxu0 0.0
        %3445 = vmatprep.subr.mxu0 0.0
        %3446 = vmatpush1.msra.mxu0 0.0
        %3447 = vmatprep.subr.mxu0 0.0
        %3448 = vmatpush1.msra.mxu0 0.0
        %3449 = vmatprep.subr.mxu0 0.0
        %3450 = vmatpush1.msra.mxu0 0.0
        %3451 = vmatprep.subr.mxu0 0.0
        %3452 = vmatpush1.msra.mxu0 0.0
        %3453 = vmatprep.subr.mxu0 0.0
        %3454 = vmatpush1.msra.mxu0 0.0
        %3455 = vmatprep.subr.mxu0 0.0
        %3456 = vmatpush1.msra.mxu0 0.0
        %3457 = vmatprep.subr.mxu0 0.0
        %3458 = vmatpush1.msra.mxu0 0.0
        %3459 = vmatprep.subr.mxu0 0.0
        %3460 = vmatpush1.msra.mxu0 0.0
        %3461 = vmatprep.subr.mxu0 0.0
        %3462 = vmatpush1.msra.mxu0 0.0
        %3463 = vmatprep.subr.mxu0 0.0
        %3464 = vmatpush1.msra.mxu0 0.0
        %3465 = vmatprep.subr.mxu0 0.0
        %3466 = vmatpush1.msra.mxu0 0.0
        %3467 = vmatprep.subr.mxu0 0.0
        %3468 = vmatpush1.msra.mxu0 0.0
        %3469 = vmatprep.subr.mxu0 0.0
        %3470 = vmatpush1.msra.mxu0 0.0
        %3471 = vmatprep.subr.mxu0 0.0
        %3472 = vmatpush1.msra.mxu0 0.0
        %3473 = vmatprep.subr.mxu0 0.0
        %3474 = vmatpush1.msra.mxu0 0.0
        %3475 = vmatprep.subr.mxu0 0.0
        %3476 = vmatpush1.msra.mxu0 0.0
        %3477 = vmatprep.subr.mxu0 0.0
        %3478 = vmatpush1.msra.mxu0 0.0
        %3479 = vmatprep.subr.mxu0 0.0
        %3480 = vmatpush1.msra.mxu0 0.0
        %3481 = vmatprep.subr.mxu0 0.0
        %3482 = vmatpush1.msra.mxu0 0.0
        %3483 = vmatprep.subr.mxu0 0.0
        %3484 = vmatpush1.msra.mxu0 0.0
        %3485 = vmatprep.subr.mxu0 0.0
        %3486 = vmatpush1.msra.mxu0 0.0
        %3487 = vmatprep.subr.mxu0 0.0
        %3488 = vmatpush1.msra.mxu0 0.0
        %3489 = vmatprep.subr.mxu0 0.0
        %3490 = vmatpush1.msra.mxu0 0.0
        %3491 = vmatprep.subr.mxu0 0.0
        %3492 = vmatpush1.msra.mxu0 0.0
        %3493 = vmatprep.subr.mxu0 0.0
        %3494 = vmatpush1.msra.mxu0 0.0
        %3495 = vmatprep.subr.mxu0 0.0
        %3496 = vmatpush1.msra.mxu0 0.0
        %3497 = vmatprep.subr.mxu0 0.0
        %3498 = vmatpush1.msra.mxu0 0.0
        %3499 = vmatprep.mubr.f32.mxu0 0.0
        %3500 = vmatmul.mubr.f32.gmra.mrb[0].mxu0 %v3421
        %v3501 = vpop.f32.mrb[0].mxu0
        %v3502 = vadd.f32 0.0, %v3501
        %v3503 = vpop.f32.mrb[0].mxu0
        %3504 = vmatprep.mubr.f32.mxu0 0.0
        %3505 = vmatmul.mubr.f32.gmra.mrb[0].mxu0 %v3424
        %v3506 = vpop.f32.mrb[0].mxu0
        %v3507 = vadd.f32 0.0, %v3506
        %v3508 = vpop.f32.mrb[0].mxu0
        %3509 = vmatprep.mubr.f32.mxu0 0.0
        %3510 = vmatmul.mubr.f32.gmra.mrb[0].mxu0 %v3427
        %v3511 = vpop.f32.mrb[0].mxu0
        %v3512 = vadd.f32 0.0, %v3511
        %v3513 = vpop.f32.mrb[0].mxu0
        %3514 = vmatprep.mubr.f32.mxu0 0.0
        %3515 = vmatmul.mubr.f32.gmra.mrb[0].mxu0 %v3430
        %v3516 = vpop.f32.mrb[0].mxu0
        %v3517 = vadd.f32 0.0, %v3516
        %v3518 = vpop.f32.mrb[0].mxu0
        %3519 = vmatprep.mubr.f32.mxu0 0.0
        %3520 = vmatmul.mubr.f32.gmra.mrb[0].mxu0 %v3433
        %v3521 = vpop.f32.mrb[0].mxu0
        %v3522 = vadd.f32 0.0, %v3521
        %v3523 = vpop.f32.mrb[0].mxu0
        %3524 = vdwg.mxu0
        %v3526 = vsel %vm2858, %v3117, 0
        %v3529 = vsel %vm2858, %v3122, 0
        %v3532 = vsel %vm2858, %v3127, 0
        %v3535 = vsel %vm2858, %v3132, 0
        %v3538 = vsel %vm2858, %v3137, 0
        %3540 = vmatprep.subr.mxu0 0.0
        %3541 = vmatpush1.msra.mxu0 %v1240
        %3542 = vmatprep.subr.mxu0 0.0
        %3543 = vmatpush1.msra.mxu0 %v1241
        %3544 = vmatprep.subr.mxu0 0.0
        %3545 = vmatpush1.msra.mxu0 %v1242
        %3546 = vmatprep.subr.mxu0 0.0
        %3547 = vmatpush1.msra.mxu0 %v1243
        %3548 = vmatprep.subr.mxu0 0.0
        %3549 = vmatpush1.msra.mxu0 0.0
        %3550 = vmatprep.subr.mxu0 0.0
        %3551 = vmatpush1.msra.mxu0 0.0
        %3552 = vmatprep.subr.mxu0 0.0
        %3553 = vmatpush1.msra.mxu0 0.0
        %3554 = vmatprep.subr.mxu0 0.0
        %3555 = vmatpush1.msra.mxu0 0.0
        %3556 = vmatprep.subr.mxu0 0.0
        %3557 = vmatpush1.msra.mxu0 0.0
        %3558 = vmatprep.subr.mxu0 0.0
        %3559 = vmatpush1.msra.mxu0 0.0
        %3560 = vmatprep.subr.mxu0 0.0
        %3561 = vmatpush1.msra.mxu0 0.0
        %3562 = vmatprep.subr.mxu0 0.0
        %3563 = vmatpush1.msra.mxu0 0.0
        %3564 = vmatprep.subr.mxu0 0.0
        %3565 = vmatpush1.msra.mxu0 0.0
        %3566 = vmatprep.subr.mxu0 0.0
        %3567 = vmatpush1.msra.mxu0 0.0
        %3568 = vmatprep.subr.mxu0 0.0
        %3569 = vmatpush1.msra.mxu0 0.0
        %3570 = vmatprep.subr.mxu0 0.0
        %3571 = vmatpush1.msra.mxu0 0.0
        %3572 = vmatprep.subr.mxu0 0.0
        %3573 = vmatpush1.msra.mxu0 0.0
        %3574 = vmatprep.subr.mxu0 0.0
        %3575 = vmatpush1.msra.mxu0 0.0
        %3576 = vmatprep.subr.mxu0 0.0
        %3577 = vmatpush1.msra.mxu0 0.0
        %3578 = vmatprep.subr.mxu0 0.0
        %3579 = vmatpush1.msra.mxu0 0.0
        %3580 = vmatprep.subr.mxu0 0.0
        %3581 = vmatpush1.msra.mxu0 0.0
        %3582 = vmatprep.subr.mxu0 0.0
        %3583 = vmatpush1.msra.mxu0 0.0
        %3584 = vmatprep.subr.mxu0 0.0
        %3585 = vmatpush1.msra.mxu0 0.0
        %3586 = vmatprep.subr.mxu0 0.0
        %3587 = vmatpush1.msra.mxu0 0.0
        %3588 = vmatprep.subr.mxu0 0.0
        %3589 = vmatpush1.msra.mxu0 0.0
        %3590 = vmatprep.subr.mxu0 0.0
        %3591 = vmatpush1.msra.mxu0 0.0
        %3592 = vmatprep.subr.mxu0 0.0
        %3593 = vmatpush1.msra.mxu0 0.0
        %3594 = vmatprep.subr.mxu0 0.0
        %3595 = vmatpush1.msra.mxu0 0.0
        %3596 = vmatprep.subr.mxu0 0.0
        %3597 = vmatpush1.msra.mxu0 0.0
        %3598 = vmatprep.subr.mxu0 0.0
        %3599 = vmatpush1.msra.mxu0 0.0
        %3600 = vmatprep.subr.mxu0 0.0
        %3601 = vmatpush1.msra.mxu0 0.0
        %3602 = vmatprep.subr.mxu0 0.0
        %3603 = vmatpush1.msra.mxu0 0.0
        %3604 = vmatprep.mubr.f32.mxu0 0.0
        %3605 = vmatmul.mubr.f32.gmra.mrb[0].mxu0 %v3526
        %v3606 = vpop.f32.mrb[0].mxu0
        %v3607 = vadd.f32 %v3502, %v3606
        %v3608 = vpop.f32.mrb[0].mxu0
        %3609 = vmatprep.mubr.f32.mxu0 0.0
        %3610 = vmatmul.mubr.f32.gmra.mrb[0].mxu0 %v3529
        %v3611 = vpop.f32.mrb[0].mxu0
        %v3612 = vadd.f32 %v3507, %v3611
        %v3613 = vpop.f32.mrb[0].mxu0
        %3614 = vmatprep.mubr.f32.mxu0 0.0
        %3615 = vmatmul.mubr.f32.gmra.mrb[0].mxu0 %v3532
        %v3616 = vpop.f32.mrb[0].mxu0
        %v3617 = vadd.f32 %v3512, %v3616
        %v3618 = vpop.f32.mrb[0].mxu0
        %3619 = vmatprep.mubr.f32.mxu0 0.0
        %3620 = vmatmul.mubr.f32.gmra.mrb[0].mxu0 %v3535
        %v3621 = vpop.f32.mrb[0].mxu0
        %v3622 = vadd.f32 %v3517, %v3621
        %v3623 = vpop.f32.mrb[0].mxu0
        %3624 = vmatprep.mubr.f32.mxu0 0.0
        %3625 = vmatmul.mubr.f32.gmra.mrb[0].mxu0 %v3538
        %v3626 = vpop.f32.mrb[0].mxu0
        %v3627 = vadd.f32 %v3522, %v3626
        %v3628 = vpop.f32.mrb[0].mxu0
        %3629 = vdwg.mxu0
        %v3631 = vsel %vm2858, %v1610, 0
        %v3634 = vsel %vm2858, %v1615, 0
        %v3637 = vsel %vm2858, %v1620, 0
        %v3640 = vsel %vm2858, %v1625, 0
        %v3643 = vsel %vm2858, %v1630, 0
        %v3646 = vsel %vm2858, %v2144, 0
        %v3649 = vsel %vm2858, %v2149, 0
        %v3652 = vsel %vm2858, %v2154, 0
        %v3655 = vsel %vm2858, %v2159, 0
        %v3658 = vsel %vm2858, %v2164, 0
        %3660 = vmatprep.subr.mxu0 0.0
        %3661 = vmatpush1.xpose.msra.mxu0 %v3646
        %3662 = vmatprep.subr.mxu0 0.0
        %3663 = vmatpush1.xpose.msra.mxu0 %v3649
        %3664 = vmatprep.subr.mxu0 0.0
        %3665 = vmatpush1.xpose.msra.mxu0 %v3652
        %3666 = vmatprep.subr.mxu0 0.0
        %3667 = vmatpush1.xpose.msra.mxu0 %v3655
        %3668 = vmatprep.subr.mxu0 0.0
        %3669 = vmatpush1.xpose.msra.mxu0 %v3658
        %3670 = vmatprep.subr.mxu0 0.0
        %3671 = vmatpush1.xpose.msra.mxu0 0.0
        %3672 = vmatprep.subr.mxu0 0.0
        %3673 = vmatpush1.xpose.msra.mxu0 0.0
        %3674 = vmatprep.subr.mxu0 0.0
        %3675 = vmatpush1.xpose.msra.mxu0 0.0
        %3676 = vmatprep.subr.mxu0 0.0
        %3677 = vmatpush1.xpose.msra.mxu0 0.0
        %3678 = vmatprep.subr.mxu0 0.0
        %3679 = vmatpush1.xpose.msra.mxu0 0.0
        %3680 = vmatprep.subr.mxu0 0.0
        %3681 = vmatpush1.xpose.msra.mxu0 0.0
        %3682 = vmatprep.subr.mxu0 0.0
        %3683 = vmatpush1.xpose.msra.mxu0 0.0
        %3684 = vmatprep.subr.mxu0 0.0
        %3685 = vmatpush1.xpose.msra.mxu0 0.0
        %3686 = vmatprep.subr.mxu0 0.0
        %3687 = vmatpush1.xpose.msra.mxu0 0.0
        %3688 = vmatprep.subr.mxu0 0.0
        %3689 = vmatpush1.xpose.msra.mxu0 0.0
        %3690 = vmatprep.subr.mxu0 0.0
        %3691 = vmatpush1.xpose.msra.mxu0 0.0
        %3692 = vmatprep.subr.mxu0 0.0
        %3693 = vmatpush1.xpose.msra.mxu0 0.0
        %3694 = vmatprep.subr.mxu0 0.0
        %3695 = vmatpush1.xpose.msra.mxu0 0.0
        %3696 = vmatprep.subr.mxu0 0.0
        %3697 = vmatpush1.xpose.msra.mxu0 0.0
        %3698 = vmatprep.subr.mxu0 0.0
        %3699 = vmatpush1.xpose.msra.mxu0 0.0
        %3700 = vmatprep.subr.mxu0 0.0
        %3701 = vmatpush1.xpose.msra.mxu0 0.0
        %3702 = vmatprep.subr.mxu0 0.0
        %3703 = vmatpush1.xpose.msra.mxu0 0.0
        %3704 = vmatprep.subr.mxu0 0.0
        %3705 = vmatpush1.xpose.msra.mxu0 0.0
        %3706 = vmatprep.subr.mxu0 0.0
        %3707 = vmatpush1.xpose.msra.mxu0 0.0
        %3708 = vmatprep.subr.mxu0 0.0
        %3709 = vmatpush1.xpose.msra.mxu0 0.0
        %3710 = vmatprep.subr.mxu0 0.0
        %3711 = vmatpush1.xpose.msra.mxu0 0.0
        %3712 = vmatprep.subr.mxu0 0.0
        %3713 = vmatpush1.xpose.msra.mxu0 0.0
        %3714 = vmatprep.subr.mxu0 0.0
        %3715 = vmatpush1.xpose.msra.mxu0 0.0
        %3716 = vmatprep.subr.mxu0 0.0
        %3717 = vmatpush1.xpose.msra.mxu0 0.0
        %3718 = vmatprep.subr.mxu0 0.0
        %3719 = vmatpush1.xpose.msra.mxu0 0.0
        %3720 = vmatprep.subr.mxu0 0.0
        %3721 = vmatpush1.xpose.msra.mxu0 0.0
        %3722 = vmatprep.subr.mxu0 0.0
        %3723 = vmatpush1.xpose.msra.mxu0 0.0
        %3724 = vmatprep.mubr.f32.mxu0 0.0
        %3725 = vmatmul.mubr.f32.gmra.mrb[0].mxu0 %v3631
        %v3726 = vpop.f32.mrb[0].mxu0
        %v3727 = vadd.f32 %v1239, %v3726
        %v3728 = vpop.f32.mrb[0].mxu0
        %3729 = vmatprep.mubr.f32.mxu0 0.0
        %3730 = vmatmul.mubr.f32.gmra.mrb[0].mxu0 %v3634
        %v3731 = vpop.f32.mrb[0].mxu0
        %v3732 = vadd.f32 %v1239, %v3731
        %v3733 = vpop.f32.mrb[0].mxu0
        %3734 = vmatprep.mubr.f32.mxu0 0.0
        %3735 = vmatmul.mubr.f32.gmra.mrb[0].mxu0 %v3637
        %v3736 = vpop.f32.mrb[0].mxu0
        %v3737 = vadd.f32 %v1239, %v3736
        %v3738 = vpop.f32.mrb[0].mxu0
        %3739 = vmatprep.mubr.f32.mxu0 0.0
        %3740 = vmatmul.mubr.f32.gmra.mrb[0].mxu0 %v3640
        %v3741 = vpop.f32.mrb[0].mxu0
        %v3742 = vadd.f32 %v1239, %v3741
        %v3743 = vpop.f32.mrb[0].mxu0
        %3744 = vmatprep.mubr.f32.mxu0 0.0
        %3745 = vmatmul.mubr.f32.gmra.mrb[0].mxu0 %v3643
        %v3746 = vpop.f32.mrb[0].mxu0
        %v3747 = vadd.f32 %v1239, %v3746
        %v3748 = vpop.f32.mrb[0].mxu0
        %3749 = vdwg.mxu0
        %v3750 = vsel %vm2979, %v3727, -inf
        %3751 = vmax.xlane.f32.xlu0 %v3750
        %v3752 = vpop.xlane.xlu0 %3751
        %v3753 = vsel %vm2979, %v3732, -inf
        %3754 = vmax.xlane.f32.xlu0 %v3753
        %v3755 = vpop.xlane.xlu0 %3754
        %v3756 = vsel %vm2979, %v3737, -inf
        %3757 = vmax.xlane.f32.xlu0 %v3756
        %v3758 = vpop.xlane.xlu0 %3757
        %v3759 = vsel %vm2979, %v3742, -inf
        %3760 = vmax.xlane.f32.xlu0 %v3759
        %v3761 = vpop.xlane.xlu0 %3760
        %v3762 = vsel %vm2979, %v3747, -inf
        %3763 = vmax.xlane.f32.xlu0 %v3762
        %v3764 = vpop.xlane.xlu0 %3763
        %v3765 = vsub.f32 %v3727, %v3752
        %v3766 = vsub.f32 %v3732, %v3755
        %v3767 = vsub.f32 %v3737, %v3758
        %v3768 = vsub.f32 %v3742, %v3761
        %v3769 = vsub.f32 %v3747, %v3764
        %v3770 = vmul.f32 %v3765, 1.442695
        %v3771 = vpow.pop %v3770
        %v3772 = vmul.f32 %v3766, 1.442695
        %v3773 = vpow.pop %v3772
        %v3774 = vmul.f32 %v3767, 1.442695
        %v3775 = vpow.pop %v3774
        %v3776 = vmul.f32 %v3768, 1.442695
        %v3777 = vpow.pop %v3776
        %v3778 = vmul.f32 %v3769, 1.442695
        %v3779 = vpow.pop %v3778
        %v3780 = vsel %vm2979, %v3771, 0.0
        %3781 = vadd.xlane.f32.xlu0 %v3780
        %v3782 = vpop.xlane.xlu0 %3781
        %v3783 = vsel %vm2979, %v3773, 0.0
        %3784 = vadd.xlane.f32.xlu0 %v3783
        %v3785 = vpop.xlane.xlu0 %3784
        %v3786 = vsel %vm2979, %v3775, 0.0
        %3787 = vadd.xlane.f32.xlu0 %v3786
        %v3788 = vpop.xlane.xlu0 %3787
        %v3789 = vsel %vm2979, %v3777, 0.0
        %3790 = vadd.xlane.f32.xlu0 %v3789
        %v3791 = vpop.xlane.xlu0 %3790
        %v3792 = vsel %vm2979, %v3779, 0.0
        %3793 = vadd.xlane.f32.xlu0 %v3792
        %v3794 = vpop.xlane.xlu0 %3793
        %v3795 = vrcp.pop %v3782
        %v3796 = vrcp.pop %v3785
        %v3797 = vrcp.pop %v3788
        %v3798 = vrcp.pop %v3791
        %v3799 = vrcp.pop %v3794
        %v3800 = vmul.f32 %v3771, %v3795
        %v3801 = vmul.f32 %v3773, %v3796
        %v3802 = vmul.f32 %v3775, %v3797
        %v3803 = vmul.f32 %v3777, %v3798
        %v3804 = vmul.f32 %v3779, %v3799
        %v3806 = vsel %vm2979, %v3800, 0
        %v3809 = vsel %vm2979, %v3801, 0
        %v3812 = vsel %vm2979, %v3802, 0
        %v3815 = vsel %vm2979, %v3803, 0
        %v3818 = vsel %vm2979, %v3804, 0
        %3820 = vmatprep.subr.mxu0 0.0
        %3821 = vmatpush1.msra.mxu0 %v2678
        %3822 = vmatprep.subr.mxu0 0.0
        %3823 = vmatpush1.msra.mxu0 %v2683
        %3824 = vmatprep.subr.mxu0 0.0
        %3825 = vmatpush1.msra.mxu0 %v2688
        %3826 = vmatprep.subr.mxu0 0.0
        %3827 = vmatpush1.msra.mxu0 %v2693
        %3828 = vmatprep.subr.mxu0 0.0
        %3829 = vmatpush1.msra.mxu0 %v2698
        %3830 = vmatprep.subr.mxu0 0.0
        %3831 = vmatpush1.msra.mxu0 0.0
        %3832 = vmatprep.subr.mxu0 0.0
        %3833 = vmatpush1.msra.mxu0 0.0
        %3834 = vmatprep.subr.mxu0 0.0
        %3835 = vmatpush1.msra.mxu0 0.0
        %3836 = vmatprep.subr.mxu0 0.0
        %3837 = vmatpush1.msra.mxu0 0.0
        %3838 = vmatprep.subr.mxu0 0.0
        %3839 = vmatpush1.msra.mxu0 0.0
        %3840 = vmatprep.subr.mxu0 0.0
        %3841 = vmatpush1.msra.mxu0 0.0
        %3842 = vmatprep.subr.mxu0 0.0
        %3843 = vmatpush1.msra.mxu0 0.0
        %3844 = vmatprep.subr.mxu0 0.0
        %3845 = vmatpush1.msra.mxu0 0.0
        %3846 = vmatprep.subr.mxu0 0.0
        %3847 = vmatpush1.msra.mxu0 0.0
        %3848 = vmatprep.subr.mxu0 0.0
        %3849 = vmatpush1.msra.mxu0 0.0
        %3850 = vmatprep.subr.mxu0 0.0
        %3851 = vmatpush1.msra.mxu0 0.0
        %3852 = vmatprep.subr.mxu0 0.0
        %3853 = vmatpush1.msra.mxu0 0.0
        %3854 = vmatprep.subr.mxu0 0.0
        %3855 = vmatpush1.msra.mxu0 0.0
        %3856 = vmatprep.subr.mxu0 0.0
        %3857 = vmatpush1.msra.mxu0 0.0
        %3858 = vmatprep.subr.mxu0 0.0
        %3859 = vmatpush1.msra.mxu0 0.0
        %3860 = vmatprep.subr.mxu0 0.0
        %3861 = vmatpush1.msra.mxu0 0.0
        %3862 = vmatprep.subr.mxu0 0.0
        %3863 = vmatpush1.msra.mxu0 0.0
        %3864 = vmatprep.subr.mxu0 0.0
        %3865 = vmatpush1.msra.mxu0 0.0
        %3866 = vmatprep.subr.mxu0 0.0
        %3867 = vmatpush1.msra.mxu0 0.0
        %3868 = vmatprep.subr.mxu0 0.0
        %3869 = vmatpush1.msra.mxu0 0.0
        %3870 = vmatprep.subr.mxu0 0.0
        %3871 = vmatpush1.msra.mxu0 0.0
        %3872 = vmatprep.subr.mxu0 0.0
        %3873 = vmatpush1.msra.mxu0 0.0
        %3874 = vmatprep.subr.mxu0 0.0
        %3875 = vmatpush1.msra.mxu0 0.0
        %3876 = vmatprep.subr.mxu0 0.0
        %3877 = vmatpush1.msra.mxu0 0.0
        %3878 = vmatprep.subr.mxu0 0.0
        %3879 = vmatpush1.msra.mxu0 0.0
        %3880 = vmatprep.subr.mxu0 0.0
        %3881 = vmatpush1.msra.mxu0 0.0
        %3882 = vmatprep.subr.mxu0 0.0
        %3883 = vmatpush1.msra.mxu0 0.0
        %3884 = vmatprep.mubr.f32.mxu0 0.0
        %3885 = vmatmul.mubr.f32.gmra.mrb[0].mxu0 %v3806
        %v3886 = vpop.f32.mrb[0].mxu0
        %v3887 = vadd.f32 0.0, %v3886
        %v3888 = vpop.f32.mrb[0].mxu0
        %3889 = vmatprep.mubr.f32.mxu0 0.0
        %3890 = vmatmul.mubr.f32.gmra.mrb[0].mxu0 %v3809
        %v3891 = vpop.f32.mrb[0].mxu0
        %v3892 = vadd.f32 0.0, %v3891
        %v3893 = vpop.f32.mrb[0].mxu0
        %3894 = vmatprep.mubr.f32.mxu0 0.0
        %3895 = vmatmul.mubr.f32.gmra.mrb[0].mxu0 %v3812
        %v3896 = vpop.f32.mrb[0].mxu0
        %v3897 = vadd.f32 0.0, %v3896
        %v3898 = vpop.f32.mrb[0].mxu0
        %3899 = vmatprep.mubr.f32.mxu0 0.0
        %3900 = vmatmul.mubr.f32.gmra.mrb[0].mxu0 %v3815
        %v3901 = vpop.f32.mrb[0].mxu0
        %v3902 = vadd.f32 0.0, %v3901
        %v3903 = vpop.f32.mrb[0].mxu0
        %3904 = vmatprep.mubr.f32.mxu0 0.0
        %3905 = vmatmul.mubr.f32.gmra.mrb[0].mxu0 %v3818
        %v3906 = vpop.f32.mrb[0].mxu0
        %v3907 = vadd.f32 0.0, %v3906
        %v3908 = vpop.f32.mrb[0].mxu0
        %3909 = vdwg.mxu0
        %v3911 = vsel %vm2858, %v3887, 0
        %v3914 = vsel %vm2858, %v3892, 0
        %v3917 = vsel %vm2858, %v3897, 0
        %v3920 = vsel %vm2858, %v3902, 0
        %v3923 = vsel %vm2858, %v3907, 0
        %3925 = vmatprep.subr.mxu0 0.0
        %3926 = vmatpush1.msra.mxu0 %v1248
        %3927 = vmatprep.subr.mxu0 0.0
        %3928 = vmatpush1.msra.mxu0 %v1249
        %3929 = vmatprep.subr.mxu0 0.0
        %3930 = vmatpush1.msra.mxu0 %v1250
        %3931 = vmatprep.subr.mxu0 0.0
        %3932 = vmatpush1.msra.mxu0 %v1251
        %3933 = vmatprep.subr.mxu0 0.0
        %3934 = vmatpush1.msra.mxu0 0.0
        %3935 = vmatprep.subr.mxu0 0.0
        %3936 = vmatpush1.msra.mxu0 0.0
        %3937 = vmatprep.subr.mxu0 0.0
        %3938 = vmatpush1.msra.mxu0 0.0
        %3939 = vmatprep.subr.mxu0 0.0
        %3940 = vmatpush1.msra.mxu0 0.0
        %3941 = vmatprep.subr.mxu0 0.0
        %3942 = vmatpush1.msra.mxu0 0.0
        %3943 = vmatprep.subr.mxu0 0.0
        %3944 = vmatpush1.msra.mxu0 0.0
        %3945 = vmatprep.subr.mxu0 0.0
        %3946 = vmatpush1.msra.mxu0 0.0
        %3947 = vmatprep.subr.mxu0 0.0
        %3948 = vmatpush1.msra.mxu0 0.0
        %3949 = vmatprep.subr.mxu0 0.0
        %3950 = vmatpush1.msra.mxu0 0.0
        %3951 = vmatprep.subr.mxu0 0.0
        %3952 = vmatpush1.msra.mxu0 0.0
        %3953 = vmatprep.subr.mxu0 0.0
        %3954 = vmatpush1.msra.mxu0 0.0
        %3955 = vmatprep.subr.mxu0 0.0
        %3956 = vmatpush1.msra.mxu0 0.0
        %3957 = vmatprep.subr.mxu0 0.0
        %3958 = vmatpush1.msra.mxu0 0.0
        %3959 = vmatprep.subr.mxu0 0.0
        %3960 = vmatpush1.msra.mxu0 0.0
        %3961 = vmatprep.subr.mxu0 0.0
        %3962 = vmatpush1.msra.mxu0 0.0
        %3963 = vmatprep.subr.mxu0 0.0
        %3964 = vmatpush1.msra.mxu0 0.0
        %3965 = vmatprep.subr.mxu0 0.0
        %3966 = vmatpush1.msra.mxu0 0.0
        %3967 = vmatprep.subr.mxu0 0.0
        %3968 = vmatpush1.msra.mxu0 0.0
        %3969 = vmatprep.subr.mxu0 0.0
        %3970 = vmatpush1.msra.mxu0 0.0
        %3971 = vmatprep.subr.mxu0 0.0
        %3972 = vmatpush1.msra.mxu0 0.0
        %3973 = vmatprep.subr.mxu0 0.0
        %3974 = vmatpush1.msra.mxu0 0.0
        %3975 = vmatprep.subr.mxu0 0.0
        %3976 = vmatpush1.msra.mxu0 0.0
        %3977 = vmatprep.subr.mxu0 0.0
        %3978 = vmatpush1.msra.mxu0 0.0
        %3979 = vmatprep.subr.mxu0 0.0
        %3980 = vmatpush1.msra.mxu0 0.0
        %3981 = vmatprep.subr.mxu0 0.0
        %3982 = vmatpush1.msra.mxu0 0.0
        %3983 = vmatprep.subr.mxu0 0.0
        %3984 = vmatpush1.msra.mxu0 0.0
        %3985 = vmatprep.subr.mxu0 0.0
        %3986 = vmatpush1.msra.mxu0 0.0
        %3987 = vmatprep.subr.mxu0 0.0
        %3988 = vmatpush1.msra.mxu0 0.0
        %3989 = vmatprep.mubr.f32.mxu0 0.0
        %3990 = vmatmul.mubr.f32.gmra.mrb[0].mxu0 %v3911
        %v3991 = vpop.f32.mrb[0].mxu0
        %v3992 = vadd.f32 0.0, %v3991
        %v3993 = vpop.f32.mrb[0].mxu0
        %3994 = vmatprep.mubr.f32.mxu0 0.0
        %3995 = vmatmul.mubr.f32.gmra.mrb[0].mxu0 %v3914
        %v3996 = vpop.f32.mrb[0].mxu0
        %v3997 = vadd.f32 0.0, %v3996
        %v3998 = vpop.f32.mrb[0].mxu0
        %3999 = vmatprep.mubr.f32.mxu0 0.0
        %4000 = vmatmul.mubr.f32.gmra.mrb[0].mxu0 %v3917
        %v4001 = vpop.f32.mrb[0].mxu0
        %v4002 = vadd.f32 0.0, %v4001
        %v4003 = vpop.f32.mrb[0].mxu0
        %4004 = vmatprep.mubr.f32.mxu0 0.0
        %4005 = vmatmul.mubr.f32.gmra.mrb[0].mxu0 %v3920
        %v4006 = vpop.f32.mrb[0].mxu0
        %v4007 = vadd.f32 0.0, %v4006
        %v4008 = vpop.f32.mrb[0].mxu0
        %4009 = vmatprep.mubr.f32.mxu0 0.0
        %4010 = vmatmul.mubr.f32.gmra.mrb[0].mxu0 %v3923
        %v4011 = vpop.f32.mrb[0].mxu0
        %v4012 = vadd.f32 0.0, %v4011
        %v4013 = vpop.f32.mrb[0].mxu0
        %4014 = vdwg.mxu0
        %v4015 = vadd.f32 %v3607, %v3992
        %v4016 = vadd.f32 %v3612, %v3997
        %v4017 = vadd.f32 %v3617, %v4002
        %v4018 = vadd.f32 %v3622, %v4007
        %v4019 = vadd.f32 %v3627, %v4012
        %v4021 = vsel %vm2858, %v1742, 0
        %v4024 = vsel %vm2858, %v1747, 0
        %v4027 = vsel %vm2858, %v1752, 0
        %v4030 = vsel %vm2858, %v1757, 0
        %v4033 = vsel %vm2858, %v1762, 0
        %v4036 = vsel %vm2858, %v2276, 0
        %v4039 = vsel %vm2858, %v2281, 0
        %v4042 = vsel %vm2858, %v2286, 0
        %v4045 = vsel %vm2858, %v2291, 0
        %v4048 = vsel %vm2858, %v2296, 0
        %4050 = vmatprep.subr.mxu0 0.0
        %4051 = vmatpush1.xpose.msra.mxu0 %v4036
        %4052 = vmatprep.subr.mxu0 0.0
        %4053 = vmatpush1.xpose.msra.mxu0 %v4039
        %4054 = vmatprep.subr.mxu0 0.0
        %4055 = vmatpush1.xpose.msra.mxu0 %v4042
        %4056 = vmatprep.subr.mxu0 0.0
        %4057 = vmatpush1.xpose.msra.mxu0 %v4045
        %4058 = vmatprep.subr.mxu0 0.0
        %4059 = vmatpush1.xpose.msra.mxu0 %v4048
        %4060 = vmatprep.subr.mxu0 0.0
        %4061 = vmatpush1.xpose.msra.mxu0 0.0
        %4062 = vmatprep.subr.mxu0 0.0
        %4063 = vmatpush1.xpose.msra.mxu0 0.0
        %4064 = vmatprep.subr.mxu0 0.0
        %4065 = vmatpush1.xpose.msra.mxu0 0.0
        %4066 = vmatprep.subr.mxu0 0.0
        %4067 = vmatpush1.xpose.msra.mxu0 0.0
        %4068 = vmatprep.subr.mxu0 0.0
        %4069 = vmatpush1.xpose.msra.mxu0 0.0
        %4070 = vmatprep.subr.mxu0 0.0
        %4071 = vmatpush1.xpose.msra.mxu0 0.0
        %4072 = vmatprep.subr.mxu0 0.0
        %4073 = vmatpush1.xpose.msra.mxu0 0.0
        %4074 = vmatprep.subr.mxu0 0.0
        %4075 = vmatpush1.xpose.msra.mxu0 0.0
        %4076 = vmatprep.subr.mxu0 0.0
        %4077 = vmatpush1.xpose.msra.mxu0 0.0
        %4078 = vmatprep.subr.mxu0 0.0
        %4079 = vmatpush1.xpose.msra.mxu0 0.0
        %4080 = vmatprep.subr.mxu0 0.0
        %4081 = vmatpush1.xpose.msra.mxu0 0.0
        %4082 = vmatprep.subr.mxu0 0.0
        %4083 = vmatpush1.xpose.msra.mxu0 0.0
        %4084 = vmatprep.subr.mxu0 0.0
        %4085 = vmatpush1.xpose.msra.mxu0 0.0
        %4086 = vmatprep.subr.mxu0 0.0
        %4087 = vmatpush1.xpose.msra.mxu0 0.0
        %4088 = vmatprep.subr.mxu0 0.0
        %4089 = vmatpush1.xpose.msra.mxu0 0.0
        %4090 = vmatprep.subr.mxu0 0.0
        %4091 = vmatpush1.xpose.msra.mxu0 0.0
        %4092 = vmatprep.subr.mxu0 0.0
        %4093 = vmatpush1.xpose.msra.mxu0 0.0
        %4094 = vmatprep.subr.mxu0 0.0
        %4095 = vmatpush1.xpose.msra.mxu0 0.0
        %4096 = vmatprep.subr.mxu0 0.0
        %4097 = vmatpush1.xpose.msra.mxu0 0.0
        %4098 = vmatprep.subr.mxu0 0.0
        %4099 = vmatpush1.xpose.msra.mxu0 0.0
        %4100 = vmatprep.subr.mxu0 0.0
        %4101 = vmatpush1.xpose.msra.mxu0 0.0
        %4102 = vmatprep.subr.mxu0 0.0
        %4103 = vmatpush1.xpose.msra.mxu0 0.0
        %4104 = vmatprep.subr.mxu0 0.0
        %4105 = vmatpush1.xpose.msra.mxu0 0.0
        %4106 = vmatprep.subr.mxu0 0.0
        %4107 = vmatpush1.xpose.msra.mxu0 0.0
        %4108 = vmatprep.subr.mxu0 0.0
        %4109 = vmatpush1.xpose.msra.mxu0 0.0
        %4110 = vmatprep.subr.mxu0 0.0
        %4111 = vmatpush1.xpose.msra.mxu0 0.0
        %4112 = vmatprep.subr.mxu0 0.0
        %4113 = vmatpush1.xpose.msra.mxu0 0.0
        %4114 = vmatprep.mubr.f32.mxu0 0.0
        %4115 = vmatmul.mubr.f32.gmra.mrb[0].mxu0 %v4021
        %v4116 = vpop.f32.mrb[0].mxu0
        %v4117 = vadd.f32 %v1239, %v4116
        %v4118 = vpop.f32.mrb[0].mxu0
        %4119 = vmatprep.mubr.f32.mxu0 0.0
        %4120 = vmatmul.mubr.f32.gmra.mrb[0].mxu0 %v4024
        %v4121 = vpop.f32.mrb[0].mxu0
        %v4122 = vadd.f32 %v1239, %v4121
        %v4123 = vpop.f32.mrb[0].mxu0
        %4124 = vmatprep.mubr.f32.mxu0 0.0
        %4125 = vmatmul.mubr.f32.gmra.mrb[0].mxu0 %v4027
        %v4126 = vpop.f32.mrb[0].mxu0
        %v4127 = vadd.f32 %v1239, %v4126
        %v4128 = vpop.f32.mrb[0].mxu0
        %4129 = vmatprep.mubr.f32.mxu0 0.0
        %4130 = vmatmul.mubr.f32.gmra.mrb[0].mxu0 %v4030
        %v4131 = vpop.f32.mrb[0].mxu0
        %v4132 = vadd.f32 %v1239, %v4131
        %v4133 = vpop.f32.mrb[0].mxu0
        %4134 = vmatprep.mubr.f32.mxu0 0.0
        %4135 = vmatmul.mubr.f32.gmra.mrb[0].mxu0 %v4033
        %v4136 = vpop.f32.mrb[0].mxu0
        %v4137 = vadd.f32 %v1239, %v4136
        %v4138 = vpop.f32.mrb[0].mxu0
        %4139 = vdwg.mxu0
        %v4140 = vsel %vm2979, %v4117, -inf
        %4141 = vmax.xlane.f32.xlu0 %v4140
        %v4142 = vpop.xlane.xlu0 %4141
        %v4143 = vsel %vm2979, %v4122, -inf
        %4144 = vmax.xlane.f32.xlu0 %v4143
        %v4145 = vpop.xlane.xlu0 %4144
        %v4146 = vsel %vm2979, %v4127, -inf
        %4147 = vmax.xlane.f32.xlu0 %v4146
        %v4148 = vpop.xlane.xlu0 %4147
        %v4149 = vsel %vm2979, %v4132, -inf
        %4150 = vmax.xlane.f32.xlu0 %v4149
        %v4151 = vpop.xlane.xlu0 %4150
        %v4152 = vsel %vm2979, %v4137, -inf
        %4153 = vmax.xlane.f32.xlu0 %v4152
        %v4154 = vpop.xlane.xlu0 %4153
        %v4155 = vsub.f32 %v4117, %v4142
        %v4156 = vsub.f32 %v4122, %v4145
        %v4157 = vsub.f32 %v4127, %v4148
        %v4158 = vsub.f32 %v4132, %v4151
        %v4159 = vsub.f32 %v4137, %v4154
        %v4160 = vmul.f32 %v4155, 1.442695
        %v4161 = vpow.pop %v4160
        %v4162 = vmul.f32 %v4156, 1.442695
        %v4163 = vpow.pop %v4162
        %v4164 = vmul.f32 %v4157, 1.442695
        %v4165 = vpow.pop %v4164
        %v4166 = vmul.f32 %v4158, 1.442695
        %v4167 = vpow.pop %v4166
        %v4168 = vmul.f32 %v4159, 1.442695
        %v4169 = vpow.pop %v4168
        %v4170 = vsel %vm2979, %v4161, 0.0
        %4171 = vadd.xlane.f32.xlu0 %v4170
        %v4172 = vpop.xlane.xlu0 %4171
        %v4173 = vsel %vm2979, %v4163, 0.0
        %4174 = vadd.xlane.f32.xlu0 %v4173
        %v4175 = vpop.xlane.xlu0 %4174
        %v4176 = vsel %vm2979, %v4165, 0.0
        %4177 = vadd.xlane.f32.xlu0 %v4176
        %v4178 = vpop.xlane.xlu0 %4177
        %v4179 = vsel %vm2979, %v4167, 0.0
        %4180 = vadd.xlane.f32.xlu0 %v4179
        %v4181 = vpop.xlane.xlu0 %4180
        %v4182 = vsel %vm2979, %v4169, 0.0
        %4183 = vadd.xlane.f32.xlu0 %v4182
        %v4184 = vpop.xlane.xlu0 %4183
        %v4185 = vrcp.pop %v4172
        %v4186 = vrcp.pop %v4175
        %v4187 = vrcp.pop %v4178
        %v4188 = vrcp.pop %v4181
        %v4189 = vrcp.pop %v4184
        %v4190 = vmul.f32 %v4161, %v4185
        %v4191 = vmul.f32 %v4163, %v4186
        %v4192 = vmul.f32 %v4165, %v4187
        %v4193 = vmul.f32 %v4167, %v4188
        %v4194 = vmul.f32 %v4169, %v4189
        %v4196 = vsel %vm2979, %v4190, 0
        %v4199 = vsel %vm2979, %v4191, 0
        %v4202 = vsel %vm2979, %v4192, 0
        %v4205 = vsel %vm2979, %v4193, 0
        %v4208 = vsel %vm2979, %v4194, 0
        %4210 = vmatprep.subr.mxu0 0.0
        %4211 = vmatpush1.msra.mxu0 %v2810
        %4212 = vmatprep.subr.mxu0 0.0
        %4213 = vmatpush1.msra.mxu0 %v2815
        %4214 = vmatprep.subr.mxu0 0.0
        %4215 = vmatpush1.msra.mxu0 %v2820
        %4216 = vmatprep.subr.mxu0 0.0
        %4217 = vmatpush1.msra.mxu0 %v2825
        %4218 = vmatprep.subr.mxu0 0.0
        %4219 = vmatpush1.msra.mxu0 %v2830
        %4220 = vmatprep.subr.mxu0 0.0
        %4221 = vmatpush1.msra.mxu0 0.0
        %4222 = vmatprep.subr.mxu0 0.0
        %4223 = vmatpush1.msra.mxu0 0.0
        %4224 = vmatprep.subr.mxu0 0.0
        %4225 = vmatpush1.msra.mxu0 0.0
        %4226 = vmatprep.subr.mxu0 0.0
        %4227 = vmatpush1.msra.mxu0 0.0
        %4228 = vmatprep.subr.mxu0 0.0
        %4229 = vmatpush1.msra.mxu0 0.0
        %4230 = vmatprep.subr.mxu0 0.0
        %4231 = vmatpush1.msra.mxu0 0.0
        %4232 = vmatprep.subr.mxu0 0.0
        %4233 = vmatpush1.msra.mxu0 0.0
        %4234 = vmatprep.subr.mxu0 0.0
        %4235 = vmatpush1.msra.mxu0 0.0
        %4236 = vmatprep.subr.mxu0 0.0
        %4237 = vmatpush1.msra.mxu0 0.0
        %4238 = vmatprep.subr.mxu0 0.0
        %4239 = vmatpush1.msra.mxu0 0.0
        %4240 = vmatprep.subr.mxu0 0.0
        %4241 = vmatpush1.msra.mxu0 0.0
        %4242 = vmatprep.subr.mxu0 0.0
        %4243 = vmatpush1.msra.mxu0 0.0
        %4244 = vmatprep.subr.mxu0 0.0
        %4245 = vmatpush1.msra.mxu0 0.0
        %4246 = vmatprep.subr.mxu0 0.0
        %4247 = vmatpush1.msra.mxu0 0.0
        %4248 = vmatprep.subr.mxu0 0.0
        %4249 = vmatpush1.msra.mxu0 0.0
        %4250 = vmatprep.subr.mxu0 0.0
        %4251 = vmatpush1.msra.mxu0 0.0
        %4252 = vmatprep.subr.mxu0 0.0
        %4253 = vmatpush1.msra.mxu0 0.0
        %4254 = vmatprep.subr.mxu0 0.0
        %4255 = vmatpush1.msra.mxu0 0.0
        %4256 = vmatprep.subr.mxu0 0.0
        %4257 = vmatpush1.msra.mxu0 0.0
        %4258 = vmatprep.subr.mxu0 0.0
        %4259 = vmatpush1.msra.mxu0 0.0
        %4260 = vmatprep.subr.mxu0 0.0
        %4261 = vmatpush1.msra.mxu0 0.0
        %4262 = vmatprep.subr.mxu0 0.0
        %4263 = vmatpush1.msra.mxu0 0.0
        %4264 = vmatprep.subr.mxu0 0.0
        %4265 = vmatpush1.msra.mxu0 0.0
        %4266 = vmatprep.subr.mxu0 0.0
        %4267 = vmatpush1.msra.mxu0 0.0
        %4268 = vmatprep.subr.mxu0 0.0
        %4269 = vmatpush1.msra.mxu0 0.0
        %4270 = vmatprep.subr.mxu0 0.0
        %4271 = vmatpush1.msra.mxu0 0.0
        %4272 = vmatprep.subr.mxu0 0.0
        %4273 = vmatpush1.msra.mxu0 0.0
        %4274 = vmatprep.mubr.f32.mxu0 0.0
        %4275 = vmatmul.mubr.f32.gmra.mrb[0].mxu0 %v4196
        %v4276 = vpop.f32.mrb[0].mxu0
        %v4277 = vadd.f32 0.0, %v4276
        %v4278 = vpop.f32.mrb[0].mxu0
        %4279 = vmatprep.mubr.f32.mxu0 0.0
        %4280 = vmatmul.mubr.f32.gmra.mrb[0].mxu0 %v4199
        %v4281 = vpop.f32.mrb[0].mxu0
        %v4282 = vadd.f32 0.0, %v4281
        %v4283 = vpop.f32.mrb[0].mxu0
        %4284 = vmatprep.mubr.f32.mxu0 0.0
        %4285 = vmatmul.mubr.f32.gmra.mrb[0].mxu0 %v4202
        %v4286 = vpop.f32.mrb[0].mxu0
        %v4287 = vadd.f32 0.0, %v4286
        %v4288 = vpop.f32.mrb[0].mxu0
        %4289 = vmatprep.mubr.f32.mxu0 0.0
        %4290 = vmatmul.mubr.f32.gmra.mrb[0].mxu0 %v4205
        %v4291 = vpop.f32.mrb[0].mxu0
        %v4292 = vadd.f32 0.0, %v4291
        %v4293 = vpop.f32.mrb[0].mxu0
        %4294 = vmatprep.mubr.f32.mxu0 0.0
        %4295 = vmatmul.mubr.f32.gmra.mrb[0].mxu0 %v4208
        %v4296 = vpop.f32.mrb[0].mxu0
        %v4297 = vadd.f32 0.0, %v4296
        %v4298 = vpop.f32.mrb[0].mxu0
        %4299 = vdwg.mxu0
        %v4301 = vsel %vm2858, %v4277, 0
        %v4304 = vsel %vm2858, %v4282, 0
        %v4307 = vsel %vm2858, %v4287, 0
        %v4310 = vsel %vm2858, %v4292, 0
        %v4313 = vsel %vm2858, %v4297, 0
        %4315 = vmatprep.subr.mxu0 0.0
        %4316 = vmatpush1.msra.mxu0 %v1252
        %4317 = vmatprep.subr.mxu0 0.0
        %4318 = vmatpush1.msra.mxu0 %v1253
        %4319 = vmatprep.subr.mxu0 0.0
        %4320 = vmatpush1.msra.mxu0 %v1254
        %4321 = vmatprep.subr.mxu0 0.0
        %4322 = vmatpush1.msra.mxu0 %v1255
        %4323 = vmatprep.subr.mxu0 0.0
        %4324 = vmatpush1.msra.mxu0 0.0
        %4325 = vmatprep.subr.mxu0 0.0
        %4326 = vmatpush1.msra.mxu0 0.0
        %4327 = vmatprep.subr.mxu0 0.0
        %4328 = vmatpush1.msra.mxu0 0.0
        %4329 = vmatprep.subr.mxu0 0.0
        %4330 = vmatpush1.msra.mxu0 0.0
        %4331 = vmatprep.subr.mxu0 0.0
        %4332 = vmatpush1.msra.mxu0 0.0
        %4333 = vmatprep.subr.mxu0 0.0
        %4334 = vmatpush1.msra.mxu0 0.0
        %4335 = vmatprep.subr.mxu0 0.0
        %4336 = vmatpush1.msra.mxu0 0.0
        %4337 = vmatprep.subr.mxu0 0.0
        %4338 = vmatpush1.msra.mxu0 0.0
        %4339 = vmatprep.subr.mxu0 0.0
        %4340 = vmatpush1.msra.mxu0 0.0
        %4341 = vmatprep.subr.mxu0 0.0
        %4342 = vmatpush1.msra.mxu0 0.0
        %4343 = vmatprep.subr.mxu0 0.0
        %4344 = vmatpush1.msra.mxu0 0.0
        %4345 = vmatprep.subr.mxu0 0.0
        %4346 = vmatpush1.msra.mxu0 0.0
        %4347 = vmatprep.subr.mxu0 0.0
        %4348 = vmatpush1.msra.mxu0 0.0
        %4349 = vmatprep.subr.mxu0 0.0
        %4350 = vmatpush1.msra.mxu0 0.0
        %4351 = vmatprep.subr.mxu0 0.0
        %4352 = vmatpush1.msra.mxu0 0.0
        %4353 = vmatprep.subr.mxu0 0.0
        %4354 = vmatpush1.msra.mxu0 0.0
        %4355 = vmatprep.subr.mxu0 0.0
        %4356 = vmatpush1.msra.mxu0 0.0
        %4357 = vmatprep.subr.mxu0 0.0
        %4358 = vmatpush1.msra.mxu0 0.0
        %4359 = vmatprep.subr.mxu0 0.0
        %4360 = vmatpush1.msra.mxu0 0.0
        %4361 = vmatprep.subr.mxu0 0.0
        %4362 = vmatpush1.msra.mxu0 0.0
        %4363 = vmatprep.subr.mxu0 0.0
        %4364 = vmatpush1.msra.mxu0 0.0
        %4365 = vmatprep.subr.mxu0 0.0
        %4366 = vmatpush1.msra.mxu0 0.0
        %4367 = vmatprep.subr.mxu0 0.0
        %4368 = vmatpush1.msra.mxu0 0.0
        %4369 = vmatprep.subr.mxu0 0.0
        %4370 = vmatpush1.msra.mxu0 0.0
        %4371 = vmatprep.subr.mxu0 0.0
        %4372 = vmatpush1.msra.mxu0 0.0
        %4373 = vmatprep.subr.mxu0 0.0
        %4374 = vmatpush1.msra.mxu0 0.0
        %4375 = vmatprep.subr.mxu0 0.0
        %4376 = vmatpush1.msra.mxu0 0.0
        %4377 = vmatprep.subr.mxu0 0.0
        %4378 = vmatpush1.msra.mxu0 0.0
        %4379 = vmatprep.mubr.f32.mxu0 0.0
        %4380 = vmatmul.mubr.f32.gmra.mrb[0].mxu0 %v4301
        %v4381 = vpop.f32.mrb[0].mxu0
        %v4382 = vadd.f32 0.0, %v4381
        %v4383 = vpop.f32.mrb[0].mxu0
        %4384 = vmatprep.mubr.f32.mxu0 0.0
        %4385 = vmatmul.mubr.f32.gmra.mrb[0].mxu0 %v4304
        %v4386 = vpop.f32.mrb[0].mxu0
        %v4387 = vadd.f32 0.0, %v4386
        %v4388 = vpop.f32.mrb[0].mxu0
        %4389 = vmatprep.mubr.f32.mxu0 0.0
        %4390 = vmatmul.mubr.f32.gmra.mrb[0].mxu0 %v4307
        %v4391 = vpop.f32.mrb[0].mxu0
        %v4392 = vadd.f32 0.0, %v4391
        %v4393 = vpop.f32.mrb[0].mxu0
        %4394 = vmatprep.mubr.f32.mxu0 0.0
        %4395 = vmatmul.mubr.f32.gmra.mrb[0].mxu0 %v4310
        %v4396 = vpop.f32.mrb[0].mxu0
        %v4397 = vadd.f32 0.0, %v4396
        %v4398 = vpop.f32.mrb[0].mxu0
        %4399 = vmatprep.mubr.f32.mxu0 0.0
        %4400 = vmatmul.mubr.f32.gmra.mrb[0].mxu0 %v4313
        %v4401 = vpop.f32.mrb[0].mxu0
        %v4402 = vadd.f32 0.0, %v4401
        %v4403 = vpop.f32.mrb[0].mxu0
        %4404 = vdwg.mxu0
        %v4405 = vadd.f32 %v4015, %v4382
        %v4406 = vadd.f32 %v4016, %v4387
        %v4407 = vadd.f32 %v4017, %v4392
        %v4408 = vadd.f32 %v4018, %v4397
        %v4409 = vadd.f32 %v4019, %v4402
        %v4411 = vsel %vm2858, %v1371, 0
        %v4414 = vsel %vm2858, %v1376, 0
        %v4417 = vsel %vm2858, %v1381, 0
        %v4420 = vsel %vm2858, %v1386, 0
        %v4423 = vsel %vm2858, %v1391, 0
        %v4426 = vsel %vm2858, %v1905, 0
        %v4429 = vsel %vm2858, %v1910, 0
        %v4432 = vsel %vm2858, %v1915, 0
        %v4435 = vsel %vm2858, %v1920, 0
        %v4438 = vsel %vm2858, %v1925, 0
        %4440 = vmatprep.subr.mxu0 0.0
        %4441 = vmatpush1.xpose.msra.mxu0 %v4426
        %4442 = vmatprep.subr.mxu0 0.0
        %4443 = vmatpush1.xpose.msra.mxu0 %v4429
        %4444 = vmatprep.subr.mxu0 0.0
        %4445 = vmatpush1.xpose.msra.mxu0 %v4432
        %4446 = vmatprep.subr.mxu0 0.0
        %4447 = vmatpush1.xpose.msra.mxu0 %v4435
        %4448 = vmatprep.subr.mxu0 0.0
        %4449 = vmatpush1.xpose.msra.mxu0 %v4438
        %4450 = vmatprep.subr.mxu0 0.0
        %4451 = vmatpush1.xpose.msra.mxu0 0.0
        %4452 = vmatprep.subr.mxu0 0.0
        %4453 = vmatpush1.xpose.msra.mxu0 0.0
        %4454 = vmatprep.subr.mxu0 0.0
        %4455 = vmatpush1.xpose.msra.mxu0 0.0
        %4456 = vmatprep.subr.mxu0 0.0
        %4457 = vmatpush1.xpose.msra.mxu0 0.0
        %4458 = vmatprep.subr.mxu0 0.0
        %4459 = vmatpush1.xpose.msra.mxu0 0.0
        %4460 = vmatprep.subr.mxu0 0.0
        %4461 = vmatpush1.xpose.msra.mxu0 0.0
        %4462 = vmatprep.subr.mxu0 0.0
        %4463 = vmatpush1.xpose.msra.mxu0 0.0
        %4464 = vmatprep.subr.mxu0 0.0
        %4465 = vmatpush1.xpose.msra.mxu0 0.0
        %4466 = vmatprep.subr.mxu0 0.0
        %4467 = vmatpush1.xpose.msra.mxu0 0.0
        %4468 = vmatprep.subr.mxu0 0.0
        %4469 = vmatpush1.xpose.msra.mxu0 0.0
        %4470 = vmatprep.subr.mxu0 0.0
        %4471 = vmatpush1.xpose.msra.mxu0 0.0
        %4472 = vmatprep.subr.mxu0 0.0
        %4473 = vmatpush1.xpose.msra.mxu0 0.0
        %4474 = vmatprep.subr.mxu0 0.0
        %4475 = vmatpush1.xpose.msra.mxu0 0.0
        %4476 = vmatprep.subr.mxu0 0.0
        %4477 = vmatpush1.xpose.msra.mxu0 0.0
        %4478 = vmatprep.subr.mxu0 0.0
        %4479 = vmatpush1.xpose.msra.mxu0 0.0
        %4480 = vmatprep.subr.mxu0 0.0
        %4481 = vmatpush1.xpose.msra.mxu0 0.0
        %4482 = vmatprep.subr.mxu0 0.0
        %4483 = vmatpush1.xpose.msra.mxu0 0.0
        %4484 = vmatprep.subr.mxu0 0.0
        %4485 = vmatpush1.xpose.msra.mxu0 0.0
        %4486 = vmatprep.subr.mxu0 0.0
        %4487 = vmatpush1.xpose.msra.mxu0 0.0
        %4488 = vmatprep.subr.mxu0 0.0
        %4489 = vmatpush1.xpose.msra.mxu0 0.0
        %4490 = vmatprep.subr.mxu0 0.0
        %4491 = vmatpush1.xpose.msra.mxu0 0.0
        %4492 = vmatprep.subr.mxu0 0.0
        %4493 = vmatpush1.xpose.msra.mxu0 0.0
        %4494 = vmatprep.subr.mxu0 0.0
        %4495 = vmatpush1.xpose.msra.mxu0 0.0
        %4496 = vmatprep.subr.mxu0 0.0
        %4497 = vmatpush1.xpose.msra.mxu0 0.0
        %4498 = vmatprep.subr.mxu0 0.0
        %4499 = vmatpush1.xpose.msra.mxu0 0.0
        %4500 = vmatprep.subr.mxu0 0.0
        %4501 = vmatpush1.xpose.msra.mxu0 0.0
        %4502 = vmatprep.subr.mxu0 0.0
        %4503 = vmatpush1.xpose.msra.mxu0 0.0
        %4504 = vmatprep.mubr.f32.mxu0 0.0
        %4505 = vmatmul.mubr.f32.gmra.mrb[0].mxu0 %v4411
        %v4506 = vpop.f32.mrb[0].mxu0
        %v4507 = vadd.f32 %v1239, %v4506
        %v4508 = vpop.f32.mrb[0].mxu0
        %4509 = vmatprep.mubr.f32.mxu0 0.0
        %4510 = vmatmul.mubr.f32.gmra.mrb[0].mxu0 %v4414
        %v4511 = vpop.f32.mrb[0].mxu0
        %v4512 = vadd.f32 %v1239, %v4511
        %v4513 = vpop.f32.mrb[0].mxu0
        %4514 = vmatprep.mubr.f32.mxu0 0.0
        %4515 = vmatmul.mubr.f32.gmra.mrb[0].mxu0 %v4417
        %v4516 = vpop.f32.mrb[0].mxu0
        %v4517 = vadd.f32 %v1239, %v4516
        %v4518 = vpop.f32.mrb[0].mxu0
        %4519 = vmatprep.mubr.f32.mxu0 0.0
        %4520 = vmatmul.mubr.f32.gmra.mrb[0].mxu0 %v4420
        %v4521 = vpop.f32.mrb[0].mxu0
        %v4522 = vadd.f32 %v1239, %v4521
        %v4523 = vpop.f32.mrb[0].mxu0
        %4524 = vmatprep.mubr.f32.mxu0 0.0
        %4525 = vmatmul.mubr.f32.gmra.mrb[0].mxu0 %v4423
        %v4526 = vpop.f32.mrb[0].mxu0
        %v4527 = vadd.f32 %v1239, %v4526
        %v4528 = vpop.f32.mrb[0].mxu0
        %4529 = vdwg.mxu0
        %v4530 = vsel %vm2979, %v4507, -inf
        %4531 = vmax.xlane.f32.xlu0 %v4530
        %v4532 = vpop.xlane.xlu0 %4531
        %v4533 = vsel %vm2979, %v4512, -inf
        %4534 = vmax.xlane.f32.xlu0 %v4533
        %v4535 = vpop.xlane.xlu0 %4534
        %v4536 = vsel %vm2979, %v4517, -inf
        %4537 = vmax.xlane.f32.xlu0 %v4536
        %v4538 = vpop.xlane.xlu0 %4537
        %v4539 = vsel %vm2979, %v4522, -inf
        %4540 = vmax.xlane.f32.xlu0 %v4539
        %v4541 = vpop.xlane.xlu0 %4540
        %v4542 = vsel %vm2979, %v4527, -inf
        %4543 = vmax.xlane.f32.xlu0 %v4542
        %v4544 = vpop.xlane.xlu0 %4543
        %v4545 = vsub.f32 %v4507, %v4532
        %v4546 = vsub.f32 %v4512, %v4535
        %v4547 = vsub.f32 %v4517, %v4538
        %v4548 = vsub.f32 %v4522, %v4541
        %v4549 = vsub.f32 %v4527, %v4544
        %v4550 = vmul.f32 %v4545, 1.442695
        %v4551 = vpow.pop %v4550
        %v4552 = vmul.f32 %v4546, 1.442695
        %v4553 = vpow.pop %v4552
        %v4554 = vmul.f32 %v4547, 1.442695
        %v4555 = vpow.pop %v4554
        %v4556 = vmul.f32 %v4548, 1.442695
        %v4557 = vpow.pop %v4556
        %v4558 = vmul.f32 %v4549, 1.442695
        %v4559 = vpow.pop %v4558
        %v4560 = vsel %vm2979, %v4551, 0.0
        %4561 = vadd.xlane.f32.xlu0 %v4560
        %v4562 = vpop.xlane.xlu0 %4561
        %v4563 = vsel %vm2979, %v4553, 0.0
        %4564 = vadd.xlane.f32.xlu0 %v4563
        %v4565 = vpop.xlane.xlu0 %4564
        %v4566 = vsel %vm2979, %v4555, 0.0
        %4567 = vadd.xlane.f32.xlu0 %v4566
        %v4568 = vpop.xlane.xlu0 %4567
        %v4569 = vsel %vm2979, %v4557, 0.0
        %4570 = vadd.xlane.f32.xlu0 %v4569
        %v4571 = vpop.xlane.xlu0 %4570
        %v4572 = vsel %vm2979, %v4559, 0.0
        %4573 = vadd.xlane.f32.xlu0 %v4572
        %v4574 = vpop.xlane.xlu0 %4573
        %v4575 = vrcp.pop %v4562
        %v4576 = vrcp.pop %v4565
        %v4577 = vrcp.pop %v4568
        %v4578 = vrcp.pop %v4571
        %v4579 = vrcp.pop %v4574
        %v4580 = vmul.f32 %v4551, %v4575
        %v4581 = vmul.f32 %v4553, %v4576
        %v4582 = vmul.f32 %v4555, %v4577
        %v4583 = vmul.f32 %v4557, %v4578
        %v4584 = vmul.f32 %v4559, %v4579
        %v4586 = vsel %vm2979, %v4580, 0
        %v4589 = vsel %vm2979, %v4581, 0
        %v4592 = vsel %vm2979, %v4582, 0
        %v4595 = vsel %vm2979, %v4583, 0
        %v4598 = vsel %vm2979, %v4584, 0
        %4600 = vmatprep.subr.mxu0 0.0
        %4601 = vmatpush1.msra.mxu0 %v2439
        %4602 = vmatprep.subr.mxu0 0.0
        %4603 = vmatpush1.msra.mxu0 %v2444
        %4604 = vmatprep.subr.mxu0 0.0
        %4605 = vmatpush1.msra.mxu0 %v2449
        %4606 = vmatprep.subr.mxu0 0.0
        %4607 = vmatpush1.msra.mxu0 %v2454
        %4608 = vmatprep.subr.mxu0 0.0
        %4609 = vmatpush1.msra.mxu0 %v2459
        %4610 = vmatprep.subr.mxu0 0.0
        %4611 = vmatpush1.msra.mxu0 0.0
        %4612 = vmatprep.subr.mxu0 0.0
        %4613 = vmatpush1.msra.mxu0 0.0
        %4614 = vmatprep.subr.mxu0 0.0
        %4615 = vmatpush1.msra.mxu0 0.0
        %4616 = vmatprep.subr.mxu0 0.0
        %4617 = vmatpush1.msra.mxu0 0.0
        %4618 = vmatprep.subr.mxu0 0.0
        %4619 = vmatpush1.msra.mxu0 0.0
        %4620 = vmatprep.subr.mxu0 0.0
        %4621 = vmatpush1.msra.mxu0 0.0
        %4622 = vmatprep.subr.mxu0 0.0
        %4623 = vmatpush1.msra.mxu0 0.0
        %4624 = vmatprep.subr.mxu0 0.0
        %4625 = vmatpush1.msra.mxu0 0.0
        %4626 = vmatprep.subr.mxu0 0.0
        %4627 = vmatpush1.msra.mxu0 0.0
        %4628 = vmatprep.subr.mxu0 0.0
        %4629 = vmatpush1.msra.mxu0 0.0
        %4630 = vmatprep.subr.mxu0 0.0
        %4631 = vmatpush1.msra.mxu0 0.0
        %4632 = vmatprep.subr.mxu0 0.0
        %4633 = vmatpush1.msra.mxu0 0.0
        %4634 = vmatprep.subr.mxu0 0.0
        %4635 = vmatpush1.msra.mxu0 0.0
        %4636 = vmatprep.subr.mxu0 0.0
        %4637 = vmatpush1.msra.mxu0 0.0
        %4638 = vmatprep.subr.mxu0 0.0
        %4639 = vmatpush1.msra.mxu0 0.0
        %4640 = vmatprep.subr.mxu0 0.0
        %4641 = vmatpush1.msra.mxu0 0.0
        %4642 = vmatprep.subr.mxu0 0.0
        %4643 = vmatpush1.msra.mxu0 0.0
        %4644 = vmatprep.subr.mxu0 0.0
        %4645 = vmatpush1.msra.mxu0 0.0
        %4646 = vmatprep.subr.mxu0 0.0
        %4647 = vmatpush1.msra.mxu0 0.0
        %4648 = vmatprep.subr.mxu0 0.0
        %4649 = vmatpush1.msra.mxu0 0.0
        %4650 = vmatprep.subr.mxu0 0.0
        %4651 = vmatpush1.msra.mxu0 0.0
        %4652 = vmatprep.subr.mxu0 0.0
        %4653 = vmatpush1.msra.mxu0 0.0
        %4654 = vmatprep.subr.mxu0 0.0
        %4655 = vmatpush1.msra.mxu0 0.0
        %4656 = vmatprep.subr.mxu0 0.0
        %4657 = vmatpush1.msra.mxu0 0.0
        %4658 = vmatprep.subr.mxu0 0.0
        %4659 = vmatpush1.msra.mxu0 0.0
        %4660 = vmatprep.subr.mxu0 0.0
        %4661 = vmatpush1.msra.mxu0 0.0
        %4662 = vmatprep.subr.mxu0 0.0
        %4663 = vmatpush1.msra.mxu0 0.0
        %4664 = vmatprep.mubr.f32.mxu0 0.0
        %4665 = vmatmul.mubr.f32.gmra.mrb[0].mxu0 %v4586
        %v4666 = vpop.f32.mrb[0].mxu0
        %v4667 = vadd.f32 0.0, %v4666
        %v4668 = vpop.f32.mrb[0].mxu0
        %4669 = vmatprep.mubr.f32.mxu0 0.0
        %4670 = vmatmul.mubr.f32.gmra.mrb[0].mxu0 %v4589
        %v4671 = vpop.f32.mrb[0].mxu0
        %v4672 = vadd.f32 0.0, %v4671
        %v4673 = vpop.f32.mrb[0].mxu0
        %4674 = vmatprep.mubr.f32.mxu0 0.0
        %4675 = vmatmul.mubr.f32.gmra.mrb[0].mxu0 %v4592
        %v4676 = vpop.f32.mrb[0].mxu0
        %v4677 = vadd.f32 0.0, %v4676
        %v4678 = vpop.f32.mrb[0].mxu0
        %4679 = vmatprep.mubr.f32.mxu0 0.0
        %4680 = vmatmul.mubr.f32.gmra.mrb[0].mxu0 %v4595
        %v4681 = vpop.f32.mrb[0].mxu0
        %v4682 = vadd.f32 0.0, %v4681
        %v4683 = vpop.f32.mrb[0].mxu0
        %4684 = vmatprep.mubr.f32.mxu0 0.0
        %4685 = vmatmul.mubr.f32.gmra.mrb[0].mxu0 %v4598
        %v4686 = vpop.f32.mrb[0].mxu0
        %v4687 = vadd.f32 0.0, %v4686
        %v4688 = vpop.f32.mrb[0].mxu0
        %4689 = vdwg.mxu0
        %v4691 = vsel %vm2858, %v1503, 0
        %v4694 = vsel %vm2858, %v1508, 0
        %v4697 = vsel %vm2858, %v1513, 0
        %v4700 = vsel %vm2858, %v1518, 0
        %v4703 = vsel %vm2858, %v1523, 0
        %v4706 = vsel %vm2858, %v2037, 0
        %v4709 = vsel %vm2858, %v2042, 0
        %v4712 = vsel %vm2858, %v2047, 0
        %v4715 = vsel %vm2858, %v2052, 0
        %v4718 = vsel %vm2858, %v2057, 0
        %4720 = vmatprep.subr.mxu0 0.0
        %4721 = vmatpush1.xpose.msra.mxu0 %v4706
        %4722 = vmatprep.subr.mxu0 0.0
        %4723 = vmatpush1.xpose.msra.mxu0 %v4709
        %4724 = vmatprep.subr.mxu0 0.0
        %4725 = vmatpush1.xpose.msra.mxu0 %v4712
        %4726 = vmatprep.subr.mxu0 0.0
        %4727 = vmatpush1.xpose.msra.mxu0 %v4715
        %4728 = vmatprep.subr.mxu0 0.0
        %4729 = vmatpush1.xpose.msra.mxu0 %v4718
        %4730 = vmatprep.subr.mxu0 0.0
        %4731 = vmatpush1.xpose.msra.mxu0 0.0
        %4732 = vmatprep.subr.mxu0 0.0
        %4733 = vmatpush1.xpose.msra.mxu0 0.0
        %4734 = vmatprep.subr.mxu0 0.0
        %4735 = vmatpush1.xpose.msra.mxu0 0.0
        %4736 = vmatprep.subr.mxu0 0.0
        %4737 = vmatpush1.xpose.msra.mxu0 0.0
        %4738 = vmatprep.subr.mxu0 0.0
        %4739 = vmatpush1.xpose.msra.mxu0 0.0
        %4740 = vmatprep.subr.mxu0 0.0
        %4741 = vmatpush1.xpose.msra.mxu0 0.0
        %4742 = vmatprep.subr.mxu0 0.0
        %4743 = vmatpush1.xpose.msra.mxu0 0.0
        %4744 = vmatprep.subr.mxu0 0.0
        %4745 = vmatpush1.xpose.msra.mxu0 0.0
        %4746 = vmatprep.subr.mxu0 0.0
        %4747 = vmatpush1.xpose.msra.mxu0 0.0
        %4748 = vmatprep.subr.mxu0 0.0
        %4749 = vmatpush1.xpose.msra.mxu0 0.0
        %4750 = vmatprep.subr.mxu0 0.0
        %4751 = vmatpush1.xpose.msra.mxu0 0.0
        %4752 = vmatprep.subr.mxu0 0.0
        %4753 = vmatpush1.xpose.msra.mxu0 0.0
        %4754 = vmatprep.subr.mxu0 0.0
        %4755 = vmatpush1.xpose.msra.mxu0 0.0
        %4756 = vmatprep.subr.mxu0 0.0
        %4757 = vmatpush1.xpose.msra.mxu0 0.0
        %4758 = vmatprep.subr.mxu0 0.0
        %4759 = vmatpush1.xpose.msra.mxu0 0.0
        %4760 = vmatprep.subr.mxu0 0.0
        %4761 = vmatpush1.xpose.msra.mxu0 0.0
        %4762 = vmatprep.subr.mxu0 0.0
        %4763 = vmatpush1.xpose.msra.mxu0 0.0
        %4764 = vmatprep.subr.mxu0 0.0
        %4765 = vmatpush1.xpose.msra.mxu0 0.0
        %4766 = vmatprep.subr.mxu0 0.0
        %4767 = vmatpush1.xpose.msra.mxu0 0.0
        %4768 = vmatprep.subr.mxu0 0.0
        %4769 = vmatpush1.xpose.msra.mxu0 0.0
        %4770 = vmatprep.subr.mxu0 0.0
        %4771 = vmatpush1.xpose.msra.mxu0 0.0
        %4772 = vmatprep.subr.mxu0 0.0
        %4773 = vmatpush1.xpose.msra.mxu0 0.0
        %4774 = vmatprep.subr.mxu0 0.0
        %4775 = vmatpush1.xpose.msra.mxu0 0.0
        %4776 = vmatprep.subr.mxu0 0.0
        %4777 = vmatpush1.xpose.msra.mxu0 0.0
        %4778 = vmatprep.subr.mxu0 0.0
        %4779 = vmatpush1.xpose.msra.mxu0 0.0
        %4780 = vmatprep.subr.mxu0 0.0
        %4781 = vmatpush1.xpose.msra.mxu0 0.0
        %4782 = vmatprep.subr.mxu0 0.0
        %4783 = vmatpush1.xpose.msra.mxu0 0.0
        %4784 = vmatprep.mubr.f32.mxu0 0.0
        %4785 = vmatmul.mubr.f32.gmra.mrb[0].mxu0 %v4691
        %v4786 = vpop.f32.mrb[0].mxu0
        %v4787 = vadd.f32 %v1239, %v4786
        %v4788 = vpop.f32.mrb[0].mxu0
        %4789 = vmatprep.mubr.f32.mxu0 0.0
        %4790 = vmatmul.mubr.f32.gmra.mrb[0].mxu0 %v4694
        %v4791 = vpop.f32.mrb[0].mxu0
        %v4792 = vadd.f32 %v1239, %v4791
        %v4793 = vpop.f32.mrb[0].mxu0
        %4794 = vmatprep.mubr.f32.mxu0 0.0
        %4795 = vmatmul.mubr.f32.gmra.mrb[0].mxu0 %v4697
        %v4796 = vpop.f32.mrb[0].mxu0
        %v4797 = vadd.f32 %v1239, %v4796
        %v4798 = vpop.f32.mrb[0].mxu0
        %4799 = vmatprep.mubr.f32.mxu0 0.0
        %4800 = vmatmul.mubr.f32.gmra.mrb[0].mxu0 %v4700
        %v4801 = vpop.f32.mrb[0].mxu0
        %v4802 = vadd.f32 %v1239, %v4801
        %v4803 = vpop.f32.mrb[0].mxu0
        %4804 = vmatprep.mubr.f32.mxu0 0.0
        %4805 = vmatmul.mubr.f32.gmra.mrb[0].mxu0 %v4703
        %v4806 = vpop.f32.mrb[0].mxu0
        %v4807 = vadd.f32 %v1239, %v4806
        %v4808 = vpop.f32.mrb[0].mxu0
        %4809 = vdwg.mxu0
        %v4810 = vsel %vm2979, %v4787, -inf
        %4811 = vmax.xlane.f32.xlu0 %v4810
        %v4812 = vpop.xlane.xlu0 %4811
        %v4813 = vsel %vm2979, %v4792, -inf
        %4814 = vmax.xlane.f32.xlu0 %v4813
        %v4815 = vpop.xlane.xlu0 %4814
        %v4816 = vsel %vm2979, %v4797, -inf
        %4817 = vmax.xlane.f32.xlu0 %v4816
        %v4818 = vpop.xlane.xlu0 %4817
        %v4819 = vsel %vm2979, %v4802, -inf
        %4820 = vmax.xlane.f32.xlu0 %v4819
        %v4821 = vpop.xlane.xlu0 %4820
        %v4822 = vsel %vm2979, %v4807, -inf
        %4823 = vmax.xlane.f32.xlu0 %v4822
        %v4824 = vpop.xlane.xlu0 %4823
        %v4825 = vsub.f32 %v4787, %v4812
        %v4826 = vsub.f32 %v4792, %v4815
        %v4827 = vsub.f32 %v4797, %v4818
        %v4828 = vsub.f32 %v4802, %v4821
        %v4829 = vsub.f32 %v4807, %v4824
        %v4830 = vmul.f32 %v4825, 1.442695
        %v4831 = vpow.pop %v4830
        %v4832 = vmul.f32 %v4826, 1.442695
        %v4833 = vpow.pop %v4832
        %v4834 = vmul.f32 %v4827, 1.442695
        %v4835 = vpow.pop %v4834
        %v4836 = vmul.f32 %v4828, 1.442695
        %v4837 = vpow.pop %v4836
        %v4838 = vmul.f32 %v4829, 1.442695
        %v4839 = vpow.pop %v4838
        %v4840 = vsel %vm2979, %v4831, 0.0
        %4841 = vadd.xlane.f32.xlu0 %v4840
        %v4842 = vpop.xlane.xlu0 %4841
        %v4843 = vsel %vm2979, %v4833, 0.0
        %4844 = vadd.xlane.f32.xlu0 %v4843
        %v4845 = vpop.xlane.xlu0 %4844
        %v4846 = vsel %vm2979, %v4835, 0.0
        %4847 = vadd.xlane.f32.xlu0 %v4846
        %v4848 = vpop.xlane.xlu0 %4847
        %v4849 = vsel %vm2979, %v4837, 0.0
        %4850 = vadd.xlane.f32.xlu0 %v4849
        %v4851 = vpop.xlane.xlu0 %4850
        %v4852 = vsel %vm2979, %v4839, 0.0
        %4853 = vadd.xlane.f32.xlu0 %v4852
        %v4854 = vpop.xlane.xlu0 %4853
        %v4855 = vrcp.pop %v4842
        %v4856 = vrcp.pop %v4845
        %v4857 = vrcp.pop %v4848
        %v4858 = vrcp.pop %v4851
        %v4859 = vrcp.pop %v4854
        %v4860 = vmul.f32 %v4831, %v4855
        %v4861 = vmul.f32 %v4833, %v4856
        %v4862 = vmul.f32 %v4835, %v4857
        %v4863 = vmul.f32 %v4837, %v4858
        %v4864 = vmul.f32 %v4839, %v4859
        %v4866 = vsel %vm2979, %v4860, 0
        %v4869 = vsel %vm2979, %v4861, 0
        %v4872 = vsel %vm2979, %v4862, 0
        %v4875 = vsel %vm2979, %v4863, 0
        %v4878 = vsel %vm2979, %v4864, 0
        %4880 = vmatprep.subr.mxu0 0.0
        %4881 = vmatpush1.msra.mxu0 %v2571
        %4882 = vmatprep.subr.mxu0 0.0
        %4883 = vmatpush1.msra.mxu0 %v2576
        %4884 = vmatprep.subr.mxu0 0.0
        %4885 = vmatpush1.msra.mxu0 %v2581
        %4886 = vmatprep.subr.mxu0 0.0
        %4887 = vmatpush1.msra.mxu0 %v2586
        %4888 = vmatprep.subr.mxu0 0.0
        %4889 = vmatpush1.msra.mxu0 %v2591
        %4890 = vmatprep.subr.mxu0 0.0
        %4891 = vmatpush1.msra.mxu0 0.0
        %4892 = vmatprep.subr.mxu0 0.0
        %4893 = vmatpush1.msra.mxu0 0.0
        %4894 = vmatprep.subr.mxu0 0.0
        %4895 = vmatpush1.msra.mxu0 0.0
        %4896 = vmatprep.subr.mxu0 0.0
        %4897 = vmatpush1.msra.mxu0 0.0
        %4898 = vmatprep.subr.mxu0 0.0
        %4899 = vmatpush1.msra.mxu0 0.0
        %4900 = vmatprep.subr.mxu0 0.0
        %4901 = vmatpush1.msra.mxu0 0.0
        %4902 = vmatprep.subr.mxu0 0.0
        %4903 = vmatpush1.msra.mxu0 0.0
        %4904 = vmatprep.subr.mxu0 0.0
        %4905 = vmatpush1.msra.mxu0 0.0
        %4906 = vmatprep.subr.mxu0 0.0
        %4907 = vmatpush1.msra.mxu0 0.0
        %4908 = vmatprep.subr.mxu0 0.0
        %4909 = vmatpush1.msra.mxu0 0.0
        %4910 = vmatprep.subr.mxu0 0.0
        %4911 = vmatpush1.msra.mxu0 0.0
        %4912 = vmatprep.subr.mxu0 0.0
        %4913 = vmatpush1.msra.mxu0 0.0
        %4914 = vmatprep.subr.mxu0 0.0
        %4915 = vmatpush1.msra.mxu0 0.0
        %4916 = vmatprep.subr.mxu0 0.0
        %4917 = vmatpush1.msra.mxu0 0.0
        %4918 = vmatprep.subr.mxu0 0.0
        %4919 = vmatpush1.msra.mxu0 0.0
        %4920 = vmatprep.subr.mxu0 0.0
        %4921 = vmatpush1.msra.mxu0 0.0
        %4922 = vmatprep.subr.mxu0 0.0
        %4923 = vmatpush1.msra.mxu0 0.0
        %4924 = vmatprep.subr.mxu0 0.0
        %4925 = vmatpush1.msra.mxu0 0.0
        %4926 = vmatprep.subr.mxu0 0.0
        %4927 = vmatpush1.msra.mxu0 0.0
        %4928 = vmatprep.subr.mxu0 0.0
        %4929 = vmatpush1.msra.mxu0 0.0
        %4930 = vmatprep.subr.mxu0 0.0
        %4931 = vmatpush1.msra.mxu0 0.0
        %4932 = vmatprep.subr.mxu0 0.0
        %4933 = vmatpush1.msra.mxu0 0.0
        %4934 = vmatprep.subr.mxu0 0.0
        %4935 = vmatpush1.msra.mxu0 0.0
        %4936 = vmatprep.subr.mxu0 0.0
        %4937 = vmatpush1.msra.mxu0 0.0
        %4938 = vmatprep.subr.mxu0 0.0
        %4939 = vmatpush1.msra.mxu0 0.0
        %4940 = vmatprep.subr.mxu0 0.0
        %4941 = vmatpush1.msra.mxu0 0.0
        %4942 = vmatprep.subr.mxu0 0.0
        %4943 = vmatpush1.msra.mxu0 0.0
        %4944 = vmatprep.mubr.f32.mxu0 0.0
        %4945 = vmatmul.mubr.f32.gmra.mrb[0].mxu0 %v4866
        %v4946 = vpop.f32.mrb[0].mxu0
        %v4947 = vadd.f32 0.0, %v4946
        %v4948 = vpop.f32.mrb[0].mxu0
        %4949 = vmatprep.mubr.f32.mxu0 0.0
        %4950 = vmatmul.mubr.f32.gmra.mrb[0].mxu0 %v4869
        %v4951 = vpop.f32.mrb[0].mxu0
        %v4952 = vadd.f32 0.0, %v4951
        %v4953 = vpop.f32.mrb[0].mxu0
        %4954 = vmatprep.mubr.f32.mxu0 0.0
        %4955 = vmatmul.mubr.f32.gmra.mrb[0].mxu0 %v4872
        %v4956 = vpop.f32.mrb[0].mxu0
        %v4957 = vadd.f32 0.0, %v4956
        %v4958 = vpop.f32.mrb[0].mxu0
        %4959 = vmatprep.mubr.f32.mxu0 0.0
        %4960 = vmatmul.mubr.f32.gmra.mrb[0].mxu0 %v4875
        %v4961 = vpop.f32.mrb[0].mxu0
        %v4962 = vadd.f32 0.0, %v4961
        %v4963 = vpop.f32.mrb[0].mxu0
        %4964 = vmatprep.mubr.f32.mxu0 0.0
        %4965 = vmatmul.mubr.f32.gmra.mrb[0].mxu0 %v4878
        %v4966 = vpop.f32.mrb[0].mxu0
        %v4967 = vadd.f32 0.0, %v4966
        %v4968 = vpop.f32.mrb[0].mxu0
        %4969 = vdwg.mxu0
        %v4971 = vsel %vm2858, %v4947, 0
        %v4974 = vsel %vm2858, %v4952, 0
        %v4977 = vsel %vm2858, %v4957, 0
        %v4980 = vsel %vm2858, %v4962, 0
        %v4983 = vsel %vm2858, %v4967, 0
        %4985 = vmatprep.subr.mxu0 0.0
        %4986 = vmatpush1.msra.mxu0 %v1244
        %4987 = vmatprep.subr.mxu0 0.0
        %4988 = vmatpush1.msra.mxu0 %v1245
        %4989 = vmatprep.subr.mxu0 0.0
        %4990 = vmatpush1.msra.mxu0 %v1246
        %4991 = vmatprep.subr.mxu0 0.0
        %4992 = vmatpush1.msra.mxu0 %v1247
        %4993 = vmatprep.subr.mxu0 0.0
        %4994 = vmatpush1.msra.mxu0 0.0
        %4995 = vmatprep.subr.mxu0 0.0
        %4996 = vmatpush1.msra.mxu0 0.0
        %4997 = vmatprep.subr.mxu0 0.0
        %4998 = vmatpush1.msra.mxu0 0.0
        %4999 = vmatprep.subr.mxu0 0.0
        %5000 = vmatpush1.msra.mxu0 0.0
        %5001 = vmatprep.subr.mxu0 0.0
        %5002 = vmatpush1.msra.mxu0 0.0
        %5003 = vmatprep.subr.mxu0 0.0
        %5004 = vmatpush1.msra.mxu0 0.0
        %5005 = vmatprep.subr.mxu0 0.0
        %5006 = vmatpush1.msra.mxu0 0.0
        %5007 = vmatprep.subr.mxu0 0.0
        %5008 = vmatpush1.msra.mxu0 0.0
        %5009 = vmatprep.subr.mxu0 0.0
        %5010 = vmatpush1.msra.mxu0 0.0
        %5011 = vmatprep.subr.mxu0 0.0
        %5012 = vmatpush1.msra.mxu0 0.0
        %5013 = vmatprep.subr.mxu0 0.0
        %5014 = vmatpush1.msra.mxu0 0.0
        %5015 = vmatprep.subr.mxu0 0.0
        %5016 = vmatpush1.msra.mxu0 0.0
        %5017 = vmatprep.subr.mxu0 0.0
        %5018 = vmatpush1.msra.mxu0 0.0
        %5019 = vmatprep.subr.mxu0 0.0
        %5020 = vmatpush1.msra.mxu0 0.0
        %5021 = vmatprep.subr.mxu0 0.0
        %5022 = vmatpush1.msra.mxu0 0.0
        %5023 = vmatprep.subr.mxu0 0.0
        %5024 = vmatpush1.msra.mxu0 0.0
        %5025 = vmatprep.subr.mxu0 0.0
        %5026 = vmatpush1.msra.mxu0 0.0
        %5027 = vmatprep.subr.mxu0 0.0
        %5028 = vmatpush1.msra.mxu0 0.0
        %5029 = vmatprep.subr.mxu0 0.0
        %5030 = vmatpush1.msra.mxu0 0.0
        %5031 = vmatprep.subr.mxu0 0.0
        %5032 = vmatpush1.msra.mxu0 0.0
        %5033 = vmatprep.subr.mxu0 0.0
        %5034 = vmatpush1.msra.mxu0 0.0
        %5035 = vmatprep.subr.mxu0 0.0
        %5036 = vmatpush1.msra.mxu0 0.0
        %5037 = vmatprep.subr.mxu0 0.0
        %5038 = vmatpush1.msra.mxu0 0.0
        %5039 = vmatprep.subr.mxu0 0.0
        %5040 = vmatpush1.msra.mxu0 0.0
        %5041 = vmatprep.subr.mxu0 0.0
        %5042 = vmatpush1.msra.mxu0 0.0
        %5043 = vmatprep.subr.mxu0 0.0
        %5044 = vmatpush1.msra.mxu0 0.0
        %5045 = vmatprep.subr.mxu0 0.0
        %5046 = vmatpush1.msra.mxu0 0.0
        %5047 = vmatprep.subr.mxu0 0.0
        %5048 = vmatpush1.msra.mxu0 0.0
        %5049 = vmatprep.mubr.f32.mxu0 0.0
        %5050 = vmatmul.mubr.f32.gmra.mrb[0].mxu0 %v4971
        %v5051 = vpop.f32.mrb[0].mxu0
        %v5052 = vadd.f32 0.0, %v5051
        %v5053 = vpop.f32.mrb[0].mxu0
        %5054 = vmatprep.mubr.f32.mxu0 0.0
        %5055 = vmatmul.mubr.f32.gmra.mrb[0].mxu0 %v4974
        %v5056 = vpop.f32.mrb[0].mxu0
        %v5057 = vadd.f32 0.0, %v5056
        %v5058 = vpop.f32.mrb[0].mxu0
        %5059 = vmatprep.mubr.f32.mxu0 0.0
        %5060 = vmatmul.mubr.f32.gmra.mrb[0].mxu0 %v4977
        %v5061 = vpop.f32.mrb[0].mxu0
        %v5062 = vadd.f32 0.0, %v5061
        %v5063 = vpop.f32.mrb[0].mxu0
        %5064 = vmatprep.mubr.f32.mxu0 0.0
        %5065 = vmatmul.mubr.f32.gmra.mrb[0].mxu0 %v4980
        %v5066 = vpop.f32.mrb[0].mxu0
        %v5067 = vadd.f32 0.0, %v5066
        %v5068 = vpop.f32.mrb[0].mxu0
        %5069 = vmatprep.mubr.f32.mxu0 0.0
        %5070 = vmatmul.mubr.f32.gmra.mrb[0].mxu0 %v4983
        %v5071 = vpop.f32.mrb[0].mxu0
        %v5072 = vadd.f32 0.0, %v5071
        %v5073 = vpop.f32.mrb[0].mxu0
        %5074 = vdwg.mxu0
        %v5076 = vsel %vm2858, %v4667, 0
        %v5079 = vsel %vm2858, %v4672, 0
        %v5082 = vsel %vm2858, %v4677, 0
        %v5085 = vsel %vm2858, %v4682, 0
        %v5088 = vsel %vm2858, %v4687, 0
        %5090 = vmatprep.subr.mxu0 0.0
        %5091 = vmatpush1.msra.mxu0 %v1240
        %5092 = vmatprep.subr.mxu0 0.0
        %5093 = vmatpush1.msra.mxu0 %v1241
        %5094 = vmatprep.subr.mxu0 0.0
        %5095 = vmatpush1.msra.mxu0 %v1242
        %5096 = vmatprep.subr.mxu0 0.0
        %5097 = vmatpush1.msra.mxu0 %v1243
        %5098 = vmatprep.subr.mxu0 0.0
        %5099 = vmatpush1.msra.mxu0 0.0
        %5100 = vmatprep.subr.mxu0 0.0
        %5101 = vmatpush1.msra.mxu0 0.0
        %5102 = vmatprep.subr.mxu0 0.0
        %5103 = vmatpush1.msra.mxu0 0.0
        %5104 = vmatprep.subr.mxu0 0.0
        %5105 = vmatpush1.msra.mxu0 0.0
        %5106 = vmatprep.subr.mxu0 0.0
        %5107 = vmatpush1.msra.mxu0 0.0
        %5108 = vmatprep.subr.mxu0 0.0
        %5109 = vmatpush1.msra.mxu0 0.0
        %5110 = vmatprep.subr.mxu0 0.0
        %5111 = vmatpush1.msra.mxu0 0.0
        %5112 = vmatprep.subr.mxu0 0.0
        %5113 = vmatpush1.msra.mxu0 0.0
        %5114 = vmatprep.subr.mxu0 0.0
        %5115 = vmatpush1.msra.mxu0 0.0
        %5116 = vmatprep.subr.mxu0 0.0
        %5117 = vmatpush1.msra.mxu0 0.0
        %5118 = vmatprep.subr.mxu0 0.0
        %5119 = vmatpush1.msra.mxu0 0.0
        %5120 = vmatprep.subr.mxu0 0.0
        %5121 = vmatpush1.msra.mxu0 0.0
        %5122 = vmatprep.subr.mxu0 0.0
        %5123 = vmatpush1.msra.mxu0 0.0
        %5124 = vmatprep.subr.mxu0 0.0
        %5125 = vmatpush1.msra.mxu0 0.0
        %5126 = vmatprep.subr.mxu0 0.0
        %5127 = vmatpush1.msra.mxu0 0.0
        %5128 = vmatprep.subr.mxu0 0.0
        %5129 = vmatpush1.msra.mxu0 0.0
        %5130 = vmatprep.subr.mxu0 0.0
        %5131 = vmatpush1.msra.mxu0 0.0
        %5132 = vmatprep.subr.mxu0 0.0
        %5133 = vmatpush1.msra.mxu0 0.0
        %5134 = vmatprep.subr.mxu0 0.0
        %5135 = vmatpush1.msra.mxu0 0.0
        %5136 = vmatprep.subr.mxu0 0.0
        %5137 = vmatpush1.msra.mxu0 0.0
        %5138 = vmatprep.subr.mxu0 0.0
        %5139 = vmatpush1.msra.mxu0 0.0
        %5140 = vmatprep.subr.mxu0 0.0
        %5141 = vmatpush1.msra.mxu0 0.0
        %5142 = vmatprep.subr.mxu0 0.0
        %5143 = vmatpush1.msra.mxu0 0.0
        %5144 = vmatprep.subr.mxu0 0.0
        %5145 = vmatpush1.msra.mxu0 0.0
        %5146 = vmatprep.subr.mxu0 0.0
        %5147 = vmatpush1.msra.mxu0 0.0
        %5148 = vmatprep.subr.mxu0 0.0
        %5149 = vmatpush1.msra.mxu0 0.0
        %5150 = vmatprep.subr.mxu0 0.0
        %5151 = vmatpush1.msra.mxu0 0.0
        %5152 = vmatprep.subr.mxu0 0.0
        %5153 = vmatpush1.msra.mxu0 0.0
        %5154 = vmatprep.mubr.f32.mxu0 0.0
        %5155 = vmatmul.mubr.f32.gmra.mrb[0].mxu0 %v5076
        %v5156 = vpop.f32.mrb[0].mxu0
        %v5157 = vadd.f32 %v5052, %v5156
        %v5158 = vpop.f32.mrb[0].mxu0
        %5159 = vmatprep.mubr.f32.mxu0 0.0
        %5160 = vmatmul.mubr.f32.gmra.mrb[0].mxu0 %v5079
        %v5161 = vpop.f32.mrb[0].mxu0
        %v5162 = vadd.f32 %v5057, %v5161
        %v5163 = vpop.f32.mrb[0].mxu0
        %5164 = vmatprep.mubr.f32.mxu0 0.0
        %5165 = vmatmul.mubr.f32.gmra.mrb[0].mxu0 %v5082
        %v5166 = vpop.f32.mrb[0].mxu0
        %v5167 = vadd.f32 %v5062, %v5166
        %v5168 = vpop.f32.mrb[0].mxu0
        %5169 = vmatprep.mubr.f32.mxu0 0.0
        %5170 = vmatmul.mubr.f32.gmra.mrb[0].mxu0 %v5085
        %v5171 = vpop.f32.mrb[0].mxu0
        %v5172 = vadd.f32 %v5067, %v5171
        %v5173 = vpop.f32.mrb[0].mxu0
        %5174 = vmatprep.mubr.f32.mxu0 0.0
        %5175 = vmatmul.mubr.f32.gmra.mrb[0].mxu0 %v5088
        %v5176 = vpop.f32.mrb[0].mxu0
        %v5177 = vadd.f32 %v5072, %v5176
        %v5178 = vpop.f32.mrb[0].mxu0
        %5179 = vdwg.mxu0
        %v5181 = vsel %vm2858, %v1635, 0
        %v5184 = vsel %vm2858, %v1640, 0
        %v5187 = vsel %vm2858, %v1645, 0
        %v5190 = vsel %vm2858, %v1650, 0
        %v5193 = vsel %vm2858, %v1655, 0
        %v5196 = vsel %vm2858, %v2169, 0
        %v5199 = vsel %vm2858, %v2174, 0
        %v5202 = vsel %vm2858, %v2179, 0
        %v5205 = vsel %vm2858, %v2184, 0
        %v5208 = vsel %vm2858, %v2189, 0
        %5210 = vmatprep.subr.mxu0 0.0
        %5211 = vmatpush1.xpose.msra.mxu0 %v5196
        %5212 = vmatprep.subr.mxu0 0.0
        %5213 = vmatpush1.xpose.msra.mxu0 %v5199
        %5214 = vmatprep.subr.mxu0 0.0
        %5215 = vmatpush1.xpose.msra.mxu0 %v5202
        %5216 = vmatprep.subr.mxu0 0.0
        %5217 = vmatpush1.xpose.msra.mxu0 %v5205
        %5218 = vmatprep.subr.mxu0 0.0
        %5219 = vmatpush1.xpose.msra.mxu0 %v5208
        %5220 = vmatprep.subr.mxu0 0.0
        %5221 = vmatpush1.xpose.msra.mxu0 0.0
        %5222 = vmatprep.subr.mxu0 0.0
        %5223 = vmatpush1.xpose.msra.mxu0 0.0
        %5224 = vmatprep.subr.mxu0 0.0
        %5225 = vmatpush1.xpose.msra.mxu0 0.0
        %5226 = vmatprep.subr.mxu0 0.0
        %5227 = vmatpush1.xpose.msra.mxu0 0.0
        %5228 = vmatprep.subr.mxu0 0.0
        %5229 = vmatpush1.xpose.msra.mxu0 0.0
        %5230 = vmatprep.subr.mxu0 0.0
        %5231 = vmatpush1.xpose.msra.mxu0 0.0
        %5232 = vmatprep.subr.mxu0 0.0
        %5233 = vmatpush1.xpose.msra.mxu0 0.0
        %5234 = vmatprep.subr.mxu0 0.0
        %5235 = vmatpush1.xpose.msra.mxu0 0.0
        %5236 = vmatprep.subr.mxu0 0.0
        %5237 = vmatpush1.xpose.msra.mxu0 0.0
        %5238 = vmatprep.subr.mxu0 0.0
        %5239 = vmatpush1.xpose.msra.mxu0 0.0
        %5240 = vmatprep.subr.mxu0 0.0
        %5241 = vmatpush1.xpose.msra.mxu0 0.0
        %5242 = vmatprep.subr.mxu0 0.0
        %5243 = vmatpush1.xpose.msra.mxu0 0.0
        %5244 = vmatprep.subr.mxu0 0.0
        %5245 = vmatpush1.xpose.msra.mxu0 0.0
        %5246 = vmatprep.subr.mxu0 0.0
        %5247 = vmatpush1.xpose.msra.mxu0 0.0
        %5248 = vmatprep.subr.mxu0 0.0
        %5249 = vmatpush1.xpose.msra.mxu0 0.0
        %5250 = vmatprep.subr.mxu0 0.0
        %5251 = vmatpush1.xpose.msra.mxu0 0.0
        %5252 = vmatprep.subr.mxu0 0.0
        %5253 = vmatpush1.xpose.msra.mxu0 0.0
        %5254 = vmatprep.subr.mxu0 0.0
        %5255 = vmatpush1.xpose.msra.mxu0 0.0
        %5256 = vmatprep.subr.mxu0 0.0
        %5257 = vmatpush1.xpose.msra.mxu0 0.0
        %5258 = vmatprep.subr.mxu0 0.0
        %5259 = vmatpush1.xpose.msra.mxu0 0.0
        %5260 = vmatprep.subr.mxu0 0.0
        %5261 = vmatpush1.xpose.msra.mxu0 0.0
        %5262 = vmatprep.subr.mxu0 0.0
        %5263 = vmatpush1.xpose.msra.mxu0 0.0
        %5264 = vmatprep.subr.mxu0 0.0
        %5265 = vmatpush1.xpose.msra.mxu0 0.0
        %5266 = vmatprep.subr.mxu0 0.0
        %5267 = vmatpush1.xpose.msra.mxu0 0.0
        %5268 = vmatprep.subr.mxu0 0.0
        %5269 = vmatpush1.xpose.msra.mxu0 0.0
        %5270 = vmatprep.subr.mxu0 0.0
        %5271 = vmatpush1.xpose.msra.mxu0 0.0
        %5272 = vmatprep.subr.mxu0 0.0
        %5273 = vmatpush1.xpose.msra.mxu0 0.0
        %5274 = vmatprep.mubr.f32.mxu0 0.0
        %5275 = vmatmul.mubr.f32.gmra.mrb[0].mxu0 %v5181
        %v5276 = vpop.f32.mrb[0].mxu0
        %v5277 = vadd.f32 %v1239, %v5276
        %v5278 = vpop.f32.mrb[0].mxu0
        %5279 = vmatprep.mubr.f32.mxu0 0.0
        %5280 = vmatmul.mubr.f32.gmra.mrb[0].mxu0 %v5184
        %v5281 = vpop.f32.mrb[0].mxu0
        %v5282 = vadd.f32 %v1239, %v5281
        %v5283 = vpop.f32.mrb[0].mxu0
        %5284 = vmatprep.mubr.f32.mxu0 0.0
        %5285 = vmatmul.mubr.f32.gmra.mrb[0].mxu0 %v5187
        %v5286 = vpop.f32.mrb[0].mxu0
        %v5287 = vadd.f32 %v1239, %v5286
        %v5288 = vpop.f32.mrb[0].mxu0
        %5289 = vmatprep.mubr.f32.mxu0 0.0
        %5290 = vmatmul.mubr.f32.gmra.mrb[0].mxu0 %v5190
        %v5291 = vpop.f32.mrb[0].mxu0
        %v5292 = vadd.f32 %v1239, %v5291
        %v5293 = vpop.f32.mrb[0].mxu0
        %5294 = vmatprep.mubr.f32.mxu0 0.0
        %5295 = vmatmul.mubr.f32.gmra.mrb[0].mxu0 %v5193
        %v5296 = vpop.f32.mrb[0].mxu0
        %v5297 = vadd.f32 %v1239, %v5296
        %v5298 = vpop.f32.mrb[0].mxu0
        %5299 = vdwg.mxu0
        %v5300 = vsel %vm2979, %v5277, -inf
        %5301 = vmax.xlane.f32.xlu0 %v5300
        %v5302 = vpop.xlane.xlu0 %5301
        %v5303 = vsel %vm2979, %v5282, -inf
        %5304 = vmax.xlane.f32.xlu0 %v5303
        %v5305 = vpop.xlane.xlu0 %5304
        %v5306 = vsel %vm2979, %v5287, -inf
        %5307 = vmax.xlane.f32.xlu0 %v5306
        %v5308 = vpop.xlane.xlu0 %5307
        %v5309 = vsel %vm2979, %v5292, -inf
        %5310 = vmax.xlane.f32.xlu0 %v5309
        %v5311 = vpop.xlane.xlu0 %5310
        %v5312 = vsel %vm2979, %v5297, -inf
        %5313 = vmax.xlane.f32.xlu0 %v5312
        %v5314 = vpop.xlane.xlu0 %5313
        %v5315 = vsub.f32 %v5277, %v5302
        %v5316 = vsub.f32 %v5282, %v5305
        %v5317 = vsub.f32 %v5287, %v5308
        %v5318 = vsub.f32 %v5292, %v5311
        %v5319 = vsub.f32 %v5297, %v5314
        %v5320 = vmul.f32 %v5315, 1.442695
        %v5321 = vpow.pop %v5320
        %v5322 = vmul.f32 %v5316, 1.442695
        %v5323 = vpow.pop %v5322
        %v5324 = vmul.f32 %v5317, 1.442695
        %v5325 = vpow.pop %v5324
        %v5326 = vmul.f32 %v5318, 1.442695
        %v5327 = vpow.pop %v5326
        %v5328 = vmul.f32 %v5319, 1.442695
        %v5329 = vpow.pop %v5328
        %v5330 = vsel %vm2979, %v5321, 0.0
        %5331 = vadd.xlane.f32.xlu0 %v5330
        %v5332 = vpop.xlane.xlu0 %5331
        %v5333 = vsel %vm2979, %v5323, 0.0
        %5334 = vadd.xlane.f32.xlu0 %v5333
        %v5335 = vpop.xlane.xlu0 %5334
        %v5336 = vsel %vm2979, %v5325, 0.0
        %5337 = vadd.xlane.f32.xlu0 %v5336
        %v5338 = vpop.xlane.xlu0 %5337
        %v5339 = vsel %vm2979, %v5327, 0.0
        %5340 = vadd.xlane.f32.xlu0 %v5339
        %v5341 = vpop.xlane.xlu0 %5340
        %v5342 = vsel %vm2979, %v5329, 0.0
        %5343 = vadd.xlane.f32.xlu0 %v5342
        %v5344 = vpop.xlane.xlu0 %5343
        %v5345 = vrcp.pop %v5332
        %v5346 = vrcp.pop %v5335
        %v5347 = vrcp.pop %v5338
        %v5348 = vrcp.pop %v5341
        %v5349 = vrcp.pop %v5344
        %v5350 = vmul.f32 %v5321, %v5345
        %v5351 = vmul.f32 %v5323, %v5346
        %v5352 = vmul.f32 %v5325, %v5347
        %v5353 = vmul.f32 %v5327, %v5348
        %v5354 = vmul.f32 %v5329, %v5349
        %v5356 = vsel %vm2979, %v5350, 0
        %v5359 = vsel %vm2979, %v5351, 0
        %v5362 = vsel %vm2979, %v5352, 0
        %v5365 = vsel %vm2979, %v5353, 0
        %v5368 = vsel %vm2979, %v5354, 0
        %5370 = vmatprep.subr.mxu0 0.0
        %5371 = vmatpush1.msra.mxu0 %v2703
        %5372 = vmatprep.subr.mxu0 0.0
        %5373 = vmatpush1.msra.mxu0 %v2708
        %5374 = vmatprep.subr.mxu0 0.0
        %5375 = vmatpush1.msra.mxu0 %v2713
        %5376 = vmatprep.subr.mxu0 0.0
        %5377 = vmatpush1.msra.mxu0 %v2718
        %5378 = vmatprep.subr.mxu0 0.0
        %5379 = vmatpush1.msra.mxu0 %v2723
        %5380 = vmatprep.subr.mxu0 0.0
        %5381 = vmatpush1.msra.mxu0 0.0
        %5382 = vmatprep.subr.mxu0 0.0
        %5383 = vmatpush1.msra.mxu0 0.0
        %5384 = vmatprep.subr.mxu0 0.0
        %5385 = vmatpush1.msra.mxu0 0.0
        %5386 = vmatprep.subr.mxu0 0.0
        %5387 = vmatpush1.msra.mxu0 0.0
        %5388 = vmatprep.subr.mxu0 0.0
        %5389 = vmatpush1.msra.mxu0 0.0
        %5390 = vmatprep.subr.mxu0 0.0
        %5391 = vmatpush1.msra.mxu0 0.0
        %5392 = vmatprep.subr.mxu0 0.0
        %5393 = vmatpush1.msra.mxu0 0.0
        %5394 = vmatprep.subr.mxu0 0.0
        %5395 = vmatpush1.msra.mxu0 0.0
        %5396 = vmatprep.subr.mxu0 0.0
        %5397 = vmatpush1.msra.mxu0 0.0
        %5398 = vmatprep.subr.mxu0 0.0
        %5399 = vmatpush1.msra.mxu0 0.0
        %5400 = vmatprep.subr.mxu0 0.0
        %5401 = vmatpush1.msra.mxu0 0.0
        %5402 = vmatprep.subr.mxu0 0.0
        %5403 = vmatpush1.msra.mxu0 0.0
        %5404 = vmatprep.subr.mxu0 0.0
        %5405 = vmatpush1.msra.mxu0 0.0
        %5406 = vmatprep.subr.mxu0 0.0
        %5407 = vmatpush1.msra.mxu0 0.0
        %5408 = vmatprep.subr.mxu0 0.0
        %5409 = vmatpush1.msra.mxu0 0.0
        %5410 = vmatprep.subr.mxu0 0.0
        %5411 = vmatpush1.msra.mxu0 0.0
        %5412 = vmatprep.subr.mxu0 0.0
        %5413 = vmatpush1.msra.mxu0 0.0
        %5414 = vmatprep.subr.mxu0 0.0
        %5415 = vmatpush1.msra.mxu0 0.0
        %5416 = vmatprep.subr.mxu0 0.0
        %5417 = vmatpush1.msra.mxu0 0.0
        %5418 = vmatprep.subr.mxu0 0.0
        %5419 = vmatpush1.msra.mxu0 0.0
        %5420 = vmatprep.subr.mxu0 0.0
        %5421 = vmatpush1.msra.mxu0 0.0
        %5422 = vmatprep.subr.mxu0 0.0
        %5423 = vmatpush1.msra.mxu0 0.0
        %5424 = vmatprep.subr.mxu0 0.0
        %5425 = vmatpush1.msra.mxu0 0.0
        %5426 = vmatprep.subr.mxu0 0.0
        %5427 = vmatpush1.msra.mxu0 0.0
        %5428 = vmatprep.subr.mxu0 0.0
        %5429 = vmatpush1.msra.mxu0 0.0
        %5430 = vmatprep.subr.mxu0 0.0
        %5431 = vmatpush1.msra.mxu0 0.0
        %5432 = vmatprep.subr.mxu0 0.0
        %5433 = vmatpush1.msra.mxu0 0.0
        %5434 = vmatprep.mubr.f32.mxu0 0.0
        %5435 = vmatmul.mubr.f32.gmra.mrb[0].mxu0 %v5356
        %v5436 = vpop.f32.mrb[0].mxu0
        %v5437 = vadd.f32 0.0, %v5436
        %v5438 = vpop.f32.mrb[0].mxu0
        %5439 = vmatprep.mubr.f32.mxu0 0.0
        %5440 = vmatmul.mubr.f32.gmra.mrb[0].mxu0 %v5359
        %v5441 = vpop.f32.mrb[0].mxu0
        %v5442 = vadd.f32 0.0, %v5441
        %v5443 = vpop.f32.mrb[0].mxu0
        %5444 = vmatprep.mubr.f32.mxu0 0.0
        %5445 = vmatmul.mubr.f32.gmra.mrb[0].mxu0 %v5362
        %v5446 = vpop.f32.mrb[0].mxu0
        %v5447 = vadd.f32 0.0, %v5446
        %v5448 = vpop.f32.mrb[0].mxu0
        %5449 = vmatprep.mubr.f32.mxu0 0.0
        %5450 = vmatmul.mubr.f32.gmra.mrb[0].mxu0 %v5365
        %v5451 = vpop.f32.mrb[0].mxu0
        %v5452 = vadd.f32 0.0, %v5451
        %v5453 = vpop.f32.mrb[0].mxu0
        %5454 = vmatprep.mubr.f32.mxu0 0.0
        %5455 = vmatmul.mubr.f32.gmra.mrb[0].mxu0 %v5368
        %v5456 = vpop.f32.mrb[0].mxu0
        %v5457 = vadd.f32 0.0, %v5456
        %v5458 = vpop.f32.mrb[0].mxu0
        %5459 = vdwg.mxu0
        %v5461 = vsel %vm2858, %v5437, 0
        %v5464 = vsel %vm2858, %v5442, 0
        %v5467 = vsel %vm2858, %v5447, 0
        %v5470 = vsel %vm2858, %v5452, 0
        %v5473 = vsel %vm2858, %v5457, 0
        %5475 = vmatprep.subr.mxu0 0.0
        %5476 = vmatpush1.msra.mxu0 %v1248
        %5477 = vmatprep.subr.mxu0 0.0
        %5478 = vmatpush1.msra.mxu0 %v1249
        %5479 = vmatprep.subr.mxu0 0.0
        %5480 = vmatpush1.msra.mxu0 %v1250
        %5481 = vmatprep.subr.mxu0 0.0
        %5482 = vmatpush1.msra.mxu0 %v1251
        %5483 = vmatprep.subr.mxu0 0.0
        %5484 = vmatpush1.msra.mxu0 0.0
        %5485 = vmatprep.subr.mxu0 0.0
        %5486 = vmatpush1.msra.mxu0 0.0
        %5487 = vmatprep.subr.mxu0 0.0
        %5488 = vmatpush1.msra.mxu0 0.0
        %5489 = vmatprep.subr.mxu0 0.0
        %5490 = vmatpush1.msra.mxu0 0.0
        %5491 = vmatprep.subr.mxu0 0.0
        %5492 = vmatpush1.msra.mxu0 0.0
        %5493 = vmatprep.subr.mxu0 0.0
        %5494 = vmatpush1.msra.mxu0 0.0
        %5495 = vmatprep.subr.mxu0 0.0
        %5496 = vmatpush1.msra.mxu0 0.0
        %5497 = vmatprep.subr.mxu0 0.0
        %5498 = vmatpush1.msra.mxu0 0.0
        %5499 = vmatprep.subr.mxu0 0.0
        %5500 = vmatpush1.msra.mxu0 0.0
        %5501 = vmatprep.subr.mxu0 0.0
        %5502 = vmatpush1.msra.mxu0 0.0
        %5503 = vmatprep.subr.mxu0 0.0
        %5504 = vmatpush1.msra.mxu0 0.0
        %5505 = vmatprep.subr.mxu0 0.0
        %5506 = vmatpush1.msra.mxu0 0.0
        %5507 = vmatprep.subr.mxu0 0.0
        %5508 = vmatpush1.msra.mxu0 0.0
        %5509 = vmatprep.subr.mxu0 0.0
        %5510 = vmatpush1.msra.mxu0 0.0
        %5511 = vmatprep.subr.mxu0 0.0
        %5512 = vmatpush1.msra.mxu0 0.0
        %5513 = vmatprep.subr.mxu0 0.0
        %5514 = vmatpush1.msra.mxu0 0.0
        %5515 = vmatprep.subr.mxu0 0.0
        %5516 = vmatpush1.msra.mxu0 0.0
        %5517 = vmatprep.subr.mxu0 0.0
        %5518 = vmatpush1.msra.mxu0 0.0
        %5519 = vmatprep.subr.mxu0 0.0
        %5520 = vmatpush1.msra.mxu0 0.0
        %5521 = vmatprep.subr.mxu0 0.0
        %5522 = vmatpush1.msra.mxu0 0.0
        %5523 = vmatprep.subr.mxu0 0.0
        %5524 = vmatpush1.msra.mxu0 0.0
        %5525 = vmatprep.subr.mxu0 0.0
        %5526 = vmatpush1.msra.mxu0 0.0
        %5527 = vmatprep.subr.mxu0 0.0
        %5528 = vmatpush1.msra.mxu0 0.0
        %5529 = vmatprep.subr.mxu0 0.0
        %5530 = vmatpush1.msra.mxu0 0.0
        %5531 = vmatprep.subr.mxu0 0.0
        %5532 = vmatpush1.msra.mxu0 0.0
        %5533 = vmatprep.subr.mxu0 0.0
        %5534 = vmatpush1.msra.mxu0 0.0
        %5535 = vmatprep.subr.mxu0 0.0
        %5536 = vmatpush1.msra.mxu0 0.0
        %5537 = vmatprep.subr.mxu0 0.0
        %5538 = vmatpush1.msra.mxu0 0.0
        %5539 = vmatprep.mubr.f32.mxu0 0.0
        %5540 = vmatmul.mubr.f32.gmra.mrb[0].mxu0 %v5461
        %v5541 = vpop.f32.mrb[0].mxu0
        %v5542 = vadd.f32 0.0, %v5541
        %v5543 = vpop.f32.mrb[0].mxu0
        %5544 = vmatprep.mubr.f32.mxu0 0.0
        %5545 = vmatmul.mubr.f32.gmra.mrb[0].mxu0 %v5464
        %v5546 = vpop.f32.mrb[0].mxu0
        %v5547 = vadd.f32 0.0, %v5546
        %v5548 = vpop.f32.mrb[0].mxu0
        %5549 = vmatprep.mubr.f32.mxu0 0.0
        %5550 = vmatmul.mubr.f32.gmra.mrb[0].mxu0 %v5467
        %v5551 = vpop.f32.mrb[0].mxu0
        %v5552 = vadd.f32 0.0, %v5551
        %v5553 = vpop.f32.mrb[0].mxu0
        %5554 = vmatprep.mubr.f32.mxu0 0.0
        %5555 = vmatmul.mubr.f32.gmra.mrb[0].mxu0 %v5470
        %v5556 = vpop.f32.mrb[0].mxu0
        %v5557 = vadd.f32 0.0, %v5556
        %v5558 = vpop.f32.mrb[0].mxu0
        %5559 = vmatprep.mubr.f32.mxu0 0.0
        %5560 = vmatmul.mubr.f32.gmra.mrb[0].mxu0 %v5473
        %v5561 = vpop.f32.mrb[0].mxu0
        %v5562 = vadd.f32 0.0, %v5561
        %v5563 = vpop.f32.mrb[0].mxu0
        %5564 = vdwg.mxu0
        %v5565 = vadd.f32 %v5157, %v5542
        %v5566 = vadd.f32 %v5162, %v5547
        %v5567 = vadd.f32 %v5167, %v5552
        %v5568 = vadd.f32 %v5172, %v5557
        %v5569 = vadd.f32 %v5177, %v5562
        %v5571 = vsel %vm2858, %v1767, 0
        %v5574 = vsel %vm2858, %v1772, 0
        %v5577 = vsel %vm2858, %v1777, 0
        %v5580 = vsel %vm2858, %v1782, 0
        %v5583 = vsel %vm2858, %v1787, 0
        %v5586 = vsel %vm2858, %v2301, 0
        %v5589 = vsel %vm2858, %v2306, 0
        %v5592 = vsel %vm2858, %v2311, 0
        %v5595 = vsel %vm2858, %v2316, 0
        %v5598 = vsel %vm2858, %v2321, 0
        %5600 = vmatprep.subr.mxu0 0.0
        %5601 = vmatpush1.xpose.msra.mxu0 %v5586
        %5602 = vmatprep.subr.mxu0 0.0
        %5603 = vmatpush1.xpose.msra.mxu0 %v5589
        %5604 = vmatprep.subr.mxu0 0.0
        %5605 = vmatpush1.xpose.msra.mxu0 %v5592
        %5606 = vmatprep.subr.mxu0 0.0
        %5607 = vmatpush1.xpose.msra.mxu0 %v5595
        %5608 = vmatprep.subr.mxu0 0.0
        %5609 = vmatpush1.xpose.msra.mxu0 %v5598
        %5610 = vmatprep.subr.mxu0 0.0
        %5611 = vmatpush1.xpose.msra.mxu0 0.0
        %5612 = vmatprep.subr.mxu0 0.0
        %5613 = vmatpush1.xpose.msra.mxu0 0.0
        %5614 = vmatprep.subr.mxu0 0.0
        %5615 = vmatpush1.xpose.msra.mxu0 0.0
        %5616 = vmatprep.subr.mxu0 0.0
        %5617 = vmatpush1.xpose.msra.mxu0 0.0
        %5618 = vmatprep.subr.mxu0 0.0
        %5619 = vmatpush1.xpose.msra.mxu0 0.0
        %5620 = vmatprep.subr.mxu0 0.0
        %5621 = vmatpush1.xpose.msra.mxu0 0.0
        %5622 = vmatprep.subr.mxu0 0.0
        %5623 = vmatpush1.xpose.msra.mxu0 0.0
        %5624 = vmatprep.subr.mxu0 0.0
        %5625 = vmatpush1.xpose.msra.mxu0 0.0
        %5626 = vmatprep.subr.mxu0 0.0
        %5627 = vmatpush1.xpose.msra.mxu0 0.0
        %5628 = vmatprep.subr.mxu0 0.0
        %5629 = vmatpush1.xpose.msra.mxu0 0.0
        %5630 = vmatprep.subr.mxu0 0.0
        %5631 = vmatpush1.xpose.msra.mxu0 0.0
        %5632 = vmatprep.subr.mxu0 0.0
        %5633 = vmatpush1.xpose.msra.mxu0 0.0
        %5634 = vmatprep.subr.mxu0 0.0
        %5635 = vmatpush1.xpose.msra.mxu0 0.0
        %5636 = vmatprep.subr.mxu0 0.0
        %5637 = vmatpush1.xpose.msra.mxu0 0.0
        %5638 = vmatprep.subr.mxu0 0.0
        %5639 = vmatpush1.xpose.msra.mxu0 0.0
        %5640 = vmatprep.subr.mxu0 0.0
        %5641 = vmatpush1.xpose.msra.mxu0 0.0
        %5642 = vmatprep.subr.mxu0 0.0
        %5643 = vmatpush1.xpose.msra.mxu0 0.0
        %5644 = vmatprep.subr.mxu0 0.0
        %5645 = vmatpush1.xpose.msra.mxu0 0.0
        %5646 = vmatprep.subr.mxu0 0.0
        %5647 = vmatpush1.xpose.msra.mxu0 0.0
        %5648 = vmatprep.subr.mxu0 0.0
        %5649 = vmatpush1.xpose.msra.mxu0 0.0
        %5650 = vmatprep.subr.mxu0 0.0
        %5651 = vmatpush1.xpose.msra.mxu0 0.0
        %5652 = vmatprep.subr.mxu0 0.0
        %5653 = vmatpush1.xpose.msra.mxu0 0.0
        %5654 = vmatprep.subr.mxu0 0.0
        %5655 = vmatpush1.xpose.msra.mxu0 0.0
        %5656 = vmatprep.subr.mxu0 0.0
        %5657 = vmatpush1.xpose.msra.mxu0 0.0
        %5658 = vmatprep.subr.mxu0 0.0
        %5659 = vmatpush1.xpose.msra.mxu0 0.0
        %5660 = vmatprep.subr.mxu0 0.0
        %5661 = vmatpush1.xpose.msra.mxu0 0.0
        %5662 = vmatprep.subr.mxu0 0.0
        %5663 = vmatpush1.xpose.msra.mxu0 0.0
        %5664 = vmatprep.mubr.f32.mxu0 0.0
        %5665 = vmatmul.mubr.f32.gmra.mrb[0].mxu0 %v5571
        %v5666 = vpop.f32.mrb[0].mxu0
        %v5667 = vadd.f32 %v1239, %v5666
        %v5668 = vpop.f32.mrb[0].mxu0
        %5669 = vmatprep.mubr.f32.mxu0 0.0
        %5670 = vmatmul.mubr.f32.gmra.mrb[0].mxu0 %v5574
        %v5671 = vpop.f32.mrb[0].mxu0
        %v5672 = vadd.f32 %v1239, %v5671
        %v5673 = vpop.f32.mrb[0].mxu0
        %5674 = vmatprep.mubr.f32.mxu0 0.0
        %5675 = vmatmul.mubr.f32.gmra.mrb[0].mxu0 %v5577
        %v5676 = vpop.f32.mrb[0].mxu0
        %v5677 = vadd.f32 %v1239, %v5676
        %v5678 = vpop.f32.mrb[0].mxu0
        %5679 = vmatprep.mubr.f32.mxu0 0.0
        %5680 = vmatmul.mubr.f32.gmra.mrb[0].mxu0 %v5580
        %v5681 = vpop.f32.mrb[0].mxu0
        %v5682 = vadd.f32 %v1239, %v5681
        %v5683 = vpop.f32.mrb[0].mxu0
        %5684 = vmatprep.mubr.f32.mxu0 0.0
        %5685 = vmatmul.mubr.f32.gmra.mrb[0].mxu0 %v5583
        %v5686 = vpop.f32.mrb[0].mxu0
        %v5687 = vadd.f32 %v1239, %v5686
        %v5688 = vpop.f32.mrb[0].mxu0
        %5689 = vdwg.mxu0
        %v5690 = vsel %vm2979, %v5667, -inf
        %5691 = vmax.xlane.f32.xlu0 %v5690
        %v5692 = vpop.xlane.xlu0 %5691
        %v5693 = vsel %vm2979, %v5672, -inf
        %5694 = vmax.xlane.f32.xlu0 %v5693
        %v5695 = vpop.xlane.xlu0 %5694
        %v5696 = vsel %vm2979, %v5677, -inf
        %5697 = vmax.xlane.f32.xlu0 %v5696
        %v5698 = vpop.xlane.xlu0 %5697
        %v5699 = vsel %vm2979, %v5682, -inf
        %5700 = vmax.xlane.f32.xlu0 %v5699
        %v5701 = vpop.xlane.xlu0 %5700
        %v5702 = vsel %vm2979, %v5687, -inf
        %5703 = vmax.xlane.f32.xlu0 %v5702
        %v5704 = vpop.xlane.xlu0 %5703
        %v5705 = vsub.f32 %v5667, %v5692
        %v5706 = vsub.f32 %v5672, %v5695
        %v5707 = vsub.f32 %v5677, %v5698
        %v5708 = vsub.f32 %v5682, %v5701
        %v5709 = vsub.f32 %v5687, %v5704
        %v5710 = vmul.f32 %v5705, 1.442695
        %v5711 = vpow.pop %v5710
        %v5712 = vmul.f32 %v5706, 1.442695
        %v5713 = vpow.pop %v5712
        %v5714 = vmul.f32 %v5707, 1.442695
        %v5715 = vpow.pop %v5714
        %v5716 = vmul.f32 %v5708, 1.442695
        %v5717 = vpow.pop %v5716
        %v5718 = vmul.f32 %v5709, 1.442695
        %v5719 = vpow.pop %v5718
        %v5720 = vsel %vm2979, %v5711, 0.0
        %5721 = vadd.xlane.f32.xlu0 %v5720
        %v5722 = vpop.xlane.xlu0 %5721
        %v5723 = vsel %vm2979, %v5713, 0.0
        %5724 = vadd.xlane.f32.xlu0 %v5723
        %v5725 = vpop.xlane.xlu0 %5724
        %v5726 = vsel %vm2979, %v5715, 0.0
        %5727 = vadd.xlane.f32.xlu0 %v5726
        %v5728 = vpop.xlane.xlu0 %5727
        %v5729 = vsel %vm2979, %v5717, 0.0
        %5730 = vadd.xlane.f32.xlu0 %v5729
        %v5731 = vpop.xlane.xlu0 %5730
        %v5732 = vsel %vm2979, %v5719, 0.0
        %5733 = vadd.xlane.f32.xlu0 %v5732
        %v5734 = vpop.xlane.xlu0 %5733
        %v5735 = vrcp.pop %v5722
        %v5736 = vrcp.pop %v5725
        %v5737 = vrcp.pop %v5728
        %v5738 = vrcp.pop %v5731
        %v5739 = vrcp.pop %v5734
        %v5740 = vmul.f32 %v5711, %v5735
        %v5741 = vmul.f32 %v5713, %v5736
        %v5742 = vmul.f32 %v5715, %v5737
        %v5743 = vmul.f32 %v5717, %v5738
        %v5744 = vmul.f32 %v5719, %v5739
        %v5746 = vsel %vm2979, %v5740, 0
        %v5749 = vsel %vm2979, %v5741, 0
        %v5752 = vsel %vm2979, %v5742, 0
        %v5755 = vsel %vm2979, %v5743, 0
        %v5758 = vsel %vm2979, %v5744, 0
        %5760 = vmatprep.subr.mxu0 0.0
        %5761 = vmatpush1.msra.mxu0 %v2835
        %5762 = vmatprep.subr.mxu0 0.0
        %5763 = vmatpush1.msra.mxu0 %v2840
        %5764 = vmatprep.subr.mxu0 0.0
        %5765 = vmatpush1.msra.mxu0 %v2845
        %5766 = vmatprep.subr.mxu0 0.0
        %5767 = vmatpush1.msra.mxu0 %v2850
        %5768 = vmatprep.subr.mxu0 0.0
        %5769 = vmatpush1.msra.mxu0 %v2855
        %5770 = vmatprep.subr.mxu0 0.0
        %5771 = vmatpush1.msra.mxu0 0.0
        %5772 = vmatprep.subr.mxu0 0.0
        %5773 = vmatpush1.msra.mxu0 0.0
        %5774 = vmatprep.subr.mxu0 0.0
        %5775 = vmatpush1.msra.mxu0 0.0
        %5776 = vmatprep.subr.mxu0 0.0
        %5777 = vmatpush1.msra.mxu0 0.0
        %5778 = vmatprep.subr.mxu0 0.0
        %5779 = vmatpush1.msra.mxu0 0.0
        %5780 = vmatprep.subr.mxu0 0.0
        %5781 = vmatpush1.msra.mxu0 0.0
        %5782 = vmatprep.subr.mxu0 0.0
        %5783 = vmatpush1.msra.mxu0 0.0
        %5784 = vmatprep.subr.mxu0 0.0
        %5785 = vmatpush1.msra.mxu0 0.0
        %5786 = vmatprep.subr.mxu0 0.0
        %5787 = vmatpush1.msra.mxu0 0.0
        %5788 = vmatprep.subr.mxu0 0.0
        %5789 = vmatpush1.msra.mxu0 0.0
        %5790 = vmatprep.subr.mxu0 0.0
        %5791 = vmatpush1.msra.mxu0 0.0
        %5792 = vmatprep.subr.mxu0 0.0
        %5793 = vmatpush1.msra.mxu0 0.0
        %5794 = vmatprep.subr.mxu0 0.0
        %5795 = vmatpush1.msra.mxu0 0.0
        %5796 = vmatprep.subr.mxu0 0.0
        %5797 = vmatpush1.msra.mxu0 0.0
        %5798 = vmatprep.subr.mxu0 0.0
        %5799 = vmatpush1.msra.mxu0 0.0
        %5800 = vmatprep.subr.mxu0 0.0
        %5801 = vmatpush1.msra.mxu0 0.0
        %5802 = vmatprep.subr.mxu0 0.0
        %5803 = vmatpush1.msra.mxu0 0.0
        %5804 = vmatprep.subr.mxu0 0.0
        %5805 = vmatpush1.msra.mxu0 0.0
        %5806 = vmatprep.subr.mxu0 0.0
        %5807 = vmatpush1.msra.mxu0 0.0
        %5808 = vmatprep.subr.mxu0 0.0
        %5809 = vmatpush1.msra.mxu0 0.0
        %5810 = vmatprep.subr.mxu0 0.0
        %5811 = vmatpush1.msra.mxu0 0.0
        %5812 = vmatprep.subr.mxu0 0.0
        %5813 = vmatpush1.msra.mxu0 0.0
        %5814 = vmatprep.subr.mxu0 0.0
        %5815 = vmatpush1.msra.mxu0 0.0
        %5816 = vmatprep.subr.mxu0 0.0
        %5817 = vmatpush1.msra.mxu0 0.0
        %5818 = vmatprep.subr.mxu0 0.0
        %5819 = vmatpush1.msra.mxu0 0.0
        %5820 = vmatprep.subr.mxu0 0.0
        %5821 = vmatpush1.msra.mxu0 0.0
        %5822 = vmatprep.subr.mxu0 0.0
        %5823 = vmatpush1.msra.mxu0 0.0
        %5824 = vmatprep.mubr.f32.mxu0 0.0
        %5825 = vmatmul.mubr.f32.gmra.mrb[0].mxu0 %v5746
        %v5826 = vpop.f32.mrb[0].mxu0
        %v5827 = vadd.f32 0.0, %v5826
        %v5828 = vpop.f32.mrb[0].mxu0
        %5829 = vmatprep.mubr.f32.mxu0 0.0
        %5830 = vmatmul.mubr.f32.gmra.mrb[0].mxu0 %v5749
        %v5831 = vpop.f32.mrb[0].mxu0
        %v5832 = vadd.f32 0.0, %v5831
        %v5833 = vpop.f32.mrb[0].mxu0
        %5834 = vmatprep.mubr.f32.mxu0 0.0
        %5835 = vmatmul.mubr.f32.gmra.mrb[0].mxu0 %v5752
        %v5836 = vpop.f32.mrb[0].mxu0
        %v5837 = vadd.f32 0.0, %v5836
        %v5838 = vpop.f32.mrb[0].mxu0
        %5839 = vmatprep.mubr.f32.mxu0 0.0
        %5840 = vmatmul.mubr.f32.gmra.mrb[0].mxu0 %v5755
        %v5841 = vpop.f32.mrb[0].mxu0
        %v5842 = vadd.f32 0.0, %v5841
        %v5843 = vpop.f32.mrb[0].mxu0
        %5844 = vmatprep.mubr.f32.mxu0 0.0
        %5845 = vmatmul.mubr.f32.gmra.mrb[0].mxu0 %v5758
        %v5846 = vpop.f32.mrb[0].mxu0
        %v5847 = vadd.f32 0.0, %v5846
        %v5848 = vpop.f32.mrb[0].mxu0
        %5849 = vdwg.mxu0
        %v5851 = vsel %vm2858, %v5827, 0
        %v5854 = vsel %vm2858, %v5832, 0
        %v5857 = vsel %vm2858, %v5837, 0
        %v5860 = vsel %vm2858, %v5842, 0
        %v5863 = vsel %vm2858, %v5847, 0
        %5865 = vmatprep.subr.mxu0 0.0
        %5866 = vmatpush1.msra.mxu0 %v1252
        %5867 = vmatprep.subr.mxu0 0.0
        %5868 = vmatpush1.msra.mxu0 %v1253
        %5869 = vmatprep.subr.mxu0 0.0
        %5870 = vmatpush1.msra.mxu0 %v1254
        %5871 = vmatprep.subr.mxu0 0.0
        %5872 = vmatpush1.msra.mxu0 %v1255
        %5873 = vmatprep.subr.mxu0 0.0
        %5874 = vmatpush1.msra.mxu0 0.0
        %5875 = vmatprep.subr.mxu0 0.0
        %5876 = vmatpush1.msra.mxu0 0.0
        %5877 = vmatprep.subr.mxu0 0.0
        %5878 = vmatpush1.msra.mxu0 0.0
        %5879 = vmatprep.subr.mxu0 0.0
        %5880 = vmatpush1.msra.mxu0 0.0
        %5881 = vmatprep.subr.mxu0 0.0
        %5882 = vmatpush1.msra.mxu0 0.0
        %5883 = vmatprep.subr.mxu0 0.0
        %5884 = vmatpush1.msra.mxu0 0.0
        %5885 = vmatprep.subr.mxu0 0.0
        %5886 = vmatpush1.msra.mxu0 0.0
        %5887 = vmatprep.subr.mxu0 0.0
        %5888 = vmatpush1.msra.mxu0 0.0
        %5889 = vmatprep.subr.mxu0 0.0
        %5890 = vmatpush1.msra.mxu0 0.0
        %5891 = vmatprep.subr.mxu0 0.0
        %5892 = vmatpush1.msra.mxu0 0.0
        %5893 = vmatprep.subr.mxu0 0.0
        %5894 = vmatpush1.msra.mxu0 0.0
        %5895 = vmatprep.subr.mxu0 0.0
        %5896 = vmatpush1.msra.mxu0 0.0
        %5897 = vmatprep.subr.mxu0 0.0
        %5898 = vmatpush1.msra.mxu0 0.0
        %5899 = vmatprep.subr.mxu0 0.0
        %5900 = vmatpush1.msra.mxu0 0.0
        %5901 = vmatprep.subr.mxu0 0.0
        %5902 = vmatpush1.msra.mxu0 0.0
        %5903 = vmatprep.subr.mxu0 0.0
        %5904 = vmatpush1.msra.mxu0 0.0
        %5905 = vmatprep.subr.mxu0 0.0
        %5906 = vmatpush1.msra.mxu0 0.0
        %5907 = vmatprep.subr.mxu0 0.0
        %5908 = vmatpush1.msra.mxu0 0.0
        %5909 = vmatprep.subr.mxu0 0.0
        %5910 = vmatpush1.msra.mxu0 0.0
        %5911 = vmatprep.subr.mxu0 0.0
        %5912 = vmatpush1.msra.mxu0 0.0
        %5913 = vmatprep.subr.mxu0 0.0
        %5914 = vmatpush1.msra.mxu0 0.0
        %5915 = vmatprep.subr.mxu0 0.0
        %5916 = vmatpush1.msra.mxu0 0.0
        %5917 = vmatprep.subr.mxu0 0.0
        %5918 = vmatpush1.msra.mxu0 0.0
        %5919 = vmatprep.subr.mxu0 0.0
        %5920 = vmatpush1.msra.mxu0 0.0
        %5921 = vmatprep.subr.mxu0 0.0
        %5922 = vmatpush1.msra.mxu0 0.0
        %5923 = vmatprep.subr.mxu0 0.0
        %5924 = vmatpush1.msra.mxu0 0.0
        %5925 = vmatprep.subr.mxu0 0.0
        %5926 = vmatpush1.msra.mxu0 0.0
        %5927 = vmatprep.subr.mxu0 0.0
        %5928 = vmatpush1.msra.mxu0 0.0
        %5929 = vmatprep.mubr.f32.mxu0 0.0
        %5930 = vmatmul.mubr.f32.gmra.mrb[0].mxu0 %v5851
        %v5931 = vpop.f32.mrb[0].mxu0
        %v5932 = vadd.f32 0.0, %v5931
        %v5933 = vpop.f32.mrb[0].mxu0
        %5934 = vmatprep.mubr.f32.mxu0 0.0
        %5935 = vmatmul.mubr.f32.gmra.mrb[0].mxu0 %v5854
        %v5936 = vpop.f32.mrb[0].mxu0
        %v5937 = vadd.f32 0.0, %v5936
        %v5938 = vpop.f32.mrb[0].mxu0
        %5939 = vmatprep.mubr.f32.mxu0 0.0
        %5940 = vmatmul.mubr.f32.gmra.mrb[0].mxu0 %v5857
        %v5941 = vpop.f32.mrb[0].mxu0
        %v5942 = vadd.f32 0.0, %v5941
        %v5943 = vpop.f32.mrb[0].mxu0
        %5944 = vmatprep.mubr.f32.mxu0 0.0
        %5945 = vmatmul.mubr.f32.gmra.mrb[0].mxu0 %v5860
        %v5946 = vpop.f32.mrb[0].mxu0
        %v5947 = vadd.f32 0.0, %v5946
        %v5948 = vpop.f32.mrb[0].mxu0
        %5949 = vmatprep.mubr.f32.mxu0 0.0
        %5950 = vmatmul.mubr.f32.gmra.mrb[0].mxu0 %v5863
        %v5951 = vpop.f32.mrb[0].mxu0
        %v5952 = vadd.f32 0.0, %v5951
        %v5953 = vpop.f32.mrb[0].mxu0
        %5954 = vdwg.mxu0
        %v5955 = vadd.f32 %v5565, %v5932
        %v5956 = vadd.f32 %v5566, %v5937
        %v5957 = vadd.f32 %v5567, %v5942
        %v5958 = vadd.f32 %v5568, %v5947
        %v5959 = vadd.f32 %v5569, %v5952
        %v5960 = vld [vmem:[%s979] sm:$0x1]
        %v5962 = vlaneseq
        %v5963 = vshrl.u32 %v5962, 7
        %v5964 = vsub.s32 0, %v5963
        %v5965 = vrot.slane %v5960, %v5964
        %v5967 = vadd.f32 %v4405, %v5965
        %v5968 = vadd.f32 %v4406, %v5965
        %v5969 = vadd.f32 %v4407, %v5965
        %v5970 = vadd.f32 %v4408, %v5965
        %v5971 = vadd.f32 %v4409, %v5965
        %v5972 = vadd.f32 %v5955, %v5965
        %v5973 = vadd.f32 %v5956, %v5965
        %v5974 = vadd.f32 %v5957, %v5965
        %v5975 = vadd.f32 %v5958, %v5965
        %v5976 = vadd.f32 %v5959, %v5965
        %v5977 = vadd.f32 %v1226, %v5967
        %v5978 = vadd.f32 %v1227, %v5968
        %v5979 = vadd.f32 %v1228, %v5969
        %v5980 = vadd.f32 %v1229, %v5970
        %v5981 = vadd.f32 %v1230, %v5971
        %v5982 = vadd.f32 %v1231, %v5972
        %v5983 = vadd.f32 %v1232, %v5973
        %v5984 = vadd.f32 %v1233, %v5974
        %v5985 = vadd.f32 %v1234, %v5975
        %v5986 = vadd.f32 %v1235, %v5976
        %v5987 = vld [vmem:[%s982] sm:$0x1]
        %v5988 = vld [vmem:[%s985] sm:$0x1]
        %5989 = vadd.xlane.f32.xlu0 %v5977
        %v5990 = vpop.xlane.xlu0 %5989
        %5991 = vadd.xlane.f32.xlu0 %v5978
        %v5992 = vpop.xlane.xlu0 %5991
        %5993 = vadd.xlane.f32.xlu0 %v5979
        %v5994 = vpop.xlane.xlu0 %5993
        %5995 = vadd.xlane.f32.xlu0 %v5980
        %v5996 = vpop.xlane.xlu0 %5995
        %5997 = vadd.xlane.f32.xlu0 %v5981
        %v5998 = vpop.xlane.xlu0 %5997
        %5999 = vadd.xlane.f32.xlu0 %v5982
        %v6000 = vpop.xlane.xlu0 %5999
        %6001 = vadd.xlane.f32.xlu0 %v5983
        %v6002 = vpop.xlane.xlu0 %6001
        %6003 = vadd.xlane.f32.xlu0 %v5984
        %v6004 = vpop.xlane.xlu0 %6003
        %6005 = vadd.xlane.f32.xlu0 %v5985
        %v6006 = vpop.xlane.xlu0 %6005
        %6007 = vadd.xlane.f32.xlu0 %v5986
        %v6008 = vpop.xlane.xlu0 %6007
        %v6009 = vrcp.pop 128.0
        %v6010 = vmul.f32 %v5990, %v6009
        %v6011 = vmul.f32 %v5992, %v6009
        %v6012 = vmul.f32 %v5994, %v6009
        %v6013 = vmul.f32 %v5996, %v6009
        %v6014 = vmul.f32 %v5998, %v6009
        %v6015 = vmul.f32 %v6000, %v6009
        %v6016 = vmul.f32 %v6002, %v6009
        %v6017 = vmul.f32 %v6004, %v6009
        %v6018 = vmul.f32 %v6006, %v6009
        %v6019 = vmul.f32 %v6008, %v6009
        %v6020 = vsub.f32 %v5977, %v6010
        %v6021 = vsub.f32 %v5978, %v6011
        %v6022 = vsub.f32 %v5979, %v6012
        %v6023 = vsub.f32 %v5980, %v6013
        %v6024 = vsub.f32 %v5981, %v6014
        %v6025 = vsub.f32 %v5982, %v6015
        %v6026 = vsub.f32 %v5983, %v6016
        %v6027 = vsub.f32 %v5984, %v6017
        %v6028 = vsub.f32 %v5985, %v6018
        %v6029 = vsub.f32 %v5986, %v6019
        %v6030 = vmul.f32 %v6020, %v6020
        %v6031 = vmul.f32 %v6021, %v6021
        %v6032 = vmul.f32 %v6022, %v6022
        %v6033 = vmul.f32 %v6023, %v6023
        %v6034 = vmul.f32 %v6024, %v6024
        %v6035 = vmul.f32 %v6025, %v6025
        %v6036 = vmul.f32 %v6026, %v6026
        %v6037 = vmul.f32 %v6027, %v6027
        %v6038 = vmul.f32 %v6028, %v6028
        %v6039 = vmul.f32 %v6029, %v6029
        %6040 = vadd.xlane.f32.xlu0 %v6030
        %v6041 = vpop.xlane.xlu0 %6040
        %6042 = vadd.xlane.f32.xlu0 %v6031
        %v6043 = vpop.xlane.xlu0 %6042
        %6044 = vadd.xlane.f32.xlu0 %v6032
        %v6045 = vpop.xlane.xlu0 %6044
        %6046 = vadd.xlane.f32.xlu0 %v6033
        %v6047 = vpop.xlane.xlu0 %6046
        %6048 = vadd.xlane.f32.xlu0 %v6034
        %v6049 = vpop.xlane.xlu0 %6048
        %6050 = vadd.xlane.f32.xlu0 %v6035
        %v6051 = vpop.xlane.xlu0 %6050
        %6052 = vadd.xlane.f32.xlu0 %v6036
        %v6053 = vpop.xlane.xlu0 %6052
        %6054 = vadd.xlane.f32.xlu0 %v6037
        %v6055 = vpop.xlane.xlu0 %6054
        %6056 = vadd.xlane.f32.xlu0 %v6038
        %v6057 = vpop.xlane.xlu0 %6056
        %6058 = vadd.xlane.f32.xlu0 %v6039
        %v6059 = vpop.xlane.xlu0 %6058
        %v6060 = vmul.f32 %v6041, %v6009
        %v6061 = vmul.f32 %v6043, %v6009
        %v6062 = vmul.f32 %v6045, %v6009
        %v6063 = vmul.f32 %v6047, %v6009
        %v6064 = vmul.f32 %v6049, %v6009
        %v6065 = vmul.f32 %v6051, %v6009
        %v6066 = vmul.f32 %v6053, %v6009
        %v6067 = vmul.f32 %v6055, %v6009
        %v6068 = vmul.f32 %v6057, %v6009
        %v6069 = vmul.f32 %v6059, %v6009
        %v6070 = vadd.f32 %v6060, 1e-05
        %v6071 = vadd.f32 %v6061, 1e-05
        %v6072 = vadd.f32 %v6062, 1e-05
        %v6073 = vadd.f32 %v6063, 1e-05
        %v6074 = vadd.f32 %v6064, 1e-05
        %v6075 = vadd.f32 %v6065, 1e-05
        %v6076 = vadd.f32 %v6066, 1e-05
        %v6077 = vadd.f32 %v6067, 1e-05
        %v6078 = vadd.f32 %v6068, 1e-05
        %v6079 = vadd.f32 %v6069, 1e-05
        %v6080 = vrsqrt.pop %v6070
        %v6081 = vrsqrt.pop %v6071
        %v6082 = vrsqrt.pop %v6072
        %v6083 = vrsqrt.pop %v6073
        %v6084 = vrsqrt.pop %v6074
        %v6085 = vrsqrt.pop %v6075
        %v6086 = vrsqrt.pop %v6076
        %v6087 = vrsqrt.pop %v6077
        %v6088 = vrsqrt.pop %v6078
        %v6089 = vrsqrt.pop %v6079
        %v6090 = vmul.f32 %v6020, %v6080
        %v6091 = vmul.f32 %v6021, %v6081
        %v6092 = vmul.f32 %v6022, %v6082
        %v6093 = vmul.f32 %v6023, %v6083
        %v6094 = vmul.f32 %v6024, %v6084
        %v6095 = vmul.f32 %v6025, %v6085
        %v6096 = vmul.f32 %v6026, %v6086
        %v6097 = vmul.f32 %v6027, %v6087
        %v6098 = vmul.f32 %v6028, %v6088
        %v6099 = vmul.f32 %v6029, %v6089
        %v6101 = vlaneseq
        %v6102 = vshrl.u32 %v6101, 7
        %v6103 = vsub.s32 0, %v6102
        %v6104 = vrot.slane %v5987, %v6103
        %v6106 = vmul.f32 %v6090, %v6104
        %v6107 = vmul.f32 %v6091, %v6104
        %v6108 = vmul.f32 %v6092, %v6104
        %v6109 = vmul.f32 %v6093, %v6104
        %v6110 = vmul.f32 %v6094, %v6104
        %v6111 = vmul.f32 %v6095, %v6104
        %v6112 = vmul.f32 %v6096, %v6104
        %v6113 = vmul.f32 %v6097, %v6104
        %v6114 = vmul.f32 %v6098, %v6104
        %v6115 = vmul.f32 %v6099, %v6104
        %v6117 = vlaneseq
        %v6118 = vshrl.u32 %v6117, 7
        %v6119 = vsub.s32 0, %v6118
        %v6120 = vrot.slane %v5988, %v6119
        %v6122 = vadd.f32 %v6106, %v6120
        %v6123 = vadd.f32 %v6107, %v6120
        %v6124 = vadd.f32 %v6108, %v6120
        %v6125 = vadd.f32 %v6109, %v6120
        %v6126 = vadd.f32 %v6110, %v6120
        %v6127 = vadd.f32 %v6111, %v6120
        %v6128 = vadd.f32 %v6112, %v6120
        %v6129 = vadd.f32 %v6113, %v6120
        %v6130 = vadd.f32 %v6114, %v6120
        %v6131 = vadd.f32 %v6115, %v6120
        %v6132 = vld [vmem:[%s990] sm:$0xff]
        %v6133 = vld [vmem:[%s990 + $0x8] sm:$0xff]
        %v6134 = vld [vmem:[%s990 + $0x10] sm:$0xff]
        %v6135 = vld [vmem:[%s990 + $0x18] sm:$0xff]
        %v6136 = vld [vmem:[%s990 + $0x20] sm:$0xff]
        %v6137 = vld [vmem:[%s990 + $0x28] sm:$0xff]
        %v6138 = vld [vmem:[%s990 + $0x30] sm:$0xff]
        %v6139 = vld [vmem:[%s990 + $0x38] sm:$0xff]
        %v6140 = vld [vmem:[%s990 + $0x40] sm:$0xff]
        %v6141 = vld [vmem:[%s990 + $0x48] sm:$0xff]
        %v6142 = vld [vmem:[%s990 + $0x50] sm:$0xff]
        %v6143 = vld [vmem:[%s990 + $0x58] sm:$0xff]
        %v6144 = vld [vmem:[%s990 + $0x60] sm:$0xff]
        %v6145 = vld [vmem:[%s990 + $0x68] sm:$0xff]
        %v6146 = vld [vmem:[%s990 + $0x70] sm:$0xff]
        %v6147 = vld [vmem:[%s990 + $0x78] sm:$0xff]
        %v6148 = vld [vmem:[%s990 + $0x80] sm:$0xff]
        %v6149 = vld [vmem:[%s990 + $0x88] sm:$0xff]
        %v6150 = vld [vmem:[%s990 + $0x90] sm:$0xff]
        %v6151 = vld [vmem:[%s990 + $0x98] sm:$0xff]
        %v6152 = vld [vmem:[%s990 + $0xa0] sm:$0xff]
        %v6153 = vld [vmem:[%s990 + $0xa8] sm:$0xff]
        %v6154 = vld [vmem:[%s990 + $0xb0] sm:$0xff]
        %v6155 = vld [vmem:[%s990 + $0xb8] sm:$0xff]
        %v6156 = vld [vmem:[%s990 + $0xc0] sm:$0xff]
        %v6157 = vld [vmem:[%s990 + $0xc8] sm:$0xff]
        %v6158 = vld [vmem:[%s990 + $0xd0] sm:$0xff]
        %v6159 = vld [vmem:[%s990 + $0xd8] sm:$0xff]
        %v6160 = vld [vmem:[%s990 + $0xe0] sm:$0xff]
        %v6161 = vld [vmem:[%s990 + $0xe8] sm:$0xff]
        %v6162 = vld [vmem:[%s990 + $0xf0] sm:$0xff]
        %v6163 = vld [vmem:[%s990 + $0xf8] sm:$0xff]
        %v6164 = vld [vmem:[%s994] sm:$0x3]
        %v6166 = vlaneseq
        %v6167 = vshrl.u32 %v6166, 7
        %v6168 = vsub.s32 0, %v6167
        %v6169 = vrot.slane %v6164, %v6168
        %v6170 = vlaneseq
        %v6171 = vshrl.u32 %v6170, 7
        %v6172 = vsub.s32 1, %v6171
        %v6173 = vrot.slane %v6164, %v6172
        %6176 = vmatprep.subr.mxu0 %v6133
        %6177 = vmatpush1.msra.mxu0 %v6132
        %6178 = vmatprep.subr.mxu0 %v6135
        %6179 = vmatpush1.msra.mxu0 %v6134
        %6180 = vmatprep.subr.mxu0 %v6137
        %6181 = vmatpush1.msra.mxu0 %v6136
        %6182 = vmatprep.subr.mxu0 %v6139
        %6183 = vmatpush1.msra.mxu0 %v6138
        %6184 = vmatprep.subr.mxu0 %v6141
        %6185 = vmatpush1.msra.mxu0 %v6140
        %6186 = vmatprep.subr.mxu0 %v6143
        %6187 = vmatpush1.msra.mxu0 %v6142
        %6188 = vmatprep.subr.mxu0 %v6145
        %6189 = vmatpush1.msra.mxu0 %v6144
        %6190 = vmatprep.subr.mxu0 %v6147
        %6191 = vmatpush1.msra.mxu0 %v6146
        %6192 = vmatprep.subr.mxu0 %v6149
        %6193 = vmatpush1.msra.mxu0 %v6148
        %6194 = vmatprep.subr.mxu0 %v6151
        %6195 = vmatpush1.msra.mxu0 %v6150
        %6196 = vmatprep.subr.mxu0 %v6153
        %6197 = vmatpush1.msra.mxu0 %v6152
        %6198 = vmatprep.subr.mxu0 %v6155
        %6199 = vmatpush1.msra.mxu0 %v6154
        %6200 = vmatprep.subr.mxu0 %v6157
        %6201 = vmatpush1.msra.mxu0 %v6156
        %6202 = vmatprep.subr.mxu0 %v6159
        %6203 = vmatpush1.msra.mxu0 %v6158
        %6204 = vmatprep.subr.mxu0 %v6161
        %6205 = vmatpush1.msra.mxu0 %v6160
        %6206 = vmatprep.subr.mxu0 %v6163
        %6207 = vmatpush1.msra.mxu0 %v6162
        %6208 = vmatprep.subr.mxu0 0.0
        %6209 = vmatpush1.msra.mxu0 0.0
        %6210 = vmatprep.subr.mxu0 0.0
        %6211 = vmatpush1.msra.mxu0 0.0
        %6212 = vmatprep.subr.mxu0 0.0
        %6213 = vmatpush1.msra.mxu0 0.0
        %6214 = vmatprep.subr.mxu0 0.0
        %6215 = vmatpush1.msra.mxu0 0.0
        %6216 = vmatprep.subr.mxu0 0.0
        %6217 = vmatpush1.msra.mxu0 0.0
        %6218 = vmatprep.subr.mxu0 0.0
        %6219 = vmatpush1.msra.mxu0 0.0
        %6220 = vmatprep.subr.mxu0 0.0
        %6221 = vmatpush1.msra.mxu0 0.0
        %6222 = vmatprep.subr.mxu0 0.0
        %6223 = vmatpush1.msra.mxu0 0.0
        %6224 = vmatprep.subr.mxu0 0.0
        %6225 = vmatpush1.msra.mxu0 0.0
        %6226 = vmatprep.subr.mxu0 0.0
        %6227 = vmatpush1.msra.mxu0 0.0
        %6228 = vmatprep.subr.mxu0 0.0
        %6229 = vmatpush1.msra.mxu0 0.0
        %6230 = vmatprep.subr.mxu0 0.0
        %6231 = vmatpush1.msra.mxu0 0.0
        %6232 = vmatprep.subr.mxu0 0.0
        %6233 = vmatpush1.msra.mxu0 0.0
        %6234 = vmatprep.subr.mxu0 0.0
        %6235 = vmatpush1.msra.mxu0 0.0
        %6236 = vmatprep.subr.mxu0 0.0
        %6237 = vmatpush1.msra.mxu0 0.0
        %6238 = vmatprep.subr.mxu0 0.0
        %6239 = vmatpush1.msra.mxu0 0.0
        %6240 = vmatprep.mubr.f32.mxu0 0.0
        %6241 = vmatmul.mubr.f32.gmra.mrb[0].mxu0 %v6122
        %v6242 = vpop.f32.mrb[0].mxu0
        %v6243 = vadd.f32 %v6169, %v6242
        %v6244 = vpop.f32.mrb[0].mxu0
        %v6245 = vadd.f32 %v6173, %v6244
        %6246 = vmatprep.mubr.f32.mxu0 0.0
        %6247 = vmatmul.mubr.f32.gmra.mrb[0].mxu0 %v6123
        %v6248 = vpop.f32.mrb[0].mxu0
        %v6249 = vadd.f32 %v6169, %v6248
        %v6250 = vpop.f32.mrb[0].mxu0
        %v6251 = vadd.f32 %v6173, %v6250
        %6252 = vmatprep.mubr.f32.mxu0 0.0
        %6253 = vmatmul.mubr.f32.gmra.mrb[0].mxu0 %v6124
        %v6254 = vpop.f32.mrb[0].mxu0
        %v6255 = vadd.f32 %v6169, %v6254
        %v6256 = vpop.f32.mrb[0].mxu0
        %v6257 = vadd.f32 %v6173, %v6256
        %6258 = vmatprep.mubr.f32.mxu0 0.0
        %6259 = vmatmul.mubr.f32.gmra.mrb[0].mxu0 %v6125
        %v6260 = vpop.f32.mrb[0].mxu0
        %v6261 = vadd.f32 %v6169, %v6260
        %v6262 = vpop.f32.mrb[0].mxu0
        %v6263 = vadd.f32 %v6173, %v6262
        %6264 = vmatprep.mubr.f32.mxu0 0.0
        %6265 = vmatmul.mubr.f32.gmra.mrb[0].mxu0 %v6126
        %v6266 = vpop.f32.mrb[0].mxu0
        %v6267 = vadd.f32 %v6169, %v6266
        %v6268 = vpop.f32.mrb[0].mxu0
        %v6269 = vadd.f32 %v6173, %v6268
        %6270 = vmatprep.mubr.f32.mxu0 0.0
        %6271 = vmatmul.mubr.f32.gmra.mrb[0].mxu0 %v6127
        %v6272 = vpop.f32.mrb[0].mxu0
        %v6273 = vadd.f32 %v6169, %v6272
        %v6274 = vpop.f32.mrb[0].mxu0
        %v6275 = vadd.f32 %v6173, %v6274
        %6276 = vmatprep.mubr.f32.mxu0 0.0
        %6277 = vmatmul.mubr.f32.gmra.mrb[0].mxu0 %v6128
        %v6278 = vpop.f32.mrb[0].mxu0
        %v6279 = vadd.f32 %v6169, %v6278
        %v6280 = vpop.f32.mrb[0].mxu0
        %v6281 = vadd.f32 %v6173, %v6280
        %6282 = vmatprep.mubr.f32.mxu0 0.0
        %6283 = vmatmul.mubr.f32.gmra.mrb[0].mxu0 %v6129
        %v6284 = vpop.f32.mrb[0].mxu0
        %v6285 = vadd.f32 %v6169, %v6284
        %v6286 = vpop.f32.mrb[0].mxu0
        %v6287 = vadd.f32 %v6173, %v6286
        %6288 = vmatprep.mubr.f32.mxu0 0.0
        %6289 = vmatmul.mubr.f32.gmra.mrb[0].mxu0 %v6130
        %v6290 = vpop.f32.mrb[0].mxu0
        %v6291 = vadd.f32 %v6169, %v6290
        %v6292 = vpop.f32.mrb[0].mxu0
        %v6293 = vadd.f32 %v6173, %v6292
        %6294 = vmatprep.mubr.f32.mxu0 0.0
        %6295 = vmatmul.mubr.f32.gmra.mrb[0].mxu0 %v6131
        %v6296 = vpop.f32.mrb[0].mxu0
        %v6297 = vadd.f32 %v6169, %v6296
        %v6298 = vpop.f32.mrb[0].mxu0
        %v6299 = vadd.f32 %v6173, %v6298
        %6300 = vdwg.mxu0
        %v6301 = vmax.f32 %v6243, 0.0
        %v6302 = vmax.f32 %v6245, 0.0
        %v6303 = vmax.f32 %v6249, 0.0
        %v6304 = vmax.f32 %v6251, 0.0
        %v6305 = vmax.f32 %v6255, 0.0
        %v6306 = vmax.f32 %v6257, 0.0
        %v6307 = vmax.f32 %v6261, 0.0
        %v6308 = vmax.f32 %v6263, 0.0
        %v6309 = vmax.f32 %v6267, 0.0
        %v6310 = vmax.f32 %v6269, 0.0
        %v6311 = vmax.f32 %v6273, 0.0
        %v6312 = vmax.f32 %v6275, 0.0
        %v6313 = vmax.f32 %v6279, 0.0
        %v6314 = vmax.f32 %v6281, 0.0
        %v6315 = vmax.f32 %v6285, 0.0
        %v6316 = vmax.f32 %v6287, 0.0
        %v6317 = vmax.f32 %v6291, 0.0
        %v6318 = vmax.f32 %v6293, 0.0
        %v6319 = vmax.f32 %v6297, 0.0
        %v6320 = vmax.f32 %v6299, 0.0
        %v6321 = vld [vmem:[%s999] sm:$0xff]
        %v6322 = vld [vmem:[%s999 + $0x8] sm:$0xff]
        %v6323 = vld [vmem:[%s999 + $0x10] sm:$0xff]
        %v6324 = vld [vmem:[%s999 + $0x18] sm:$0xff]
        %v6325 = vld [vmem:[%s999 + $0x20] sm:$0xff]
        %v6326 = vld [vmem:[%s999 + $0x28] sm:$0xff]
        %v6327 = vld [vmem:[%s999 + $0x30] sm:$0xff]
        %v6328 = vld [vmem:[%s999 + $0x38] sm:$0xff]
        %v6329 = vld [vmem:[%s999 + $0x40] sm:$0xff]
        %v6330 = vld [vmem:[%s999 + $0x48] sm:$0xff]
        %v6331 = vld [vmem:[%s999 + $0x50] sm:$0xff]
        %v6332 = vld [vmem:[%s999 + $0x58] sm:$0xff]
        %v6333 = vld [vmem:[%s999 + $0x60] sm:$0xff]
        %v6334 = vld [vmem:[%s999 + $0x68] sm:$0xff]
        %v6335 = vld [vmem:[%s999 + $0x70] sm:$0xff]
        %v6336 = vld [vmem:[%s999 + $0x78] sm:$0xff]
        %v6337 = vld [vmem:[%s999 + $0x80] sm:$0xff]
        %v6338 = vld [vmem:[%s999 + $0x88] sm:$0xff]
        %v6339 = vld [vmem:[%s999 + $0x90] sm:$0xff]
        %v6340 = vld [vmem:[%s999 + $0x98] sm:$0xff]
        %v6341 = vld [vmem:[%s999 + $0xa0] sm:$0xff]
        %v6342 = vld [vmem:[%s999 + $0xa8] sm:$0xff]
        %v6343 = vld [vmem:[%s999 + $0xb0] sm:$0xff]
        %v6344 = vld [vmem:[%s999 + $0xb8] sm:$0xff]
        %v6345 = vld [vmem:[%s999 + $0xc0] sm:$0xff]
        %v6346 = vld [vmem:[%s999 + $0xc8] sm:$0xff]
        %v6347 = vld [vmem:[%s999 + $0xd0] sm:$0xff]
        %v6348 = vld [vmem:[%s999 + $0xd8] sm:$0xff]
        %v6349 = vld [vmem:[%s999 + $0xe0] sm:$0xff]
        %v6350 = vld [vmem:[%s999 + $0xe8] sm:$0xff]
        %v6351 = vld [vmem:[%s999 + $0xf0] sm:$0xff]
        %v6352 = vld [vmem:[%s999 + $0xf8] sm:$0xff]
        %v6353 = vld [vmem:[%s1002] sm:$0x1]
        %v6355 = vlaneseq
        %v6356 = vshrl.u32 %v6355, 7
        %v6357 = vsub.s32 0, %v6356
        %v6358 = vrot.slane %v6353, %v6357
        %6360 = vmatprep.subr.mxu0 0.0
        %6361 = vmatpush1.msra.mxu0 %v6321
        %6362 = vmatprep.subr.mxu0 0.0
        %6363 = vmatpush1.msra.mxu0 %v6322
        %6364 = vmatprep.subr.mxu0 0.0
        %6365 = vmatpush1.msra.mxu0 %v6323
        %6366 = vmatprep.subr.mxu0 0.0
        %6367 = vmatpush1.msra.mxu0 %v6324
        %6368 = vmatprep.subr.mxu0 0.0
        %6369 = vmatpush1.msra.mxu0 %v6325
        %6370 = vmatprep.subr.mxu0 0.0
        %6371 = vmatpush1.msra.mxu0 %v6326
        %6372 = vmatprep.subr.mxu0 0.0
        %6373 = vmatpush1.msra.mxu0 %v6327
        %6374 = vmatprep.subr.mxu0 0.0
        %6375 = vmatpush1.msra.mxu0 %v6328
        %6376 = vmatprep.subr.mxu0 0.0
        %6377 = vmatpush1.msra.mxu0 %v6329
        %6378 = vmatprep.subr.mxu0 0.0
        %6379 = vmatpush1.msra.mxu0 %v6330
        %6380 = vmatprep.subr.mxu0 0.0
        %6381 = vmatpush1.msra.mxu0 %v6331
        %6382 = vmatprep.subr.mxu0 0.0
        %6383 = vmatpush1.msra.mxu0 %v6332
        %6384 = vmatprep.subr.mxu0 0.0
        %6385 = vmatpush1.msra.mxu0 %v6333
        %6386 = vmatprep.subr.mxu0 0.0
        %6387 = vmatpush1.msra.mxu0 %v6334
        %6388 = vmatprep.subr.mxu0 0.0
        %6389 = vmatpush1.msra.mxu0 %v6335
        %6390 = vmatprep.subr.mxu0 0.0
        %6391 = vmatpush1.msra.mxu0 %v6336
        %6392 = vmatprep.subr.mxu0 0.0
        %6393 = vmatpush1.msra.mxu0 %v6337
        %6394 = vmatprep.subr.mxu0 0.0
        %6395 = vmatpush1.msra.mxu0 %v6338
        %6396 = vmatprep.subr.mxu0 0.0
        %6397 = vmatpush1.msra.mxu0 %v6339
        %6398 = vmatprep.subr.mxu0 0.0
        %6399 = vmatpush1.msra.mxu0 %v6340
        %6400 = vmatprep.subr.mxu0 0.0
        %6401 = vmatpush1.msra.mxu0 %v6341
        %6402 = vmatprep.subr.mxu0 0.0
        %6403 = vmatpush1.msra.mxu0 %v6342
        %6404 = vmatprep.subr.mxu0 0.0
        %6405 = vmatpush1.msra.mxu0 %v6343
        %6406 = vmatprep.subr.mxu0 0.0
        %6407 = vmatpush1.msra.mxu0 %v6344
        %6408 = vmatprep.subr.mxu0 0.0
        %6409 = vmatpush1.msra.mxu0 %v6345
        %6410 = vmatprep.subr.mxu0 0.0
        %6411 = vmatpush1.msra.mxu0 %v6346
        %6412 = vmatprep.subr.mxu0 0.0
        %6413 = vmatpush1.msra.mxu0 %v6347
        %6414 = vmatprep.subr.mxu0 0.0
        %6415 = vmatpush1.msra.mxu0 %v6348
        %6416 = vmatprep.subr.mxu0 0.0
        %6417 = vmatpush1.msra.mxu0 %v6349
        %6418 = vmatprep.subr.mxu0 0.0
        %6419 = vmatpush1.msra.mxu0 %v6350
        %6420 = vmatprep.subr.mxu0 0.0
        %6421 = vmatpush1.msra.mxu0 %v6351
        %6422 = vmatprep.subr.mxu0 0.0
        %6423 = vmatpush1.msra.mxu0 %v6352
        %6424 = vmatprep.mubr.f32.mxu0 %v6302
        %6425 = vmatmul.mubr.f32.gmra.mrb[0].mxu0 %v6301
        %v6426 = vpop.f32.mrb[0].mxu0
        %v6427 = vadd.f32 %v6358, %v6426
        %v6428 = vpop.f32.mrb[0].mxu0
        %6429 = vmatprep.mubr.f32.mxu0 %v6304
        %6430 = vmatmul.mubr.f32.gmra.mrb[0].mxu0 %v6303
        %v6431 = vpop.f32.mrb[0].mxu0
        %v6432 = vadd.f32 %v6358, %v6431
        %v6433 = vpop.f32.mrb[0].mxu0
        %6434 = vmatprep.mubr.f32.mxu0 %v6306
        %6435 = vmatmul.mubr.f32.gmra.mrb[0].mxu0 %v6305
        %v6436 = vpop.f32.mrb[0].mxu0
        %v6437 = vadd.f32 %v6358, %v6436
        %v6438 = vpop.f32.mrb[0].mxu0
        %6439 = vmatprep.mubr.f32.mxu0 %v6308
        %6440 = vmatmul.mubr.f32.gmra.mrb[0].mxu0 %v6307
        %v6441 = vpop.f32.mrb[0].mxu0
        %v6442 = vadd.f32 %v6358, %v6441
        %v6443 = vpop.f32.mrb[0].mxu0
        %6444 = vmatprep.mubr.f32.mxu0 %v6310
        %6445 = vmatmul.mubr.f32.gmra.mrb[0].mxu0 %v6309
        %v6446 = vpop.f32.mrb[0].mxu0
        %v6447 = vadd.f32 %v6358, %v6446
        %v6448 = vpop.f32.mrb[0].mxu0
        %6449 = vmatprep.mubr.f32.mxu0 %v6312
        %6450 = vmatmul.mubr.f32.gmra.mrb[0].mxu0 %v6311
        %v6451 = vpop.f32.mrb[0].mxu0
        %v6452 = vadd.f32 %v6358, %v6451
        %v6453 = vpop.f32.mrb[0].mxu0
        %6454 = vmatprep.mubr.f32.mxu0 %v6314
        %6455 = vmatmul.mubr.f32.gmra.mrb[0].mxu0 %v6313
        %v6456 = vpop.f32.mrb[0].mxu0
        %v6457 = vadd.f32 %v6358, %v6456
        %v6458 = vpop.f32.mrb[0].mxu0
        %6459 = vmatprep.mubr.f32.mxu0 %v6316
        %6460 = vmatmul.mubr.f32.gmra.mrb[0].mxu0 %v6315
        %v6461 = vpop.f32.mrb[0].mxu0
        %v6462 = vadd.f32 %v6358, %v6461
        %v6463 = vpop.f32.mrb[0].mxu0
        %6464 = vmatprep.mubr.f32.mxu0 %v6318
        %6465 = vmatmul.mubr.f32.gmra.mrb[0].mxu0 %v6317
        %v6466 = vpop.f32.mrb[0].mxu0
        %v6467 = vadd.f32 %v6358, %v6466
        %v6468 = vpop.f32.mrb[0].mxu0
        %6469 = vmatprep.mubr.f32.mxu0 %v6320
        %6470 = vmatmul.mubr.f32.gmra.mrb[0].mxu0 %v6319
        %v6471 = vpop.f32.mrb[0].mxu0
        %v6472 = vadd.f32 %v6358, %v6471
        %v6473 = vpop.f32.mrb[0].mxu0
        %6474 = vdwg.mxu0
        %v6475 = vadd.f32 %v6122, %v6427
        %v6476 = vadd.f32 %v6123, %v6432
        %v6477 = vadd.f32 %v6124, %v6437
        %v6478 = vadd.f32 %v6125, %v6442
        %v6479 = vadd.f32 %v6126, %v6447
        %v6480 = vadd.f32 %v6127, %v6452
        %v6481 = vadd.f32 %v6128, %v6457
        %v6482 = vadd.f32 %v6129, %v6462
        %v6483 = vadd.f32 %v6130, %v6467
        %v6484 = vadd.f32 %v6131, %v6472
        %v6485 = vld [vmem:[%s1005] sm:$0x1]
        %v6486 = vld [vmem:[%s1008] sm:$0x1]
        %6487 = vadd.xlane.f32.xlu0 %v6475
        %v6488 = vpop.xlane.xlu0 %6487
        %6489 = vadd.xlane.f32.xlu0 %v6476
        %v6490 = vpop.xlane.xlu0 %6489
        %6491 = vadd.xlane.f32.xlu0 %v6477
        %v6492 = vpop.xlane.xlu0 %6491
        %6493 = vadd.xlane.f32.xlu0 %v6478
        %v6494 = vpop.xlane.xlu0 %6493
        %6495 = vadd.xlane.f32.xlu0 %v6479
        %v6496 = vpop.xlane.xlu0 %6495
        %6497 = vadd.xlane.f32.xlu0 %v6480
        %v6498 = vpop.xlane.xlu0 %6497
        %6499 = vadd.xlane.f32.xlu0 %v6481
        %v6500 = vpop.xlane.xlu0 %6499
        %6501 = vadd.xlane.f32.xlu0 %v6482
        %v6502 = vpop.xlane.xlu0 %6501
        %6503 = vadd.xlane.f32.xlu0 %v6483
        %v6504 = vpop.xlane.xlu0 %6503
        %6505 = vadd.xlane.f32.xlu0 %v6484
        %v6506 = vpop.xlane.xlu0 %6505
        %v6507 = vmul.f32 %v6488, %v6009
        %v6508 = vmul.f32 %v6490, %v6009
        %v6509 = vmul.f32 %v6492, %v6009
        %v6510 = vmul.f32 %v6494, %v6009
        %v6511 = vmul.f32 %v6496, %v6009
        %v6512 = vmul.f32 %v6498, %v6009
        %v6513 = vmul.f32 %v6500, %v6009
        %v6514 = vmul.f32 %v6502, %v6009
        %v6515 = vmul.f32 %v6504, %v6009
        %v6516 = vmul.f32 %v6506, %v6009
        %v6517 = vsub.f32 %v6475, %v6507
        %v6518 = vsub.f32 %v6476, %v6508
        %v6519 = vsub.f32 %v6477, %v6509
        %v6520 = vsub.f32 %v6478, %v6510
        %v6521 = vsub.f32 %v6479, %v6511
        %v6522 = vsub.f32 %v6480, %v6512
        %v6523 = vsub.f32 %v6481, %v6513
        %v6524 = vsub.f32 %v6482, %v6514
        %v6525 = vsub.f32 %v6483, %v6515
        %v6526 = vsub.f32 %v6484, %v6516
        %v6527 = vmul.f32 %v6517, %v6517
        %v6528 = vmul.f32 %v6518, %v6518
        %v6529 = vmul.f32 %v6519, %v6519
        %v6530 = vmul.f32 %v6520, %v6520
        %v6531 = vmul.f32 %v6521, %v6521
        %v6532 = vmul.f32 %v6522, %v6522
        %v6533 = vmul.f32 %v6523, %v6523
        %v6534 = vmul.f32 %v6524, %v6524
        %v6535 = vmul.f32 %v6525, %v6525
        %v6536 = vmul.f32 %v6526, %v6526
        %6537 = vadd.xlane.f32.xlu0 %v6527
        %v6538 = vpop.xlane.xlu0 %6537
        %6539 = vadd.xlane.f32.xlu0 %v6528
        %v6540 = vpop.xlane.xlu0 %6539
        %6541 = vadd.xlane.f32.xlu0 %v6529
        %v6542 = vpop.xlane.xlu0 %6541
        %6543 = vadd.xlane.f32.xlu0 %v6530
        %v6544 = vpop.xlane.xlu0 %6543
        %6545 = vadd.xlane.f32.xlu0 %v6531
        %v6546 = vpop.xlane.xlu0 %6545
        %6547 = vadd.xlane.f32.xlu0 %v6532
        %v6548 = vpop.xlane.xlu0 %6547
        %6549 = vadd.xlane.f32.xlu0 %v6533
        %v6550 = vpop.xlane.xlu0 %6549
        %6551 = vadd.xlane.f32.xlu0 %v6534
        %v6552 = vpop.xlane.xlu0 %6551
        %6553 = vadd.xlane.f32.xlu0 %v6535
        %v6554 = vpop.xlane.xlu0 %6553
        %6555 = vadd.xlane.f32.xlu0 %v6536
        %v6556 = vpop.xlane.xlu0 %6555
        %v6557 = vmul.f32 %v6538, %v6009
        %v6558 = vmul.f32 %v6540, %v6009
        %v6559 = vmul.f32 %v6542, %v6009
        %v6560 = vmul.f32 %v6544, %v6009
        %v6561 = vmul.f32 %v6546, %v6009
        %v6562 = vmul.f32 %v6548, %v6009
        %v6563 = vmul.f32 %v6550, %v6009
        %v6564 = vmul.f32 %v6552, %v6009
        %v6565 = vmul.f32 %v6554, %v6009
        %v6566 = vmul.f32 %v6556, %v6009
        %v6567 = vadd.f32 %v6557, 1e-05
        %v6568 = vadd.f32 %v6558, 1e-05
        %v6569 = vadd.f32 %v6559, 1e-05
        %v6570 = vadd.f32 %v6560, 1e-05
        %v6571 = vadd.f32 %v6561, 1e-05
        %v6572 = vadd.f32 %v6562, 1e-05
        %v6573 = vadd.f32 %v6563, 1e-05
        %v6574 = vadd.f32 %v6564, 1e-05
        %v6575 = vadd.f32 %v6565, 1e-05
        %v6576 = vadd.f32 %v6566, 1e-05
        %v6577 = vrsqrt.pop %v6567
        %v6578 = vrsqrt.pop %v6568
        %v6579 = vrsqrt.pop %v6569
        %v6580 = vrsqrt.pop %v6570
        %v6581 = vrsqrt.pop %v6571
        %v6582 = vrsqrt.pop %v6572
        %v6583 = vrsqrt.pop %v6573
        %v6584 = vrsqrt.pop %v6574
        %v6585 = vrsqrt.pop %v6575
        %v6586 = vrsqrt.pop %v6576
        %v6587 = vmul.f32 %v6517, %v6577
        %v6588 = vmul.f32 %v6518, %v6578
        %v6589 = vmul.f32 %v6519, %v6579
        %v6590 = vmul.f32 %v6520, %v6580
        %v6591 = vmul.f32 %v6521, %v6581
        %v6592 = vmul.f32 %v6522, %v6582
        %v6593 = vmul.f32 %v6523, %v6583
        %v6594 = vmul.f32 %v6524, %v6584
        %v6595 = vmul.f32 %v6525, %v6585
        %v6596 = vmul.f32 %v6526, %v6586
        %v6598 = vlaneseq
        %v6599 = vshrl.u32 %v6598, 7
        %v6600 = vsub.s32 0, %v6599
        %v6601 = vrot.slane %v6485, %v6600
        %v6603 = vmul.f32 %v6587, %v6601
        %v6604 = vmul.f32 %v6588, %v6601
        %v6605 = vmul.f32 %v6589, %v6601
        %v6606 = vmul.f32 %v6590, %v6601
        %v6607 = vmul.f32 %v6591, %v6601
        %v6608 = vmul.f32 %v6592, %v6601
        %v6609 = vmul.f32 %v6593, %v6601
        %v6610 = vmul.f32 %v6594, %v6601
        %v6611 = vmul.f32 %v6595, %v6601
        %v6612 = vmul.f32 %v6596, %v6601
        %v6614 = vlaneseq
        %v6615 = vshrl.u32 %v6614, 7
        %v6616 = vsub.s32 0, %v6615
        %v6617 = vrot.slane %v6486, %v6616
        %v6619 = vadd.f32 %v6603, %v6617
        %v6620 = vadd.f32 %v6604, %v6617
        %v6621 = vadd.f32 %v6605, %v6617
        %v6622 = vadd.f32 %v6606, %v6617
        %v6623 = vadd.f32 %v6607, %v6617
        %v6624 = vadd.f32 %v6608, %v6617
        %v6625 = vadd.f32 %v6609, %v6617
        %v6626 = vadd.f32 %v6610, %v6617
        %v6627 = vadd.f32 %v6611, %v6617
        %v6628 = vadd.f32 %v6612, %v6617
        %6629 = vst [vmem:[#allocation2] sm:$0xff] %v6619
        %6630 = vst [vmem:[#allocation2 + $0x8] sm:$0xff] %v6620
        %6631 = vst [vmem:[#allocation2 + $0x10] sm:$0xff] %v6621
        %6632 = vst [vmem:[#allocation2 + $0x18] sm:$0xff] %v6622
        %6633 = vst [vmem:[#allocation2 + $0x20] sm:$0xff] %v6623
        %6634 = vst [vmem:[#allocation2 + $0x28] sm:$0xff] %v6624
        %6635 = vst [vmem:[#allocation2 + $0x30] sm:$0xff] %v6625
        %6636 = vst [vmem:[#allocation2 + $0x38] sm:$0xff] %v6626
        %6637 = vst [vmem:[#allocation2 + $0x40] sm:$0xff] %v6627
        %6638 = vst [vmem:[#allocation2 + $0x48] sm:$0xff] %v6628
        %p6639 = scmp.eq.s32.totalorder %s41, 1
        // Predicated region
        $region121: #{tpu_custom_call.1} parent=115 // pred_check
          %p6640 = pneg %p6639
        $region122: #{tpu_custom_call.1} parent=115 // pred_check_branch
          %6642 = sbr.rel (%p6640) target = $region124
        $region123: #{tpu_custom_call.1} parent=115 // pred_region
          %v6644 = vrot.slane %v6624, 7
          %vm6646 = vcmask 1040384
          %v6647 = vsel %vm6646, %v6619, %v6644
          %v6648 = vld [vmem:[%s20] sm:$0x1]
          %v6649 = vld [vmem:[%s21] sm:$0x1]
          %vm6650 = vcmask 1041408
          %v6651 = vsel %vm6650, %v6647, 0.0
          %6652 = vadd.xlane.f32.xlu0 %v6651
          %v6653 = vpop.xlane.xlu0 %6652
          %v6654 = vmul.f32 %v6653, %v6009
          %v6655 = vsub.f32 %v6647, %v6654
          %v6656 = vmul.f32 %v6655, %v6655
          %v6657 = vsel %vm6650, %v6656, 0.0
          %6658 = vadd.xlane.f32.xlu0 %v6657
          %v6659 = vpop.xlane.xlu0 %6658
          %v6660 = vmul.f32 %v6659, %v6009
          %v6661 = vadd.f32 %v6660, 1e-05
          %v6662 = vrsqrt.pop %v6661
          %v6663 = vmul.f32 %v6655, %v6662
          %v6665 = vlaneseq
          %v6666 = vshrl.u32 %v6665, 7
          %v6667 = vsub.s32 0, %v6666
          %v6668 = vrot.slane %v6648, %v6667
          %v6670 = vmul.f32 %v6663, %v6668
          %v6672 = vlaneseq
          %v6673 = vshrl.u32 %v6672, 7
          %v6674 = vsub.s32 0, %v6673
          %v6675 = vrot.slane %v6649, %v6674
          %v6677 = vadd.f32 %v6670, %v6675
          %v6678 = vld [vmem:[%s22] sm:$0xff]
          %v6679 = vld [vmem:[%s22 + $0x8] sm:$0xff]
          %v6680 = vld [vmem:[%s22 + $0x10] sm:$0xff]
          %v6681 = vld [vmem:[%s22 + $0x18] sm:$0xff]
          %v6682 = vld [vmem:[%s22 + $0x20] sm:$0xff]
          %v6683 = vld [vmem:[%s22 + $0x28] sm:$0xff]
          %v6684 = vld [vmem:[%s22 + $0x30] sm:$0xff]
          %v6685 = vld [vmem:[%s22 + $0x38] sm:$0xff]
          %v6686 = vld [vmem:[%s22 + $0x40] sm:$0xff]
          %v6687 = vld [vmem:[%s22 + $0x48] sm:$0xff]
          %v6688 = vld [vmem:[%s22 + $0x50] sm:$0xff]
          %v6689 = vld [vmem:[%s22 + $0x58] sm:$0xff]
          %v6690 = vld [vmem:[%s22 + $0x60] sm:$0xff]
          %v6691 = vld [vmem:[%s22 + $0x68] sm:$0xff]
          %v6692 = vld [vmem:[%s22 + $0x70] sm:$0xff]
          %v6693 = vld [vmem:[%s22 + $0x78] sm:$0xff]
          %v6694 = vld [vmem:[%s23] sm:$0x1]
          %v6696 = vlaneseq
          %v6697 = vshrl.u32 %v6696, 7
          %v6698 = vsub.s32 0, %v6697
          %v6699 = vrot.slane %v6694, %v6698
          %6701 = vmatprep.subr.mxu0 0.0
          %6702 = vmatpush1.msra.mxu0 %v6678
          %6703 = vmatprep.subr.mxu0 0.0
          %6704 = vmatpush1.msra.mxu0 %v6679
          %6705 = vmatprep.subr.mxu0 0.0
          %6706 = vmatpush1.msra.mxu0 %v6680
          %6707 = vmatprep.subr.mxu0 0.0
          %6708 = vmatpush1.msra.mxu0 %v6681
          %6709 = vmatprep.subr.mxu0 0.0
          %6710 = vmatpush1.msra.mxu0 %v6682
          %6711 = vmatprep.subr.mxu0 0.0
          %6712 = vmatpush1.msra.mxu0 %v6683
          %6713 = vmatprep.subr.mxu0 0.0
          %6714 = vmatpush1.msra.mxu0 %v6684
          %6715 = vmatprep.subr.mxu0 0.0
          %6716 = vmatpush1.msra.mxu0 %v6685
          %6717 = vmatprep.subr.mxu0 0.0
          %6718 = vmatpush1.msra.mxu0 %v6686
          %6719 = vmatprep.subr.mxu0 0.0
          %6720 = vmatpush1.msra.mxu0 %v6687
          %6721 = vmatprep.subr.mxu0 0.0
          %6722 = vmatpush1.msra.mxu0 %v6688
          %6723 = vmatprep.subr.mxu0 0.0
          %6724 = vmatpush1.msra.mxu0 %v6689
          %6725 = vmatprep.subr.mxu0 0.0
          %6726 = vmatpush1.msra.mxu0 %v6690
          %6727 = vmatprep.subr.mxu0 0.0
          %6728 = vmatpush1.msra.mxu0 %v6691
          %6729 = vmatprep.subr.mxu0 0.0
          %6730 = vmatpush1.msra.mxu0 %v6692
          %6731 = vmatprep.subr.mxu0 0.0
          %6732 = vmatpush1.msra.mxu0 %v6693
          %6733 = vmatprep.subr.mxu0 0.0
          %6734 = vmatpush1.msra.mxu0 0.0
          %6735 = vmatprep.subr.mxu0 0.0
          %6736 = vmatpush1.msra.mxu0 0.0
          %6737 = vmatprep.subr.mxu0 0.0
          %6738 = vmatpush1.msra.mxu0 0.0
          %6739 = vmatprep.subr.mxu0 0.0
          %6740 = vmatpush1.msra.mxu0 0.0
          %6741 = vmatprep.subr.mxu0 0.0
          %6742 = vmatpush1.msra.mxu0 0.0
          %6743 = vmatprep.subr.mxu0 0.0
          %6744 = vmatpush1.msra.mxu0 0.0
          %6745 = vmatprep.subr.mxu0 0.0
          %6746 = vmatpush1.msra.mxu0 0.0
          %6747 = vmatprep.subr.mxu0 0.0
          %6748 = vmatpush1.msra.mxu0 0.0
          %6749 = vmatprep.subr.mxu0 0.0
          %6750 = vmatpush1.msra.mxu0 0.0
          %6751 = vmatprep.subr.mxu0 0.0
          %6752 = vmatpush1.msra.mxu0 0.0
          %6753 = vmatprep.subr.mxu0 0.0
          %6754 = vmatpush1.msra.mxu0 0.0
          %6755 = vmatprep.subr.mxu0 0.0
          %6756 = vmatpush1.msra.mxu0 0.0
          %6757 = vmatprep.subr.mxu0 0.0
          %6758 = vmatpush1.msra.mxu0 0.0
          %6759 = vmatprep.subr.mxu0 0.0
          %6760 = vmatpush1.msra.mxu0 0.0
          %6761 = vmatprep.subr.mxu0 0.0
          %6762 = vmatpush1.msra.mxu0 0.0
          %6763 = vmatprep.subr.mxu0 0.0
          %6764 = vmatpush1.msra.mxu0 0.0
          %6765 = vmatprep.mubr.f32.mxu0 0.0
          %6766 = vmatmul.mubr.f32.gmra.mrb[0].mxu0 %v6677
          %v6767 = vpop.f32.mrb[0].mxu0
          %v6768 = vadd.f32 %v6699, %v6767
          %v6769 = vpop.f32.mrb[0].mxu0
          %6770 = vdwg.mxu0
          %6771 = vst [vmem:[#allocation3] sm:$0x3] %v6768
        $region124: #{tpu_custom_call.1} parent=115 // pred_fallthru
          _
        // Predicated region
        $region125: #{tpu_custom_call.1} parent=115 // pred_check
          %p6772 = pneg %p655
        $region126: #{tpu_custom_call.1} parent=115 // pred_check_branch
          %6774 = sbr.rel (%p6772) target = $region128
        $region127: #{tpu_custom_call.1} parent=115 // pred_region
          %s6776 = ssub.s32 32, 32
          %6777 = vsyncadd [#allocation4], %s6776
          %s6778 = smul.addr %s40, 32
          %s6779 = scalar_lea.hbm %s24, %s6778
          %s6781 = sshll.u32 [#allocation3], 4
          %s6782 = int_to_ptr.vmem [resolvable:$true] %s6781
          %6784 = dma.vmem_to_hbm [thread:$0]  %s6782, 32, %s6779, [#allocation4]
        $region128: #{tpu_custom_call.1} parent=115 // pred_fallthru
          _
        // Predicated region
        $region129: #{tpu_custom_call.1} parent=115 // pred_check
          %p6785 = pneg %p655
        $region130: #{tpu_custom_call.1} parent=115 // pred_check_branch
          %6787 = sbr.rel (%p6785) target = $region132
        $region131: #{tpu_custom_call.1} parent=115 // pred_region
          %6788 = dma.done [#allocation4], 32
        $region132: #{tpu_custom_call.1} parent=115 // pred_fallthru
          _
      $region116: #{tpu_custom_call.1} parent=5 // pred_fallthru
        _
      %p6789 = scmp.le.s32.totalorder 2, %s31
      // Predicated region
      $region133: #{tpu_custom_call.1} parent=5 // pred_check
        %p6790 = pneg %p6789
      $region134: #{tpu_custom_call.1} parent=5 // pred_check_branch
        %6792 = sbr.rel (%p6790) target = $region136
      $region135: #{tpu_custom_call.1} parent=5 // pred_region
        %s6793 = ssub.s32 %s31, 2
      $region136: #{tpu_custom_call.1} parent=5 // pred_fallthru
        _
    $region6: #{tpu_custom_call.1} parent=1 // loop_footer
      %s35 = sadd.s32 1, %s31
    $region7: #{tpu_custom_call.1} parent=1 // loop_footer_branch
      %30 = sbr.rel target = $region3
    $region8: #{tpu_custom_call.1} parent=1 // loop_exit
      _
    %6794 = vsyncpa [#allocation4], 1
    %s6795 = scalar_lea.sflag [#allocation4], 1
    %6796 = vsyncpa %s6795, 1

</llo_original>
